<compile_context>
chip_gen: v7x
topology: tpu7x:2x2x1
jax: 0.10.0
libtpu: 0.0.40
codegen_flags: <defaults>
</compile_context>

<pallas_src>
import functools
import math
from dataclasses import dataclass

import numpy as np
import jax
import jax.numpy as jnp
from jax import lax
from jax.experimental import pallas as pl
from jax.experimental.pallas import tpu as pltpu


# ----------------------------------------------------------------------------
# Config (matches the fields used by the PyTorch module)
# ----------------------------------------------------------------------------
@dataclass(frozen=True)
class Config:
    n_embd: int = 32
    latent_dim: int = 32
    n_head: int = 4
    rope_dim: int = 4          # rotary dims (<= head_dim, even)
    mlp_hidden_dim: int = 64
    n_layer_decoder: int = 2
    is_causal: bool = False


_SQRT_HALF = 0.7071067811865476
# Matmul operand dtype.  Flip to jnp.bfloat16 on v6e/v7x once C/T grow; f32
# accumulation is kept via preferred_element_type either way.
_MM_DTYPE = jnp.float32


# ----------------------------------------------------------------------------
# In-kernel math helpers
# ----------------------------------------------------------------------------
def _recip(x):
    # EUP approximate reciprocal + one Newton-Raphson step (rel err ~1e-7),
    # per the correctness review (approx alone is ~1e-3..1e-4).
    r = pl.reciprocal(x, approx=True)
    return r * (2.0 - x * r)


def _erf_approx(x):
    # PyTorch nn.GELU() uses exact erf; Mosaic has no native erf, so use
    # Abramowitz & Stegun 7.1.26 (|err| <= 1.5e-7).
    a1, a2, a3, a4, a5 = (0.254829592, -0.284496736, 1.421413741,
                          -1.453152027, 1.061405429)
    p = 0.3275911
    sign = jnp.where(x >= 0.0, 1.0, -1.0)
    ax = jnp.abs(x)
    t = _recip(1.0 + p * ax)
    poly = ((((a5 * t + a4) * t + a3) * t + a2) * t + a1) * t
    return sign * (1.0 - poly * jnp.exp(-ax * ax))


def _gelu(x):
    # erf-based GELU (PyTorch nn.GELU() default, approximate='none')
    return 0.5 * x * (1.0 + _erf_approx(x * _SQRT_HALF))


def _layernorm(v, w, eps=1e-5):
    # F.layer_norm over last dim, weight only (module's LayerNorm has bias=False)
    mu = jnp.mean(v, axis=-1, keepdims=True)
    var = jnp.mean((v - mu) ** 2, axis=-1, keepdims=True)
    return (v - mu) * lax.rsqrt(var + eps) * w


def _mm(a, b):
    return jnp.dot(a.astype(_MM_DTYPE), b.astype(_MM_DTYPE),
                   preferred_element_type=jnp.float32)


def _upsample_bn_gelu(xflat, wcat, bcat, gamma, beta):
    """ConvTranspose2d(k=2,s=2) + BatchNorm2d (training-mode batch stats) + GELU.

    xflat : (N, Cin)       one row per input pixel
    wcat  : (Cin, 4*Cout)  column block p = di*2+dj holds weight[:, :, di, dj]
    bcat  : (1, 4*Cout)    conv bias tiled over the 4 phases
    Returns (N, 4*Cout) lane-dense, phase-major.  NOTE: BN statistics are over
    the whole tensor only because this runs ungridded on all N rows at once.
    """
    n = xflat.shape[0]
    cout = gamma.shape[-1]
    y = _mm(xflat, wcat) + bcat
    inv_n = 1.0 / (4.0 * n)

    csum = jnp.sum(y, axis=0, keepdims=True)                       # (1, 4*Cout)
    csum = (csum[:, 0:cout] + csum[:, cout:2 * cout]
            + csum[:, 2 * cout:3 * cout] + csum[:, 3 * cout:4 * cout])
    mean = csum * inv_n                                            # (1, Cout)
    mean_t = jnp.concatenate([mean] * 4, axis=1)

    d = y - mean_t
    ssum = jnp.sum(d * d, axis=0, keepdims=True)
    ssum = (ssum[:, 0:cout] + ssum[:, cout:2 * cout]
            + ssum[:, 2 * cout:3 * cout] + ssum[:, 3 * cout:4 * cout])
    var = ssum * inv_n                                             # biased var

    scale = gamma * lax.rsqrt(var + 1e-5)
    shift = beta - mean * scale
    scale_t = jnp.concatenate([scale] * 4, axis=1)
    shift_t = jnp.concatenate([shift] * 4, axis=1)
    return _gelu(y * scale_t + shift_t)


# ----------------------------------------------------------------------------
# The fused decoder kernel: in_proj + all blocks + first upsample stage
# ----------------------------------------------------------------------------
def _fused_decoder_kernel(*refs, n_layer, n_head, n_embd, latent_dim,
                          mlp_hidden, in_ch, qk_w, batch, seq_len,
                          fuse_upsample, out_channels):
    o_ref = refs[-1]
    xt_ref, inproj_ref, lnw_ref, wslab_ref, rope_ref, attm_ref = refs[:6]
    if fuse_upsample:
        upslab_ref = refs[6]

    C, L, M, T, B = n_embd, latent_dim, mlp_hidden, seq_len, batch
    nh = n_head
    BT = B * T
    wrows = max(C, L, M)

    # --- 1x1 conv in_proj as one matmul + bias (pixels are rows) -----------
    x = (_mm(xt_ref[...], inproj_ref[0:in_ch, :])
         + inproj_ref[in_ch:in_ch + 1, :])                          # (BT, C)

    # --- constants, loaded ONCE and reused by every layer -------------------
    cos = rope_ref[0:BT, :]
    sinl = rope_ref[BT:2 * BT, :]
    sinr = rope_ref[2 * BT:3 * BT, :]
    amask = attm_ref[:, 0:BT]            # (nh*BT, BT) additive cross-batch/causal
    rowm = attm_ref[:, BT:BT + L]        # (nh*BT, L)  per-head column mask

    for layer in range(n_layer):
        r0 = layer * wrows
        ln1w = lnw_ref[2 * layer:2 * layer + 1, :]
        ln2w = lnw_ref[2 * layer + 1:2 * layer + 2, :]
        wqkv = wslab_ref[r0:r0 + C, 0:qk_w]                   # (C, qk_w)
        wo = wslab_ref[r0:r0 + L, qk_w:qk_w + C]              # (L, C)
        wfc = wslab_ref[r0:r0 + C, qk_w + C:qk_w + C + M]     # (C, M)
        wpj = wslab_ref[r0:r0 + M, qk_w + C + M:qk_w + C + M + C]   # (M, C)

        # ---- attention branch (all batches & heads, ONE matmul pair) -------
        h = _layernorm(x, ln1w)
        qkv = _mm(h, wqkv)                                     # (BT, qk_w) f32
        # Interleaved-pair RoPE:  out = x*cos + pair_swap(x)*(+/-sin), built
        # from two XLU lane rotations; cos=1 / sin=0 on non-rotated / v / pad
        # lanes makes them pass through untouched.
        qkv = (qkv * cos
               + pltpu.roll(qkv, qk_w - 1, 1) * sinl           # <- lane i+1
               + pltpu.roll(qkv, 1, 1) * sinr)                 # <- lane i-1
        q = qkv[:, 0:L]          # 1/sqrt(head_dim) already folded into wqkv
        k = qkv[:, L:2 * L]
        v = qkv[:, 2 * L:3 * L]

        # Head-stacked, head-masked Q: row h*BT + r holds q[r] restricted to
        # head h's columns, so one (nh*BT, L)@(L, BT) matmul yields every
        # head's and every batch's scores with a lane-dense N of BT.
        qs = jnp.concatenate([q] * nh, axis=0) * rowm          # (nh*BT, L)
        s = lax.dot_general(qs.astype(_MM_DTYPE), k.astype(_MM_DTYPE),
                            (((1,), (1,)), ((), ())),
                            preferred_element_type=jnp.float32)  # (nh*BT, BT)
        s = s + amask                                          # batch + causal
        s = s - jnp.max(s, axis=-1, keepdims=True)
        p = jnp.exp(s)
        p = p * _recip(jnp.sum(p, axis=-1, keepdims=True))
        # One P@V for everything; rowm keeps each head's own output columns,
        # then the nh row blocks fold back into (BT, L) by addition.
        ym = _mm(p, v) * rowm                                  # (nh*BT, L)
        att = ym[0:BT]
        for hh in range(1, nh):
            att = att + ym[hh * BT:(hh + 1) * BT]
        x = x + _mm(att, wo)

        # ---- MLP branch -----------------------------------------------------
        h2 = _layernorm(x, ln2w)
        x = x + _mm(_gelu(_mm(h2, wfc)), wpj)

    if fuse_upsample:
        co = out_channels
        wcat = upslab_ref[0:C, :]
        bcat = upslab_ref[C:C + 1, :]
        gamma = upslab_ref[C + 1:C + 2, 0:co]
        beta = upslab_ref[C + 2:C + 3, 0:co]
        o_ref[...] = _upsample_bn_gelu(x, wcat, bcat, gamma, beta)
    else:
        # TODO(synk): pad this sub-128-lane store to 128 lanes if the
        #             upscale_factor==1 path ever matters (v5e vst.msk).
        o_ref[...] = x


# Standalone stage kernel, only used when upscale_factor > 2 (extra stages).
def _upsample_stage_kernel(x_ref, upslab_ref, o_ref, *, cin, cout):
    wcat = upslab_ref[0:cin, :]
    bcat = upslab_ref[cin:cin + 1, :]
    gamma = upslab_ref[cin + 1:cin + 2, 0:cout]
    beta = upslab_ref[cin + 2:cin + 3, 0:cout]
    o_ref[...] = _upsample_bn_gelu(x_ref[...], wcat, bcat, gamma, beta)


# ----------------------------------------------------------------------------
# Host-side constant tables / operand packing
# ----------------------------------------------------------------------------
def _rope_tables(T, B, head_dim, rope_dim, n_head, latent_dim, width):
    # Sign-folded interleaved-pair RoPE tables (rotary_embedding_torch
    # convention), stacked [cos; sinl; sinr] -> (3*B*T, width), one operand.
    inv_freq = 1.0 / (10000.0 ** (np.arange(0, rope_dim, 2, dtype=np.float32)
                                  / rope_dim))
    pos = np.arange(T, dtype=np.float32)
    ang = np.repeat(pos[:, None] * inv_freq[None, :], 2, axis=-1)  # interleaved
    cos_h = np.ones((T, head_dim), np.float32)
    sin_h = np.zeros((T, head_dim), np.float32)
    cos_h[:, :rope_dim] = np.cos(ang)
    sin_h[:, :rope_dim] = np.sin(ang)
    cos_l = np.tile(cos_h, (1, n_head))                            # (T, L)
    sin_l = np.tile(sin_h, (1, n_head))
    sinl_l = np.zeros_like(sin_l)
    sinr_l = np.zeros_like(sin_l)
    sinl_l[:, 0::2] = -sin_l[:, 0::2]
    sinr_l[:, 1::2] = sin_l[:, 1::2]
    cos_w = np.ones((T, width), np.float32)      # identity on v / pad lanes
    sinl_w = np.zeros((T, width), np.float32)
    sinr_w = np.zeros((T, width), np.float32)
    cos_w[:, :latent_dim] = cos_l
    cos_w[:, latent_dim:2 * latent_dim] = cos_l
    sinl_w[:, :latent_dim] = sinl_l
    sinl_w[:, latent_dim:2 * latent_dim] = sinl_l
    sinr_w[:, :latent_dim] = sinr_l
    sinr_w[:, latent_dim:2 * latent_dim] = sinr_l
    stack = np.concatenate([np.tile(cos_w, (B, 1)),
                            np.tile(sinl_w, (B, 1)),
                            np.tile(sinr_w, (B, 1))], axis=0)
    return jnp.asarray(stack)


def _attention_mask_slab(B, T, n_head, head_dim, latent_dim, is_causal):
    # [amask | rowm]: amask (nh*BT, BT) additive cross-batch (+causal) mask,
    # rowm (nh*BT, L) head-column mask.  One operand, amask lane-tile aligned.
    BT = B * T
    qb = np.arange(BT)[:, None] // T
    kb = np.arange(BT)[None, :] // T
    allowed = qb == kb
    if is_causal:
        allowed = allowed & ((np.arange(BT)[None, :] % T)
                             <= (np.arange(BT)[:, None] % T))
    amask = np.where(allowed, 0.0, -1e30).astype(np.float32)
    amask = np.tile(amask, (n_head, 1))                            # (nh*BT, BT)
    rowm = np.zeros((n_head * BT, latent_dim), np.float32)
    col_head = np.arange(latent_dim) // head_dim
    for h in range(n_head):
        rowm[h * BT:(h + 1) * BT, col_head == h] = 1.0
    return jnp.asarray(np.concatenate([amask, rowm], axis=1))      # (nh*BT, BT+L)


def _pack_layer_weights(blocks, C, L, M, qk_w, hd):
    # One slab for ALL layers: per layer, rows 0:max(C,L,M), columns
    # [wqkv(pad to qk_w) | wo | wfc | wpj].  1/sqrt(hd) folded into q columns.
    wrows = max(C, L, M)
    wcols = qk_w + C + M + C
    inv = 1.0 / math.sqrt(hd)
    slabs = []
    for bp in blocks:
        slab = jnp.zeros((wrows, wcols), jnp.float32)
        wqkv = bp["wqkv"].at[:, 0:L].multiply(inv)
        slab = slab.at[0:C, 0:wqkv.shape[1]].set(wqkv)
        slab = slab.at[0:L, qk_w:qk_w + C].set(bp["wo"])
        slab = slab.at[0:C, qk_w + C:qk_w + C + M].set(bp["wfc"])
        slab = slab.at[0:M, qk_w + C + M:qk_w + C + M + C].set(bp["wp2"])
        slabs.append(slab)
    return jnp.concatenate(slabs, axis=0)            # (n_layer*wrows, wcols)


def _pack_upsample(u, cin, cout):
    # [wcat ; bcat ; gamma ; beta] in one (cin+3, 4*cout) slab.
    slab = jnp.zeros((cin + 3, 4 * cout), jnp.float32)
    slab = slab.at[0:cin, :].set(u["wcat"])
    slab = slab.at[cin:cin + 1, :].set(u["bcat"])
    slab = slab.at[cin + 1:cin + 2, 0:cout].set(u["gamma"])
    slab = slab.at[cin + 2:cin + 3, 0:cout].set(u["beta"])
    return slab


def _phases_to_nchw(y, B, H, W, cout, n_stages):
    # y rows encode (b, i, j, p0, ..., p_{n-2}); columns encode (p_{n-1}, c).
    # One combined de-interleave + NCHW transpose at the very end.
    y = y.reshape((B, H, W) + (2, 2) * n_stages + (cout,))
    di_axes = [3 + 2 * s for s in range(n_stages)]
    dj_axes = [4 + 2 * s for s in range(n_stages)]
    c_axis = 3 + 2 * n_stages
    perm = [0, c_axis, 1] + di_axes + [2] + dj_axes
    y = jnp.transpose(y, perm)
    return y.reshape(B, cout, H * 2 ** n_stages, W * 2 ** n_stages)


# ----------------------------------------------------------------------------
# Parameter init (deterministic, synthetic)
# ----------------------------------------------------------------------------
def init_params(key, cfg, in_ch, out_channels, upscale_factor):
    C, L, M = cfg.n_embd, cfg.latent_dim, cfg.mlp_hidden_dim
    keys = iter(jax.random.split(key, 128))

    def rnd(shape, scale=0.02):
        return scale * jax.random.normal(next(keys), shape, jnp.float32)

    params = {
        "in_proj_w": rnd((in_ch, C)),      # 1x1 conv weight (Cin, Cout)
        "in_proj_b": rnd((1, C)),
        "blocks": [],
        "up": [],
    }
    for _ in range(cfg.n_layer_decoder):
        params["blocks"].append({
            "ln1_w": jnp.ones((1, C), jnp.float32),
            "wqkv": rnd((C, 3 * L)),
            "wo": rnd((L, C)),
            "ln2_w": jnp.ones((1, C), jnp.float32),
            "wfc": rnd((C, M)),
            "wp2": rnd((M, C)),
        })
    cur, f = C, upscale_factor
    while f > 1:
        b0 = rnd((1, out_channels))
        params["up"].append({
            # (Cin, 4*Cout), column block p=di*2+dj == ConvT weight[:,:,di,dj]
            "wcat": rnd((cur, 4 * out_channels)),
            "bcat": jnp.tile(b0, (1, 4)),          # same conv bias per phase
            "gamma": jnp.ones((1, out_channels), jnp.float32),
            "beta": jnp.zeros((1, out_channels), jnp.float32),
        })
        cur = out_channels
        f //= 2
    return params


# ----------------------------------------------------------------------------
# Full VitDecoder forward
# ----------------------------------------------------------------------------
def vit_decoder_forward(x_nchw, params, cfg, upscale_factor):
    B, in_ch, H, W = x_nchw.shape
    C, L, M, nh = cfg.n_embd, cfg.latent_dim, cfg.mlp_hidden_dim, cfg.n_head
    hd = L // nh
    T = H * W
    BT = B * T
    qk_w = ((3 * L + 127) // 128) * 128     # lane-dense qkv width (zero pad)

    # NCHW -> (B*H*W, Cin): rows are pixels (tiny, done once); everything else
    # stays inside the fused kernel until the final (required) NCHW reshape.
    xt = jnp.transpose(x_nchw, (0, 2, 3, 1)).reshape(BT, in_ch)

    # --- pack ~23 tiny operands into 7 lane-dense slabs ---------------------
    inproj = jnp.concatenate([params["in_proj_w"], params["in_proj_b"]], axis=0)
    lnw = jnp.concatenate(
        [jnp.concatenate([bp["ln1_w"], bp["ln2_w"]], axis=0)
         for bp in params["blocks"]], axis=0)                    # (2*n_layer, C)
    wslab = _pack_layer_weights(params["blocks"], C, L, M, qk_w, hd)
    rope = _rope_tables(T, B, hd, cfg.rope_dim, nh, L, qk_w)
    attm = _attention_mask_slab(B, T, nh, hd, L, cfg.is_causal)

    n_up = len(params["up"])
    fuse_up = n_up >= 1
    out_channels = params["up"][0]["gamma"].shape[-1] if fuse_up else C
    ops = [xt, inproj, lnw, wslab, rope, attm]
    if fuse_up:
        ops.append(_pack_upsample(params["up"][0], C, out_channels))
        out_shape = jax.ShapeDtypeStruct((BT, 4 * out_channels), jnp.float32)
    else:
        out_shape = jax.ShapeDtypeStruct((BT, C), jnp.float32)

    kernel = functools.partial(
        _fused_decoder_kernel,
        n_layer=len(params["blocks"]), n_head=nh, n_embd=C, latent_dim=L,
        mlp_hidden=M, in_ch=in_ch, qk_w=qk_w, batch=B, seq_len=T,
        fuse_upsample=fuse_up, out_channels=out_channels)

    # Single ungridded invocation: every operand + all activations fit in VMEM.
    # TODO(synk): for large B*T, grid over batch (("parallel",) -> 2 TCs on
    #             v7x) and KV-tile the attention; move the BN-batch-stats
    #             upsample to its own call to keep whole-tensor statistics.
    y = pl.pallas_call(
        kernel, out_shape=out_shape,
        compiler_params=pltpu.CompilerParams(
            vmem_limit_bytes=32 * 1024 * 1024),
    )(*ops)

    if not fuse_up:
        return jnp.transpose(y.reshape(B, H, W, C), (0, 3, 1, 2))

    cout = out_channels
    for si in range(1, n_up):       # only reached when upscale_factor > 2
        # Next stage is row-order invariant (per-pixel matmul + whole-tensor
        # BN stats), so phase blocks are simply unfolded into rows; no
        # transpose / spatial de-interleave until the very end.
        y = y.reshape(-1, cout)                     # (4*N_prev, cout_prev)
        cin = cout
        u = params["up"][si]
        cout = u["gamma"].shape[-1]
        upslab = _pack_upsample(u, cin, cout)
        y = pl.pallas_call(
            functools.partial(_upsample_stage_kernel, cin=cin, cout=cout),
            out_shape=jax.ShapeDtypeStruct((y.shape[0], 4 * cout), jnp.float32),
        )(y, upslab)

    # One transpose total: phase de-interleave fused with the required NCHW
    # output layout.
    return _phases_to_nchw(y, B, H, W, cout, n_up)


# ----------------------------------------------------------------------------
if __name__ == "__main__":
    cfg = Config()
    upscale_factor = 2
    level = 1
    B, H, W = 2, 8, 8
    in_ch = cfg.n_embd * (level + 1)
    out_channels = cfg.n_embd            # default out_channels = n_embd

    key = jax.random.PRNGKey(0)
    kx, kp = jax.random.split(key)
    x = jax.random.normal(kx, (B, in_ch, H, W), jnp.float32)
    params = init_params(kp, cfg, in_ch, out_channels, upscale_factor)

    fwd = jax.jit(lambda a, p: vit_decoder_forward(a, p, cfg, upscale_factor))
    out = jax.block_until_ready(fwd(x, params))

    assert out.shape == (B, out_channels, H * upscale_factor,
                         W * upscale_factor), out.shape
    assert bool(jnp.all(jnp.isfinite(out)))
    print("KERNEL_OK")
</pallas_src>

<mosaic_0001>
module attributes {stable_mosaic.version = 11 : i64} {
  func.func @_fused_decoder_kernel(%arg0: memref<128x64xf32, #tpu.memory_space<vmem>>, %arg1: memref<65x32xf32, #tpu.memory_space<vmem>>, %arg2: memref<4x32xf32, #tpu.memory_space<vmem>>, %arg3: memref<128x256xf32, #tpu.memory_space<vmem>>, %arg4: memref<384x128xf32, #tpu.memory_space<vmem>>, %arg5: memref<512x160xf32, #tpu.memory_space<vmem>>, %arg6: memref<35x128xf32, #tpu.memory_space<vmem>>, %arg7: memref<128x128xf32, #tpu.memory_space<vmem>>) attributes {dimension_semantics = [], scalar_prefetch = 0 : i64, scratch_operands = 0 : i64, tpu.core_type = #tpu.core_type<tc>} {
    %c0 = arith.constant 0 : index
    %c0_0 = arith.constant 0 : index
    %0 = vector.load %arg0[%c0, %c0_0] : memref<128x64xf32, #tpu.memory_space<vmem>>, vector<128x64xf32>
    %c0_1 = arith.constant 0 : index
    %c0_2 = arith.constant 0 : index
    %1 = vector.load %arg1[%c0_1, %c0_2] : memref<65x32xf32, #tpu.memory_space<vmem>>, vector<64x32xf32>
    %cst = arith.constant dense<0.000000e+00> : vector<128x32xf32>
    %2 = tpu.matmul %0, %1, %cst {dimension_numbers = #tpu.dot_dimension_numbers<[1], [0], [0], [1], [0, 0, 1, 1], [], []>} : vector<128x64xf32>, vector<64x32xf32>, vector<128x32xf32> -> vector<128x32xf32>
    %c64 = arith.constant 64 : index
    %c0_3 = arith.constant 0 : index
    %3 = vector.load %arg1[%c64, %c0_3] : memref<65x32xf32, #tpu.memory_space<vmem>>, vector<1x32xf32>
    %4 = vector.broadcast %3 : vector<1x32xf32> to vector<128x32xf32>
    %5 = arith.addf %2, %4 : vector<128x32xf32>
    %c0_4 = arith.constant 0 : index
    %c0_5 = arith.constant 0 : index
    %6 = vector.load %arg4[%c0_4, %c0_5] : memref<384x128xf32, #tpu.memory_space<vmem>>, vector<128x128xf32>
    %c128 = arith.constant 128 : index
    %c0_6 = arith.constant 0 : index
    %7 = vector.load %arg4[%c128, %c0_6] : memref<384x128xf32, #tpu.memory_space<vmem>>, vector<128x128xf32>
    %c256 = arith.constant 256 : index
    %c0_7 = arith.constant 0 : index
    %8 = vector.load %arg4[%c256, %c0_7] : memref<384x128xf32, #tpu.memory_space<vmem>>, vector<128x128xf32>
    %c0_8 = arith.constant 0 : index
    %c0_9 = arith.constant 0 : index
    %9 = vector.load %arg5[%c0_8, %c0_9] : memref<512x160xf32, #tpu.memory_space<vmem>>, vector<512x128xf32>
    %c0_10 = arith.constant 0 : index
    %c128_11 = arith.constant 128 : index
    %10 = vector.load %arg5[%c0_10, %c128_11] : memref<512x160xf32, #tpu.memory_space<vmem>>, vector<512x32xf32>
    %c0_12 = arith.constant 0 : index
    %c0_13 = arith.constant 0 : index
    %11 = vector.load %arg2[%c0_12, %c0_13] : memref<4x32xf32, #tpu.memory_space<vmem>>, vector<1x32xf32>
    %c1 = arith.constant 1 : index
    %c0_14 = arith.constant 0 : index
    %12 = vector.load %arg2[%c1, %c0_14] : memref<4x32xf32, #tpu.memory_space<vmem>>, vector<1x32xf32>
    %c0_15 = arith.constant 0 : index
    %c0_16 = arith.constant 0 : index
    %13 = vector.load %arg3[%c0_15, %c0_16] : memref<128x256xf32, #tpu.memory_space<vmem>>, vector<32x128xf32>
    %c0_17 = arith.constant 0 : index
    %c128_18 = arith.constant 128 : index
    %14 = vector.load %arg3[%c0_17, %c128_18] : memref<128x256xf32, #tpu.memory_space<vmem>>, vector<32x32xf32>
    %c0_19 = arith.constant 0 : index
    %c160 = arith.constant 160 : index
    %15 = vector.load %arg3[%c0_19, %c160] : memref<128x256xf32, #tpu.memory_space<vmem>>, vector<32x64xf32>
    %c0_20 = arith.constant 0 : index
    %c224 = arith.constant 224 : index
    %16 = vector.load %arg3[%c0_20, %c224] : memref<128x256xf32, #tpu.memory_space<vmem>>, vector<64x32xf32>
    %cst_21 = arith.constant dense<0.000000e+00> : vector<128xf32>
    %17 = vector.multi_reduction <add>, %5, %cst_21 [1] : vector<128x32xf32> to vector<128xf32>
    %18 = vector.shape_cast %17 : vector<128xf32> to vector<128x1xf32>
    %cst_22 = arith.constant 3.200000e+01 : f32
    %19 = vector.broadcast %cst_22 : f32 to vector<128x1xf32>
    %20 = arith.divf %18, %19 : vector<128x1xf32>
    %21 = vector.broadcast %20 : vector<128x1xf32> to vector<128x32xf32>
    %22 = arith.subf %5, %21 : vector<128x32xf32>
    %23 = arith.mulf %22, %22 : vector<128x32xf32>
    %cst_23 = arith.constant dense<0.000000e+00> : vector<128xf32>
    %24 = vector.multi_reduction <add>, %23, %cst_23 [1] : vector<128x32xf32> to vector<128xf32>
    %25 = vector.shape_cast %24 : vector<128xf32> to vector<128x1xf32>
    %cst_24 = arith.constant 3.200000e+01 : f32
    %26 = vector.broadcast %cst_24 : f32 to vector<128x1xf32>
    %27 = arith.divf %25, %26 : vector<128x1xf32>
    %28 = vector.broadcast %20 : vector<128x1xf32> to vector<128x32xf32>
    %29 = arith.subf %5, %28 : vector<128x32xf32>
    %cst_25 = arith.constant 9.99999974E-6 : f32
    %30 = vector.broadcast %cst_25 : f32 to vector<128x1xf32>
    %31 = arith.addf %27, %30 : vector<128x1xf32>
    %32 = math.rsqrt %31 : vector<128x1xf32>
    %33 = vector.broadcast %32 : vector<128x1xf32> to vector<128x32xf32>
    %34 = arith.mulf %29, %33 : vector<128x32xf32>
    %35 = vector.broadcast %11 : vector<1x32xf32> to vector<128x32xf32>
    %36 = arith.mulf %34, %35 : vector<128x32xf32>
    %cst_26 = arith.constant dense<0.000000e+00> : vector<128x128xf32>
    %37 = tpu.matmul %36, %13, %cst_26 {dimension_numbers = #tpu.dot_dimension_numbers<[1], [0], [0], [1], [0, 0, 1, 1], [], []>} : vector<128x32xf32>, vector<32x128xf32>, vector<128x128xf32> -> vector<128x128xf32>
    %38 = arith.mulf %37, %6 : vector<128x128xf32>
    %c127_i32 = arith.constant 127 : i32
    %39 = tpu.dynamic_rotate %37 by %c127_i32 dim 1 : vector<128x128xf32>, i32 -> vector<128x128xf32>
    %40 = arith.mulf %39, %7 : vector<128x128xf32>
    %41 = arith.addf %38, %40 : vector<128x128xf32>
    %c1_i32 = arith.constant 1 : i32
    %42 = tpu.dynamic_rotate %37 by %c1_i32 dim 1 : vector<128x128xf32>, i32 -> vector<128x128xf32>
    %43 = arith.mulf %42, %8 : vector<128x128xf32>
    %44 = arith.addf %41, %43 : vector<128x128xf32>
    %45 = vector.extract_strided_slice %44 {offsets = [0, 0], sizes = [128, 32], strides = [1, 1]} : vector<128x128xf32> to vector<128x32xf32>
    %46 = vector.extract_strided_slice %44 {offsets = [0, 32], sizes = [128, 32], strides = [1, 1]} : vector<128x128xf32> to vector<128x32xf32>
    %47 = vector.extract_strided_slice %44 {offsets = [0, 64], sizes = [128, 32], strides = [1, 1]} : vector<128x128xf32> to vector<128x32xf32>
    %48 = tpu.concatenate %45, %45, %45, %45 in 0 : vector<128x32xf32>, vector<128x32xf32>, vector<128x32xf32>, vector<128x32xf32> -> vector<512x32xf32>
    %49 = arith.mulf %48, %10 : vector<512x32xf32>
    %cst_27 = arith.constant dense<0.000000e+00> : vector<512x128xf32>
    %50 = tpu.matmul %49, %46, %cst_27 {dimension_numbers = #tpu.dot_dimension_numbers<[1], [1], [0], [0], [0, 0, 1, 0], [], []>} : vector<512x32xf32>, vector<128x32xf32>, vector<512x128xf32> -> vector<512x128xf32>
    %51 = arith.addf %50, %9 : vector<512x128xf32>
    %cst_28 = arith.constant dense<0xFF800000> : vector<512xf32>
    %52 = vector.multi_reduction <maximumf>, %51, %cst_28 [1] : vector<512x128xf32> to vector<512xf32>
    %53 = vector.shape_cast %52 : vector<512xf32> to vector<512x1xf32>
    %54 = vector.broadcast %53 : vector<512x1xf32> to vector<512x128xf32>
    %55 = arith.subf %51, %54 : vector<512x128xf32>
    %56 = math.exp %55 : vector<512x128xf32>
    %cst_29 = arith.constant dense<0.000000e+00> : vector<512xf32>
    %57 = vector.multi_reduction <add>, %56, %cst_29 [1] : vector<512x128xf32> to vector<512xf32>
    %58 = vector.shape_cast %57 : vector<512xf32> to vector<512x1xf32>
    %59 = tpu.reciprocal %58 {approx = true} : vector<512x1xf32> -> vector<512x1xf32>
    %60 = arith.mulf %58, %59 : vector<512x1xf32>
    %cst_30 = arith.constant 2.000000e+00 : f32
    %61 = vector.broadcast %cst_30 : f32 to vector<512x1xf32>
    %62 = arith.subf %61, %60 : vector<512x1xf32>
    %63 = arith.mulf %59, %62 : vector<512x1xf32>
    %64 = vector.broadcast %63 : vector<512x1xf32> to vector<512x128xf32>
    %65 = arith.mulf %56, %64 : vector<512x128xf32>
    %cst_31 = arith.constant dense<0.000000e+00> : vector<512x32xf32>
    %66 = tpu.matmul %65, %47, %cst_31 {dimension_numbers = #tpu.dot_dimension_numbers<[1], [0], [0], [1], [0, 0, 1, 1], [], []>} : vector<512x128xf32>, vector<128x32xf32>, vector<512x32xf32> -> vector<512x32xf32>
    %67 = arith.mulf %66, %10 : vector<512x32xf32>
    %68 = vector.extract_strided_slice %67 {offsets = [0, 0], sizes = [128, 32], strides = [1, 1]} : vector<512x32xf32> to vector<128x32xf32>
    %69 = vector.extract_strided_slice %67 {offsets = [128, 0], sizes = [128, 32], strides = [1, 1]} : vector<512x32xf32> to vector<128x32xf32>
    %70 = arith.addf %68, %69 : vector<128x32xf32>
    %71 = vector.extract_strided_slice %67 {offsets = [256, 0], sizes = [128, 32], strides = [1, 1]} : vector<512x32xf32> to vector<128x32xf32>
    %72 = arith.addf %70, %71 : vector<128x32xf32>
    %73 = vector.extract_strided_slice %67 {offsets = [384, 0], sizes = [128, 32], strides = [1, 1]} : vector<512x32xf32> to vector<128x32xf32>
    %74 = arith.addf %72, %73 : vector<128x32xf32>
    %cst_32 = arith.constant dense<0.000000e+00> : vector<128x32xf32>
    %75 = tpu.matmul %74, %14, %cst_32 {dimension_numbers = #tpu.dot_dimension_numbers<[1], [0], [0], [1], [0, 0, 1, 1], [], []>} : vector<128x32xf32>, vector<32x32xf32>, vector<128x32xf32> -> vector<128x32xf32>
    %76 = arith.addf %5, %75 : vector<128x32xf32>
    %cst_33 = arith.constant dense<0.000000e+00> : vector<128xf32>
    %77 = vector.multi_reduction <add>, %76, %cst_33 [1] : vector<128x32xf32> to vector<128xf32>
    %78 = vector.shape_cast %77 : vector<128xf32> to vector<128x1xf32>
    %cst_34 = arith.constant 3.200000e+01 : f32
    %79 = vector.broadcast %cst_34 : f32 to vector<128x1xf32>
    %80 = arith.divf %78, %79 : vector<128x1xf32>
    %81 = vector.broadcast %80 : vector<128x1xf32> to vector<128x32xf32>
    %82 = arith.subf %76, %81 : vector<128x32xf32>
    %83 = arith.mulf %82, %82 : vector<128x32xf32>
    %cst_35 = arith.constant dense<0.000000e+00> : vector<128xf32>
    %84 = vector.multi_reduction <add>, %83, %cst_35 [1] : vector<128x32xf32> to vector<128xf32>
    %85 = vector.shape_cast %84 : vector<128xf32> to vector<128x1xf32>
    %cst_36 = arith.constant 3.200000e+01 : f32
    %86 = vector.broadcast %cst_36 : f32 to vector<128x1xf32>
    %87 = arith.divf %85, %86 : vector<128x1xf32>
    %88 = vector.broadcast %80 : vector<128x1xf32> to vector<128x32xf32>
    %89 = arith.subf %76, %88 : vector<128x32xf32>
    %cst_37 = arith.constant 9.99999974E-6 : f32
    %90 = vector.broadcast %cst_37 : f32 to vector<128x1xf32>
    %91 = arith.addf %87, %90 : vector<128x1xf32>
    %92 = math.rsqrt %91 : vector<128x1xf32>
    %93 = vector.broadcast %92 : vector<128x1xf32> to vector<128x32xf32>
    %94 = arith.mulf %89, %93 : vector<128x32xf32>
    %95 = vector.broadcast %12 : vector<1x32xf32> to vector<128x32xf32>
    %96 = arith.mulf %94, %95 : vector<128x32xf32>
    %cst_38 = arith.constant dense<0.000000e+00> : vector<128x64xf32>
    %97 = tpu.matmul %96, %15, %cst_38 {dimension_numbers = #tpu.dot_dimension_numbers<[1], [0], [0], [1], [0, 0, 1, 1], [], []>} : vector<128x32xf32>, vector<32x64xf32>, vector<128x64xf32> -> vector<128x64xf32>
    %cst_39 = arith.constant 5.000000e-01 : f32
    %98 = vector.broadcast %cst_39 : f32 to vector<128x64xf32>
    %99 = arith.mulf %98, %97 : vector<128x64xf32>
    %cst_40 = arith.constant 0.707106769 : f32
    %100 = vector.broadcast %cst_40 : f32 to vector<128x64xf32>
    %101 = arith.mulf %97, %100 : vector<128x64xf32>
    %cst_41 = arith.constant 0.000000e+00 : f32
    %102 = vector.broadcast %cst_41 : f32 to vector<128x64xf32>
    %103 = arith.cmpf oge, %101, %102 : vector<128x64xf32>
    %cst_42 = arith.constant 1.000000e+00 : f32
    %cst_43 = arith.constant -1.000000e+00 : f32
    %104 = vector.broadcast %cst_42 : f32 to vector<128x64xf32>
    %105 = vector.broadcast %cst_43 : f32 to vector<128x64xf32>
    %106 = arith.select %103, %104, %105 : vector<128x64xi1>, vector<128x64xf32>
    %107 = math.absf %101 : vector<128x64xf32>
    %cst_44 = arith.constant 0.327591091 : f32
    %108 = vector.broadcast %cst_44 : f32 to vector<128x64xf32>
    %109 = arith.mulf %108, %107 : vector<128x64xf32>
    %cst_45 = arith.constant 1.000000e+00 : f32
    %110 = vector.broadcast %cst_45 : f32 to vector<128x64xf32>
    %111 = arith.addf %110, %109 : vector<128x64xf32>
    %112 = tpu.reciprocal %111 {approx = true} : vector<128x64xf32> -> vector<128x64xf32>
    %113 = arith.mulf %111, %112 : vector<128x64xf32>
    %cst_46 = arith.constant 2.000000e+00 : f32
    %114 = vector.broadcast %cst_46 : f32 to vector<128x64xf32>
    %115 = arith.subf %114, %113 : vector<128x64xf32>
    %116 = arith.mulf %112, %115 : vector<128x64xf32>
    %cst_47 = arith.constant 1.06140542 : f32
    %117 = vector.broadcast %cst_47 : f32 to vector<128x64xf32>
    %118 = arith.mulf %117, %116 : vector<128x64xf32>
    %cst_48 = arith.constant -1.45315206 : f32
    %119 = vector.broadcast %cst_48 : f32 to vector<128x64xf32>
    %120 = arith.addf %118, %119 : vector<128x64xf32>
    %121 = arith.mulf %120, %116 : vector<128x64xf32>
    %cst_49 = arith.constant 1.42141378 : f32
    %122 = vector.broadcast %cst_49 : f32 to vector<128x64xf32>
    %123 = arith.addf %121, %122 : vector<128x64xf32>
    %124 = arith.mulf %123, %116 : vector<128x64xf32>
    %cst_50 = arith.constant -0.284496725 : f32
    %125 = vector.broadcast %cst_50 : f32 to vector<128x64xf32>
    %126 = arith.addf %124, %125 : vector<128x64xf32>
    %127 = arith.mulf %126, %116 : vector<128x64xf32>
    %cst_51 = arith.constant 0.254829586 : f32
    %128 = vector.broadcast %cst_51 : f32 to vector<128x64xf32>
    %129 = arith.addf %127, %128 : vector<128x64xf32>
    %130 = arith.mulf %129, %116 : vector<128x64xf32>
    %cst_52 = arith.constant 0.000000e+00 : f32
    %131 = vector.broadcast %cst_52 : f32 to vector<128x64xf32>
    %132 = arith.subf %131, %107 : vector<128x64xf32>
    %133 = arith.mulf %132, %107 : vector<128x64xf32>
    %134 = math.exp %133 : vector<128x64xf32>
    %135 = arith.mulf %130, %134 : vector<128x64xf32>
    %cst_53 = arith.constant 1.000000e+00 : f32
    %136 = vector.broadcast %cst_53 : f32 to vector<128x64xf32>
    %137 = arith.subf %136, %135 : vector<128x64xf32>
    %138 = arith.mulf %106, %137 : vector<128x64xf32>
    %cst_54 = arith.constant 1.000000e+00 : f32
    %139 = vector.broadcast %cst_54 : f32 to vector<128x64xf32>
    %140 = arith.addf %139, %138 : vector<128x64xf32>
    %141 = arith.mulf %99, %140 : vector<128x64xf32>
    %cst_55 = arith.constant dense<0.000000e+00> : vector<128x32xf32>
    %142 = tpu.matmul %141, %16, %cst_55 {dimension_numbers = #tpu.dot_dimension_numbers<[1], [0], [0], [1], [0, 0, 1, 1], [], []>} : vector<128x64xf32>, vector<64x32xf32>, vector<128x32xf32> -> vector<128x32xf32>
    %143 = arith.addf %76, %142 : vector<128x32xf32>
    %c2 = arith.constant 2 : index
    %c0_56 = arith.constant 0 : index
    %144 = vector.load %arg2[%c2, %c0_56] : memref<4x32xf32, #tpu.memory_space<vmem>>, vector<1x32xf32>
    %c3 = arith.constant 3 : index
    %c0_57 = arith.constant 0 : index
    %145 = vector.load %arg2[%c3, %c0_57] : memref<4x32xf32, #tpu.memory_space<vmem>>, vector<1x32xf32>
    %c64_58 = arith.constant 64 : index
    %c0_59 = arith.constant 0 : index
    %146 = vector.load %arg3[%c64_58, %c0_59] : memref<128x256xf32, #tpu.memory_space<vmem>>, vector<32x128xf32>
    %c64_60 = arith.constant 64 : index
    %c128_61 = arith.constant 128 : index
    %147 = vector.load %arg3[%c64_60, %c128_61] : memref<128x256xf32, #tpu.memory_space<vmem>>, vector<32x32xf32>
    %c64_62 = arith.constant 64 : index
    %c160_63 = arith.constant 160 : index
    %148 = vector.load %arg3[%c64_62, %c160_63] : memref<128x256xf32, #tpu.memory_space<vmem>>, vector<32x64xf32>
    %c64_64 = arith.constant 64 : index
    %c224_65 = arith.constant 224 : index
    %149 = vector.load %arg3[%c64_64, %c224_65] : memref<128x256xf32, #tpu.memory_space<vmem>>, vector<64x32xf32>
    %cst_66 = arith.constant dense<0.000000e+00> : vector<128xf32>
    %150 = vector.multi_reduction <add>, %143, %cst_66 [1] : vector<128x32xf32> to vector<128xf32>
    %151 = vector.shape_cast %150 : vector<128xf32> to vector<128x1xf32>
    %cst_67 = arith.constant 3.200000e+01 : f32
    %152 = vector.broadcast %cst_67 : f32 to vector<128x1xf32>
    %153 = arith.divf %151, %152 : vector<128x1xf32>
    %154 = vector.broadcast %153 : vector<128x1xf32> to vector<128x32xf32>
    %155 = arith.subf %143, %154 : vector<128x32xf32>
    %156 = arith.mulf %155, %155 : vector<128x32xf32>
    %cst_68 = arith.constant dense<0.000000e+00> : vector<128xf32>
    %157 = vector.multi_reduction <add>, %156, %cst_68 [1] : vector<128x32xf32> to vector<128xf32>
    %158 = vector.shape_cast %157 : vector<128xf32> to vector<128x1xf32>
    %cst_69 = arith.constant 3.200000e+01 : f32
    %159 = vector.broadcast %cst_69 : f32 to vector<128x1xf32>
    %160 = arith.divf %158, %159 : vector<128x1xf32>
    %161 = vector.broadcast %153 : vector<128x1xf32> to vector<128x32xf32>
    %162 = arith.subf %143, %161 : vector<128x32xf32>
    %cst_70 = arith.constant 9.99999974E-6 : f32
    %163 = vector.broadcast %cst_70 : f32 to vector<128x1xf32>
    %164 = arith.addf %160, %163 : vector<128x1xf32>
    %165 = math.rsqrt %164 : vector<128x1xf32>
    %166 = vector.broadcast %165 : vector<128x1xf32> to vector<128x32xf32>
    %167 = arith.mulf %162, %166 : vector<128x32xf32>
    %168 = vector.broadcast %144 : vector<1x32xf32> to vector<128x32xf32>
    %169 = arith.mulf %167, %168 : vector<128x32xf32>
    %cst_71 = arith.constant dense<0.000000e+00> : vector<128x128xf32>
    %170 = tpu.matmul %169, %146, %cst_71 {dimension_numbers = #tpu.dot_dimension_numbers<[1], [0], [0], [1], [0, 0, 1, 1], [], []>} : vector<128x32xf32>, vector<32x128xf32>, vector<128x128xf32> -> vector<128x128xf32>
    %171 = arith.mulf %170, %6 : vector<128x128xf32>
    %c127_i32_72 = arith.constant 127 : i32
    %172 = tpu.dynamic_rotate %170 by %c127_i32_72 dim 1 : vector<128x128xf32>, i32 -> vector<128x128xf32>
    %173 = arith.mulf %172, %7 : vector<128x128xf32>
    %174 = arith.addf %171, %173 : vector<128x128xf32>
    %c1_i32_73 = arith.constant 1 : i32
    %175 = tpu.dynamic_rotate %170 by %c1_i32_73 dim 1 : vector<128x128xf32>, i32 -> vector<128x128xf32>
    %176 = arith.mulf %175, %8 : vector<128x128xf32>
    %177 = arith.addf %174, %176 : vector<128x128xf32>
    %178 = vector.extract_strided_slice %177 {offsets = [0, 0], sizes = [128, 32], strides = [1, 1]} : vector<128x128xf32> to vector<128x32xf32>
    %179 = vector.extract_strided_slice %177 {offsets = [0, 32], sizes = [128, 32], strides = [1, 1]} : vector<128x128xf32> to vector<128x32xf32>
    %180 = vector.extract_strided_slice %177 {offsets = [0, 64], sizes = [128, 32], strides = [1, 1]} : vector<128x128xf32> to vector<128x32xf32>
    %181 = tpu.concatenate %178, %178, %178, %178 in 0 : vector<128x32xf32>, vector<128x32xf32>, vector<128x32xf32>, vector<128x32xf32> -> vector<512x32xf32>
    %182 = arith.mulf %181, %10 : vector<512x32xf32>
    %cst_74 = arith.constant dense<0.000000e+00> : vector<512x128xf32>
    %183 = tpu.matmul %182, %179, %cst_74 {dimension_numbers = #tpu.dot_dimension_numbers<[1], [1], [0], [0], [0, 0, 1, 0], [], []>} : vector<512x32xf32>, vector<128x32xf32>, vector<512x128xf32> -> vector<512x128xf32>
    %184 = arith.addf %183, %9 : vector<512x128xf32>
    %cst_75 = arith.constant dense<0xFF800000> : vector<512xf32>
    %185 = vector.multi_reduction <maximumf>, %184, %cst_75 [1] : vector<512x128xf32> to vector<512xf32>
    %186 = vector.shape_cast %185 : vector<512xf32> to vector<512x1xf32>
    %187 = vector.broadcast %186 : vector<512x1xf32> to vector<512x128xf32>
    %188 = arith.subf %184, %187 : vector<512x128xf32>
    %189 = math.exp %188 : vector<512x128xf32>
    %cst_76 = arith.constant dense<0.000000e+00> : vector<512xf32>
    %190 = vector.multi_reduction <add>, %189, %cst_76 [1] : vector<512x128xf32> to vector<512xf32>
    %191 = vector.shape_cast %190 : vector<512xf32> to vector<512x1xf32>
    %192 = tpu.reciprocal %191 {approx = true} : vector<512x1xf32> -> vector<512x1xf32>
    %193 = arith.mulf %191, %192 : vector<512x1xf32>
    %cst_77 = arith.constant 2.000000e+00 : f32
    %194 = vector.broadcast %cst_77 : f32 to vector<512x1xf32>
    %195 = arith.subf %194, %193 : vector<512x1xf32>
    %196 = arith.mulf %192, %195 : vector<512x1xf32>
    %197 = vector.broadcast %196 : vector<512x1xf32> to vector<512x128xf32>
    %198 = arith.mulf %189, %197 : vector<512x128xf32>
    %cst_78 = arith.constant dense<0.000000e+00> : vector<512x32xf32>
    %199 = tpu.matmul %198, %180, %cst_78 {dimension_numbers = #tpu.dot_dimension_numbers<[1], [0], [0], [1], [0, 0, 1, 1], [], []>} : vector<512x128xf32>, vector<128x32xf32>, vector<512x32xf32> -> vector<512x32xf32>
    %200 = arith.mulf %199, %10 : vector<512x32xf32>
    %201 = vector.extract_strided_slice %200 {offsets = [0, 0], sizes = [128, 32], strides = [1, 1]} : vector<512x32xf32> to vector<128x32xf32>
    %202 = vector.extract_strided_slice %200 {offsets = [128, 0], sizes = [128, 32], strides = [1, 1]} : vector<512x32xf32> to vector<128x32xf32>
    %203 = arith.addf %201, %202 : vector<128x32xf32>
    %204 = vector.extract_strided_slice %200 {offsets = [256, 0], sizes = [128, 32], strides = [1, 1]} : vector<512x32xf32> to vector<128x32xf32>
    %205 = arith.addf %203, %204 : vector<128x32xf32>
    %206 = vector.extract_strided_slice %200 {offsets = [384, 0], sizes = [128, 32], strides = [1, 1]} : vector<512x32xf32> to vector<128x32xf32>
    %207 = arith.addf %205, %206 : vector<128x32xf32>
    %cst_79 = arith.constant dense<0.000000e+00> : vector<128x32xf32>
    %208 = tpu.matmul %207, %147, %cst_79 {dimension_numbers = #tpu.dot_dimension_numbers<[1], [0], [0], [1], [0, 0, 1, 1], [], []>} : vector<128x32xf32>, vector<32x32xf32>, vector<128x32xf32> -> vector<128x32xf32>
    %209 = arith.addf %143, %208 : vector<128x32xf32>
    %cst_80 = arith.constant dense<0.000000e+00> : vector<128xf32>
    %210 = vector.multi_reduction <add>, %209, %cst_80 [1] : vector<128x32xf32> to vector<128xf32>
    %211 = vector.shape_cast %210 : vector<128xf32> to vector<128x1xf32>
    %cst_81 = arith.constant 3.200000e+01 : f32
    %212 = vector.broadcast %cst_81 : f32 to vector<128x1xf32>
    %213 = arith.divf %211, %212 : vector<128x1xf32>
    %214 = vector.broadcast %213 : vector<128x1xf32> to vector<128x32xf32>
    %215 = arith.subf %209, %214 : vector<128x32xf32>
    %216 = arith.mulf %215, %215 : vector<128x32xf32>
    %cst_82 = arith.constant dense<0.000000e+00> : vector<128xf32>
    %217 = vector.multi_reduction <add>, %216, %cst_82 [1] : vector<128x32xf32> to vector<128xf32>
    %218 = vector.shape_cast %217 : vector<128xf32> to vector<128x1xf32>
    %cst_83 = arith.constant 3.200000e+01 : f32
    %219 = vector.broadcast %cst_83 : f32 to vector<128x1xf32>
    %220 = arith.divf %218, %219 : vector<128x1xf32>
    %221 = vector.broadcast %213 : vector<128x1xf32> to vector<128x32xf32>
    %222 = arith.subf %209, %221 : vector<128x32xf32>
    %cst_84 = arith.constant 9.99999974E-6 : f32
    %223 = vector.broadcast %cst_84 : f32 to vector<128x1xf32>
    %224 = arith.addf %220, %223 : vector<128x1xf32>
    %225 = math.rsqrt %224 : vector<128x1xf32>
    %226 = vector.broadcast %225 : vector<128x1xf32> to vector<128x32xf32>
    %227 = arith.mulf %222, %226 : vector<128x32xf32>
    %228 = vector.broadcast %145 : vector<1x32xf32> to vector<128x32xf32>
    %229 = arith.mulf %227, %228 : vector<128x32xf32>
    %cst_85 = arith.constant dense<0.000000e+00> : vector<128x64xf32>
    %230 = tpu.matmul %229, %148, %cst_85 {dimension_numbers = #tpu.dot_dimension_numbers<[1], [0], [0], [1], [0, 0, 1, 1], [], []>} : vector<128x32xf32>, vector<32x64xf32>, vector<128x64xf32> -> vector<128x64xf32>
    %cst_86 = arith.constant 5.000000e-01 : f32
    %231 = vector.broadcast %cst_86 : f32 to vector<128x64xf32>
    %232 = arith.mulf %231, %230 : vector<128x64xf32>
    %cst_87 = arith.constant 0.707106769 : f32
    %233 = vector.broadcast %cst_87 : f32 to vector<128x64xf32>
    %234 = arith.mulf %230, %233 : vector<128x64xf32>
    %cst_88 = arith.constant 0.000000e+00 : f32
    %235 = vector.broadcast %cst_88 : f32 to vector<128x64xf32>
    %236 = arith.cmpf oge, %234, %235 : vector<128x64xf32>
    %cst_89 = arith.constant 1.000000e+00 : f32
    %cst_90 = arith.constant -1.000000e+00 : f32
    %237 = vector.broadcast %cst_89 : f32 to vector<128x64xf32>
    %238 = vector.broadcast %cst_90 : f32 to vector<128x64xf32>
    %239 = arith.select %236, %237, %238 : vector<128x64xi1>, vector<128x64xf32>
    %240 = math.absf %234 : vector<128x64xf32>
    %cst_91 = arith.constant 0.327591091 : f32
    %241 = vector.broadcast %cst_91 : f32 to vector<128x64xf32>
    %242 = arith.mulf %241, %240 : vector<128x64xf32>
    %cst_92 = arith.constant 1.000000e+00 : f32
    %243 = vector.broadcast %cst_92 : f32 to vector<128x64xf32>
    %244 = arith.addf %243, %242 : vector<128x64xf32>
    %245 = tpu.reciprocal %244 {approx = true} : vector<128x64xf32> -> vector<128x64xf32>
    %246 = arith.mulf %244, %245 : vector<128x64xf32>
    %cst_93 = arith.constant 2.000000e+00 : f32
    %247 = vector.broadcast %cst_93 : f32 to vector<128x64xf32>
    %248 = arith.subf %247, %246 : vector<128x64xf32>
    %249 = arith.mulf %245, %248 : vector<128x64xf32>
    %cst_94 = arith.constant 1.06140542 : f32
    %250 = vector.broadcast %cst_94 : f32 to vector<128x64xf32>
    %251 = arith.mulf %250, %249 : vector<128x64xf32>
    %cst_95 = arith.constant -1.45315206 : f32
    %252 = vector.broadcast %cst_95 : f32 to vector<128x64xf32>
    %253 = arith.addf %251, %252 : vector<128x64xf32>
    %254 = arith.mulf %253, %249 : vector<128x64xf32>
    %cst_96 = arith.constant 1.42141378 : f32
    %255 = vector.broadcast %cst_96 : f32 to vector<128x64xf32>
    %256 = arith.addf %254, %255 : vector<128x64xf32>
    %257 = arith.mulf %256, %249 : vector<128x64xf32>
    %cst_97 = arith.constant -0.284496725 : f32
    %258 = vector.broadcast %cst_97 : f32 to vector<128x64xf32>
    %259 = arith.addf %257, %258 : vector<128x64xf32>
    %260 = arith.mulf %259, %249 : vector<128x64xf32>
    %cst_98 = arith.constant 0.254829586 : f32
    %261 = vector.broadcast %cst_98 : f32 to vector<128x64xf32>
    %262 = arith.addf %260, %261 : vector<128x64xf32>
    %263 = arith.mulf %262, %249 : vector<128x64xf32>
    %cst_99 = arith.constant 0.000000e+00 : f32
    %264 = vector.broadcast %cst_99 : f32 to vector<128x64xf32>
    %265 = arith.subf %264, %240 : vector<128x64xf32>
    %266 = arith.mulf %265, %240 : vector<128x64xf32>
    %267 = math.exp %266 : vector<128x64xf32>
    %268 = arith.mulf %263, %267 : vector<128x64xf32>
    %cst_100 = arith.constant 1.000000e+00 : f32
    %269 = vector.broadcast %cst_100 : f32 to vector<128x64xf32>
    %270 = arith.subf %269, %268 : vector<128x64xf32>
    %271 = arith.mulf %239, %270 : vector<128x64xf32>
    %cst_101 = arith.constant 1.000000e+00 : f32
    %272 = vector.broadcast %cst_101 : f32 to vector<128x64xf32>
    %273 = arith.addf %272, %271 : vector<128x64xf32>
    %274 = arith.mulf %232, %273 : vector<128x64xf32>
    %cst_102 = arith.constant dense<0.000000e+00> : vector<128x32xf32>
    %275 = tpu.matmul %274, %149, %cst_102 {dimension_numbers = #tpu.dot_dimension_numbers<[1], [0], [0], [1], [0, 0, 1, 1], [], []>} : vector<128x64xf32>, vector<64x32xf32>, vector<128x32xf32> -> vector<128x32xf32>
    %276 = arith.addf %209, %275 : vector<128x32xf32>
    %c0_103 = arith.constant 0 : index
    %c0_104 = arith.constant 0 : index
    %277 = vector.load %arg6[%c0_103, %c0_104] : memref<35x128xf32, #tpu.memory_space<vmem>>, vector<32x128xf32>
    %c32 = arith.constant 32 : index
    %c0_105 = arith.constant 0 : index
    %278 = vector.load %arg6[%c32, %c0_105] : memref<35x128xf32, #tpu.memory_space<vmem>>, vector<1x128xf32>
    %c33 = arith.constant 33 : index
    %c0_106 = arith.constant 0 : index
    %279 = vector.load %arg6[%c33, %c0_106] : memref<35x128xf32, #tpu.memory_space<vmem>>, vector<1x32xf32>
    %c34 = arith.constant 34 : index
    %c0_107 = arith.constant 0 : index
    %280 = vector.load %arg6[%c34, %c0_107] : memref<35x128xf32, #tpu.memory_space<vmem>>, vector<1x32xf32>
    %cst_108 = arith.constant dense<0.000000e+00> : vector<128x128xf32>
    %281 = tpu.matmul %276, %277, %cst_108 {dimension_numbers = #tpu.dot_dimension_numbers<[1], [0], [0], [1], [0, 0, 1, 1], [], []>} : vector<128x32xf32>, vector<32x128xf32>, vector<128x128xf32> -> vector<128x128xf32>
    %282 = vector.broadcast %278 : vector<1x128xf32> to vector<128x128xf32>
    %283 = arith.addf %281, %282 : vector<128x128xf32>
    %cst_109 = arith.constant dense<0.000000e+00> : vector<128xf32>
    %284 = vector.multi_reduction <add>, %283, %cst_109 [0] : vector<128x128xf32> to vector<128xf32>
    %285 = vector.shape_cast %284 : vector<128xf32> to vector<1x128xf32>
    %286 = vector.extract_strided_slice %285 {offsets = [0, 0], sizes = [1, 32], strides = [1, 1]} : vector<1x128xf32> to vector<1x32xf32>
    %287 = vector.extract_strided_slice %285 {offsets = [0, 32], sizes = [1, 32], strides = [1, 1]} : vector<1x128xf32> to vector<1x32xf32>
    %288 = arith.addf %286, %287 : vector<1x32xf32>
    %289 = vector.extract_strided_slice %285 {offsets = [0, 64], sizes = [1, 32], strides = [1, 1]} : vector<1x128xf32> to vector<1x32xf32>
    %290 = arith.addf %288, %289 : vector<1x32xf32>
    %291 = vector.extract_strided_slice %285 {offsets = [0, 96], sizes = [1, 32], strides = [1, 1]} : vector<1x128xf32> to vector<1x32xf32>
    %292 = arith.addf %290, %291 : vector<1x32xf32>
    %cst_110 = arith.constant 0.001953125 : f32
    %293 = vector.broadcast %cst_110 : f32 to vector<1x32xf32>
    %294 = arith.mulf %292, %293 : vector<1x32xf32>
    %295 = tpu.concatenate %294, %294, %294, %294 in 1 : vector<1x32xf32>, vector<1x32xf32>, vector<1x32xf32>, vector<1x32xf32> -> vector<1x128xf32>
    %296 = vector.broadcast %295 : vector<1x128xf32> to vector<128x128xf32>
    %297 = arith.subf %283, %296 : vector<128x128xf32>
    %298 = arith.mulf %297, %297 : vector<128x128xf32>
    %cst_111 = arith.constant dense<0.000000e+00> : vector<128xf32>
    %299 = vector.multi_reduction <add>, %298, %cst_111 [0] : vector<128x128xf32> to vector<128xf32>
    %300 = vector.shape_cast %299 : vector<128xf32> to vector<1x128xf32>
    %301 = vector.extract_strided_slice %300 {offsets = [0, 0], sizes = [1, 32], strides = [1, 1]} : vector<1x128xf32> to vector<1x32xf32>
    %302 = vector.extract_strided_slice %300 {offsets = [0, 32], sizes = [1, 32], strides = [1, 1]} : vector<1x128xf32> to vector<1x32xf32>
    %303 = arith.addf %301, %302 : vector<1x32xf32>
    %304 = vector.extract_strided_slice %300 {offsets = [0, 64], sizes = [1, 32], strides = [1, 1]} : vector<1x128xf32> to vector<1x32xf32>
    %305 = arith.addf %303, %304 : vector<1x32xf32>
    %306 = vector.extract_strided_slice %300 {offsets = [0, 96], sizes = [1, 32], strides = [1, 1]} : vector<1x128xf32> to vector<1x32xf32>
    %307 = arith.addf %305, %306 : vector<1x32xf32>
    %cst_112 = arith.constant 0.001953125 : f32
    %308 = vector.broadcast %cst_112 : f32 to vector<1x32xf32>
    %309 = arith.mulf %307, %308 : vector<1x32xf32>
    %cst_113 = arith.constant 9.99999974E-6 : f32
    %310 = vector.broadcast %cst_113 : f32 to vector<1x32xf32>
    %311 = arith.addf %309, %310 : vector<1x32xf32>
    %312 = math.rsqrt %311 : vector<1x32xf32>
    %313 = arith.mulf %279, %312 : vector<1x32xf32>
    %314 = arith.mulf %294, %313 : vector<1x32xf32>
    %315 = arith.subf %280, %314 : vector<1x32xf32>
    %316 = tpu.concatenate %313, %313, %313, %313 in 1 : vector<1x32xf32>, vector<1x32xf32>, vector<1x32xf32>, vector<1x32xf32> -> vector<1x128xf32>
    %317 = tpu.concatenate %315, %315, %315, %315 in 1 : vector<1x32xf32>, vector<1x32xf32>, vector<1x32xf32>, vector<1x32xf32> -> vector<1x128xf32>
    %318 = vector.broadcast %316 : vector<1x128xf32> to vector<128x128xf32>
    %319 = arith.mulf %283, %318 : vector<128x128xf32>
    %320 = vector.broadcast %317 : vector<1x128xf32> to vector<128x128xf32>
    %321 = arith.addf %319, %320 : vector<128x128xf32>
    %cst_114 = arith.constant 5.000000e-01 : f32
    %322 = vector.broadcast %cst_114 : f32 to vector<128x128xf32>
    %323 = arith.mulf %322, %321 : vector<128x128xf32>
    %cst_115 = arith.constant 0.707106769 : f32
    %324 = vector.broadcast %cst_115 : f32 to vector<128x128xf32>
    %325 = arith.mulf %321, %324 : vector<128x128xf32>
    %cst_116 = arith.constant 0.000000e+00 : f32
    %326 = vector.broadcast %cst_116 : f32 to vector<128x128xf32>
    %327 = arith.cmpf oge, %325, %326 : vector<128x128xf32>
    %cst_117 = arith.constant 1.000000e+00 : f32
    %cst_118 = arith.constant -1.000000e+00 : f32
    %328 = vector.broadcast %cst_117 : f32 to vector<128x128xf32>
    %329 = vector.broadcast %cst_118 : f32 to vector<128x128xf32>
    %330 = arith.select %327, %328, %329 : vector<128x128xi1>, vector<128x128xf32>
    %331 = math.absf %325 : vector<128x128xf32>
    %cst_119 = arith.constant 0.327591091 : f32
    %332 = vector.broadcast %cst_119 : f32 to vector<128x128xf32>
    %333 = arith.mulf %332, %331 : vector<128x128xf32>
    %cst_120 = arith.constant 1.000000e+00 : f32
    %334 = vector.broadcast %cst_120 : f32 to vector<128x128xf32>
    %335 = arith.addf %334, %333 : vector<128x128xf32>
    %336 = tpu.reciprocal %335 {approx = true} : vector<128x128xf32> -> vector<128x128xf32>
    %337 = arith.mulf %335, %336 : vector<128x128xf32>
    %cst_121 = arith.constant 2.000000e+00 : f32
    %338 = vector.broadcast %cst_121 : f32 to vector<128x128xf32>
    %339 = arith.subf %338, %337 : vector<128x128xf32>
    %340 = arith.mulf %336, %339 : vector<128x128xf32>
    %cst_122 = arith.constant 1.06140542 : f32
    %341 = vector.broadcast %cst_122 : f32 to vector<128x128xf32>
    %342 = arith.mulf %341, %340 : vector<128x128xf32>
    %cst_123 = arith.constant -1.45315206 : f32
    %343 = vector.broadcast %cst_123 : f32 to vector<128x128xf32>
    %344 = arith.addf %342, %343 : vector<128x128xf32>
    %345 = arith.mulf %344, %340 : vector<128x128xf32>
    %cst_124 = arith.constant 1.42141378 : f32
    %346 = vector.broadcast %cst_124 : f32 to vector<128x128xf32>
    %347 = arith.addf %345, %346 : vector<128x128xf32>
    %348 = arith.mulf %347, %340 : vector<128x128xf32>
    %cst_125 = arith.constant -0.284496725 : f32
    %349 = vector.broadcast %cst_125 : f32 to vector<128x128xf32>
    %350 = arith.addf %348, %349 : vector<128x128xf32>
    %351 = arith.mulf %350, %340 : vector<128x128xf32>
    %cst_126 = arith.constant 0.254829586 : f32
    %352 = vector.broadcast %cst_126 : f32 to vector<128x128xf32>
    %353 = arith.addf %351, %352 : vector<128x128xf32>
    %354 = arith.mulf %353, %340 : vector<128x128xf32>
    %cst_127 = arith.constant 0.000000e+00 : f32
    %355 = vector.broadcast %cst_127 : f32 to vector<128x128xf32>
    %356 = arith.subf %355, %331 : vector<128x128xf32>
    %357 = arith.mulf %356, %331 : vector<128x128xf32>
    %358 = math.exp %357 : vector<128x128xf32>
    %359 = arith.mulf %354, %358 : vector<128x128xf32>
    %cst_128 = arith.constant 1.000000e+00 : f32
    %360 = vector.broadcast %cst_128 : f32 to vector<128x128xf32>
    %361 = arith.subf %360, %359 : vector<128x128xf32>
    %362 = arith.mulf %330, %361 : vector<128x128xf32>
    %cst_129 = arith.constant 1.000000e+00 : f32
    %363 = vector.broadcast %cst_129 : f32 to vector<128x128xf32>
    %364 = arith.addf %363, %362 : vector<128x128xf32>
    %365 = arith.mulf %323, %364 : vector<128x128xf32>
    %c0_130 = arith.constant 0 : index
    %c0_131 = arith.constant 0 : index
    %366 = vector.load %arg7[%c0_130, %c0_131] : memref<128x128xf32, #tpu.memory_space<vmem>>, vector<128x128xf32>
    tpu.vector_store %arg7[%c0_130, %c0_131], %365 {strides = array<i32>} : memref<128x128xf32, #tpu.memory_space<vmem>>, vector<128x128xf32>,
    return
  }
}

</mosaic_0001>

<llo_original>
// kernel: _lambda_.1
$region0: #{_lambda_.1}
  #allocation0 [shape = 'u32[]', space=smem, size = 0x4, offset = 0x4, fixed_abs, tag = 'smem constant byte address 0x4 - core index']
  #allocation1 [shape = 'u32[144,128]{1,0:T(1,128)}', space=vmem, size = 0x12000, scoped, tag = 'internal scratch']
  %s0 = inlined_call_operand.vmem [shape: f32[128,64], index: 0, kind: input, shape index: {}]
  %s1 = inlined_call_operand.vmem [shape: f32[65,32], index: 1, kind: input, shape index: {}]
  %s2 = inlined_call_operand.vmem [shape: f32[4,32], index: 2, kind: input, shape index: {}]
  %s3 = inlined_call_operand.vmem [shape: f32[128,256], index: 3, kind: input, shape index: {}]
  %s4 = inlined_call_operand.vmem [shape: f32[384,128], index: 4, kind: input, shape index: {}]
  %s5 = inlined_call_operand.vmem [shape: f32[512,160], index: 5, kind: input, shape index: {}]
  %s6 = inlined_call_operand.vmem [shape: f32[35,128], index: 6, kind: input, shape index: {}]
  %s7 = inlined_call_operand.vmem [shape: f32[128,128], index: 7, kind: output, shape index: {}]
  %s8 = sld [smem:[#allocation0]]
  $region38: #{_lambda_.1} parent=0
    _
  %s10 = ssub.s32 1, %s8
  %s11 = scalar_select 0, %s10, %s8
  // Predicated region
  $region2: #{_lambda_.1} parent=0 // pred_check
    _
  $region3: #{_lambda_.1} parent=0 // pred_check_branch
    %13 = sbr.rel (0) target = $region5
  $region4: #{_lambda_.1} parent=0 // pred_region
    _
  $region5: #{_lambda_.1} parent=0 // pred_fallthru
    _
  // Predicated region
  $region6: #{_lambda_.1} parent=0 // pred_check
    _
  $region7: #{_lambda_.1} parent=0 // pred_check_branch
    %15 = sbr.rel (0) target = $region9
  $region8: #{_lambda_.1} parent=0 // pred_region
    _
  $region9: #{_lambda_.1} parent=0 // pred_fallthru
    _
  // Predicated region
  $region10: #{_lambda_.1} parent=0 // pred_check
    _
  $region11: #{_lambda_.1} parent=0 // pred_check_branch
    %17 = sbr.rel (0) target = $region13
  $region12: #{_lambda_.1} parent=0 // pred_region
    _
  $region13: #{_lambda_.1} parent=0 // pred_fallthru
    _
  // Predicated region
  $region14: #{_lambda_.1} parent=0 // pred_check
    _
  $region15: #{_lambda_.1} parent=0 // pred_check_branch
    %19 = sbr.rel (0) target = $region17
  $region16: #{_lambda_.1} parent=0 // pred_region
    _
  $region17: #{_lambda_.1} parent=0 // pred_fallthru
    _
  // Predicated region
  $region18: #{_lambda_.1} parent=0 // pred_check
    _
  $region19: #{_lambda_.1} parent=0 // pred_check_branch
    %21 = sbr.rel (0) target = $region21
  $region20: #{_lambda_.1} parent=0 // pred_region
    _
  $region21: #{_lambda_.1} parent=0 // pred_fallthru
    _
  // Predicated region
  $region22: #{_lambda_.1} parent=0 // pred_check
    _
  $region23: #{_lambda_.1} parent=0 // pred_check_branch
    %23 = sbr.rel (0) target = $region25
  $region24: #{_lambda_.1} parent=0 // pred_region
    _
  $region25: #{_lambda_.1} parent=0 // pred_fallthru
    _
  // Predicated region
  $region26: #{_lambda_.1} parent=0 // pred_check
    _
  $region27: #{_lambda_.1} parent=0 // pred_check_branch
    %25 = sbr.rel (0) target = $region29
  $region28: #{_lambda_.1} parent=0 // pred_region
    _
  $region29: #{_lambda_.1} parent=0 // pred_fallthru
    _
  %v26 = vld [vmem:[%s0] sm:$0xff]
  %v27 = vld [vmem:[%s0 + $0x8] sm:$0xff]
  %v28 = vld [vmem:[%s0 + $0x10] sm:$0xff]
  %v29 = vld [vmem:[%s0 + $0x18] sm:$0xff]
  %v30 = vld [vmem:[%s0 + $0x20] sm:$0xff]
  %v31 = vld [vmem:[%s0 + $0x28] sm:$0xff]
  %v32 = vld [vmem:[%s0 + $0x30] sm:$0xff]
  %v33 = vld [vmem:[%s0 + $0x38] sm:$0xff]
  %v34 = vld [vmem:[%s0 + $0x40] sm:$0xff]
  %v35 = vld [vmem:[%s0 + $0x48] sm:$0xff]
  %v36 = vld [vmem:[%s0 + $0x50] sm:$0xff]
  %v37 = vld [vmem:[%s0 + $0x58] sm:$0xff]
  %v38 = vld [vmem:[%s0 + $0x60] sm:$0xff]
  %v39 = vld [vmem:[%s0 + $0x68] sm:$0xff]
  %v40 = vld [vmem:[%s0 + $0x70] sm:$0xff]
  %v41 = vld [vmem:[%s0 + $0x78] sm:$0xff]
  %v42 = vld [vmem:[%s1] sm:$0xff]
  %v43 = vld [vmem:[%s1 + $0x8] sm:$0xff]
  %v44 = vld [vmem:[%s1 + $0x10] sm:$0xff]
  %v45 = vld [vmem:[%s1 + $0x18] sm:$0xff]
  %v46 = vld [vmem:[%s1 + $0x20] sm:$0xff]
  %v47 = vld [vmem:[%s1 + $0x28] sm:$0xff]
  %v48 = vld [vmem:[%s1 + $0x30] sm:$0xff]
  %v49 = vld [vmem:[%s1 + $0x38] sm:$0xff]
  %v50 = vld [vmem:[%s1 + $0x40] sm:$0x1]
  %v51 = vlaneseq
  %v52 = vshrl.u32 %v51, 7
  %v53 = vsub.s32 0, %v52
  %v54 = vrot.slane %v50, %v53
  %vm55 = vcmask 523264
  %v57 = vsel %vm55, %v26, 0
  %v60 = vsel %vm55, %v27, 0
  %v63 = vsel %vm55, %v28, 0
  %v66 = vsel %vm55, %v29, 0
  %v69 = vsel %vm55, %v30, 0
  %v72 = vsel %vm55, %v31, 0
  %v75 = vsel %vm55, %v32, 0
  %v78 = vsel %vm55, %v33, 0
  %v81 = vsel %vm55, %v34, 0
  %v84 = vsel %vm55, %v35, 0
  %v87 = vsel %vm55, %v36, 0
  %v90 = vsel %vm55, %v37, 0
  %v93 = vsel %vm55, %v38, 0
  %v96 = vsel %vm55, %v39, 0
  %v99 = vsel %vm55, %v40, 0
  %v102 = vsel %vm55, %v41, 0
  %104 = vmatprep.subr.mxu0 0.0
  %105 = vmatpush1.msra.mxu0 %v42
  %106 = vmatprep.subr.mxu0 0.0
  %107 = vmatpush1.msra.mxu0 %v43
  %108 = vmatprep.subr.mxu0 0.0
  %109 = vmatpush1.msra.mxu0 %v44
  %110 = vmatprep.subr.mxu0 0.0
  %111 = vmatpush1.msra.mxu0 %v45
  %112 = vmatprep.subr.mxu0 0.0
  %113 = vmatpush1.msra.mxu0 %v46
  %114 = vmatprep.subr.mxu0 0.0
  %115 = vmatpush1.msra.mxu0 %v47
  %116 = vmatprep.subr.mxu0 0.0
  %117 = vmatpush1.msra.mxu0 %v48
  %118 = vmatprep.subr.mxu0 0.0
  %119 = vmatpush1.msra.mxu0 %v49
  %120 = vmatprep.subr.mxu0 0.0
  %121 = vmatpush1.msra.mxu0 0.0
  %122 = vmatprep.subr.mxu0 0.0
  %123 = vmatpush1.msra.mxu0 0.0
  %124 = vmatprep.subr.mxu0 0.0
  %125 = vmatpush1.msra.mxu0 0.0
  %126 = vmatprep.subr.mxu0 0.0
  %127 = vmatpush1.msra.mxu0 0.0
  %128 = vmatprep.subr.mxu0 0.0
  %129 = vmatpush1.msra.mxu0 0.0
  %130 = vmatprep.subr.mxu0 0.0
  %131 = vmatpush1.msra.mxu0 0.0
  %132 = vmatprep.subr.mxu0 0.0
  %133 = vmatpush1.msra.mxu0 0.0
  %134 = vmatprep.subr.mxu0 0.0
  %135 = vmatpush1.msra.mxu0 0.0
  %136 = vmatprep.subr.mxu0 0.0
  %137 = vmatpush1.msra.mxu0 0.0
  %138 = vmatprep.subr.mxu0 0.0
  %139 = vmatpush1.msra.mxu0 0.0
  %140 = vmatprep.subr.mxu0 0.0
  %141 = vmatpush1.msra.mxu0 0.0
  %142 = vmatprep.subr.mxu0 0.0
  %143 = vmatpush1.msra.mxu0 0.0
  %144 = vmatprep.subr.mxu0 0.0
  %145 = vmatpush1.msra.mxu0 0.0
  %146 = vmatprep.subr.mxu0 0.0
  %147 = vmatpush1.msra.mxu0 0.0
  %148 = vmatprep.subr.mxu0 0.0
  %149 = vmatpush1.msra.mxu0 0.0
  %150 = vmatprep.subr.mxu0 0.0
  %151 = vmatpush1.msra.mxu0 0.0
  %152 = vmatprep.subr.mxu0 0.0
  %153 = vmatpush1.msra.mxu0 0.0
  %154 = vmatprep.subr.mxu0 0.0
  %155 = vmatpush1.msra.mxu0 0.0
  %156 = vmatprep.subr.mxu0 0.0
  %157 = vmatpush1.msra.mxu0 0.0
  %158 = vmatprep.subr.mxu0 0.0
  %159 = vmatpush1.msra.mxu0 0.0
  %160 = vmatprep.subr.mxu0 0.0
  %161 = vmatpush1.msra.mxu0 0.0
  %162 = vmatprep.subr.mxu0 0.0
  %163 = vmatpush1.msra.mxu0 0.0
  %164 = vmatprep.subr.mxu0 0.0
  %165 = vmatpush1.msra.mxu0 0.0
  %166 = vmatprep.subr.mxu0 0.0
  %167 = vmatpush1.msra.mxu0 0.0
  %168 = vmatprep.mubr.f32.mxu0 0.0
  %169 = vmatmul.mubr.f32.gmra.mrb[0].mxu0 %v57
  %v170 = vpop.f32.mrb[0].mxu0
  %v171 = vadd.f32 %v54, %v170
  %v172 = vpop.f32.mrb[0].mxu0
  %173 = vmatprep.mubr.f32.mxu0 0.0
  %174 = vmatmul.mubr.f32.gmra.mrb[0].mxu0 %v60
  %v175 = vpop.f32.mrb[0].mxu0
  %v176 = vadd.f32 %v54, %v175
  %v177 = vpop.f32.mrb[0].mxu0
  %178 = vmatprep.mubr.f32.mxu0 0.0
  %179 = vmatmul.mubr.f32.gmra.mrb[0].mxu0 %v63
  %v180 = vpop.f32.mrb[0].mxu0
  %v181 = vadd.f32 %v54, %v180
  %v182 = vpop.f32.mrb[0].mxu0
  %183 = vmatprep.mubr.f32.mxu0 0.0
  %184 = vmatmul.mubr.f32.gmra.mrb[0].mxu0 %v66
  %v185 = vpop.f32.mrb[0].mxu0
  %v186 = vadd.f32 %v54, %v185
  %v187 = vpop.f32.mrb[0].mxu0
  %188 = vmatprep.mubr.f32.mxu0 0.0
  %189 = vmatmul.mubr.f32.gmra.mrb[0].mxu0 %v69
  %v190 = vpop.f32.mrb[0].mxu0
  %v191 = vadd.f32 %v54, %v190
  %v192 = vpop.f32.mrb[0].mxu0
  %193 = vmatprep.mubr.f32.mxu0 0.0
  %194 = vmatmul.mubr.f32.gmra.mrb[0].mxu0 %v72
  %v195 = vpop.f32.mrb[0].mxu0
  %v196 = vadd.f32 %v54, %v195
  %v197 = vpop.f32.mrb[0].mxu0
  %198 = vmatprep.mubr.f32.mxu0 0.0
  %199 = vmatmul.mubr.f32.gmra.mrb[0].mxu0 %v75
  %v200 = vpop.f32.mrb[0].mxu0
  %v201 = vadd.f32 %v54, %v200
  %v202 = vpop.f32.mrb[0].mxu0
  %203 = vmatprep.mubr.f32.mxu0 0.0
  %204 = vmatmul.mubr.f32.gmra.mrb[0].mxu0 %v78
  %v205 = vpop.f32.mrb[0].mxu0
  %v206 = vadd.f32 %v54, %v205
  %v207 = vpop.f32.mrb[0].mxu0
  %208 = vmatprep.mubr.f32.mxu0 0.0
  %209 = vmatmul.mubr.f32.gmra.mrb[0].mxu0 %v81
  %v210 = vpop.f32.mrb[0].mxu0
  %v211 = vadd.f32 %v54, %v210
  %v212 = vpop.f32.mrb[0].mxu0
  %213 = vmatprep.mubr.f32.mxu0 0.0
  %214 = vmatmul.mubr.f32.gmra.mrb[0].mxu0 %v84
  %v215 = vpop.f32.mrb[0].mxu0
  %v216 = vadd.f32 %v54, %v215
  %v217 = vpop.f32.mrb[0].mxu0
  %218 = vmatprep.mubr.f32.mxu0 0.0
  %219 = vmatmul.mubr.f32.gmra.mrb[0].mxu0 %v87
  %v220 = vpop.f32.mrb[0].mxu0
  %v221 = vadd.f32 %v54, %v220
  %v222 = vpop.f32.mrb[0].mxu0
  %223 = vmatprep.mubr.f32.mxu0 0.0
  %224 = vmatmul.mubr.f32.gmra.mrb[0].mxu0 %v90
  %v225 = vpop.f32.mrb[0].mxu0
  %v226 = vadd.f32 %v54, %v225
  %v227 = vpop.f32.mrb[0].mxu0
  %228 = vmatprep.mubr.f32.mxu0 0.0
  %229 = vmatmul.mubr.f32.gmra.mrb[0].mxu0 %v93
  %v230 = vpop.f32.mrb[0].mxu0
  %v231 = vadd.f32 %v54, %v230
  %v232 = vpop.f32.mrb[0].mxu0
  %233 = vmatprep.mubr.f32.mxu0 0.0
  %234 = vmatmul.mubr.f32.gmra.mrb[0].mxu0 %v96
  %v235 = vpop.f32.mrb[0].mxu0
  %v236 = vadd.f32 %v54, %v235
  %v237 = vpop.f32.mrb[0].mxu0
  %238 = vmatprep.mubr.f32.mxu0 0.0
  %239 = vmatmul.mubr.f32.gmra.mrb[0].mxu0 %v99
  %v240 = vpop.f32.mrb[0].mxu0
  %v241 = vadd.f32 %v54, %v240
  %v242 = vpop.f32.mrb[0].mxu0
  %243 = vmatprep.mubr.f32.mxu0 0.0
  %244 = vmatmul.mubr.f32.gmra.mrb[0].mxu0 %v102
  %v245 = vpop.f32.mrb[0].mxu0
  %v246 = vadd.f32 %v54, %v245
  %v247 = vpop.f32.mrb[0].mxu0
  %248 = vdwg.mxu0
  %v249 = vld [vmem:[%s4] sm:$0xff]
  %v250 = vld [vmem:[%s4 + $0x8] sm:$0xff]
  %v251 = vld [vmem:[%s4 + $0x10] sm:$0xff]
  %v252 = vld [vmem:[%s4 + $0x18] sm:$0xff]
  %v253 = vld [vmem:[%s4 + $0x20] sm:$0xff]
  %v254 = vld [vmem:[%s4 + $0x28] sm:$0xff]
  %v255 = vld [vmem:[%s4 + $0x30] sm:$0xff]
  %v256 = vld [vmem:[%s4 + $0x38] sm:$0xff]
  %v257 = vld [vmem:[%s4 + $0x40] sm:$0xff]
  %v258 = vld [vmem:[%s4 + $0x48] sm:$0xff]
  %v259 = vld [vmem:[%s4 + $0x50] sm:$0xff]
  %v260 = vld [vmem:[%s4 + $0x58] sm:$0xff]
  %v261 = vld [vmem:[%s4 + $0x60] sm:$0xff]
  %v262 = vld [vmem:[%s4 + $0x68] sm:$0xff]
  %v263 = vld [vmem:[%s4 + $0x70] sm:$0xff]
  %v264 = vld [vmem:[%s4 + $0x78] sm:$0xff]
  %v265 = vld [vmem:[%s4 + $0x80] sm:$0xff]
  %v266 = vld [vmem:[%s4 + $0x88] sm:$0xff]
  %v267 = vld [vmem:[%s4 + $0x90] sm:$0xff]
  %v268 = vld [vmem:[%s4 + $0x98] sm:$0xff]
  %v269 = vld [vmem:[%s4 + $0xa0] sm:$0xff]
  %v270 = vld [vmem:[%s4 + $0xa8] sm:$0xff]
  %v271 = vld [vmem:[%s4 + $0xb0] sm:$0xff]
  %v272 = vld [vmem:[%s4 + $0xb8] sm:$0xff]
  %v273 = vld [vmem:[%s4 + $0xc0] sm:$0xff]
  %v274 = vld [vmem:[%s4 + $0xc8] sm:$0xff]
  %v275 = vld [vmem:[%s4 + $0xd0] sm:$0xff]
  %v276 = vld [vmem:[%s4 + $0xd8] sm:$0xff]
  %v277 = vld [vmem:[%s4 + $0xe0] sm:$0xff]
  %v278 = vld [vmem:[%s4 + $0xe8] sm:$0xff]
  %v279 = vld [vmem:[%s4 + $0xf0] sm:$0xff]
  %v280 = vld [vmem:[%s4 + $0xf8] sm:$0xff]
  %v281 = vld [vmem:[%s4 + $0x100] sm:$0xff]
  %v282 = vld [vmem:[%s4 + $0x108] sm:$0xff]
  %v283 = vld [vmem:[%s4 + $0x110] sm:$0xff]
  %v284 = vld [vmem:[%s4 + $0x118] sm:$0xff]
  %v285 = vld [vmem:[%s4 + $0x120] sm:$0xff]
  %v286 = vld [vmem:[%s4 + $0x128] sm:$0xff]
  %v287 = vld [vmem:[%s4 + $0x130] sm:$0xff]
  %v288 = vld [vmem:[%s4 + $0x138] sm:$0xff]
  %v289 = vld [vmem:[%s4 + $0x140] sm:$0xff]
  %v290 = vld [vmem:[%s4 + $0x148] sm:$0xff]
  %v291 = vld [vmem:[%s4 + $0x150] sm:$0xff]
  %v292 = vld [vmem:[%s4 + $0x158] sm:$0xff]
  %v293 = vld [vmem:[%s4 + $0x160] sm:$0xff]
  %v294 = vld [vmem:[%s4 + $0x168] sm:$0xff]
  %v295 = vld [vmem:[%s4 + $0x170] sm:$0xff]
  %v296 = vld [vmem:[%s4 + $0x178] sm:$0xff]
  %v297 = vld [vmem:[%s5] sm:$0xff]
  %v298 = vld [vmem:[%s5 + $0x10] sm:$0xff]
  %v299 = vld [vmem:[%s5 + $0x20] sm:$0xff]
  %v300 = vld [vmem:[%s5 + $0x30] sm:$0xff]
  %v301 = vld [vmem:[%s5 + $0x40] sm:$0xff]
  %v302 = vld [vmem:[%s5 + $0x50] sm:$0xff]
  %v303 = vld [vmem:[%s5 + $0x60] sm:$0xff]
  %v304 = vld [vmem:[%s5 + $0x70] sm:$0xff]
  %v305 = vld [vmem:[%s5 + $0x80] sm:$0xff]
  %v306 = vld [vmem:[%s5 + $0x90] sm:$0xff]
  %v307 = vld [vmem:[%s5 + $0xa0] sm:$0xff]
  %v308 = vld [vmem:[%s5 + $0xb0] sm:$0xff]
  %v309 = vld [vmem:[%s5 + $0xc0] sm:$0xff]
  %v310 = vld [vmem:[%s5 + $0xd0] sm:$0xff]
  %v311 = vld [vmem:[%s5 + $0xe0] sm:$0xff]
  %v312 = vld [vmem:[%s5 + $0xf0] sm:$0xff]
  %v313 = vld [vmem:[%s5 + $0x100] sm:$0xff]
  %v314 = vld [vmem:[%s5 + $0x110] sm:$0xff]
  %v315 = vld [vmem:[%s5 + $0x120] sm:$0xff]
  %v316 = vld [vmem:[%s5 + $0x130] sm:$0xff]
  %v317 = vld [vmem:[%s5 + $0x140] sm:$0xff]
  %v318 = vld [vmem:[%s5 + $0x150] sm:$0xff]
  %v319 = vld [vmem:[%s5 + $0x160] sm:$0xff]
  %v320 = vld [vmem:[%s5 + $0x170] sm:$0xff]
  %v321 = vld [vmem:[%s5 + $0x180] sm:$0xff]
  %v322 = vld [vmem:[%s5 + $0x190] sm:$0xff]
  %v323 = vld [vmem:[%s5 + $0x1a0] sm:$0xff]
  %v324 = vld [vmem:[%s5 + $0x1b0] sm:$0xff]
  %v325 = vld [vmem:[%s5 + $0x1c0] sm:$0xff]
  %v326 = vld [vmem:[%s5 + $0x1d0] sm:$0xff]
  %v327 = vld [vmem:[%s5 + $0x1e0] sm:$0xff]
  %v328 = vld [vmem:[%s5 + $0x1f0] sm:$0xff]
  %v329 = vld [vmem:[%s5 + $0x200] sm:$0xff]
  %v330 = vld [vmem:[%s5 + $0x210] sm:$0xff]
  %v331 = vld [vmem:[%s5 + $0x220] sm:$0xff]
  %v332 = vld [vmem:[%s5 + $0x230] sm:$0xff]
  %v333 = vld [vmem:[%s5 + $0x240] sm:$0xff]
  %v334 = vld [vmem:[%s5 + $0x250] sm:$0xff]
  %v335 = vld [vmem:[%s5 + $0x260] sm:$0xff]
  %v336 = vld [vmem:[%s5 + $0x270] sm:$0xff]
  %v337 = vld [vmem:[%s5 + $0x280] sm:$0xff]
  %v338 = vld [vmem:[%s5 + $0x290] sm:$0xff]
  %v339 = vld [vmem:[%s5 + $0x2a0] sm:$0xff]
  %v340 = vld [vmem:[%s5 + $0x2b0] sm:$0xff]
  %v341 = vld [vmem:[%s5 + $0x2c0] sm:$0xff]
  %v342 = vld [vmem:[%s5 + $0x2d0] sm:$0xff]
  %v343 = vld [vmem:[%s5 + $0x2e0] sm:$0xff]
  %v344 = vld [vmem:[%s5 + $0x2f0] sm:$0xff]
  %v345 = vld [vmem:[%s5 + $0x300] sm:$0xff]
  %v346 = vld [vmem:[%s5 + $0x310] sm:$0xff]
  %v347 = vld [vmem:[%s5 + $0x320] sm:$0xff]
  %v348 = vld [vmem:[%s5 + $0x330] sm:$0xff]
  %v349 = vld [vmem:[%s5 + $0x340] sm:$0xff]
  %v350 = vld [vmem:[%s5 + $0x350] sm:$0xff]
  %v351 = vld [vmem:[%s5 + $0x360] sm:$0xff]
  %v352 = vld [vmem:[%s5 + $0x370] sm:$0xff]
  %v353 = vld [vmem:[%s5 + $0x380] sm:$0xff]
  %v354 = vld [vmem:[%s5 + $0x390] sm:$0xff]
  %v355 = vld [vmem:[%s5 + $0x3a0] sm:$0xff]
  %v356 = vld [vmem:[%s5 + $0x3b0] sm:$0xff]
  %v357 = vld [vmem:[%s5 + $0x3c0] sm:$0xff]
  %v358 = vld [vmem:[%s5 + $0x3d0] sm:$0xff]
  %v359 = vld [vmem:[%s5 + $0x3e0] sm:$0xff]
  %v360 = vld [vmem:[%s5 + $0x3f0] sm:$0xff]
  %v361 = vld [vmem:[%s5 + $0x8] sm:$0xff]
  %v362 = vld [vmem:[%s5 + $0x18] sm:$0xff]
  %v363 = vld [vmem:[%s5 + $0x28] sm:$0xff]
  %v364 = vld [vmem:[%s5 + $0x38] sm:$0xff]
  %v365 = vld [vmem:[%s5 + $0x48] sm:$0xff]
  %v366 = vld [vmem:[%s5 + $0x58] sm:$0xff]
  %v367 = vld [vmem:[%s5 + $0x68] sm:$0xff]
  %v368 = vld [vmem:[%s5 + $0x78] sm:$0xff]
  %v369 = vld [vmem:[%s5 + $0x88] sm:$0xff]
  %v370 = vld [vmem:[%s5 + $0x98] sm:$0xff]
  %v371 = vld [vmem:[%s5 + $0xa8] sm:$0xff]
  %v372 = vld [vmem:[%s5 + $0xb8] sm:$0xff]
  %v373 = vld [vmem:[%s5 + $0xc8] sm:$0xff]
  %v374 = vld [vmem:[%s5 + $0xd8] sm:$0xff]
  %v375 = vld [vmem:[%s5 + $0xe8] sm:$0xff]
  %v376 = vld [vmem:[%s5 + $0xf8] sm:$0xff]
  %v377 = vld [vmem:[%s5 + $0x108] sm:$0xff]
  %v378 = vld [vmem:[%s5 + $0x118] sm:$0xff]
  %v379 = vld [vmem:[%s5 + $0x128] sm:$0xff]
  %v380 = vld [vmem:[%s5 + $0x138] sm:$0xff]
  %v381 = vld [vmem:[%s5 + $0x148] sm:$0xff]
  %v382 = vld [vmem:[%s5 + $0x158] sm:$0xff]
  %v383 = vld [vmem:[%s5 + $0x168] sm:$0xff]
  %v384 = vld [vmem:[%s5 + $0x178] sm:$0xff]
  %v385 = vld [vmem:[%s5 + $0x188] sm:$0xff]
  %v386 = vld [vmem:[%s5 + $0x198] sm:$0xff]
  %v387 = vld [vmem:[%s5 + $0x1a8] sm:$0xff]
  %v388 = vld [vmem:[%s5 + $0x1b8] sm:$0xff]
  %v389 = vld [vmem:[%s5 + $0x1c8] sm:$0xff]
  %v390 = vld [vmem:[%s5 + $0x1d8] sm:$0xff]
  %v391 = vld [vmem:[%s5 + $0x1e8] sm:$0xff]
  %v392 = vld [vmem:[%s5 + $0x1f8] sm:$0xff]
  %v393 = vld [vmem:[%s5 + $0x208] sm:$0xff]
  %v394 = vld [vmem:[%s5 + $0x218] sm:$0xff]
  %v395 = vld [vmem:[%s5 + $0x228] sm:$0xff]
  %v396 = vld [vmem:[%s5 + $0x238] sm:$0xff]
  %v397 = vld [vmem:[%s5 + $0x248] sm:$0xff]
  %v398 = vld [vmem:[%s5 + $0x258] sm:$0xff]
  %v399 = vld [vmem:[%s5 + $0x268] sm:$0xff]
  %v400 = vld [vmem:[%s5 + $0x278] sm:$0xff]
  %v401 = vld [vmem:[%s5 + $0x288] sm:$0xff]
  %v402 = vld [vmem:[%s5 + $0x298] sm:$0xff]
  %v403 = vld [vmem:[%s5 + $0x2a8] sm:$0xff]
  %v404 = vld [vmem:[%s5 + $0x2b8] sm:$0xff]
  %v405 = vld [vmem:[%s5 + $0x2c8] sm:$0xff]
  %v406 = vld [vmem:[%s5 + $0x2d8] sm:$0xff]
  %v407 = vld [vmem:[%s5 + $0x2e8] sm:$0xff]
  %v408 = vld [vmem:[%s5 + $0x2f8] sm:$0xff]
  %v409 = vld [vmem:[%s5 + $0x308] sm:$0xff]
  %v410 = vld [vmem:[%s5 + $0x318] sm:$0xff]
  %v411 = vld [vmem:[%s5 + $0x328] sm:$0xff]
  %v412 = vld [vmem:[%s5 + $0x338] sm:$0xff]
  %v413 = vld [vmem:[%s5 + $0x348] sm:$0xff]
  %v414 = vld [vmem:[%s5 + $0x358] sm:$0xff]
  %v415 = vld [vmem:[%s5 + $0x368] sm:$0xff]
  %v416 = vld [vmem:[%s5 + $0x378] sm:$0xff]
  %v417 = vld [vmem:[%s5 + $0x388] sm:$0xff]
  %v418 = vld [vmem:[%s5 + $0x398] sm:$0xff]
  %v419 = vld [vmem:[%s5 + $0x3a8] sm:$0xff]
  %v420 = vld [vmem:[%s5 + $0x3b8] sm:$0xff]
  %v421 = vld [vmem:[%s5 + $0x3c8] sm:$0xff]
  %v422 = vld [vmem:[%s5 + $0x3d8] sm:$0xff]
  %v423 = vld [vmem:[%s5 + $0x3e8] sm:$0xff]
  %v424 = vld [vmem:[%s5 + $0x3f8] sm:$0xff]
  %v425 = vld [vmem:[%s2] sm:$0x1]
  %v426 = vld [vmem:[%s2 + $0x1] sm:$0x1]
  %v427 = vld [vmem:[%s3] sm:$0xff]
  %v428 = vld [vmem:[%s3 + $0x10] sm:$0xff]
  %v429 = vld [vmem:[%s3 + $0x20] sm:$0xff]
  %v430 = vld [vmem:[%s3 + $0x30] sm:$0xff]
  %v431 = vld [vmem:[%s3 + $0x8] sm:$0xff]
  %v432 = vld [vmem:[%s3 + $0x18] sm:$0xff]
  %v433 = vld [vmem:[%s3 + $0x28] sm:$0xff]
  %v434 = vld [vmem:[%s3 + $0x38] sm:$0xff]
  %v435 = vld [vmem:[%s3 + $0x48] sm:$0xff]
  %v436 = vld [vmem:[%s3 + $0x58] sm:$0xff]
  %v437 = vld [vmem:[%s3 + $0x68] sm:$0xff]
  %v438 = vld [vmem:[%s3 + $0x78] sm:$0xff]
  %vm439 = vcmask 261120
  %v440 = vsel %vm439, %v171, 0.0
  %441 = vadd.xlane.f32.xlu0 %v440
  %v442 = vpop.xlane.xlu0 %441
  %v443 = vsel %vm439, %v176, 0.0
  %444 = vadd.xlane.f32.xlu0 %v443
  %v445 = vpop.xlane.xlu0 %444
  %v446 = vsel %vm439, %v181, 0.0
  %447 = vadd.xlane.f32.xlu0 %v446
  %v448 = vpop.xlane.xlu0 %447
  %v449 = vsel %vm439, %v186, 0.0
  %450 = vadd.xlane.f32.xlu0 %v449
  %v451 = vpop.xlane.xlu0 %450
  %v452 = vsel %vm439, %v191, 0.0
  %453 = vadd.xlane.f32.xlu0 %v452
  %v454 = vpop.xlane.xlu0 %453
  %v455 = vsel %vm439, %v196, 0.0
  %456 = vadd.xlane.f32.xlu0 %v455
  %v457 = vpop.xlane.xlu0 %456
  %v458 = vsel %vm439, %v201, 0.0
  %459 = vadd.xlane.f32.xlu0 %v458
  %v460 = vpop.xlane.xlu0 %459
  %v461 = vsel %vm439, %v206, 0.0
  %462 = vadd.xlane.f32.xlu0 %v461
  %v463 = vpop.xlane.xlu0 %462
  %v464 = vsel %vm439, %v211, 0.0
  %465 = vadd.xlane.f32.xlu0 %v464
  %v466 = vpop.xlane.xlu0 %465
  %v467 = vsel %vm439, %v216, 0.0
  %468 = vadd.xlane.f32.xlu0 %v467
  %v469 = vpop.xlane.xlu0 %468
  %v470 = vsel %vm439, %v221, 0.0
  %471 = vadd.xlane.f32.xlu0 %v470
  %v472 = vpop.xlane.xlu0 %471
  %v473 = vsel %vm439, %v226, 0.0
  %474 = vadd.xlane.f32.xlu0 %v473
  %v475 = vpop.xlane.xlu0 %474
  %v476 = vsel %vm439, %v231, 0.0
  %477 = vadd.xlane.f32.xlu0 %v476
  %v478 = vpop.xlane.xlu0 %477
  %v479 = vsel %vm439, %v236, 0.0
  %480 = vadd.xlane.f32.xlu0 %v479
  %v481 = vpop.xlane.xlu0 %480
  %v482 = vsel %vm439, %v241, 0.0
  %483 = vadd.xlane.f32.xlu0 %v482
  %v484 = vpop.xlane.xlu0 %483
  %v485 = vsel %vm439, %v246, 0.0
  %486 = vadd.xlane.f32.xlu0 %v485
  %v487 = vpop.xlane.xlu0 %486
  %v488 = vrcp.pop 32.0
  %v489 = vmul.f32 %v442, %v488
  %v490 = vmul.f32 %v445, %v488
  %v491 = vmul.f32 %v448, %v488
  %v492 = vmul.f32 %v451, %v488
  %v493 = vmul.f32 %v454, %v488
  %v494 = vmul.f32 %v457, %v488
  %v495 = vmul.f32 %v460, %v488
  %v496 = vmul.f32 %v463, %v488
  %v497 = vmul.f32 %v466, %v488
  %v498 = vmul.f32 %v469, %v488
  %v499 = vmul.f32 %v472, %v488
  %v500 = vmul.f32 %v475, %v488
  %v501 = vmul.f32 %v478, %v488
  %v502 = vmul.f32 %v481, %v488
  %v503 = vmul.f32 %v484, %v488
  %v504 = vmul.f32 %v487, %v488
  %v505 = vsub.f32 %v171, %v489
  %v506 = vsub.f32 %v176, %v490
  %v507 = vsub.f32 %v181, %v491
  %v508 = vsub.f32 %v186, %v492
  %v509 = vsub.f32 %v191, %v493
  %v510 = vsub.f32 %v196, %v494
  %v511 = vsub.f32 %v201, %v495
  %v512 = vsub.f32 %v206, %v496
  %v513 = vsub.f32 %v211, %v497
  %v514 = vsub.f32 %v216, %v498
  %v515 = vsub.f32 %v221, %v499
  %v516 = vsub.f32 %v226, %v500
  %v517 = vsub.f32 %v231, %v501
  %v518 = vsub.f32 %v236, %v502
  %v519 = vsub.f32 %v241, %v503
  %v520 = vsub.f32 %v246, %v504
  %v521 = vmul.f32 %v505, %v505
  %v522 = vmul.f32 %v506, %v506
  %v523 = vmul.f32 %v507, %v507
  %v524 = vmul.f32 %v508, %v508
  %v525 = vmul.f32 %v509, %v509
  %v526 = vmul.f32 %v510, %v510
  %v527 = vmul.f32 %v511, %v511
  %v528 = vmul.f32 %v512, %v512
  %v529 = vmul.f32 %v513, %v513
  %v530 = vmul.f32 %v514, %v514
  %v531 = vmul.f32 %v515, %v515
  %v532 = vmul.f32 %v516, %v516
  %v533 = vmul.f32 %v517, %v517
  %v534 = vmul.f32 %v518, %v518
  %v535 = vmul.f32 %v519, %v519
  %v536 = vmul.f32 %v520, %v520
  %v537 = vsel %vm439, %v521, 0.0
  %538 = vadd.xlane.f32.xlu0 %v537
  %v539 = vpop.xlane.xlu0 %538
  %v540 = vsel %vm439, %v522, 0.0
  %541 = vadd.xlane.f32.xlu0 %v540
  %v542 = vpop.xlane.xlu0 %541
  %v543 = vsel %vm439, %v523, 0.0
  %544 = vadd.xlane.f32.xlu0 %v543
  %v545 = vpop.xlane.xlu0 %544
  %v546 = vsel %vm439, %v524, 0.0
  %547 = vadd.xlane.f32.xlu0 %v546
  %v548 = vpop.xlane.xlu0 %547
  %v549 = vsel %vm439, %v525, 0.0
  %550 = vadd.xlane.f32.xlu0 %v549
  %v551 = vpop.xlane.xlu0 %550
  %v552 = vsel %vm439, %v526, 0.0
  %553 = vadd.xlane.f32.xlu0 %v552
  %v554 = vpop.xlane.xlu0 %553
  %v555 = vsel %vm439, %v527, 0.0
  %556 = vadd.xlane.f32.xlu0 %v555
  %v557 = vpop.xlane.xlu0 %556
  %v558 = vsel %vm439, %v528, 0.0
  %559 = vadd.xlane.f32.xlu0 %v558
  %v560 = vpop.xlane.xlu0 %559
  %v561 = vsel %vm439, %v529, 0.0
  %562 = vadd.xlane.f32.xlu0 %v561
  %v563 = vpop.xlane.xlu0 %562
  %v564 = vsel %vm439, %v530, 0.0
  %565 = vadd.xlane.f32.xlu0 %v564
  %v566 = vpop.xlane.xlu0 %565
  %v567 = vsel %vm439, %v531, 0.0
  %568 = vadd.xlane.f32.xlu0 %v567
  %v569 = vpop.xlane.xlu0 %568
  %v570 = vsel %vm439, %v532, 0.0
  %571 = vadd.xlane.f32.xlu0 %v570
  %v572 = vpop.xlane.xlu0 %571
  %v573 = vsel %vm439, %v533, 0.0
  %574 = vadd.xlane.f32.xlu0 %v573
  %v575 = vpop.xlane.xlu0 %574
  %v576 = vsel %vm439, %v534, 0.0
  %577 = vadd.xlane.f32.xlu0 %v576
  %v578 = vpop.xlane.xlu0 %577
  %v579 = vsel %vm439, %v535, 0.0
  %580 = vadd.xlane.f32.xlu0 %v579
  %v581 = vpop.xlane.xlu0 %580
  %v582 = vsel %vm439, %v536, 0.0
  %583 = vadd.xlane.f32.xlu0 %v582
  %v584 = vpop.xlane.xlu0 %583
  %v585 = vmul.f32 %v539, %v488
  %v586 = vmul.f32 %v542, %v488
  %v587 = vmul.f32 %v545, %v488
  %v588 = vmul.f32 %v548, %v488
  %v589 = vmul.f32 %v551, %v488
  %v590 = vmul.f32 %v554, %v488
  %v591 = vmul.f32 %v557, %v488
  %v592 = vmul.f32 %v560, %v488
  %v593 = vmul.f32 %v563, %v488
  %v594 = vmul.f32 %v566, %v488
  %v595 = vmul.f32 %v569, %v488
  %v596 = vmul.f32 %v572, %v488
  %v597 = vmul.f32 %v575, %v488
  %v598 = vmul.f32 %v578, %v488
  %v599 = vmul.f32 %v581, %v488
  %v600 = vmul.f32 %v584, %v488
  %v601 = vadd.f32 %v585, 1e-05
  %v602 = vadd.f32 %v586, 1e-05
  %v603 = vadd.f32 %v587, 1e-05
  %v604 = vadd.f32 %v588, 1e-05
  %v605 = vadd.f32 %v589, 1e-05
  %v606 = vadd.f32 %v590, 1e-05
  %v607 = vadd.f32 %v591, 1e-05
  %v608 = vadd.f32 %v592, 1e-05
  %v609 = vadd.f32 %v593, 1e-05
  %v610 = vadd.f32 %v594, 1e-05
  %v611 = vadd.f32 %v595, 1e-05
  %v612 = vadd.f32 %v596, 1e-05
  %v613 = vadd.f32 %v597, 1e-05
  %v614 = vadd.f32 %v598, 1e-05
  %v615 = vadd.f32 %v599, 1e-05
  %v616 = vadd.f32 %v600, 1e-05
  %v617 = vrsqrt.pop %v601
  %v618 = vrsqrt.pop %v602
  %v619 = vrsqrt.pop %v603
  %v620 = vrsqrt.pop %v604
  %v621 = vrsqrt.pop %v605
  %v622 = vrsqrt.pop %v606
  %v623 = vrsqrt.pop %v607
  %v624 = vrsqrt.pop %v608
  %v625 = vrsqrt.pop %v609
  %v626 = vrsqrt.pop %v610
  %v627 = vrsqrt.pop %v611
  %v628 = vrsqrt.pop %v612
  %v629 = vrsqrt.pop %v613
  %v630 = vrsqrt.pop %v614
  %v631 = vrsqrt.pop %v615
  %v632 = vrsqrt.pop %v616
  %v633 = vmul.f32 %v505, %v617
  %v634 = vmul.f32 %v506, %v618
  %v635 = vmul.f32 %v507, %v619
  %v636 = vmul.f32 %v508, %v620
  %v637 = vmul.f32 %v509, %v621
  %v638 = vmul.f32 %v510, %v622
  %v639 = vmul.f32 %v511, %v623
  %v640 = vmul.f32 %v512, %v624
  %v641 = vmul.f32 %v513, %v625
  %v642 = vmul.f32 %v514, %v626
  %v643 = vmul.f32 %v515, %v627
  %v644 = vmul.f32 %v516, %v628
  %v645 = vmul.f32 %v517, %v629
  %v646 = vmul.f32 %v518, %v630
  %v647 = vmul.f32 %v519, %v631
  %v648 = vmul.f32 %v520, %v632
  %v649 = vlaneseq
  %v650 = vshrl.u32 %v649, 7
  %v651 = vsub.s32 0, %v650
  %v652 = vrot.slane %v425, %v651
  %v653 = vmul.f32 %v633, %v652
  %v654 = vmul.f32 %v634, %v652
  %v655 = vmul.f32 %v635, %v652
  %v656 = vmul.f32 %v636, %v652
  %v657 = vmul.f32 %v637, %v652
  %v658 = vmul.f32 %v638, %v652
  %v659 = vmul.f32 %v639, %v652
  %v660 = vmul.f32 %v640, %v652
  %v661 = vmul.f32 %v641, %v652
  %v662 = vmul.f32 %v642, %v652
  %v663 = vmul.f32 %v643, %v652
  %v664 = vmul.f32 %v644, %v652
  %v665 = vmul.f32 %v645, %v652
  %v666 = vmul.f32 %v646, %v652
  %v667 = vmul.f32 %v647, %v652
  %v668 = vmul.f32 %v648, %v652
  %v670 = vsel %vm439, %v653, 0
  %v673 = vsel %vm439, %v654, 0
  %v676 = vsel %vm439, %v655, 0
  %v679 = vsel %vm439, %v656, 0
  %v682 = vsel %vm439, %v657, 0
  %v685 = vsel %vm439, %v658, 0
  %v688 = vsel %vm439, %v659, 0
  %v691 = vsel %vm439, %v660, 0
  %v694 = vsel %vm439, %v661, 0
  %v697 = vsel %vm439, %v662, 0
  %v700 = vsel %vm439, %v663, 0
  %v703 = vsel %vm439, %v664, 0
  %v706 = vsel %vm439, %v665, 0
  %v709 = vsel %vm439, %v666, 0
  %v712 = vsel %vm439, %v667, 0
  %v715 = vsel %vm439, %v668, 0
  %717 = vmatprep.subr.mxu0 0.0
  %718 = vmatpush1.msra.mxu0 %v427
  %719 = vmatprep.subr.mxu0 0.0
  %720 = vmatpush1.msra.mxu0 %v428
  %721 = vmatprep.subr.mxu0 0.0
  %722 = vmatpush1.msra.mxu0 %v429
  %723 = vmatprep.subr.mxu0 0.0
  %724 = vmatpush1.msra.mxu0 %v430
  %725 = vmatprep.subr.mxu0 0.0
  %726 = vmatpush1.msra.mxu0 0.0
  %727 = vmatprep.subr.mxu0 0.0
  %728 = vmatpush1.msra.mxu0 0.0
  %729 = vmatprep.subr.mxu0 0.0
  %730 = vmatpush1.msra.mxu0 0.0
  %731 = vmatprep.subr.mxu0 0.0
  %732 = vmatpush1.msra.mxu0 0.0
  %733 = vmatprep.subr.mxu0 0.0
  %734 = vmatpush1.msra.mxu0 0.0
  %735 = vmatprep.subr.mxu0 0.0
  %736 = vmatpush1.msra.mxu0 0.0
  %737 = vmatprep.subr.mxu0 0.0
  %738 = vmatpush1.msra.mxu0 0.0
  %739 = vmatprep.subr.mxu0 0.0
  %740 = vmatpush1.msra.mxu0 0.0
  %741 = vmatprep.subr.mxu0 0.0
  %742 = vmatpush1.msra.mxu0 0.0
  %743 = vmatprep.subr.mxu0 0.0
  %744 = vmatpush1.msra.mxu0 0.0
  %745 = vmatprep.subr.mxu0 0.0
  %746 = vmatpush1.msra.mxu0 0.0
  %747 = vmatprep.subr.mxu0 0.0
  %748 = vmatpush1.msra.mxu0 0.0
  %749 = vmatprep.subr.mxu0 0.0
  %750 = vmatpush1.msra.mxu0 0.0
  %751 = vmatprep.subr.mxu0 0.0
  %752 = vmatpush1.msra.mxu0 0.0
  %753 = vmatprep.subr.mxu0 0.0
  %754 = vmatpush1.msra.mxu0 0.0
  %755 = vmatprep.subr.mxu0 0.0
  %756 = vmatpush1.msra.mxu0 0.0
  %757 = vmatprep.subr.mxu0 0.0
  %758 = vmatpush1.msra.mxu0 0.0
  %759 = vmatprep.subr.mxu0 0.0
  %760 = vmatpush1.msra.mxu0 0.0
  %761 = vmatprep.subr.mxu0 0.0
  %762 = vmatpush1.msra.mxu0 0.0
  %763 = vmatprep.subr.mxu0 0.0
  %764 = vmatpush1.msra.mxu0 0.0
  %765 = vmatprep.subr.mxu0 0.0
  %766 = vmatpush1.msra.mxu0 0.0
  %767 = vmatprep.subr.mxu0 0.0
  %768 = vmatpush1.msra.mxu0 0.0
  %769 = vmatprep.subr.mxu0 0.0
  %770 = vmatpush1.msra.mxu0 0.0
  %771 = vmatprep.subr.mxu0 0.0
  %772 = vmatpush1.msra.mxu0 0.0
  %773 = vmatprep.subr.mxu0 0.0
  %774 = vmatpush1.msra.mxu0 0.0
  %775 = vmatprep.subr.mxu0 0.0
  %776 = vmatpush1.msra.mxu0 0.0
  %777 = vmatprep.subr.mxu0 0.0
  %778 = vmatpush1.msra.mxu0 0.0
  %779 = vmatprep.subr.mxu0 0.0
  %780 = vmatpush1.msra.mxu0 0.0
  %781 = vmatprep.mubr.f32.mxu0 0.0
  %782 = vmatmul.mubr.f32.gmra.mrb[0].mxu0 %v670
  %v783 = vpop.f32.mrb[0].mxu0
  %v784 = vadd.f32 0.0, %v783
  %v785 = vpop.f32.mrb[0].mxu0
  %786 = vmatprep.mubr.f32.mxu0 0.0
  %787 = vmatmul.mubr.f32.gmra.mrb[0].mxu0 %v673
  %v788 = vpop.f32.mrb[0].mxu0
  %v789 = vadd.f32 0.0, %v788
  %v790 = vpop.f32.mrb[0].mxu0
  %791 = vmatprep.mubr.f32.mxu0 0.0
  %792 = vmatmul.mubr.f32.gmra.mrb[0].mxu0 %v676
  %v793 = vpop.f32.mrb[0].mxu0
  %v794 = vadd.f32 0.0, %v793
  %v795 = vpop.f32.mrb[0].mxu0
  %796 = vmatprep.mubr.f32.mxu0 0.0
  %797 = vmatmul.mubr.f32.gmra.mrb[0].mxu0 %v679
  %v798 = vpop.f32.mrb[0].mxu0
  %v799 = vadd.f32 0.0, %v798
  %v800 = vpop.f32.mrb[0].mxu0
  %801 = vmatprep.mubr.f32.mxu0 0.0
  %802 = vmatmul.mubr.f32.gmra.mrb[0].mxu0 %v682
  %v803 = vpop.f32.mrb[0].mxu0
  %v804 = vadd.f32 0.0, %v803
  %v805 = vpop.f32.mrb[0].mxu0
  %806 = vmatprep.mubr.f32.mxu0 0.0
  %807 = vmatmul.mubr.f32.gmra.mrb[0].mxu0 %v685
  %v808 = vpop.f32.mrb[0].mxu0
  %v809 = vadd.f32 0.0, %v808
  %v810 = vpop.f32.mrb[0].mxu0
  %811 = vmatprep.mubr.f32.mxu0 0.0
  %812 = vmatmul.mubr.f32.gmra.mrb[0].mxu0 %v688
  %v813 = vpop.f32.mrb[0].mxu0
  %v814 = vadd.f32 0.0, %v813
  %v815 = vpop.f32.mrb[0].mxu0
  %816 = vmatprep.mubr.f32.mxu0 0.0
  %817 = vmatmul.mubr.f32.gmra.mrb[0].mxu0 %v691
  %v818 = vpop.f32.mrb[0].mxu0
  %v819 = vadd.f32 0.0, %v818
  %v820 = vpop.f32.mrb[0].mxu0
  %821 = vmatprep.mubr.f32.mxu0 0.0
  %822 = vmatmul.mubr.f32.gmra.mrb[0].mxu0 %v694
  %v823 = vpop.f32.mrb[0].mxu0
  %v824 = vadd.f32 0.0, %v823
  %v825 = vpop.f32.mrb[0].mxu0
  %826 = vmatprep.mubr.f32.mxu0 0.0
  %827 = vmatmul.mubr.f32.gmra.mrb[0].mxu0 %v697
  %v828 = vpop.f32.mrb[0].mxu0
  %v829 = vadd.f32 0.0, %v828
  %v830 = vpop.f32.mrb[0].mxu0
  %831 = vmatprep.mubr.f32.mxu0 0.0
  %832 = vmatmul.mubr.f32.gmra.mrb[0].mxu0 %v700
  %v833 = vpop.f32.mrb[0].mxu0
  %v834 = vadd.f32 0.0, %v833
  %v835 = vpop.f32.mrb[0].mxu0
  %836 = vmatprep.mubr.f32.mxu0 0.0
  %837 = vmatmul.mubr.f32.gmra.mrb[0].mxu0 %v703
  %v838 = vpop.f32.mrb[0].mxu0
  %v839 = vadd.f32 0.0, %v838
  %v840 = vpop.f32.mrb[0].mxu0
  %841 = vmatprep.mubr.f32.mxu0 0.0
  %842 = vmatmul.mubr.f32.gmra.mrb[0].mxu0 %v706
  %v843 = vpop.f32.mrb[0].mxu0
  %v844 = vadd.f32 0.0, %v843
  %v845 = vpop.f32.mrb[0].mxu0
  %846 = vmatprep.mubr.f32.mxu0 0.0
  %847 = vmatmul.mubr.f32.gmra.mrb[0].mxu0 %v709
  %v848 = vpop.f32.mrb[0].mxu0
  %v849 = vadd.f32 0.0, %v848
  %v850 = vpop.f32.mrb[0].mxu0
  %851 = vmatprep.mubr.f32.mxu0 0.0
  %852 = vmatmul.mubr.f32.gmra.mrb[0].mxu0 %v712
  %v853 = vpop.f32.mrb[0].mxu0
  %v854 = vadd.f32 0.0, %v853
  %v855 = vpop.f32.mrb[0].mxu0
  %856 = vmatprep.mubr.f32.mxu0 0.0
  %857 = vmatmul.mubr.f32.gmra.mrb[0].mxu0 %v715
  %v858 = vpop.f32.mrb[0].mxu0
  %v859 = vadd.f32 0.0, %v858
  %v860 = vpop.f32.mrb[0].mxu0
  %861 = vdwg.mxu0
  %v862 = vmul.f32 %v784, %v249
  %v863 = vmul.f32 %v789, %v250
  %v864 = vmul.f32 %v794, %v251
  %v865 = vmul.f32 %v799, %v252
  %v866 = vmul.f32 %v804, %v253
  %v867 = vmul.f32 %v809, %v254
  %v868 = vmul.f32 %v814, %v255
  %v869 = vmul.f32 %v819, %v256
  %v870 = vmul.f32 %v824, %v257
  %v871 = vmul.f32 %v829, %v258
  %v872 = vmul.f32 %v834, %v259
  %v873 = vmul.f32 %v839, %v260
  %v874 = vmul.f32 %v844, %v261
  %v875 = vmul.f32 %v849, %v262
  %v876 = vmul.f32 %v854, %v263
  %v877 = vmul.f32 %v859, %v264
  %878 = vrot.lane.b32.xlu0 %v784, 127
  %v879 = vpop.permute.xlu0 %878
  %880 = vrot.lane.b32.xlu0 %v789, 127
  %v881 = vpop.permute.xlu0 %880
  %882 = vrot.lane.b32.xlu0 %v794, 127
  %v883 = vpop.permute.xlu0 %882
  %884 = vrot.lane.b32.xlu0 %v799, 127
  %v885 = vpop.permute.xlu0 %884
  %886 = vrot.lane.b32.xlu0 %v804, 127
  %v887 = vpop.permute.xlu0 %886
  %888 = vrot.lane.b32.xlu0 %v809, 127
  %v889 = vpop.permute.xlu0 %888
  %890 = vrot.lane.b32.xlu0 %v814, 127
  %v891 = vpop.permute.xlu0 %890
  %892 = vrot.lane.b32.xlu0 %v819, 127
  %v893 = vpop.permute.xlu0 %892
  %894 = vrot.lane.b32.xlu0 %v824, 127
  %v895 = vpop.permute.xlu0 %894
  %896 = vrot.lane.b32.xlu0 %v829, 127
  %v897 = vpop.permute.xlu0 %896
  %898 = vrot.lane.b32.xlu0 %v834, 127
  %v899 = vpop.permute.xlu0 %898
  %900 = vrot.lane.b32.xlu0 %v839, 127
  %v901 = vpop.permute.xlu0 %900
  %902 = vrot.lane.b32.xlu0 %v844, 127
  %v903 = vpop.permute.xlu0 %902
  %904 = vrot.lane.b32.xlu0 %v849, 127
  %v905 = vpop.permute.xlu0 %904
  %906 = vrot.lane.b32.xlu0 %v854, 127
  %v907 = vpop.permute.xlu0 %906
  %908 = vrot.lane.b32.xlu0 %v859, 127
  %v909 = vpop.permute.xlu0 %908
  %v910 = vmul.f32 %v879, %v265
  %v911 = vmul.f32 %v881, %v266
  %v912 = vmul.f32 %v883, %v267
  %v913 = vmul.f32 %v885, %v268
  %v914 = vmul.f32 %v887, %v269
  %v915 = vmul.f32 %v889, %v270
  %v916 = vmul.f32 %v891, %v271
  %v917 = vmul.f32 %v893, %v272
  %v918 = vmul.f32 %v895, %v273
  %v919 = vmul.f32 %v897, %v274
  %v920 = vmul.f32 %v899, %v275
  %v921 = vmul.f32 %v901, %v276
  %v922 = vmul.f32 %v903, %v277
  %v923 = vmul.f32 %v905, %v278
  %v924 = vmul.f32 %v907, %v279
  %v925 = vmul.f32 %v909, %v280
  %v926 = vadd.f32 %v862, %v910
  %v927 = vadd.f32 %v863, %v911
  %v928 = vadd.f32 %v864, %v912
  %v929 = vadd.f32 %v865, %v913
  %v930 = vadd.f32 %v866, %v914
  %v931 = vadd.f32 %v867, %v915
  %v932 = vadd.f32 %v868, %v916
  %v933 = vadd.f32 %v869, %v917
  %v934 = vadd.f32 %v870, %v918
  %v935 = vadd.f32 %v871, %v919
  %v936 = vadd.f32 %v872, %v920
  %v937 = vadd.f32 %v873, %v921
  %v938 = vadd.f32 %v874, %v922
  %v939 = vadd.f32 %v875, %v923
  %v940 = vadd.f32 %v876, %v924
  %v941 = vadd.f32 %v877, %v925
  %942 = vrot.lane.b32.xlu0 %v784, 1
  %v943 = vpop.permute.xlu0 %942
  %944 = vrot.lane.b32.xlu0 %v789, 1
  %v945 = vpop.permute.xlu0 %944
  %946 = vrot.lane.b32.xlu0 %v794, 1
  %v947 = vpop.permute.xlu0 %946
  %948 = vrot.lane.b32.xlu0 %v799, 1
  %v949 = vpop.permute.xlu0 %948
  %950 = vrot.lane.b32.xlu0 %v804, 1
  %v951 = vpop.permute.xlu0 %950
  %952 = vrot.lane.b32.xlu0 %v809, 1
  %v953 = vpop.permute.xlu0 %952
  %954 = vrot.lane.b32.xlu0 %v814, 1
  %v955 = vpop.permute.xlu0 %954
  %956 = vrot.lane.b32.xlu0 %v819, 1
  %v957 = vpop.permute.xlu0 %956
  %958 = vrot.lane.b32.xlu0 %v824, 1
  %v959 = vpop.permute.xlu0 %958
  %960 = vrot.lane.b32.xlu0 %v829, 1
  %v961 = vpop.permute.xlu0 %960
  %962 = vrot.lane.b32.xlu0 %v834, 1
  %v963 = vpop.permute.xlu0 %962
  %964 = vrot.lane.b32.xlu0 %v839, 1
  %v965 = vpop.permute.xlu0 %964
  %966 = vrot.lane.b32.xlu0 %v844, 1
  %v967 = vpop.permute.xlu0 %966
  %968 = vrot.lane.b32.xlu0 %v849, 1
  %v969 = vpop.permute.xlu0 %968
  %970 = vrot.lane.b32.xlu0 %v854, 1
  %v971 = vpop.permute.xlu0 %970
  %972 = vrot.lane.b32.xlu0 %v859, 1
  %v973 = vpop.permute.xlu0 %972
  %v974 = vmul.f32 %v943, %v281
  %v975 = vmul.f32 %v945, %v282
  %v976 = vmul.f32 %v947, %v283
  %v977 = vmul.f32 %v949, %v284
  %v978 = vmul.f32 %v951, %v285
  %v979 = vmul.f32 %v953, %v286
  %v980 = vmul.f32 %v955, %v287
  %v981 = vmul.f32 %v957, %v288
  %v982 = vmul.f32 %v959, %v289
  %v983 = vmul.f32 %v961, %v290
  %v984 = vmul.f32 %v963, %v291
  %v985 = vmul.f32 %v965, %v292
  %v986 = vmul.f32 %v967, %v293
  %v987 = vmul.f32 %v969, %v294
  %v988 = vmul.f32 %v971, %v295
  %v989 = vmul.f32 %v973, %v296
  %v990 = vadd.f32 %v926, %v974
  %v991 = vadd.f32 %v927, %v975
  %v992 = vadd.f32 %v928, %v976
  %v993 = vadd.f32 %v929, %v977
  %v994 = vadd.f32 %v930, %v978
  %v995 = vadd.f32 %v931, %v979
  %v996 = vadd.f32 %v932, %v980
  %v997 = vadd.f32 %v933, %v981
  %v998 = vadd.f32 %v934, %v982
  %v999 = vadd.f32 %v935, %v983
  %v1000 = vadd.f32 %v936, %v984
  %v1001 = vadd.f32 %v937, %v985
  %v1002 = vadd.f32 %v938, %v986
  %v1003 = vadd.f32 %v939, %v987
  %v1004 = vadd.f32 %v940, %v988
  %v1005 = vadd.f32 %v941, %v989
  %v1006 = vmul.f32 %v990, %v361
  %v1007 = vmul.f32 %v991, %v362
  %v1008 = vmul.f32 %v992, %v363
  %v1009 = vmul.f32 %v993, %v364
  %v1010 = vmul.f32 %v994, %v365
  %v1011 = vmul.f32 %v995, %v366
  %v1012 = vmul.f32 %v996, %v367
  %v1013 = vmul.f32 %v997, %v368
  %v1014 = vmul.f32 %v998, %v369
  %v1015 = vmul.f32 %v999, %v370
  %v1016 = vmul.f32 %v1000, %v371
  %v1017 = vmul.f32 %v1001, %v372
  %v1018 = vmul.f32 %v1002, %v373
  %v1019 = vmul.f32 %v1003, %v374
  %v1020 = vmul.f32 %v1004, %v375
  %v1021 = vmul.f32 %v1005, %v376
  %v1022 = vmul.f32 %v990, %v377
  %v1023 = vmul.f32 %v991, %v378
  %v1024 = vmul.f32 %v992, %v379
  %v1025 = vmul.f32 %v993, %v380
  %v1026 = vmul.f32 %v994, %v381
  %v1027 = vmul.f32 %v995, %v382
  %v1028 = vmul.f32 %v996, %v383
  %v1029 = vmul.f32 %v997, %v384
  %v1030 = vmul.f32 %v998, %v385
  %v1031 = vmul.f32 %v999, %v386
  %v1032 = vmul.f32 %v1000, %v387
  %v1033 = vmul.f32 %v1001, %v388
  %v1034 = vmul.f32 %v1002, %v389
  %v1035 = vmul.f32 %v1003, %v390
  %v1036 = vmul.f32 %v1004, %v391
  %v1037 = vmul.f32 %v1005, %v392
  %v1038 = vmul.f32 %v990, %v393
  %v1039 = vmul.f32 %v991, %v394
  %v1040 = vmul.f32 %v992, %v395
  %v1041 = vmul.f32 %v993, %v396
  %v1042 = vmul.f32 %v994, %v397
  %v1043 = vmul.f32 %v995, %v398
  %v1044 = vmul.f32 %v996, %v399
  %v1045 = vmul.f32 %v997, %v400
  %v1046 = vmul.f32 %v998, %v401
  %v1047 = vmul.f32 %v999, %v402
  %v1048 = vmul.f32 %v1000, %v403
  %v1049 = vmul.f32 %v1001, %v404
  %v1050 = vmul.f32 %v1002, %v405
  %v1051 = vmul.f32 %v1003, %v406
  %v1052 = vmul.f32 %v1004, %v407
  %v1053 = vmul.f32 %v1005, %v408
  %v1054 = vmul.f32 %v990, %v409
  %v1055 = vmul.f32 %v991, %v410
  %v1056 = vmul.f32 %v992, %v411
  %v1057 = vmul.f32 %v993, %v412
  %v1058 = vmul.f32 %v994, %v413
  %v1059 = vmul.f32 %v995, %v414
  %v1060 = vmul.f32 %v996, %v415
  %v1061 = vmul.f32 %v997, %v416
  %v1062 = vmul.f32 %v998, %v417
  %v1063 = vmul.f32 %v999, %v418
  %v1064 = vmul.f32 %v1000, %v419
  %v1065 = vmul.f32 %v1001, %v420
  %v1066 = vmul.f32 %v1002, %v421
  %v1067 = vmul.f32 %v1003, %v422
  %v1068 = vmul.f32 %v1004, %v423
  %v1069 = vmul.f32 %v1005, %v424
  %1086 = vrot.lane.b32.xlu0 %v990, 96
  %v1087 = vpop.permute.xlu0 %1086
  %1088 = vrot.lane.b32.xlu0 %v991, 96
  %v1089 = vpop.permute.xlu0 %1088
  %1090 = vrot.lane.b32.xlu0 %v992, 96
  %v1091 = vpop.permute.xlu0 %1090
  %1092 = vrot.lane.b32.xlu0 %v993, 96
  %v1093 = vpop.permute.xlu0 %1092
  %1094 = vrot.lane.b32.xlu0 %v994, 96
  %v1095 = vpop.permute.xlu0 %1094
  %1096 = vrot.lane.b32.xlu0 %v995, 96
  %v1097 = vpop.permute.xlu0 %1096
  %1098 = vrot.lane.b32.xlu0 %v996, 96
  %v1099 = vpop.permute.xlu0 %1098
  %1100 = vrot.lane.b32.xlu0 %v997, 96
  %v1101 = vpop.permute.xlu0 %1100
  %1102 = vrot.lane.b32.xlu0 %v998, 96
  %v1103 = vpop.permute.xlu0 %1102
  %1104 = vrot.lane.b32.xlu0 %v999, 96
  %v1105 = vpop.permute.xlu0 %1104
  %1106 = vrot.lane.b32.xlu0 %v1000, 96
  %v1107 = vpop.permute.xlu0 %1106
  %1108 = vrot.lane.b32.xlu0 %v1001, 96
  %v1109 = vpop.permute.xlu0 %1108
  %1110 = vrot.lane.b32.xlu0 %v1002, 96
  %v1111 = vpop.permute.xlu0 %1110
  %1112 = vrot.lane.b32.xlu0 %v1003, 96
  %v1113 = vpop.permute.xlu0 %1112
  %1114 = vrot.lane.b32.xlu0 %v1004, 96
  %v1115 = vpop.permute.xlu0 %1114
  %1116 = vrot.lane.b32.xlu0 %v1005, 96
  %v1117 = vpop.permute.xlu0 %1116
  %v1119 = vsel %vm439, %v1006, 0
  %v1122 = vsel %vm439, %v1007, 0
  %v1125 = vsel %vm439, %v1008, 0
  %v1128 = vsel %vm439, %v1009, 0
  %v1131 = vsel %vm439, %v1010, 0
  %v1134 = vsel %vm439, %v1011, 0
  %v1137 = vsel %vm439, %v1012, 0
  %v1140 = vsel %vm439, %v1013, 0
  %v1143 = vsel %vm439, %v1014, 0
  %v1146 = vsel %vm439, %v1015, 0
  %v1149 = vsel %vm439, %v1016, 0
  %v1152 = vsel %vm439, %v1017, 0
  %v1155 = vsel %vm439, %v1018, 0
  %v1158 = vsel %vm439, %v1019, 0
  %v1161 = vsel %vm439, %v1020, 0
  %v1164 = vsel %vm439, %v1021, 0
  %v1167 = vsel %vm439, %v1022, 0
  %v1170 = vsel %vm439, %v1023, 0
  %v1173 = vsel %vm439, %v1024, 0
  %v1176 = vsel %vm439, %v1025, 0
  %v1179 = vsel %vm439, %v1026, 0
  %v1182 = vsel %vm439, %v1027, 0
  %v1185 = vsel %vm439, %v1028, 0
  %v1188 = vsel %vm439, %v1029, 0
  %v1191 = vsel %vm439, %v1030, 0
  %v1194 = vsel %vm439, %v1031, 0
  %v1197 = vsel %vm439, %v1032, 0
  %v1200 = vsel %vm439, %v1033, 0
  %v1203 = vsel %vm439, %v1034, 0
  %v1206 = vsel %vm439, %v1035, 0
  %v1209 = vsel %vm439, %v1036, 0
  %v1212 = vsel %vm439, %v1037, 0
  %v1215 = vsel %vm439, %v1038, 0
  %v1218 = vsel %vm439, %v1039, 0
  %v1221 = vsel %vm439, %v1040, 0
  %v1224 = vsel %vm439, %v1041, 0
  %v1227 = vsel %vm439, %v1042, 0
  %v1230 = vsel %vm439, %v1043, 0
  %v1233 = vsel %vm439, %v1044, 0
  %v1236 = vsel %vm439, %v1045, 0
  %v1239 = vsel %vm439, %v1046, 0
  %v1242 = vsel %vm439, %v1047, 0
  %v1245 = vsel %vm439, %v1048, 0
  %v1248 = vsel %vm439, %v1049, 0
  %v1251 = vsel %vm439, %v1050, 0
  %v1254 = vsel %vm439, %v1051, 0
  %v1257 = vsel %vm439, %v1052, 0
  %v1260 = vsel %vm439, %v1053, 0
  %v1263 = vsel %vm439, %v1054, 0
  %v1266 = vsel %vm439, %v1055, 0
  %v1269 = vsel %vm439, %v1056, 0
  %v1272 = vsel %vm439, %v1057, 0
  %v1275 = vsel %vm439, %v1058, 0
  %v1278 = vsel %vm439, %v1059, 0
  %v1281 = vsel %vm439, %v1060, 0
  %v1284 = vsel %vm439, %v1061, 0
  %v1287 = vsel %vm439, %v1062, 0
  %v1290 = vsel %vm439, %v1063, 0
  %v1293 = vsel %vm439, %v1064, 0
  %v1296 = vsel %vm439, %v1065, 0
  %v1299 = vsel %vm439, %v1066, 0
  %v1302 = vsel %vm439, %v1067, 0
  %v1305 = vsel %vm439, %v1068, 0
  %v1308 = vsel %vm439, %v1069, 0
  %v1310 = vsel %vm439, %v1087, 0
  %v1312 = vsel %vm439, %v1089, 0
  %v1314 = vsel %vm439, %v1091, 0
  %v1316 = vsel %vm439, %v1093, 0
  %v1318 = vsel %vm439, %v1095, 0
  %v1320 = vsel %vm439, %v1097, 0
  %v1322 = vsel %vm439, %v1099, 0
  %v1324 = vsel %vm439, %v1101, 0
  %v1326 = vsel %vm439, %v1103, 0
  %v1328 = vsel %vm439, %v1105, 0
  %v1330 = vsel %vm439, %v1107, 0
  %v1332 = vsel %vm439, %v1109, 0
  %v1334 = vsel %vm439, %v1111, 0
  %v1336 = vsel %vm439, %v1113, 0
  %v1338 = vsel %vm439, %v1115, 0
  %v1340 = vsel %vm439, %v1117, 0
  %1342 = vmatprep.subr.mxu0 0.0
  %1343 = vmatpush1.xpose.msra.mxu0 %v1310
  %1344 = vmatprep.subr.mxu0 0.0
  %1345 = vmatpush1.xpose.msra.mxu0 %v1312
  %1346 = vmatprep.subr.mxu0 0.0
  %1347 = vmatpush1.xpose.msra.mxu0 %v1314
  %1348 = vmatprep.subr.mxu0 0.0
  %1349 = vmatpush1.xpose.msra.mxu0 %v1316
  %1350 = vmatprep.subr.mxu0 0.0
  %1351 = vmatpush1.xpose.msra.mxu0 %v1318
  %1352 = vmatprep.subr.mxu0 0.0
  %1353 = vmatpush1.xpose.msra.mxu0 %v1320
  %1354 = vmatprep.subr.mxu0 0.0
  %1355 = vmatpush1.xpose.msra.mxu0 %v1322
  %1356 = vmatprep.subr.mxu0 0.0
  %1357 = vmatpush1.xpose.msra.mxu0 %v1324
  %1358 = vmatprep.subr.mxu0 0.0
  %1359 = vmatpush1.xpose.msra.mxu0 %v1326
  %1360 = vmatprep.subr.mxu0 0.0
  %1361 = vmatpush1.xpose.msra.mxu0 %v1328
  %1362 = vmatprep.subr.mxu0 0.0
  %1363 = vmatpush1.xpose.msra.mxu0 %v1330
  %1364 = vmatprep.subr.mxu0 0.0
  %1365 = vmatpush1.xpose.msra.mxu0 %v1332
  %1366 = vmatprep.subr.mxu0 0.0
  %1367 = vmatpush1.xpose.msra.mxu0 %v1334
  %1368 = vmatprep.subr.mxu0 0.0
  %1369 = vmatpush1.xpose.msra.mxu0 %v1336
  %1370 = vmatprep.subr.mxu0 0.0
  %1371 = vmatpush1.xpose.msra.mxu0 %v1338
  %1372 = vmatprep.subr.mxu0 0.0
  %1373 = vmatpush1.xpose.msra.mxu0 %v1340
  %1374 = vmatprep.subr.mxu0 0.0
  %1375 = vmatpush1.xpose.msra.mxu0 0.0
  %1376 = vmatprep.subr.mxu0 0.0
  %1377 = vmatpush1.xpose.msra.mxu0 0.0
  %1378 = vmatprep.subr.mxu0 0.0
  %1379 = vmatpush1.xpose.msra.mxu0 0.0
  %1380 = vmatprep.subr.mxu0 0.0
  %1381 = vmatpush1.xpose.msra.mxu0 0.0
  %1382 = vmatprep.subr.mxu0 0.0
  %1383 = vmatpush1.xpose.msra.mxu0 0.0
  %1384 = vmatprep.subr.mxu0 0.0
  %1385 = vmatpush1.xpose.msra.mxu0 0.0
  %1386 = vmatprep.subr.mxu0 0.0
  %1387 = vmatpush1.xpose.msra.mxu0 0.0
  %1388 = vmatprep.subr.mxu0 0.0
  %1389 = vmatpush1.xpose.msra.mxu0 0.0
  %1390 = vmatprep.subr.mxu0 0.0
  %1391 = vmatpush1.xpose.msra.mxu0 0.0
  %1392 = vmatprep.subr.mxu0 0.0
  %1393 = vmatpush1.xpose.msra.mxu0 0.0
  %1394 = vmatprep.subr.mxu0 0.0
  %1395 = vmatpush1.xpose.msra.mxu0 0.0
  %1396 = vmatprep.subr.mxu0 0.0
  %1397 = vmatpush1.xpose.msra.mxu0 0.0
  %1398 = vmatprep.subr.mxu0 0.0
  %1399 = vmatpush1.xpose.msra.mxu0 0.0
  %1400 = vmatprep.subr.mxu0 0.0
  %1401 = vmatpush1.xpose.msra.mxu0 0.0
  %1402 = vmatprep.subr.mxu0 0.0
  %1403 = vmatpush1.xpose.msra.mxu0 0.0
  %1404 = vmatprep.subr.mxu0 0.0
  %1405 = vmatpush1.xpose.msra.mxu0 0.0
  %1406 = vmatprep.mubr.f32.mxu0 0.0
  %1407 = vmatmul.mubr.f32.gmra.mrb[0].mxu0 %v1119
  %v1408 = vpop.f32.mrb[0].mxu0
  %v1409 = vadd.f32 %v297, %v1408
  %v1410 = vpop.f32.mrb[0].mxu0
  %1411 = vmatprep.mubr.f32.mxu0 0.0
  %1412 = vmatmul.mubr.f32.gmra.mrb[0].mxu0 %v1122
  %v1413 = vpop.f32.mrb[0].mxu0
  %v1414 = vadd.f32 %v298, %v1413
  %v1415 = vpop.f32.mrb[0].mxu0
  %1416 = vmatprep.mubr.f32.mxu0 0.0
  %1417 = vmatmul.mubr.f32.gmra.mrb[0].mxu0 %v1125
  %v1418 = vpop.f32.mrb[0].mxu0
  %v1419 = vadd.f32 %v299, %v1418
  %v1420 = vpop.f32.mrb[0].mxu0
  %1421 = vmatprep.mubr.f32.mxu0 0.0
  %1422 = vmatmul.mubr.f32.gmra.mrb[0].mxu0 %v1128
  %v1423 = vpop.f32.mrb[0].mxu0
  %v1424 = vadd.f32 %v300, %v1423
  %v1425 = vpop.f32.mrb[0].mxu0
  %1426 = vmatprep.mubr.f32.mxu0 0.0
  %1427 = vmatmul.mubr.f32.gmra.mrb[0].mxu0 %v1131
  %v1428 = vpop.f32.mrb[0].mxu0
  %v1429 = vadd.f32 %v301, %v1428
  %v1430 = vpop.f32.mrb[0].mxu0
  %1431 = vmatprep.mubr.f32.mxu0 0.0
  %1432 = vmatmul.mubr.f32.gmra.mrb[0].mxu0 %v1134
  %v1433 = vpop.f32.mrb[0].mxu0
  %v1434 = vadd.f32 %v302, %v1433
  %v1435 = vpop.f32.mrb[0].mxu0
  %1436 = vmatprep.mubr.f32.mxu0 0.0
  %1437 = vmatmul.mubr.f32.gmra.mrb[0].mxu0 %v1137
  %v1438 = vpop.f32.mrb[0].mxu0
  %v1439 = vadd.f32 %v303, %v1438
  %v1440 = vpop.f32.mrb[0].mxu0
  %1441 = vmatprep.mubr.f32.mxu0 0.0
  %1442 = vmatmul.mubr.f32.gmra.mrb[0].mxu0 %v1140
  %v1443 = vpop.f32.mrb[0].mxu0
  %v1444 = vadd.f32 %v304, %v1443
  %v1445 = vpop.f32.mrb[0].mxu0
  %1446 = vmatprep.mubr.f32.mxu0 0.0
  %1447 = vmatmul.mubr.f32.gmra.mrb[0].mxu0 %v1143
  %v1448 = vpop.f32.mrb[0].mxu0
  %v1449 = vadd.f32 %v305, %v1448
  %v1450 = vpop.f32.mrb[0].mxu0
  %1451 = vmatprep.mubr.f32.mxu0 0.0
  %1452 = vmatmul.mubr.f32.gmra.mrb[0].mxu0 %v1146
  %v1453 = vpop.f32.mrb[0].mxu0
  %v1454 = vadd.f32 %v306, %v1453
  %v1455 = vpop.f32.mrb[0].mxu0
  %1456 = vmatprep.mubr.f32.mxu0 0.0
  %1457 = vmatmul.mubr.f32.gmra.mrb[0].mxu0 %v1149
  %v1458 = vpop.f32.mrb[0].mxu0
  %v1459 = vadd.f32 %v307, %v1458
  %v1460 = vpop.f32.mrb[0].mxu0
  %1461 = vmatprep.mubr.f32.mxu0 0.0
  %1462 = vmatmul.mubr.f32.gmra.mrb[0].mxu0 %v1152
  %v1463 = vpop.f32.mrb[0].mxu0
  %v1464 = vadd.f32 %v308, %v1463
  %v1465 = vpop.f32.mrb[0].mxu0
  %1466 = vmatprep.mubr.f32.mxu0 0.0
  %1467 = vmatmul.mubr.f32.gmra.mrb[0].mxu0 %v1155
  %v1468 = vpop.f32.mrb[0].mxu0
  %v1469 = vadd.f32 %v309, %v1468
  %v1470 = vpop.f32.mrb[0].mxu0
  %1471 = vmatprep.mubr.f32.mxu0 0.0
  %1472 = vmatmul.mubr.f32.gmra.mrb[0].mxu0 %v1158
  %v1473 = vpop.f32.mrb[0].mxu0
  %v1474 = vadd.f32 %v310, %v1473
  %v1475 = vpop.f32.mrb[0].mxu0
  %1476 = vmatprep.mubr.f32.mxu0 0.0
  %1477 = vmatmul.mubr.f32.gmra.mrb[0].mxu0 %v1161
  %v1478 = vpop.f32.mrb[0].mxu0
  %v1479 = vadd.f32 %v311, %v1478
  %v1480 = vpop.f32.mrb[0].mxu0
  %1481 = vmatprep.mubr.f32.mxu0 0.0
  %1482 = vmatmul.mubr.f32.gmra.mrb[0].mxu0 %v1164
  %v1483 = vpop.f32.mrb[0].mxu0
  %v1484 = vadd.f32 %v312, %v1483
  %v1485 = vpop.f32.mrb[0].mxu0
  %1486 = vmatprep.mubr.f32.mxu0 0.0
  %1487 = vmatmul.mubr.f32.gmra.mrb[0].mxu0 %v1167
  %v1488 = vpop.f32.mrb[0].mxu0
  %v1489 = vadd.f32 %v313, %v1488
  %v1490 = vpop.f32.mrb[0].mxu0
  %1491 = vmatprep.mubr.f32.mxu0 0.0
  %1492 = vmatmul.mubr.f32.gmra.mrb[0].mxu0 %v1170
  %v1493 = vpop.f32.mrb[0].mxu0
  %v1494 = vadd.f32 %v314, %v1493
  %v1495 = vpop.f32.mrb[0].mxu0
  %1496 = vmatprep.mubr.f32.mxu0 0.0
  %1497 = vmatmul.mubr.f32.gmra.mrb[0].mxu0 %v1173
  %v1498 = vpop.f32.mrb[0].mxu0
  %v1499 = vadd.f32 %v315, %v1498
  %v1500 = vpop.f32.mrb[0].mxu0
  %1501 = vmatprep.mubr.f32.mxu0 0.0
  %1502 = vmatmul.mubr.f32.gmra.mrb[0].mxu0 %v1176
  %v1503 = vpop.f32.mrb[0].mxu0
  %v1504 = vadd.f32 %v316, %v1503
  %v1505 = vpop.f32.mrb[0].mxu0
  %1506 = vmatprep.mubr.f32.mxu0 0.0
  %1507 = vmatmul.mubr.f32.gmra.mrb[0].mxu0 %v1179
  %v1508 = vpop.f32.mrb[0].mxu0
  %v1509 = vadd.f32 %v317, %v1508
  %v1510 = vpop.f32.mrb[0].mxu0
  %1511 = vmatprep.mubr.f32.mxu0 0.0
  %1512 = vmatmul.mubr.f32.gmra.mrb[0].mxu0 %v1182
  %v1513 = vpop.f32.mrb[0].mxu0
  %v1514 = vadd.f32 %v318, %v1513
  %v1515 = vpop.f32.mrb[0].mxu0
  %1516 = vmatprep.mubr.f32.mxu0 0.0
  %1517 = vmatmul.mubr.f32.gmra.mrb[0].mxu0 %v1185
  %v1518 = vpop.f32.mrb[0].mxu0
  %v1519 = vadd.f32 %v319, %v1518
  %v1520 = vpop.f32.mrb[0].mxu0
  %1521 = vmatprep.mubr.f32.mxu0 0.0
  %1522 = vmatmul.mubr.f32.gmra.mrb[0].mxu0 %v1188
  %v1523 = vpop.f32.mrb[0].mxu0
  %v1524 = vadd.f32 %v320, %v1523
  %v1525 = vpop.f32.mrb[0].mxu0
  %1526 = vmatprep.mubr.f32.mxu0 0.0
  %1527 = vmatmul.mubr.f32.gmra.mrb[0].mxu0 %v1191
  %v1528 = vpop.f32.mrb[0].mxu0
  %v1529 = vadd.f32 %v321, %v1528
  %v1530 = vpop.f32.mrb[0].mxu0
  %1531 = vmatprep.mubr.f32.mxu0 0.0
  %1532 = vmatmul.mubr.f32.gmra.mrb[0].mxu0 %v1194
  %v1533 = vpop.f32.mrb[0].mxu0
  %v1534 = vadd.f32 %v322, %v1533
  %v1535 = vpop.f32.mrb[0].mxu0
  %1536 = vmatprep.mubr.f32.mxu0 0.0
  %1537 = vmatmul.mubr.f32.gmra.mrb[0].mxu0 %v1197
  %v1538 = vpop.f32.mrb[0].mxu0
  %v1539 = vadd.f32 %v323, %v1538
  %v1540 = vpop.f32.mrb[0].mxu0
  %1541 = vmatprep.mubr.f32.mxu0 0.0
  %1542 = vmatmul.mubr.f32.gmra.mrb[0].mxu0 %v1200
  %v1543 = vpop.f32.mrb[0].mxu0
  %v1544 = vadd.f32 %v324, %v1543
  %v1545 = vpop.f32.mrb[0].mxu0
  %1546 = vmatprep.mubr.f32.mxu0 0.0
  %1547 = vmatmul.mubr.f32.gmra.mrb[0].mxu0 %v1203
  %v1548 = vpop.f32.mrb[0].mxu0
  %v1549 = vadd.f32 %v325, %v1548
  %v1550 = vpop.f32.mrb[0].mxu0
  %1551 = vmatprep.mubr.f32.mxu0 0.0
  %1552 = vmatmul.mubr.f32.gmra.mrb[0].mxu0 %v1206
  %v1553 = vpop.f32.mrb[0].mxu0
  %v1554 = vadd.f32 %v326, %v1553
  %v1555 = vpop.f32.mrb[0].mxu0
  %1556 = vmatprep.mubr.f32.mxu0 0.0
  %1557 = vmatmul.mubr.f32.gmra.mrb[0].mxu0 %v1209
  %v1558 = vpop.f32.mrb[0].mxu0
  %v1559 = vadd.f32 %v327, %v1558
  %v1560 = vpop.f32.mrb[0].mxu0
  %1561 = vmatprep.mubr.f32.mxu0 0.0
  %1562 = vmatmul.mubr.f32.gmra.mrb[0].mxu0 %v1212
  %v1563 = vpop.f32.mrb[0].mxu0
  %v1564 = vadd.f32 %v328, %v1563
  %v1565 = vpop.f32.mrb[0].mxu0
  %1566 = vmatprep.mubr.f32.mxu0 0.0
  %1567 = vmatmul.mubr.f32.gmra.mrb[0].mxu0 %v1215
  %v1568 = vpop.f32.mrb[0].mxu0
  %v1569 = vadd.f32 %v329, %v1568
  %v1570 = vpop.f32.mrb[0].mxu0
  %1571 = vmatprep.mubr.f32.mxu0 0.0
  %1572 = vmatmul.mubr.f32.gmra.mrb[0].mxu0 %v1218
  %v1573 = vpop.f32.mrb[0].mxu0
  %v1574 = vadd.f32 %v330, %v1573
  %v1575 = vpop.f32.mrb[0].mxu0
  %1576 = vmatprep.mubr.f32.mxu0 0.0
  %1577 = vmatmul.mubr.f32.gmra.mrb[0].mxu0 %v1221
  %v1578 = vpop.f32.mrb[0].mxu0
  %v1579 = vadd.f32 %v331, %v1578
  %v1580 = vpop.f32.mrb[0].mxu0
  %1581 = vmatprep.mubr.f32.mxu0 0.0
  %1582 = vmatmul.mubr.f32.gmra.mrb[0].mxu0 %v1224
  %v1583 = vpop.f32.mrb[0].mxu0
  %v1584 = vadd.f32 %v332, %v1583
  %v1585 = vpop.f32.mrb[0].mxu0
  %1586 = vmatprep.mubr.f32.mxu0 0.0
  %1587 = vmatmul.mubr.f32.gmra.mrb[0].mxu0 %v1227
  %v1588 = vpop.f32.mrb[0].mxu0
  %v1589 = vadd.f32 %v333, %v1588
  %v1590 = vpop.f32.mrb[0].mxu0
  %1591 = vmatprep.mubr.f32.mxu0 0.0
  %1592 = vmatmul.mubr.f32.gmra.mrb[0].mxu0 %v1230
  %v1593 = vpop.f32.mrb[0].mxu0
  %v1594 = vadd.f32 %v334, %v1593
  %v1595 = vpop.f32.mrb[0].mxu0
  %1596 = vmatprep.mubr.f32.mxu0 0.0
  %1597 = vmatmul.mubr.f32.gmra.mrb[0].mxu0 %v1233
  %v1598 = vpop.f32.mrb[0].mxu0
  %v1599 = vadd.f32 %v335, %v1598
  %v1600 = vpop.f32.mrb[0].mxu0
  %1601 = vmatprep.mubr.f32.mxu0 0.0
  %1602 = vmatmul.mubr.f32.gmra.mrb[0].mxu0 %v1236
  %v1603 = vpop.f32.mrb[0].mxu0
  %v1604 = vadd.f32 %v336, %v1603
  %v1605 = vpop.f32.mrb[0].mxu0
  %1606 = vmatprep.mubr.f32.mxu0 0.0
  %1607 = vmatmul.mubr.f32.gmra.mrb[0].mxu0 %v1239
  %v1608 = vpop.f32.mrb[0].mxu0
  %v1609 = vadd.f32 %v337, %v1608
  %v1610 = vpop.f32.mrb[0].mxu0
  %1611 = vmatprep.mubr.f32.mxu0 0.0
  %1612 = vmatmul.mubr.f32.gmra.mrb[0].mxu0 %v1242
  %v1613 = vpop.f32.mrb[0].mxu0
  %v1614 = vadd.f32 %v338, %v1613
  %v1615 = vpop.f32.mrb[0].mxu0
  %1616 = vmatprep.mubr.f32.mxu0 0.0
  %1617 = vmatmul.mubr.f32.gmra.mrb[0].mxu0 %v1245
  %v1618 = vpop.f32.mrb[0].mxu0
  %v1619 = vadd.f32 %v339, %v1618
  %v1620 = vpop.f32.mrb[0].mxu0
  %1621 = vmatprep.mubr.f32.mxu0 0.0
  %1622 = vmatmul.mubr.f32.gmra.mrb[0].mxu0 %v1248
  %v1623 = vpop.f32.mrb[0].mxu0
  %v1624 = vadd.f32 %v340, %v1623
  %v1625 = vpop.f32.mrb[0].mxu0
  %1626 = vmatprep.mubr.f32.mxu0 0.0
  %1627 = vmatmul.mubr.f32.gmra.mrb[0].mxu0 %v1251
  %v1628 = vpop.f32.mrb[0].mxu0
  %v1629 = vadd.f32 %v341, %v1628
  %v1630 = vpop.f32.mrb[0].mxu0
  %1631 = vmatprep.mubr.f32.mxu0 0.0
  %1632 = vmatmul.mubr.f32.gmra.mrb[0].mxu0 %v1254
  %v1633 = vpop.f32.mrb[0].mxu0
  %v1634 = vadd.f32 %v342, %v1633
  %v1635 = vpop.f32.mrb[0].mxu0
  %1636 = vmatprep.mubr.f32.mxu0 0.0
  %1637 = vmatmul.mubr.f32.gmra.mrb[0].mxu0 %v1257
  %v1638 = vpop.f32.mrb[0].mxu0
  %v1639 = vadd.f32 %v343, %v1638
  %v1640 = vpop.f32.mrb[0].mxu0
  %1641 = vmatprep.mubr.f32.mxu0 0.0
  %1642 = vmatmul.mubr.f32.gmra.mrb[0].mxu0 %v1260
  %v1643 = vpop.f32.mrb[0].mxu0
  %v1644 = vadd.f32 %v344, %v1643
  %v1645 = vpop.f32.mrb[0].mxu0
  %1646 = vmatprep.mubr.f32.mxu0 0.0
  %1647 = vmatmul.mubr.f32.gmra.mrb[0].mxu0 %v1263
  %v1648 = vpop.f32.mrb[0].mxu0
  %v1649 = vadd.f32 %v345, %v1648
  %v1650 = vpop.f32.mrb[0].mxu0
  %1651 = vmatprep.mubr.f32.mxu0 0.0
  %1652 = vmatmul.mubr.f32.gmra.mrb[0].mxu0 %v1266
  %v1653 = vpop.f32.mrb[0].mxu0
  %v1654 = vadd.f32 %v346, %v1653
  %v1655 = vpop.f32.mrb[0].mxu0
  %1656 = vmatprep.mubr.f32.mxu0 0.0
  %1657 = vmatmul.mubr.f32.gmra.mrb[0].mxu0 %v1269
  %v1658 = vpop.f32.mrb[0].mxu0
  %v1659 = vadd.f32 %v347, %v1658
  %v1660 = vpop.f32.mrb[0].mxu0
  %1661 = vmatprep.mubr.f32.mxu0 0.0
  %1662 = vmatmul.mubr.f32.gmra.mrb[0].mxu0 %v1272
  %v1663 = vpop.f32.mrb[0].mxu0
  %v1664 = vadd.f32 %v348, %v1663
  %v1665 = vpop.f32.mrb[0].mxu0
  %1666 = vmatprep.mubr.f32.mxu0 0.0
  %1667 = vmatmul.mubr.f32.gmra.mrb[0].mxu0 %v1275
  %v1668 = vpop.f32.mrb[0].mxu0
  %v1669 = vadd.f32 %v349, %v1668
  %v1670 = vpop.f32.mrb[0].mxu0
  %1671 = vmatprep.mubr.f32.mxu0 0.0
  %1672 = vmatmul.mubr.f32.gmra.mrb[0].mxu0 %v1278
  %v1673 = vpop.f32.mrb[0].mxu0
  %v1674 = vadd.f32 %v350, %v1673
  %v1675 = vpop.f32.mrb[0].mxu0
  %1676 = vmatprep.mubr.f32.mxu0 0.0
  %1677 = vmatmul.mubr.f32.gmra.mrb[0].mxu0 %v1281
  %v1678 = vpop.f32.mrb[0].mxu0
  %v1679 = vadd.f32 %v351, %v1678
  %v1680 = vpop.f32.mrb[0].mxu0
  %1681 = vmatprep.mubr.f32.mxu0 0.0
  %1682 = vmatmul.mubr.f32.gmra.mrb[0].mxu0 %v1284
  %v1683 = vpop.f32.mrb[0].mxu0
  %v1684 = vadd.f32 %v352, %v1683
  %v1685 = vpop.f32.mrb[0].mxu0
  %1686 = vmatprep.mubr.f32.mxu0 0.0
  %1687 = vmatmul.mubr.f32.gmra.mrb[0].mxu0 %v1287
  %v1688 = vpop.f32.mrb[0].mxu0
  %v1689 = vadd.f32 %v353, %v1688
  %v1690 = vpop.f32.mrb[0].mxu0
  %1691 = vmatprep.mubr.f32.mxu0 0.0
  %1692 = vmatmul.mubr.f32.gmra.mrb[0].mxu0 %v1290
  %v1693 = vpop.f32.mrb[0].mxu0
  %v1694 = vadd.f32 %v354, %v1693
  %v1695 = vpop.f32.mrb[0].mxu0
  %1696 = vmatprep.mubr.f32.mxu0 0.0
  %1697 = vmatmul.mubr.f32.gmra.mrb[0].mxu0 %v1293
  %v1698 = vpop.f32.mrb[0].mxu0
  %v1699 = vadd.f32 %v355, %v1698
  %v1700 = vpop.f32.mrb[0].mxu0
  %1701 = vmatprep.mubr.f32.mxu0 0.0
  %1702 = vmatmul.mubr.f32.gmra.mrb[0].mxu0 %v1296
  %v1703 = vpop.f32.mrb[0].mxu0
  %v1704 = vadd.f32 %v356, %v1703
  %v1705 = vpop.f32.mrb[0].mxu0
  %1706 = vmatprep.mubr.f32.mxu0 0.0
  %1707 = vmatmul.mubr.f32.gmra.mrb[0].mxu0 %v1299
  %v1708 = vpop.f32.mrb[0].mxu0
  %v1709 = vadd.f32 %v357, %v1708
  %v1710 = vpop.f32.mrb[0].mxu0
  %1711 = vmatprep.mubr.f32.mxu0 0.0
  %1712 = vmatmul.mubr.f32.gmra.mrb[0].mxu0 %v1302
  %v1713 = vpop.f32.mrb[0].mxu0
  %v1714 = vadd.f32 %v358, %v1713
  %v1715 = vpop.f32.mrb[0].mxu0
  %1716 = vmatprep.mubr.f32.mxu0 0.0
  %1717 = vmatmul.mubr.f32.gmra.mrb[0].mxu0 %v1305
  %v1718 = vpop.f32.mrb[0].mxu0
  %v1719 = vadd.f32 %v359, %v1718
  %v1720 = vpop.f32.mrb[0].mxu0
  %1721 = vmatprep.mubr.f32.mxu0 0.0
  %1722 = vmatmul.mubr.f32.gmra.mrb[0].mxu0 %v1308
  %v1723 = vpop.f32.mrb[0].mxu0
  %v1724 = vadd.f32 %v360, %v1723
  %v1725 = vpop.f32.mrb[0].mxu0
  %1726 = vdwg.mxu0
  %1727 = vmax.xlane.f32.xlu0 %v1409
  %v1728 = vpop.xlane.xlu0 %1727
  %1729 = vmax.xlane.f32.xlu0 %v1414
  %v1730 = vpop.xlane.xlu0 %1729
  %1731 = vmax.xlane.f32.xlu0 %v1419
  %v1732 = vpop.xlane.xlu0 %1731
  %1733 = vmax.xlane.f32.xlu0 %v1424
  %v1734 = vpop.xlane.xlu0 %1733
  %1735 = vmax.xlane.f32.xlu0 %v1429
  %v1736 = vpop.xlane.xlu0 %1735
  %1737 = vmax.xlane.f32.xlu0 %v1434
  %v1738 = vpop.xlane.xlu0 %1737
  %1739 = vmax.xlane.f32.xlu0 %v1439
  %v1740 = vpop.xlane.xlu0 %1739
  %1741 = vmax.xlane.f32.xlu0 %v1444
  %v1742 = vpop.xlane.xlu0 %1741
  %1743 = vmax.xlane.f32.xlu0 %v1449
  %v1744 = vpop.xlane.xlu0 %1743
  %1745 = vmax.xlane.f32.xlu0 %v1454
  %v1746 = vpop.xlane.xlu0 %1745
  %1747 = vmax.xlane.f32.xlu0 %v1459
  %v1748 = vpop.xlane.xlu0 %1747
  %1749 = vmax.xlane.f32.xlu0 %v1464
  %v1750 = vpop.xlane.xlu0 %1749
  %1751 = vmax.xlane.f32.xlu0 %v1469
  %v1752 = vpop.xlane.xlu0 %1751
  %1753 = vmax.xlane.f32.xlu0 %v1474
  %v1754 = vpop.xlane.xlu0 %1753
  %1755 = vmax.xlane.f32.xlu0 %v1479
  %v1756 = vpop.xlane.xlu0 %1755
  %1757 = vmax.xlane.f32.xlu0 %v1484
  %v1758 = vpop.xlane.xlu0 %1757
  %1759 = vmax.xlane.f32.xlu0 %v1489
  %v1760 = vpop.xlane.xlu0 %1759
  %1761 = vmax.xlane.f32.xlu0 %v1494
  %v1762 = vpop.xlane.xlu0 %1761
  %1763 = vmax.xlane.f32.xlu0 %v1499
  %v1764 = vpop.xlane.xlu0 %1763
  %1765 = vmax.xlane.f32.xlu0 %v1504
  %v1766 = vpop.xlane.xlu0 %1765
  %1767 = vmax.xlane.f32.xlu0 %v1509
  %v1768 = vpop.xlane.xlu0 %1767
  %1769 = vmax.xlane.f32.xlu0 %v1514
  %v1770 = vpop.xlane.xlu0 %1769
  %1771 = vmax.xlane.f32.xlu0 %v1519
  %v1772 = vpop.xlane.xlu0 %1771
  %1773 = vmax.xlane.f32.xlu0 %v1524
  %v1774 = vpop.xlane.xlu0 %1773
  %1775 = vmax.xlane.f32.xlu0 %v1529
  %v1776 = vpop.xlane.xlu0 %1775
  %1777 = vmax.xlane.f32.xlu0 %v1534
  %v1778 = vpop.xlane.xlu0 %1777
  %1779 = vmax.xlane.f32.xlu0 %v1539
  %v1780 = vpop.xlane.xlu0 %1779
  %1781 = vmax.xlane.f32.xlu0 %v1544
  %v1782 = vpop.xlane.xlu0 %1781
  %1783 = vmax.xlane.f32.xlu0 %v1549
  %v1784 = vpop.xlane.xlu0 %1783
  %1785 = vmax.xlane.f32.xlu0 %v1554
  %v1786 = vpop.xlane.xlu0 %1785
  %1787 = vmax.xlane.f32.xlu0 %v1559
  %v1788 = vpop.xlane.xlu0 %1787
  %1789 = vmax.xlane.f32.xlu0 %v1564
  %v1790 = vpop.xlane.xlu0 %1789
  %1791 = vmax.xlane.f32.xlu0 %v1569
  %v1792 = vpop.xlane.xlu0 %1791
  %1793 = vmax.xlane.f32.xlu0 %v1574
  %v1794 = vpop.xlane.xlu0 %1793
  %1795 = vmax.xlane.f32.xlu0 %v1579
  %v1796 = vpop.xlane.xlu0 %1795
  %1797 = vmax.xlane.f32.xlu0 %v1584
  %v1798 = vpop.xlane.xlu0 %1797
  %1799 = vmax.xlane.f32.xlu0 %v1589
  %v1800 = vpop.xlane.xlu0 %1799
  %1801 = vmax.xlane.f32.xlu0 %v1594
  %v1802 = vpop.xlane.xlu0 %1801
  %1803 = vmax.xlane.f32.xlu0 %v1599
  %v1804 = vpop.xlane.xlu0 %1803
  %1805 = vmax.xlane.f32.xlu0 %v1604
  %v1806 = vpop.xlane.xlu0 %1805
  %1807 = vmax.xlane.f32.xlu0 %v1609
  %v1808 = vpop.xlane.xlu0 %1807
  %1809 = vmax.xlane.f32.xlu0 %v1614
  %v1810 = vpop.xlane.xlu0 %1809
  %1811 = vmax.xlane.f32.xlu0 %v1619
  %v1812 = vpop.xlane.xlu0 %1811
  %1813 = vmax.xlane.f32.xlu0 %v1624
  %v1814 = vpop.xlane.xlu0 %1813
  %1815 = vmax.xlane.f32.xlu0 %v1629
  %v1816 = vpop.xlane.xlu0 %1815
  %1817 = vmax.xlane.f32.xlu0 %v1634
  %v1818 = vpop.xlane.xlu0 %1817
  %1819 = vmax.xlane.f32.xlu0 %v1639
  %v1820 = vpop.xlane.xlu0 %1819
  %1821 = vmax.xlane.f32.xlu0 %v1644
  %v1822 = vpop.xlane.xlu0 %1821
  %1823 = vmax.xlane.f32.xlu0 %v1649
  %v1824 = vpop.xlane.xlu0 %1823
  %1825 = vmax.xlane.f32.xlu0 %v1654
  %v1826 = vpop.xlane.xlu0 %1825
  %1827 = vmax.xlane.f32.xlu0 %v1659
  %v1828 = vpop.xlane.xlu0 %1827
  %1829 = vmax.xlane.f32.xlu0 %v1664
  %v1830 = vpop.xlane.xlu0 %1829
  %1831 = vmax.xlane.f32.xlu0 %v1669
  %v1832 = vpop.xlane.xlu0 %1831
  %1833 = vmax.xlane.f32.xlu0 %v1674
  %v1834 = vpop.xlane.xlu0 %1833
  %1835 = vmax.xlane.f32.xlu0 %v1679
  %v1836 = vpop.xlane.xlu0 %1835
  %1837 = vmax.xlane.f32.xlu0 %v1684
  %v1838 = vpop.xlane.xlu0 %1837
  %1839 = vmax.xlane.f32.xlu0 %v1689
  %v1840 = vpop.xlane.xlu0 %1839
  %1841 = vmax.xlane.f32.xlu0 %v1694
  %v1842 = vpop.xlane.xlu0 %1841
  %1843 = vmax.xlane.f32.xlu0 %v1699
  %v1844 = vpop.xlane.xlu0 %1843
  %1845 = vmax.xlane.f32.xlu0 %v1704
  %v1846 = vpop.xlane.xlu0 %1845
  %1847 = vmax.xlane.f32.xlu0 %v1709
  %v1848 = vpop.xlane.xlu0 %1847
  %1849 = vmax.xlane.f32.xlu0 %v1714
  %v1850 = vpop.xlane.xlu0 %1849
  %1851 = vmax.xlane.f32.xlu0 %v1719
  %v1852 = vpop.xlane.xlu0 %1851
  %1853 = vmax.xlane.f32.xlu0 %v1724
  %v1854 = vpop.xlane.xlu0 %1853
  %v1855 = vsub.f32 %v1409, %v1728
  %v1856 = vsub.f32 %v1414, %v1730
  %v1857 = vsub.f32 %v1419, %v1732
  %v1858 = vsub.f32 %v1424, %v1734
  %v1859 = vsub.f32 %v1429, %v1736
  %v1860 = vsub.f32 %v1434, %v1738
  %v1861 = vsub.f32 %v1439, %v1740
  %v1862 = vsub.f32 %v1444, %v1742
  %v1863 = vsub.f32 %v1449, %v1744
  %v1864 = vsub.f32 %v1454, %v1746
  %v1865 = vsub.f32 %v1459, %v1748
  %v1866 = vsub.f32 %v1464, %v1750
  %v1867 = vsub.f32 %v1469, %v1752
  %v1868 = vsub.f32 %v1474, %v1754
  %v1869 = vsub.f32 %v1479, %v1756
  %v1870 = vsub.f32 %v1484, %v1758
  %v1871 = vsub.f32 %v1489, %v1760
  %v1872 = vsub.f32 %v1494, %v1762
  %v1873 = vsub.f32 %v1499, %v1764
  %v1874 = vsub.f32 %v1504, %v1766
  %v1875 = vsub.f32 %v1509, %v1768
  %v1876 = vsub.f32 %v1514, %v1770
  %v1877 = vsub.f32 %v1519, %v1772
  %v1878 = vsub.f32 %v1524, %v1774
  %v1879 = vsub.f32 %v1529, %v1776
  %v1880 = vsub.f32 %v1534, %v1778
  %v1881 = vsub.f32 %v1539, %v1780
  %v1882 = vsub.f32 %v1544, %v1782
  %v1883 = vsub.f32 %v1549, %v1784
  %v1884 = vsub.f32 %v1554, %v1786
  %v1885 = vsub.f32 %v1559, %v1788
  %v1886 = vsub.f32 %v1564, %v1790
  %v1887 = vsub.f32 %v1569, %v1792
  %v1888 = vsub.f32 %v1574, %v1794
  %v1889 = vsub.f32 %v1579, %v1796
  %v1890 = vsub.f32 %v1584, %v1798
  %v1891 = vsub.f32 %v1589, %v1800
  %v1892 = vsub.f32 %v1594, %v1802
  %v1893 = vsub.f32 %v1599, %v1804
  %v1894 = vsub.f32 %v1604, %v1806
  %v1895 = vsub.f32 %v1609, %v1808
  %v1896 = vsub.f32 %v1614, %v1810
  %v1897 = vsub.f32 %v1619, %v1812
  %v1898 = vsub.f32 %v1624, %v1814
  %v1899 = vsub.f32 %v1629, %v1816
  %v1900 = vsub.f32 %v1634, %v1818
  %v1901 = vsub.f32 %v1639, %v1820
  %v1902 = vsub.f32 %v1644, %v1822
  %v1903 = vsub.f32 %v1649, %v1824
  %v1904 = vsub.f32 %v1654, %v1826
  %v1905 = vsub.f32 %v1659, %v1828
  %v1906 = vsub.f32 %v1664, %v1830
  %v1907 = vsub.f32 %v1669, %v1832
  %v1908 = vsub.f32 %v1674, %v1834
  %v1909 = vsub.f32 %v1679, %v1836
  %v1910 = vsub.f32 %v1684, %v1838
  %v1911 = vsub.f32 %v1689, %v1840
  %v1912 = vsub.f32 %v1694, %v1842
  %v1913 = vsub.f32 %v1699, %v1844
  %v1914 = vsub.f32 %v1704, %v1846
  %v1915 = vsub.f32 %v1709, %v1848
  %v1916 = vsub.f32 %v1714, %v1850
  %v1917 = vsub.f32 %v1719, %v1852
  %v1918 = vsub.f32 %v1724, %v1854
  %v1919 = vmul.f32 %v1855, 1.442695
  %v1920 = vpow.pop %v1919
  %v1921 = vmul.f32 %v1856, 1.442695
  %v1922 = vpow.pop %v1921
  %v1923 = vmul.f32 %v1857, 1.442695
  %v1924 = vpow.pop %v1923
  %v1925 = vmul.f32 %v1858, 1.442695
  %v1926 = vpow.pop %v1925
  %v1927 = vmul.f32 %v1859, 1.442695
  %v1928 = vpow.pop %v1927
  %v1929 = vmul.f32 %v1860, 1.442695
  %v1930 = vpow.pop %v1929
  %v1931 = vmul.f32 %v1861, 1.442695
  %v1932 = vpow.pop %v1931
  %v1933 = vmul.f32 %v1862, 1.442695
  %v1934 = vpow.pop %v1933
  %v1935 = vmul.f32 %v1863, 1.442695
  %v1936 = vpow.pop %v1935
  %v1937 = vmul.f32 %v1864, 1.442695
  %v1938 = vpow.pop %v1937
  %v1939 = vmul.f32 %v1865, 1.442695
  %v1940 = vpow.pop %v1939
  %v1941 = vmul.f32 %v1866, 1.442695
  %v1942 = vpow.pop %v1941
  %v1943 = vmul.f32 %v1867, 1.442695
  %v1944 = vpow.pop %v1943
  %v1945 = vmul.f32 %v1868, 1.442695
  %v1946 = vpow.pop %v1945
  %v1947 = vmul.f32 %v1869, 1.442695
  %v1948 = vpow.pop %v1947
  %v1949 = vmul.f32 %v1870, 1.442695
  %v1950 = vpow.pop %v1949
  %v1951 = vmul.f32 %v1871, 1.442695
  %v1952 = vpow.pop %v1951
  %v1953 = vmul.f32 %v1872, 1.442695
  %v1954 = vpow.pop %v1953
  %v1955 = vmul.f32 %v1873, 1.442695
  %v1956 = vpow.pop %v1955
  %v1957 = vmul.f32 %v1874, 1.442695
  %v1958 = vpow.pop %v1957
  %v1959 = vmul.f32 %v1875, 1.442695
  %v1960 = vpow.pop %v1959
  %v1961 = vmul.f32 %v1876, 1.442695
  %v1962 = vpow.pop %v1961
  %v1963 = vmul.f32 %v1877, 1.442695
  %v1964 = vpow.pop %v1963
  %v1965 = vmul.f32 %v1878, 1.442695
  %v1966 = vpow.pop %v1965
  %v1967 = vmul.f32 %v1879, 1.442695
  %v1968 = vpow.pop %v1967
  %v1969 = vmul.f32 %v1880, 1.442695
  %v1970 = vpow.pop %v1969
  %v1971 = vmul.f32 %v1881, 1.442695
  %v1972 = vpow.pop %v1971
  %v1973 = vmul.f32 %v1882, 1.442695
  %v1974 = vpow.pop %v1973
  %v1975 = vmul.f32 %v1883, 1.442695
  %v1976 = vpow.pop %v1975
  %v1977 = vmul.f32 %v1884, 1.442695
  %v1978 = vpow.pop %v1977
  %v1979 = vmul.f32 %v1885, 1.442695
  %v1980 = vpow.pop %v1979
  %v1981 = vmul.f32 %v1886, 1.442695
  %v1982 = vpow.pop %v1981
  %v1983 = vmul.f32 %v1887, 1.442695
  %v1984 = vpow.pop %v1983
  %v1985 = vmul.f32 %v1888, 1.442695
  %v1986 = vpow.pop %v1985
  %v1987 = vmul.f32 %v1889, 1.442695
  %v1988 = vpow.pop %v1987
  %v1989 = vmul.f32 %v1890, 1.442695
  %v1990 = vpow.pop %v1989
  %v1991 = vmul.f32 %v1891, 1.442695
  %v1992 = vpow.pop %v1991
  %v1993 = vmul.f32 %v1892, 1.442695
  %v1994 = vpow.pop %v1993
  %v1995 = vmul.f32 %v1893, 1.442695
  %v1996 = vpow.pop %v1995
  %v1997 = vmul.f32 %v1894, 1.442695
  %v1998 = vpow.pop %v1997
  %v1999 = vmul.f32 %v1895, 1.442695
  %v2000 = vpow.pop %v1999
  %v2001 = vmul.f32 %v1896, 1.442695
  %v2002 = vpow.pop %v2001
  %v2003 = vmul.f32 %v1897, 1.442695
  %v2004 = vpow.pop %v2003
  %v2005 = vmul.f32 %v1898, 1.442695
  %v2006 = vpow.pop %v2005
  %v2007 = vmul.f32 %v1899, 1.442695
  %v2008 = vpow.pop %v2007
  %v2009 = vmul.f32 %v1900, 1.442695
  %v2010 = vpow.pop %v2009
  %v2011 = vmul.f32 %v1901, 1.442695
  %v2012 = vpow.pop %v2011
  %v2013 = vmul.f32 %v1902, 1.442695
  %v2014 = vpow.pop %v2013
  %v2015 = vmul.f32 %v1903, 1.442695
  %v2016 = vpow.pop %v2015
  %v2017 = vmul.f32 %v1904, 1.442695
  %v2018 = vpow.pop %v2017
  %v2019 = vmul.f32 %v1905, 1.442695
  %v2020 = vpow.pop %v2019
  %v2021 = vmul.f32 %v1906, 1.442695
  %v2022 = vpow.pop %v2021
  %v2023 = vmul.f32 %v1907, 1.442695
  %v2024 = vpow.pop %v2023
  %v2025 = vmul.f32 %v1908, 1.442695
  %v2026 = vpow.pop %v2025
  %v2027 = vmul.f32 %v1909, 1.442695
  %v2028 = vpow.pop %v2027
  %v2029 = vmul.f32 %v1910, 1.442695
  %v2030 = vpow.pop %v2029
  %v2031 = vmul.f32 %v1911, 1.442695
  %v2032 = vpow.pop %v2031
  %v2033 = vmul.f32 %v1912, 1.442695
  %v2034 = vpow.pop %v2033
  %v2035 = vmul.f32 %v1913, 1.442695
  %v2036 = vpow.pop %v2035
  %v2037 = vmul.f32 %v1914, 1.442695
  %v2038 = vpow.pop %v2037
  %v2039 = vmul.f32 %v1915, 1.442695
  %v2040 = vpow.pop %v2039
  %v2041 = vmul.f32 %v1916, 1.442695
  %v2042 = vpow.pop %v2041
  %v2043 = vmul.f32 %v1917, 1.442695
  %v2044 = vpow.pop %v2043
  %v2045 = vmul.f32 %v1918, 1.442695
  %v2046 = vpow.pop %v2045
  %2047 = vadd.xlane.f32.xlu0 %v1920
  %v2048 = vpop.xlane.xlu0 %2047
  %2049 = vadd.xlane.f32.xlu0 %v1922
  %v2050 = vpop.xlane.xlu0 %2049
  %2051 = vadd.xlane.f32.xlu0 %v1924
  %v2052 = vpop.xlane.xlu0 %2051
  %2053 = vadd.xlane.f32.xlu0 %v1926
  %v2054 = vpop.xlane.xlu0 %2053
  %2055 = vadd.xlane.f32.xlu0 %v1928
  %v2056 = vpop.xlane.xlu0 %2055
  %2057 = vadd.xlane.f32.xlu0 %v1930
  %v2058 = vpop.xlane.xlu0 %2057
  %2059 = vadd.xlane.f32.xlu0 %v1932
  %v2060 = vpop.xlane.xlu0 %2059
  %2061 = vadd.xlane.f32.xlu0 %v1934
  %v2062 = vpop.xlane.xlu0 %2061
  %2063 = vadd.xlane.f32.xlu0 %v1936
  %v2064 = vpop.xlane.xlu0 %2063
  %2065 = vadd.xlane.f32.xlu0 %v1938
  %v2066 = vpop.xlane.xlu0 %2065
  %2067 = vadd.xlane.f32.xlu0 %v1940
  %v2068 = vpop.xlane.xlu0 %2067
  %2069 = vadd.xlane.f32.xlu0 %v1942
  %v2070 = vpop.xlane.xlu0 %2069
  %2071 = vadd.xlane.f32.xlu0 %v1944
  %v2072 = vpop.xlane.xlu0 %2071
  %2073 = vadd.xlane.f32.xlu0 %v1946
  %v2074 = vpop.xlane.xlu0 %2073
  %2075 = vadd.xlane.f32.xlu0 %v1948
  %v2076 = vpop.xlane.xlu0 %2075
  %2077 = vadd.xlane.f32.xlu0 %v1950
  %v2078 = vpop.xlane.xlu0 %2077
  %2079 = vadd.xlane.f32.xlu0 %v1952
  %v2080 = vpop.xlane.xlu0 %2079
  %2081 = vadd.xlane.f32.xlu0 %v1954
  %v2082 = vpop.xlane.xlu0 %2081
  %2083 = vadd.xlane.f32.xlu0 %v1956
  %v2084 = vpop.xlane.xlu0 %2083
  %2085 = vadd.xlane.f32.xlu0 %v1958
  %v2086 = vpop.xlane.xlu0 %2085
  %2087 = vadd.xlane.f32.xlu0 %v1960
  %v2088 = vpop.xlane.xlu0 %2087
  %2089 = vadd.xlane.f32.xlu0 %v1962
  %v2090 = vpop.xlane.xlu0 %2089
  %2091 = vadd.xlane.f32.xlu0 %v1964
  %v2092 = vpop.xlane.xlu0 %2091
  %2093 = vadd.xlane.f32.xlu0 %v1966
  %v2094 = vpop.xlane.xlu0 %2093
  %2095 = vadd.xlane.f32.xlu0 %v1968
  %v2096 = vpop.xlane.xlu0 %2095
  %2097 = vadd.xlane.f32.xlu0 %v1970
  %v2098 = vpop.xlane.xlu0 %2097
  %2099 = vadd.xlane.f32.xlu0 %v1972
  %v2100 = vpop.xlane.xlu0 %2099
  %2101 = vadd.xlane.f32.xlu0 %v1974
  %v2102 = vpop.xlane.xlu0 %2101
  %2103 = vadd.xlane.f32.xlu0 %v1976
  %v2104 = vpop.xlane.xlu0 %2103
  %2105 = vadd.xlane.f32.xlu0 %v1978
  %v2106 = vpop.xlane.xlu0 %2105
  %2107 = vadd.xlane.f32.xlu0 %v1980
  %v2108 = vpop.xlane.xlu0 %2107
  %2109 = vadd.xlane.f32.xlu0 %v1982
  %v2110 = vpop.xlane.xlu0 %2109
  %2111 = vadd.xlane.f32.xlu0 %v1984
  %v2112 = vpop.xlane.xlu0 %2111
  %2113 = vadd.xlane.f32.xlu0 %v1986
  %v2114 = vpop.xlane.xlu0 %2113
  %2115 = vadd.xlane.f32.xlu0 %v1988
  %v2116 = vpop.xlane.xlu0 %2115
  %2117 = vadd.xlane.f32.xlu0 %v1990
  %v2118 = vpop.xlane.xlu0 %2117
  %2119 = vadd.xlane.f32.xlu0 %v1992
  %v2120 = vpop.xlane.xlu0 %2119
  %2121 = vadd.xlane.f32.xlu0 %v1994
  %v2122 = vpop.xlane.xlu0 %2121
  %2123 = vadd.xlane.f32.xlu0 %v1996
  %v2124 = vpop.xlane.xlu0 %2123
  %2125 = vadd.xlane.f32.xlu0 %v1998
  %v2126 = vpop.xlane.xlu0 %2125
  %2127 = vadd.xlane.f32.xlu0 %v2000
  %v2128 = vpop.xlane.xlu0 %2127
  %2129 = vadd.xlane.f32.xlu0 %v2002
  %v2130 = vpop.xlane.xlu0 %2129
  %2131 = vadd.xlane.f32.xlu0 %v2004
  %v2132 = vpop.xlane.xlu0 %2131
  %2133 = vadd.xlane.f32.xlu0 %v2006
  %v2134 = vpop.xlane.xlu0 %2133
  %2135 = vadd.xlane.f32.xlu0 %v2008
  %v2136 = vpop.xlane.xlu0 %2135
  %2137 = vadd.xlane.f32.xlu0 %v2010
  %v2138 = vpop.xlane.xlu0 %2137
  %2139 = vadd.xlane.f32.xlu0 %v2012
  %v2140 = vpop.xlane.xlu0 %2139
  %2141 = vadd.xlane.f32.xlu0 %v2014
  %v2142 = vpop.xlane.xlu0 %2141
  %2143 = vadd.xlane.f32.xlu0 %v2016
  %v2144 = vpop.xlane.xlu0 %2143
  %2145 = vadd.xlane.f32.xlu0 %v2018
  %v2146 = vpop.xlane.xlu0 %2145
  %2147 = vadd.xlane.f32.xlu0 %v2020
  %v2148 = vpop.xlane.xlu0 %2147
  %2149 = vadd.xlane.f32.xlu0 %v2022
  %v2150 = vpop.xlane.xlu0 %2149
  %2151 = vadd.xlane.f32.xlu0 %v2024
  %v2152 = vpop.xlane.xlu0 %2151
  %2153 = vadd.xlane.f32.xlu0 %v2026
  %v2154 = vpop.xlane.xlu0 %2153
  %2155 = vadd.xlane.f32.xlu0 %v2028
  %v2156 = vpop.xlane.xlu0 %2155
  %2157 = vadd.xlane.f32.xlu0 %v2030
  %v2158 = vpop.xlane.xlu0 %2157
  %2159 = vadd.xlane.f32.xlu0 %v2032
  %v2160 = vpop.xlane.xlu0 %2159
  %2161 = vadd.xlane.f32.xlu0 %v2034
  %v2162 = vpop.xlane.xlu0 %2161
  %2163 = vadd.xlane.f32.xlu0 %v2036
  %v2164 = vpop.xlane.xlu0 %2163
  %2165 = vadd.xlane.f32.xlu0 %v2038
  %v2166 = vpop.xlane.xlu0 %2165
  %2167 = vadd.xlane.f32.xlu0 %v2040
  %v2168 = vpop.xlane.xlu0 %2167
  %2169 = vadd.xlane.f32.xlu0 %v2042
  %v2170 = vpop.xlane.xlu0 %2169
  %2171 = vadd.xlane.f32.xlu0 %v2044
  %v2172 = vpop.xlane.xlu0 %2171
  %2173 = vadd.xlane.f32.xlu0 %v2046
  %v2174 = vpop.xlane.xlu0 %2173
  %v2175 = vrcp.pop %v2048
  %v2176 = vrcp.pop %v2050
  %v2177 = vrcp.pop %v2052
  %v2178 = vrcp.pop %v2054
  %v2179 = vrcp.pop %v2056
  %v2180 = vrcp.pop %v2058
  %v2181 = vrcp.pop %v2060
  %v2182 = vrcp.pop %v2062
  %v2183 = vrcp.pop %v2064
  %v2184 = vrcp.pop %v2066
  %v2185 = vrcp.pop %v2068
  %v2186 = vrcp.pop %v2070
  %v2187 = vrcp.pop %v2072
  %v2188 = vrcp.pop %v2074
  %v2189 = vrcp.pop %v2076
  %v2190 = vrcp.pop %v2078
  %v2191 = vrcp.pop %v2080
  %v2192 = vrcp.pop %v2082
  %v2193 = vrcp.pop %v2084
  %v2194 = vrcp.pop %v2086
  %v2195 = vrcp.pop %v2088
  %v2196 = vrcp.pop %v2090
  %v2197 = vrcp.pop %v2092
  %v2198 = vrcp.pop %v2094
  %v2199 = vrcp.pop %v2096
  %v2200 = vrcp.pop %v2098
  %v2201 = vrcp.pop %v2100
  %v2202 = vrcp.pop %v2102
  %v2203 = vrcp.pop %v2104
  %v2204 = vrcp.pop %v2106
  %v2205 = vrcp.pop %v2108
  %v2206 = vrcp.pop %v2110
  %v2207 = vrcp.pop %v2112
  %v2208 = vrcp.pop %v2114
  %v2209 = vrcp.pop %v2116
  %v2210 = vrcp.pop %v2118
  %v2211 = vrcp.pop %v2120
  %v2212 = vrcp.pop %v2122
  %v2213 = vrcp.pop %v2124
  %v2214 = vrcp.pop %v2126
  %v2215 = vrcp.pop %v2128
  %v2216 = vrcp.pop %v2130
  %v2217 = vrcp.pop %v2132
  %v2218 = vrcp.pop %v2134
  %v2219 = vrcp.pop %v2136
  %v2220 = vrcp.pop %v2138
  %v2221 = vrcp.pop %v2140
  %v2222 = vrcp.pop %v2142
  %v2223 = vrcp.pop %v2144
  %v2224 = vrcp.pop %v2146
  %v2225 = vrcp.pop %v2148
  %v2226 = vrcp.pop %v2150
  %v2227 = vrcp.pop %v2152
  %v2228 = vrcp.pop %v2154
  %v2229 = vrcp.pop %v2156
  %v2230 = vrcp.pop %v2158
  %v2231 = vrcp.pop %v2160
  %v2232 = vrcp.pop %v2162
  %v2233 = vrcp.pop %v2164
  %v2234 = vrcp.pop %v2166
  %v2235 = vrcp.pop %v2168
  %v2236 = vrcp.pop %v2170
  %v2237 = vrcp.pop %v2172
  %v2238 = vrcp.pop %v2174
  %v2239 = vmul.f32 %v2048, %v2175
  %v2240 = vmul.f32 %v2050, %v2176
  %v2241 = vmul.f32 %v2052, %v2177
  %v2242 = vmul.f32 %v2054, %v2178
  %v2243 = vmul.f32 %v2056, %v2179
  %v2244 = vmul.f32 %v2058, %v2180
  %v2245 = vmul.f32 %v2060, %v2181
  %v2246 = vmul.f32 %v2062, %v2182
  %v2247 = vmul.f32 %v2064, %v2183
  %v2248 = vmul.f32 %v2066, %v2184
  %v2249 = vmul.f32 %v2068, %v2185
  %v2250 = vmul.f32 %v2070, %v2186
  %v2251 = vmul.f32 %v2072, %v2187
  %v2252 = vmul.f32 %v2074, %v2188
  %v2253 = vmul.f32 %v2076, %v2189
  %v2254 = vmul.f32 %v2078, %v2190
  %v2255 = vmul.f32 %v2080, %v2191
  %v2256 = vmul.f32 %v2082, %v2192
  %v2257 = vmul.f32 %v2084, %v2193
  %v2258 = vmul.f32 %v2086, %v2194
  %v2259 = vmul.f32 %v2088, %v2195
  %v2260 = vmul.f32 %v2090, %v2196
  %v2261 = vmul.f32 %v2092, %v2197
  %v2262 = vmul.f32 %v2094, %v2198
  %v2263 = vmul.f32 %v2096, %v2199
  %v2264 = vmul.f32 %v2098, %v2200
  %v2265 = vmul.f32 %v2100, %v2201
  %v2266 = vmul.f32 %v2102, %v2202
  %v2267 = vmul.f32 %v2104, %v2203
  %v2268 = vmul.f32 %v2106, %v2204
  %v2269 = vmul.f32 %v2108, %v2205
  %v2270 = vmul.f32 %v2110, %v2206
  %v2271 = vmul.f32 %v2112, %v2207
  %v2272 = vmul.f32 %v2114, %v2208
  %v2273 = vmul.f32 %v2116, %v2209
  %v2274 = vmul.f32 %v2118, %v2210
  %v2275 = vmul.f32 %v2120, %v2211
  %v2276 = vmul.f32 %v2122, %v2212
  %v2277 = vmul.f32 %v2124, %v2213
  %v2278 = vmul.f32 %v2126, %v2214
  %v2279 = vmul.f32 %v2128, %v2215
  %v2280 = vmul.f32 %v2130, %v2216
  %v2281 = vmul.f32 %v2132, %v2217
  %v2282 = vmul.f32 %v2134, %v2218
  %v2283 = vmul.f32 %v2136, %v2219
  %v2284 = vmul.f32 %v2138, %v2220
  %v2285 = vmul.f32 %v2140, %v2221
  %v2286 = vmul.f32 %v2142, %v2222
  %v2287 = vmul.f32 %v2144, %v2223
  %v2288 = vmul.f32 %v2146, %v2224
  %v2289 = vmul.f32 %v2148, %v2225
  %v2290 = vmul.f32 %v2150, %v2226
  %v2291 = vmul.f32 %v2152, %v2227
  %v2292 = vmul.f32 %v2154, %v2228
  %v2293 = vmul.f32 %v2156, %v2229
  %v2294 = vmul.f32 %v2158, %v2230
  %v2295 = vmul.f32 %v2160, %v2231
  %v2296 = vmul.f32 %v2162, %v2232
  %v2297 = vmul.f32 %v2164, %v2233
  %v2298 = vmul.f32 %v2166, %v2234
  %v2299 = vmul.f32 %v2168, %v2235
  %v2300 = vmul.f32 %v2170, %v2236
  %v2301 = vmul.f32 %v2172, %v2237
  %v2302 = vmul.f32 %v2174, %v2238
  %v2303 = vsub.f32 2.0, %v2239
  %v2304 = vsub.f32 2.0, %v2240
  %v2305 = vsub.f32 2.0, %v2241
  %v2306 = vsub.f32 2.0, %v2242
  %v2307 = vsub.f32 2.0, %v2243
  %v2308 = vsub.f32 2.0, %v2244
  %v2309 = vsub.f32 2.0, %v2245
  %v2310 = vsub.f32 2.0, %v2246
  %v2311 = vsub.f32 2.0, %v2247
  %v2312 = vsub.f32 2.0, %v2248
  %v2313 = vsub.f32 2.0, %v2249
  %v2314 = vsub.f32 2.0, %v2250
  %v2315 = vsub.f32 2.0, %v2251
  %v2316 = vsub.f32 2.0, %v2252
  %v2317 = vsub.f32 2.0, %v2253
  %v2318 = vsub.f32 2.0, %v2254
  %v2319 = vsub.f32 2.0, %v2255
  %v2320 = vsub.f32 2.0, %v2256
  %v2321 = vsub.f32 2.0, %v2257
  %v2322 = vsub.f32 2.0, %v2258
  %v2323 = vsub.f32 2.0, %v2259
  %v2324 = vsub.f32 2.0, %v2260
  %v2325 = vsub.f32 2.0, %v2261
  %v2326 = vsub.f32 2.0, %v2262
  %v2327 = vsub.f32 2.0, %v2263
  %v2328 = vsub.f32 2.0, %v2264
  %v2329 = vsub.f32 2.0, %v2265
  %v2330 = vsub.f32 2.0, %v2266
  %v2331 = vsub.f32 2.0, %v2267
  %v2332 = vsub.f32 2.0, %v2268
  %v2333 = vsub.f32 2.0, %v2269
  %v2334 = vsub.f32 2.0, %v2270
  %v2335 = vsub.f32 2.0, %v2271
  %v2336 = vsub.f32 2.0, %v2272
  %v2337 = vsub.f32 2.0, %v2273
  %v2338 = vsub.f32 2.0, %v2274
  %v2339 = vsub.f32 2.0, %v2275
  %v2340 = vsub.f32 2.0, %v2276
  %v2341 = vsub.f32 2.0, %v2277
  %v2342 = vsub.f32 2.0, %v2278
  %v2343 = vsub.f32 2.0, %v2279
  %v2344 = vsub.f32 2.0, %v2280
  %v2345 = vsub.f32 2.0, %v2281
  %v2346 = vsub.f32 2.0, %v2282
  %v2347 = vsub.f32 2.0, %v2283
  %v2348 = vsub.f32 2.0, %v2284
  %v2349 = vsub.f32 2.0, %v2285
  %v2350 = vsub.f32 2.0, %v2286
  %v2351 = vsub.f32 2.0, %v2287
  %v2352 = vsub.f32 2.0, %v2288
  %v2353 = vsub.f32 2.0, %v2289
  %v2354 = vsub.f32 2.0, %v2290
  %v2355 = vsub.f32 2.0, %v2291
  %v2356 = vsub.f32 2.0, %v2292
  %v2357 = vsub.f32 2.0, %v2293
  %v2358 = vsub.f32 2.0, %v2294
  %v2359 = vsub.f32 2.0, %v2295
  %v2360 = vsub.f32 2.0, %v2296
  %v2361 = vsub.f32 2.0, %v2297
  %v2362 = vsub.f32 2.0, %v2298
  %v2363 = vsub.f32 2.0, %v2299
  %v2364 = vsub.f32 2.0, %v2300
  %v2365 = vsub.f32 2.0, %v2301
  %v2366 = vsub.f32 2.0, %v2302
  %v2367 = vmul.f32 %v2175, %v2303
  %v2368 = vmul.f32 %v2176, %v2304
  %v2369 = vmul.f32 %v2177, %v2305
  %v2370 = vmul.f32 %v2178, %v2306
  %v2371 = vmul.f32 %v2179, %v2307
  %v2372 = vmul.f32 %v2180, %v2308
  %v2373 = vmul.f32 %v2181, %v2309
  %v2374 = vmul.f32 %v2182, %v2310
  %v2375 = vmul.f32 %v2183, %v2311
  %v2376 = vmul.f32 %v2184, %v2312
  %v2377 = vmul.f32 %v2185, %v2313
  %v2378 = vmul.f32 %v2186, %v2314
  %v2379 = vmul.f32 %v2187, %v2315
  %v2380 = vmul.f32 %v2188, %v2316
  %v2381 = vmul.f32 %v2189, %v2317
  %v2382 = vmul.f32 %v2190, %v2318
  %v2383 = vmul.f32 %v2191, %v2319
  %v2384 = vmul.f32 %v2192, %v2320
  %v2385 = vmul.f32 %v2193, %v2321
  %v2386 = vmul.f32 %v2194, %v2322
  %v2387 = vmul.f32 %v2195, %v2323
  %v2388 = vmul.f32 %v2196, %v2324
  %v2389 = vmul.f32 %v2197, %v2325
  %v2390 = vmul.f32 %v2198, %v2326
  %v2391 = vmul.f32 %v2199, %v2327
  %v2392 = vmul.f32 %v2200, %v2328
  %v2393 = vmul.f32 %v2201, %v2329
  %v2394 = vmul.f32 %v2202, %v2330
  %v2395 = vmul.f32 %v2203, %v2331
  %v2396 = vmul.f32 %v2204, %v2332
  %v2397 = vmul.f32 %v2205, %v2333
  %v2398 = vmul.f32 %v2206, %v2334
  %v2399 = vmul.f32 %v2207, %v2335
  %v2400 = vmul.f32 %v2208, %v2336
  %v2401 = vmul.f32 %v2209, %v2337
  %v2402 = vmul.f32 %v2210, %v2338
  %v2403 = vmul.f32 %v2211, %v2339
  %v2404 = vmul.f32 %v2212, %v2340
  %v2405 = vmul.f32 %v2213, %v2341
  %v2406 = vmul.f32 %v2214, %v2342
  %v2407 = vmul.f32 %v2215, %v2343
  %v2408 = vmul.f32 %v2216, %v2344
  %v2409 = vmul.f32 %v2217, %v2345
  %v2410 = vmul.f32 %v2218, %v2346
  %v2411 = vmul.f32 %v2219, %v2347
  %v2412 = vmul.f32 %v2220, %v2348
  %v2413 = vmul.f32 %v2221, %v2349
  %v2414 = vmul.f32 %v2222, %v2350
  %v2415 = vmul.f32 %v2223, %v2351
  %v2416 = vmul.f32 %v2224, %v2352
  %v2417 = vmul.f32 %v2225, %v2353
  %v2418 = vmul.f32 %v2226, %v2354
  %v2419 = vmul.f32 %v2227, %v2355
  %v2420 = vmul.f32 %v2228, %v2356
  %v2421 = vmul.f32 %v2229, %v2357
  %v2422 = vmul.f32 %v2230, %v2358
  %v2423 = vmul.f32 %v2231, %v2359
  %v2424 = vmul.f32 %v2232, %v2360
  %v2425 = vmul.f32 %v2233, %v2361
  %v2426 = vmul.f32 %v2234, %v2362
  %v2427 = vmul.f32 %v2235, %v2363
  %v2428 = vmul.f32 %v2236, %v2364
  %v2429 = vmul.f32 %v2237, %v2365
  %v2430 = vmul.f32 %v2238, %v2366
  %v2431 = vmul.f32 %v1920, %v2367
  %v2432 = vmul.f32 %v1922, %v2368
  %v2433 = vmul.f32 %v1924, %v2369
  %v2434 = vmul.f32 %v1926, %v2370
  %v2435 = vmul.f32 %v1928, %v2371
  %v2436 = vmul.f32 %v1930, %v2372
  %v2437 = vmul.f32 %v1932, %v2373
  %v2438 = vmul.f32 %v1934, %v2374
  %v2439 = vmul.f32 %v1936, %v2375
  %v2440 = vmul.f32 %v1938, %v2376
  %v2441 = vmul.f32 %v1940, %v2377
  %v2442 = vmul.f32 %v1942, %v2378
  %v2443 = vmul.f32 %v1944, %v2379
  %v2444 = vmul.f32 %v1946, %v2380
  %v2445 = vmul.f32 %v1948, %v2381
  %v2446 = vmul.f32 %v1950, %v2382
  %v2447 = vmul.f32 %v1952, %v2383
  %v2448 = vmul.f32 %v1954, %v2384
  %v2449 = vmul.f32 %v1956, %v2385
  %v2450 = vmul.f32 %v1958, %v2386
  %v2451 = vmul.f32 %v1960, %v2387
  %v2452 = vmul.f32 %v1962, %v2388
  %v2453 = vmul.f32 %v1964, %v2389
  %v2454 = vmul.f32 %v1966, %v2390
  %v2455 = vmul.f32 %v1968, %v2391
  %v2456 = vmul.f32 %v1970, %v2392
  %v2457 = vmul.f32 %v1972, %v2393
  %v2458 = vmul.f32 %v1974, %v2394
  %v2459 = vmul.f32 %v1976, %v2395
  %v2460 = vmul.f32 %v1978, %v2396
  %v2461 = vmul.f32 %v1980, %v2397
  %v2462 = vmul.f32 %v1982, %v2398
  %v2463 = vmul.f32 %v1984, %v2399
  %v2464 = vmul.f32 %v1986, %v2400
  %v2465 = vmul.f32 %v1988, %v2401
  %v2466 = vmul.f32 %v1990, %v2402
  %v2467 = vmul.f32 %v1992, %v2403
  %v2468 = vmul.f32 %v1994, %v2404
  %v2469 = vmul.f32 %v1996, %v2405
  %v2470 = vmul.f32 %v1998, %v2406
  %v2471 = vmul.f32 %v2000, %v2407
  %v2472 = vmul.f32 %v2002, %v2408
  %v2473 = vmul.f32 %v2004, %v2409
  %v2474 = vmul.f32 %v2006, %v2410
  %v2475 = vmul.f32 %v2008, %v2411
  %v2476 = vmul.f32 %v2010, %v2412
  %v2477 = vmul.f32 %v2012, %v2413
  %v2478 = vmul.f32 %v2014, %v2414
  %v2479 = vmul.f32 %v2016, %v2415
  %v2480 = vmul.f32 %v2018, %v2416
  %v2481 = vmul.f32 %v2020, %v2417
  %v2482 = vmul.f32 %v2022, %v2418
  %v2483 = vmul.f32 %v2024, %v2419
  %v2484 = vmul.f32 %v2026, %v2420
  %v2485 = vmul.f32 %v2028, %v2421
  %v2486 = vmul.f32 %v2030, %v2422
  %v2487 = vmul.f32 %v2032, %v2423
  %v2488 = vmul.f32 %v2034, %v2424
  %v2489 = vmul.f32 %v2036, %v2425
  %v2490 = vmul.f32 %v2038, %v2426
  %v2491 = vmul.f32 %v2040, %v2427
  %v2492 = vmul.f32 %v2042, %v2428
  %v2493 = vmul.f32 %v2044, %v2429
  %v2494 = vmul.f32 %v2046, %v2430
  %2495 = vrot.lane.b32.xlu0 %v990, 64
  %v2496 = vpop.permute.xlu0 %2495
  %2497 = vrot.lane.b32.xlu0 %v991, 64
  %v2498 = vpop.permute.xlu0 %2497
  %2499 = vrot.lane.b32.xlu0 %v992, 64
  %v2500 = vpop.permute.xlu0 %2499
  %2501 = vrot.lane.b32.xlu0 %v993, 64
  %v2502 = vpop.permute.xlu0 %2501
  %2503 = vrot.lane.b32.xlu0 %v994, 64
  %v2504 = vpop.permute.xlu0 %2503
  %2505 = vrot.lane.b32.xlu0 %v995, 64
  %v2506 = vpop.permute.xlu0 %2505
  %2507 = vrot.lane.b32.xlu0 %v996, 64
  %v2508 = vpop.permute.xlu0 %2507
  %2509 = vrot.lane.b32.xlu0 %v997, 64
  %v2510 = vpop.permute.xlu0 %2509
  %2511 = vrot.lane.b32.xlu0 %v998, 64
  %v2512 = vpop.permute.xlu0 %2511
  %2513 = vrot.lane.b32.xlu0 %v999, 64
  %v2514 = vpop.permute.xlu0 %2513
  %2515 = vrot.lane.b32.xlu0 %v1000, 64
  %v2516 = vpop.permute.xlu0 %2515
  %2517 = vrot.lane.b32.xlu0 %v1001, 64
  %v2518 = vpop.permute.xlu0 %2517
  %2519 = vrot.lane.b32.xlu0 %v1002, 64
  %v2520 = vpop.permute.xlu0 %2519
  %2521 = vrot.lane.b32.xlu0 %v1003, 64
  %v2522 = vpop.permute.xlu0 %2521
  %2523 = vrot.lane.b32.xlu0 %v1004, 64
  %v2524 = vpop.permute.xlu0 %2523
  %2525 = vrot.lane.b32.xlu0 %v1005, 64
  %v2526 = vpop.permute.xlu0 %2525
  %2543 = vmatprep.subr.mxu0 0.0
  %2544 = vmatpush1.msra.mxu0 %v2496
  %2545 = vmatprep.subr.mxu0 0.0
  %2546 = vmatpush1.msra.mxu0 %v2498
  %2547 = vmatprep.subr.mxu0 0.0
  %2548 = vmatpush1.msra.mxu0 %v2500
  %2549 = vmatprep.subr.mxu0 0.0
  %2550 = vmatpush1.msra.mxu0 %v2502
  %2551 = vmatprep.subr.mxu0 0.0
  %2552 = vmatpush1.msra.mxu0 %v2504
  %2553 = vmatprep.subr.mxu0 0.0
  %2554 = vmatpush1.msra.mxu0 %v2506
  %2555 = vmatprep.subr.mxu0 0.0
  %2556 = vmatpush1.msra.mxu0 %v2508
  %2557 = vmatprep.subr.mxu0 0.0
  %2558 = vmatpush1.msra.mxu0 %v2510
  %2559 = vmatprep.subr.mxu0 0.0
  %2560 = vmatpush1.msra.mxu0 %v2512
  %2561 = vmatprep.subr.mxu0 0.0
  %2562 = vmatpush1.msra.mxu0 %v2514
  %2563 = vmatprep.subr.mxu0 0.0
  %2564 = vmatpush1.msra.mxu0 %v2516
  %2565 = vmatprep.subr.mxu0 0.0
  %2566 = vmatpush1.msra.mxu0 %v2518
  %2567 = vmatprep.subr.mxu0 0.0
  %2568 = vmatpush1.msra.mxu0 %v2520
  %2569 = vmatprep.subr.mxu0 0.0
  %2570 = vmatpush1.msra.mxu0 %v2522
  %2571 = vmatprep.subr.mxu0 0.0
  %2572 = vmatpush1.msra.mxu0 %v2524
  %2573 = vmatprep.subr.mxu0 0.0
  %2574 = vmatpush1.msra.mxu0 %v2526
  %2575 = vmatprep.subr.mxu0 0.0
  %2576 = vmatpush1.msra.mxu0 0.0
  %2577 = vmatprep.subr.mxu0 0.0
  %2578 = vmatpush1.msra.mxu0 0.0
  %2579 = vmatprep.subr.mxu0 0.0
  %2580 = vmatpush1.msra.mxu0 0.0
  %2581 = vmatprep.subr.mxu0 0.0
  %2582 = vmatpush1.msra.mxu0 0.0
  %2583 = vmatprep.subr.mxu0 0.0
  %2584 = vmatpush1.msra.mxu0 0.0
  %2585 = vmatprep.subr.mxu0 0.0
  %2586 = vmatpush1.msra.mxu0 0.0
  %2587 = vmatprep.subr.mxu0 0.0
  %2588 = vmatpush1.msra.mxu0 0.0
  %2589 = vmatprep.subr.mxu0 0.0
  %2590 = vmatpush1.msra.mxu0 0.0
  %2591 = vmatprep.subr.mxu0 0.0
  %2592 = vmatpush1.msra.mxu0 0.0
  %2593 = vmatprep.subr.mxu0 0.0
  %2594 = vmatpush1.msra.mxu0 0.0
  %2595 = vmatprep.subr.mxu0 0.0
  %2596 = vmatpush1.msra.mxu0 0.0
  %2597 = vmatprep.subr.mxu0 0.0
  %2598 = vmatpush1.msra.mxu0 0.0
  %2599 = vmatprep.subr.mxu0 0.0
  %2600 = vmatpush1.msra.mxu0 0.0
  %2601 = vmatprep.subr.mxu0 0.0
  %2602 = vmatpush1.msra.mxu0 0.0
  %2603 = vmatprep.subr.mxu0 0.0
  %2604 = vmatpush1.msra.mxu0 0.0
  %2605 = vmatprep.subr.mxu0 0.0
  %2606 = vmatpush1.msra.mxu0 0.0
  %2607 = vmatprep.mubr.f32.mxu0 0.0
  %2608 = vmatmul.mubr.f32.gmra.mrb[0].mxu0 %v2431
  %v2609 = vpop.f32.mrb[0].mxu0
  %v2610 = vadd.f32 0.0, %v2609
  %v2611 = vpop.f32.mrb[0].mxu0
  %2612 = vmatprep.mubr.f32.mxu0 0.0
  %2613 = vmatmul.mubr.f32.gmra.mrb[0].mxu0 %v2432
  %v2614 = vpop.f32.mrb[0].mxu0
  %v2615 = vadd.f32 0.0, %v2614
  %v2616 = vpop.f32.mrb[0].mxu0
  %2617 = vmatprep.mubr.f32.mxu0 0.0
  %2618 = vmatmul.mubr.f32.gmra.mrb[0].mxu0 %v2433
  %v2619 = vpop.f32.mrb[0].mxu0
  %v2620 = vadd.f32 0.0, %v2619
  %v2621 = vpop.f32.mrb[0].mxu0
  %2622 = vmatprep.mubr.f32.mxu0 0.0
  %2623 = vmatmul.mubr.f32.gmra.mrb[0].mxu0 %v2434
  %v2624 = vpop.f32.mrb[0].mxu0
  %v2625 = vadd.f32 0.0, %v2624
  %v2626 = vpop.f32.mrb[0].mxu0
  %2627 = vmatprep.mubr.f32.mxu0 0.0
  %2628 = vmatmul.mubr.f32.gmra.mrb[0].mxu0 %v2435
  %v2629 = vpop.f32.mrb[0].mxu0
  %v2630 = vadd.f32 0.0, %v2629
  %v2631 = vpop.f32.mrb[0].mxu0
  %2632 = vmatprep.mubr.f32.mxu0 0.0
  %2633 = vmatmul.mubr.f32.gmra.mrb[0].mxu0 %v2436
  %v2634 = vpop.f32.mrb[0].mxu0
  %v2635 = vadd.f32 0.0, %v2634
  %v2636 = vpop.f32.mrb[0].mxu0
  %2637 = vmatprep.mubr.f32.mxu0 0.0
  %2638 = vmatmul.mubr.f32.gmra.mrb[0].mxu0 %v2437
  %v2639 = vpop.f32.mrb[0].mxu0
  %v2640 = vadd.f32 0.0, %v2639
  %v2641 = vpop.f32.mrb[0].mxu0
  %2642 = vmatprep.mubr.f32.mxu0 0.0
  %2643 = vmatmul.mubr.f32.gmra.mrb[0].mxu0 %v2438
  %v2644 = vpop.f32.mrb[0].mxu0
  %v2645 = vadd.f32 0.0, %v2644
  %v2646 = vpop.f32.mrb[0].mxu0
  %2647 = vmatprep.mubr.f32.mxu0 0.0
  %2648 = vmatmul.mubr.f32.gmra.mrb[0].mxu0 %v2439
  %v2649 = vpop.f32.mrb[0].mxu0
  %v2650 = vadd.f32 0.0, %v2649
  %v2651 = vpop.f32.mrb[0].mxu0
  %2652 = vmatprep.mubr.f32.mxu0 0.0
  %2653 = vmatmul.mubr.f32.gmra.mrb[0].mxu0 %v2440
  %v2654 = vpop.f32.mrb[0].mxu0
  %v2655 = vadd.f32 0.0, %v2654
  %v2656 = vpop.f32.mrb[0].mxu0
  %2657 = vmatprep.mubr.f32.mxu0 0.0
  %2658 = vmatmul.mubr.f32.gmra.mrb[0].mxu0 %v2441
  %v2659 = vpop.f32.mrb[0].mxu0
  %v2660 = vadd.f32 0.0, %v2659
  %v2661 = vpop.f32.mrb[0].mxu0
  %2662 = vmatprep.mubr.f32.mxu0 0.0
  %2663 = vmatmul.mubr.f32.gmra.mrb[0].mxu0 %v2442
  %v2664 = vpop.f32.mrb[0].mxu0
  %v2665 = vadd.f32 0.0, %v2664
  %v2666 = vpop.f32.mrb[0].mxu0
  %2667 = vmatprep.mubr.f32.mxu0 0.0
  %2668 = vmatmul.mubr.f32.gmra.mrb[0].mxu0 %v2443
  %v2669 = vpop.f32.mrb[0].mxu0
  %v2670 = vadd.f32 0.0, %v2669
  %v2671 = vpop.f32.mrb[0].mxu0
  %2672 = vmatprep.mubr.f32.mxu0 0.0
  %2673 = vmatmul.mubr.f32.gmra.mrb[0].mxu0 %v2444
  %v2674 = vpop.f32.mrb[0].mxu0
  %v2675 = vadd.f32 0.0, %v2674
  %v2676 = vpop.f32.mrb[0].mxu0
  %2677 = vmatprep.mubr.f32.mxu0 0.0
  %2678 = vmatmul.mubr.f32.gmra.mrb[0].mxu0 %v2445
  %v2679 = vpop.f32.mrb[0].mxu0
  %v2680 = vadd.f32 0.0, %v2679
  %v2681 = vpop.f32.mrb[0].mxu0
  %2682 = vmatprep.mubr.f32.mxu0 0.0
  %2683 = vmatmul.mubr.f32.gmra.mrb[0].mxu0 %v2446
  %v2684 = vpop.f32.mrb[0].mxu0
  %v2685 = vadd.f32 0.0, %v2684
  %v2686 = vpop.f32.mrb[0].mxu0
  %2687 = vmatprep.mubr.f32.mxu0 0.0
  %2688 = vmatmul.mubr.f32.gmra.mrb[0].mxu0 %v2447
  %v2689 = vpop.f32.mrb[0].mxu0
  %v2690 = vadd.f32 0.0, %v2689
  %v2691 = vpop.f32.mrb[0].mxu0
  %2692 = vmatprep.mubr.f32.mxu0 0.0
  %2693 = vmatmul.mubr.f32.gmra.mrb[0].mxu0 %v2448
  %v2694 = vpop.f32.mrb[0].mxu0
  %v2695 = vadd.f32 0.0, %v2694
  %v2696 = vpop.f32.mrb[0].mxu0
  %2697 = vmatprep.mubr.f32.mxu0 0.0
  %2698 = vmatmul.mubr.f32.gmra.mrb[0].mxu0 %v2449
  %v2699 = vpop.f32.mrb[0].mxu0
  %v2700 = vadd.f32 0.0, %v2699
  %v2701 = vpop.f32.mrb[0].mxu0
  %2702 = vmatprep.mubr.f32.mxu0 0.0
  %2703 = vmatmul.mubr.f32.gmra.mrb[0].mxu0 %v2450
  %v2704 = vpop.f32.mrb[0].mxu0
  %v2705 = vadd.f32 0.0, %v2704
  %v2706 = vpop.f32.mrb[0].mxu0
  %2707 = vmatprep.mubr.f32.mxu0 0.0
  %2708 = vmatmul.mubr.f32.gmra.mrb[0].mxu0 %v2451
  %v2709 = vpop.f32.mrb[0].mxu0
  %v2710 = vadd.f32 0.0, %v2709
  %v2711 = vpop.f32.mrb[0].mxu0
  %2712 = vmatprep.mubr.f32.mxu0 0.0
  %2713 = vmatmul.mubr.f32.gmra.mrb[0].mxu0 %v2452
  %v2714 = vpop.f32.mrb[0].mxu0
  %v2715 = vadd.f32 0.0, %v2714
  %v2716 = vpop.f32.mrb[0].mxu0
  %2717 = vmatprep.mubr.f32.mxu0 0.0
  %2718 = vmatmul.mubr.f32.gmra.mrb[0].mxu0 %v2453
  %v2719 = vpop.f32.mrb[0].mxu0
  %v2720 = vadd.f32 0.0, %v2719
  %v2721 = vpop.f32.mrb[0].mxu0
  %2722 = vmatprep.mubr.f32.mxu0 0.0
  %2723 = vmatmul.mubr.f32.gmra.mrb[0].mxu0 %v2454
  %v2724 = vpop.f32.mrb[0].mxu0
  %v2725 = vadd.f32 0.0, %v2724
  %v2726 = vpop.f32.mrb[0].mxu0
  %2727 = vmatprep.mubr.f32.mxu0 0.0
  %2728 = vmatmul.mubr.f32.gmra.mrb[0].mxu0 %v2455
  %v2729 = vpop.f32.mrb[0].mxu0
  %v2730 = vadd.f32 0.0, %v2729
  %v2731 = vpop.f32.mrb[0].mxu0
  %2732 = vmatprep.mubr.f32.mxu0 0.0
  %2733 = vmatmul.mubr.f32.gmra.mrb[0].mxu0 %v2456
  %v2734 = vpop.f32.mrb[0].mxu0
  %v2735 = vadd.f32 0.0, %v2734
  %v2736 = vpop.f32.mrb[0].mxu0
  %2737 = vmatprep.mubr.f32.mxu0 0.0
  %2738 = vmatmul.mubr.f32.gmra.mrb[0].mxu0 %v2457
  %v2739 = vpop.f32.mrb[0].mxu0
  %v2740 = vadd.f32 0.0, %v2739
  %v2741 = vpop.f32.mrb[0].mxu0
  %2742 = vmatprep.mubr.f32.mxu0 0.0
  %2743 = vmatmul.mubr.f32.gmra.mrb[0].mxu0 %v2458
  %v2744 = vpop.f32.mrb[0].mxu0
  %v2745 = vadd.f32 0.0, %v2744
  %v2746 = vpop.f32.mrb[0].mxu0
  %2747 = vmatprep.mubr.f32.mxu0 0.0
  %2748 = vmatmul.mubr.f32.gmra.mrb[0].mxu0 %v2459
  %v2749 = vpop.f32.mrb[0].mxu0
  %v2750 = vadd.f32 0.0, %v2749
  %v2751 = vpop.f32.mrb[0].mxu0
  %2752 = vmatprep.mubr.f32.mxu0 0.0
  %2753 = vmatmul.mubr.f32.gmra.mrb[0].mxu0 %v2460
  %v2754 = vpop.f32.mrb[0].mxu0
  %v2755 = vadd.f32 0.0, %v2754
  %v2756 = vpop.f32.mrb[0].mxu0
  %2757 = vmatprep.mubr.f32.mxu0 0.0
  %2758 = vmatmul.mubr.f32.gmra.mrb[0].mxu0 %v2461
  %v2759 = vpop.f32.mrb[0].mxu0
  %v2760 = vadd.f32 0.0, %v2759
  %v2761 = vpop.f32.mrb[0].mxu0
  %2762 = vmatprep.mubr.f32.mxu0 0.0
  %2763 = vmatmul.mubr.f32.gmra.mrb[0].mxu0 %v2462
  %v2764 = vpop.f32.mrb[0].mxu0
  %v2765 = vadd.f32 0.0, %v2764
  %v2766 = vpop.f32.mrb[0].mxu0
  %2767 = vmatprep.mubr.f32.mxu0 0.0
  %2768 = vmatmul.mubr.f32.gmra.mrb[0].mxu0 %v2463
  %v2769 = vpop.f32.mrb[0].mxu0
  %v2770 = vadd.f32 0.0, %v2769
  %v2771 = vpop.f32.mrb[0].mxu0
  %2772 = vmatprep.mubr.f32.mxu0 0.0
  %2773 = vmatmul.mubr.f32.gmra.mrb[0].mxu0 %v2464
  %v2774 = vpop.f32.mrb[0].mxu0
  %v2775 = vadd.f32 0.0, %v2774
  %v2776 = vpop.f32.mrb[0].mxu0
  %2777 = vmatprep.mubr.f32.mxu0 0.0
  %2778 = vmatmul.mubr.f32.gmra.mrb[0].mxu0 %v2465
  %v2779 = vpop.f32.mrb[0].mxu0
  %v2780 = vadd.f32 0.0, %v2779
  %v2781 = vpop.f32.mrb[0].mxu0
  %2782 = vmatprep.mubr.f32.mxu0 0.0
  %2783 = vmatmul.mubr.f32.gmra.mrb[0].mxu0 %v2466
  %v2784 = vpop.f32.mrb[0].mxu0
  %v2785 = vadd.f32 0.0, %v2784
  %v2786 = vpop.f32.mrb[0].mxu0
  %2787 = vmatprep.mubr.f32.mxu0 0.0
  %2788 = vmatmul.mubr.f32.gmra.mrb[0].mxu0 %v2467
  %v2789 = vpop.f32.mrb[0].mxu0
  %v2790 = vadd.f32 0.0, %v2789
  %v2791 = vpop.f32.mrb[0].mxu0
  %2792 = vmatprep.mubr.f32.mxu0 0.0
  %2793 = vmatmul.mubr.f32.gmra.mrb[0].mxu0 %v2468
  %v2794 = vpop.f32.mrb[0].mxu0
  %v2795 = vadd.f32 0.0, %v2794
  %v2796 = vpop.f32.mrb[0].mxu0
  %2797 = vmatprep.mubr.f32.mxu0 0.0
  %2798 = vmatmul.mubr.f32.gmra.mrb[0].mxu0 %v2469
  %v2799 = vpop.f32.mrb[0].mxu0
  %v2800 = vadd.f32 0.0, %v2799
  %v2801 = vpop.f32.mrb[0].mxu0
  %2802 = vmatprep.mubr.f32.mxu0 0.0
  %2803 = vmatmul.mubr.f32.gmra.mrb[0].mxu0 %v2470
  %v2804 = vpop.f32.mrb[0].mxu0
  %v2805 = vadd.f32 0.0, %v2804
  %v2806 = vpop.f32.mrb[0].mxu0
  %2807 = vmatprep.mubr.f32.mxu0 0.0
  %2808 = vmatmul.mubr.f32.gmra.mrb[0].mxu0 %v2471
  %v2809 = vpop.f32.mrb[0].mxu0
  %v2810 = vadd.f32 0.0, %v2809
  %v2811 = vpop.f32.mrb[0].mxu0
  %2812 = vmatprep.mubr.f32.mxu0 0.0
  %2813 = vmatmul.mubr.f32.gmra.mrb[0].mxu0 %v2472
  %v2814 = vpop.f32.mrb[0].mxu0
  %v2815 = vadd.f32 0.0, %v2814
  %v2816 = vpop.f32.mrb[0].mxu0
  %2817 = vmatprep.mubr.f32.mxu0 0.0
  %2818 = vmatmul.mubr.f32.gmra.mrb[0].mxu0 %v2473
  %v2819 = vpop.f32.mrb[0].mxu0
  %v2820 = vadd.f32 0.0, %v2819
  %v2821 = vpop.f32.mrb[0].mxu0
  %2822 = vmatprep.mubr.f32.mxu0 0.0
  %2823 = vmatmul.mubr.f32.gmra.mrb[0].mxu0 %v2474
  %v2824 = vpop.f32.mrb[0].mxu0
  %v2825 = vadd.f32 0.0, %v2824
  %v2826 = vpop.f32.mrb[0].mxu0
  %2827 = vmatprep.mubr.f32.mxu0 0.0
  %2828 = vmatmul.mubr.f32.gmra.mrb[0].mxu0 %v2475
  %v2829 = vpop.f32.mrb[0].mxu0
  %v2830 = vadd.f32 0.0, %v2829
  %v2831 = vpop.f32.mrb[0].mxu0
  %2832 = vmatprep.mubr.f32.mxu0 0.0
  %2833 = vmatmul.mubr.f32.gmra.mrb[0].mxu0 %v2476
  %v2834 = vpop.f32.mrb[0].mxu0
  %v2835 = vadd.f32 0.0, %v2834
  %v2836 = vpop.f32.mrb[0].mxu0
  %2837 = vmatprep.mubr.f32.mxu0 0.0
  %2838 = vmatmul.mubr.f32.gmra.mrb[0].mxu0 %v2477
  %v2839 = vpop.f32.mrb[0].mxu0
  %v2840 = vadd.f32 0.0, %v2839
  %v2841 = vpop.f32.mrb[0].mxu0
  %2842 = vmatprep.mubr.f32.mxu0 0.0
  %2843 = vmatmul.mubr.f32.gmra.mrb[0].mxu0 %v2478
  %v2844 = vpop.f32.mrb[0].mxu0
  %v2845 = vadd.f32 0.0, %v2844
  %v2846 = vpop.f32.mrb[0].mxu0
  %2847 = vmatprep.mubr.f32.mxu0 0.0
  %2848 = vmatmul.mubr.f32.gmra.mrb[0].mxu0 %v2479
  %v2849 = vpop.f32.mrb[0].mxu0
  %v2850 = vadd.f32 0.0, %v2849
  %v2851 = vpop.f32.mrb[0].mxu0
  %2852 = vmatprep.mubr.f32.mxu0 0.0
  %2853 = vmatmul.mubr.f32.gmra.mrb[0].mxu0 %v2480
  %v2854 = vpop.f32.mrb[0].mxu0
  %v2855 = vadd.f32 0.0, %v2854
  %v2856 = vpop.f32.mrb[0].mxu0
  %2857 = vmatprep.mubr.f32.mxu0 0.0
  %2858 = vmatmul.mubr.f32.gmra.mrb[0].mxu0 %v2481
  %v2859 = vpop.f32.mrb[0].mxu0
  %v2860 = vadd.f32 0.0, %v2859
  %v2861 = vpop.f32.mrb[0].mxu0
  %2862 = vmatprep.mubr.f32.mxu0 0.0
  %2863 = vmatmul.mubr.f32.gmra.mrb[0].mxu0 %v2482
  %v2864 = vpop.f32.mrb[0].mxu0
  %v2865 = vadd.f32 0.0, %v2864
  %v2866 = vpop.f32.mrb[0].mxu0
  %2867 = vmatprep.mubr.f32.mxu0 0.0
  %2868 = vmatmul.mubr.f32.gmra.mrb[0].mxu0 %v2483
  %v2869 = vpop.f32.mrb[0].mxu0
  %v2870 = vadd.f32 0.0, %v2869
  %v2871 = vpop.f32.mrb[0].mxu0
  %2872 = vmatprep.mubr.f32.mxu0 0.0
  %2873 = vmatmul.mubr.f32.gmra.mrb[0].mxu0 %v2484
  %v2874 = vpop.f32.mrb[0].mxu0
  %v2875 = vadd.f32 0.0, %v2874
  %v2876 = vpop.f32.mrb[0].mxu0
  %2877 = vmatprep.mubr.f32.mxu0 0.0
  %2878 = vmatmul.mubr.f32.gmra.mrb[0].mxu0 %v2485
  %v2879 = vpop.f32.mrb[0].mxu0
  %v2880 = vadd.f32 0.0, %v2879
  %v2881 = vpop.f32.mrb[0].mxu0
  %2882 = vmatprep.mubr.f32.mxu0 0.0
  %2883 = vmatmul.mubr.f32.gmra.mrb[0].mxu0 %v2486
  %v2884 = vpop.f32.mrb[0].mxu0
  %v2885 = vadd.f32 0.0, %v2884
  %v2886 = vpop.f32.mrb[0].mxu0
  %2887 = vmatprep.mubr.f32.mxu0 0.0
  %2888 = vmatmul.mubr.f32.gmra.mrb[0].mxu0 %v2487
  %v2889 = vpop.f32.mrb[0].mxu0
  %v2890 = vadd.f32 0.0, %v2889
  %v2891 = vpop.f32.mrb[0].mxu0
  %2892 = vmatprep.mubr.f32.mxu0 0.0
  %2893 = vmatmul.mubr.f32.gmra.mrb[0].mxu0 %v2488
  %v2894 = vpop.f32.mrb[0].mxu0
  %v2895 = vadd.f32 0.0, %v2894
  %v2896 = vpop.f32.mrb[0].mxu0
  %2897 = vmatprep.mubr.f32.mxu0 0.0
  %2898 = vmatmul.mubr.f32.gmra.mrb[0].mxu0 %v2489
  %v2899 = vpop.f32.mrb[0].mxu0
  %v2900 = vadd.f32 0.0, %v2899
  %v2901 = vpop.f32.mrb[0].mxu0
  %2902 = vmatprep.mubr.f32.mxu0 0.0
  %2903 = vmatmul.mubr.f32.gmra.mrb[0].mxu0 %v2490
  %v2904 = vpop.f32.mrb[0].mxu0
  %v2905 = vadd.f32 0.0, %v2904
  %v2906 = vpop.f32.mrb[0].mxu0
  %2907 = vmatprep.mubr.f32.mxu0 0.0
  %2908 = vmatmul.mubr.f32.gmra.mrb[0].mxu0 %v2491
  %v2909 = vpop.f32.mrb[0].mxu0
  %v2910 = vadd.f32 0.0, %v2909
  %v2911 = vpop.f32.mrb[0].mxu0
  %2912 = vmatprep.mubr.f32.mxu0 0.0
  %2913 = vmatmul.mubr.f32.gmra.mrb[0].mxu0 %v2492
  %v2914 = vpop.f32.mrb[0].mxu0
  %v2915 = vadd.f32 0.0, %v2914
  %v2916 = vpop.f32.mrb[0].mxu0
  %2917 = vmatprep.mubr.f32.mxu0 0.0
  %2918 = vmatmul.mubr.f32.gmra.mrb[0].mxu0 %v2493
  %v2919 = vpop.f32.mrb[0].mxu0
  %v2920 = vadd.f32 0.0, %v2919
  %v2921 = vpop.f32.mrb[0].mxu0
  %2922 = vmatprep.mubr.f32.mxu0 0.0
  %2923 = vmatmul.mubr.f32.gmra.mrb[0].mxu0 %v2494
  %v2924 = vpop.f32.mrb[0].mxu0
  %v2925 = vadd.f32 0.0, %v2924
  %v2926 = vpop.f32.mrb[0].mxu0
  %2927 = vdwg.mxu0
  %v2928 = vmul.f32 %v2610, %v361
  %v2929 = vmul.f32 %v2615, %v362
  %v2930 = vmul.f32 %v2620, %v363
  %v2931 = vmul.f32 %v2625, %v364
  %v2932 = vmul.f32 %v2630, %v365
  %v2933 = vmul.f32 %v2635, %v366
  %v2934 = vmul.f32 %v2640, %v367
  %v2935 = vmul.f32 %v2645, %v368
  %v2936 = vmul.f32 %v2650, %v369
  %v2937 = vmul.f32 %v2655, %v370
  %v2938 = vmul.f32 %v2660, %v371
  %v2939 = vmul.f32 %v2665, %v372
  %v2940 = vmul.f32 %v2670, %v373
  %v2941 = vmul.f32 %v2675, %v374
  %v2942 = vmul.f32 %v2680, %v375
  %v2943 = vmul.f32 %v2685, %v376
  %v2944 = vmul.f32 %v2690, %v377
  %v2945 = vmul.f32 %v2695, %v378
  %v2946 = vmul.f32 %v2700, %v379
  %v2947 = vmul.f32 %v2705, %v380
  %v2948 = vmul.f32 %v2710, %v381
  %v2949 = vmul.f32 %v2715, %v382
  %v2950 = vmul.f32 %v2720, %v383
  %v2951 = vmul.f32 %v2725, %v384
  %v2952 = vmul.f32 %v2730, %v385
  %v2953 = vmul.f32 %v2735, %v386
  %v2954 = vmul.f32 %v2740, %v387
  %v2955 = vmul.f32 %v2745, %v388
  %v2956 = vmul.f32 %v2750, %v389
  %v2957 = vmul.f32 %v2755, %v390
  %v2958 = vmul.f32 %v2760, %v391
  %v2959 = vmul.f32 %v2765, %v392
  %v2960 = vmul.f32 %v2770, %v393
  %v2961 = vmul.f32 %v2775, %v394
  %v2962 = vmul.f32 %v2780, %v395
  %v2963 = vmul.f32 %v2785, %v396
  %v2964 = vmul.f32 %v2790, %v397
  %v2965 = vmul.f32 %v2795, %v398
  %v2966 = vmul.f32 %v2800, %v399
  %v2967 = vmul.f32 %v2805, %v400
  %v2968 = vmul.f32 %v2810, %v401
  %v2969 = vmul.f32 %v2815, %v402
  %v2970 = vmul.f32 %v2820, %v403
  %v2971 = vmul.f32 %v2825, %v404
  %v2972 = vmul.f32 %v2830, %v405
  %v2973 = vmul.f32 %v2835, %v406
  %v2974 = vmul.f32 %v2840, %v407
  %v2975 = vmul.f32 %v2845, %v408
  %v2976 = vmul.f32 %v2850, %v409
  %v2977 = vmul.f32 %v2855, %v410
  %v2978 = vmul.f32 %v2860, %v411
  %v2979 = vmul.f32 %v2865, %v412
  %v2980 = vmul.f32 %v2870, %v413
  %v2981 = vmul.f32 %v2875, %v414
  %v2982 = vmul.f32 %v2880, %v415
  %v2983 = vmul.f32 %v2885, %v416
  %v2984 = vmul.f32 %v2890, %v417
  %v2985 = vmul.f32 %v2895, %v418
  %v2986 = vmul.f32 %v2900, %v419
  %v2987 = vmul.f32 %v2905, %v420
  %v2988 = vmul.f32 %v2910, %v421
  %v2989 = vmul.f32 %v2915, %v422
  %v2990 = vmul.f32 %v2920, %v423
  %v2991 = vmul.f32 %v2925, %v424
  %v2992 = vadd.f32 %v2928, %v2944
  %v2993 = vadd.f32 %v2929, %v2945
  %v2994 = vadd.f32 %v2930, %v2946
  %v2995 = vadd.f32 %v2931, %v2947
  %v2996 = vadd.f32 %v2932, %v2948
  %v2997 = vadd.f32 %v2933, %v2949
  %v2998 = vadd.f32 %v2934, %v2950
  %v2999 = vadd.f32 %v2935, %v2951
  %v3000 = vadd.f32 %v2936, %v2952
  %v3001 = vadd.f32 %v2937, %v2953
  %v3002 = vadd.f32 %v2938, %v2954
  %v3003 = vadd.f32 %v2939, %v2955
  %v3004 = vadd.f32 %v2940, %v2956
  %v3005 = vadd.f32 %v2941, %v2957
  %v3006 = vadd.f32 %v2942, %v2958
  %v3007 = vadd.f32 %v2943, %v2959
  %v3008 = vadd.f32 %v2992, %v2960
  %v3009 = vadd.f32 %v2993, %v2961
  %v3010 = vadd.f32 %v2994, %v2962
  %v3011 = vadd.f32 %v2995, %v2963
  %v3012 = vadd.f32 %v2996, %v2964
  %v3013 = vadd.f32 %v2997, %v2965
  %v3014 = vadd.f32 %v2998, %v2966
  %v3015 = vadd.f32 %v2999, %v2967
  %v3016 = vadd.f32 %v3000, %v2968
  %v3017 = vadd.f32 %v3001, %v2969
  %v3018 = vadd.f32 %v3002, %v2970
  %v3019 = vadd.f32 %v3003, %v2971
  %v3020 = vadd.f32 %v3004, %v2972
  %v3021 = vadd.f32 %v3005, %v2973
  %v3022 = vadd.f32 %v3006, %v2974
  %v3023 = vadd.f32 %v3007, %v2975
  %v3024 = vadd.f32 %v3008, %v2976
  %v3025 = vadd.f32 %v3009, %v2977
  %v3026 = vadd.f32 %v3010, %v2978
  %v3027 = vadd.f32 %v3011, %v2979
  %v3028 = vadd.f32 %v3012, %v2980
  %v3029 = vadd.f32 %v3013, %v2981
  %v3030 = vadd.f32 %v3014, %v2982
  %v3031 = vadd.f32 %v3015, %v2983
  %v3032 = vadd.f32 %v3016, %v2984
  %v3033 = vadd.f32 %v3017, %v2985
  %v3034 = vadd.f32 %v3018, %v2986
  %v3035 = vadd.f32 %v3019, %v2987
  %v3036 = vadd.f32 %v3020, %v2988
  %v3037 = vadd.f32 %v3021, %v2989
  %v3038 = vadd.f32 %v3022, %v2990
  %v3039 = vadd.f32 %v3023, %v2991
  %v3041 = vsel %vm439, %v3024, 0
  %v3044 = vsel %vm439, %v3025, 0
  %v3047 = vsel %vm439, %v3026, 0
  %v3050 = vsel %vm439, %v3027, 0
  %v3053 = vsel %vm439, %v3028, 0
  %v3056 = vsel %vm439, %v3029, 0
  %v3059 = vsel %vm439, %v3030, 0
  %v3062 = vsel %vm439, %v3031, 0
  %v3065 = vsel %vm439, %v3032, 0
  %v3068 = vsel %vm439, %v3033, 0
  %v3071 = vsel %vm439, %v3034, 0
  %v3074 = vsel %vm439, %v3035, 0
  %v3077 = vsel %vm439, %v3036, 0
  %v3080 = vsel %vm439, %v3037, 0
  %v3083 = vsel %vm439, %v3038, 0
  %v3086 = vsel %vm439, %v3039, 0
  %3088 = vmatprep.subr.mxu0 0.0
  %3089 = vmatpush1.msra.mxu0 %v431
  %3090 = vmatprep.subr.mxu0 0.0
  %3091 = vmatpush1.msra.mxu0 %v432
  %3092 = vmatprep.subr.mxu0 0.0
  %3093 = vmatpush1.msra.mxu0 %v433
  %3094 = vmatprep.subr.mxu0 0.0
  %3095 = vmatpush1.msra.mxu0 %v434
  %3096 = vmatprep.subr.mxu0 0.0
  %3097 = vmatpush1.msra.mxu0 0.0
  %3098 = vmatprep.subr.mxu0 0.0
  %3099 = vmatpush1.msra.mxu0 0.0
  %3100 = vmatprep.subr.mxu0 0.0
  %3101 = vmatpush1.msra.mxu0 0.0
  %3102 = vmatprep.subr.mxu0 0.0
  %3103 = vmatpush1.msra.mxu0 0.0
  %3104 = vmatprep.subr.mxu0 0.0
  %3105 = vmatpush1.msra.mxu0 0.0
  %3106 = vmatprep.subr.mxu0 0.0
  %3107 = vmatpush1.msra.mxu0 0.0
  %3108 = vmatprep.subr.mxu0 0.0
  %3109 = vmatpush1.msra.mxu0 0.0
  %3110 = vmatprep.subr.mxu0 0.0
  %3111 = vmatpush1.msra.mxu0 0.0
  %3112 = vmatprep.subr.mxu0 0.0
  %3113 = vmatpush1.msra.mxu0 0.0
  %3114 = vmatprep.subr.mxu0 0.0
  %3115 = vmatpush1.msra.mxu0 0.0
  %3116 = vmatprep.subr.mxu0 0.0
  %3117 = vmatpush1.msra.mxu0 0.0
  %3118 = vmatprep.subr.mxu0 0.0
  %3119 = vmatpush1.msra.mxu0 0.0
  %3120 = vmatprep.subr.mxu0 0.0
  %3121 = vmatpush1.msra.mxu0 0.0
  %3122 = vmatprep.subr.mxu0 0.0
  %3123 = vmatpush1.msra.mxu0 0.0
  %3124 = vmatprep.subr.mxu0 0.0
  %3125 = vmatpush1.msra.mxu0 0.0
  %3126 = vmatprep.subr.mxu0 0.0
  %3127 = vmatpush1.msra.mxu0 0.0
  %3128 = vmatprep.subr.mxu0 0.0
  %3129 = vmatpush1.msra.mxu0 0.0
  %3130 = vmatprep.subr.mxu0 0.0
  %3131 = vmatpush1.msra.mxu0 0.0
  %3132 = vmatprep.subr.mxu0 0.0
  %3133 = vmatpush1.msra.mxu0 0.0
  %3134 = vmatprep.subr.mxu0 0.0
  %3135 = vmatpush1.msra.mxu0 0.0
  %3136 = vmatprep.subr.mxu0 0.0
  %3137 = vmatpush1.msra.mxu0 0.0
  %3138 = vmatprep.subr.mxu0 0.0
  %3139 = vmatpush1.msra.mxu0 0.0
  %3140 = vmatprep.subr.mxu0 0.0
  %3141 = vmatpush1.msra.mxu0 0.0
  %3142 = vmatprep.subr.mxu0 0.0
  %3143 = vmatpush1.msra.mxu0 0.0
  %3144 = vmatprep.subr.mxu0 0.0
  %3145 = vmatpush1.msra.mxu0 0.0
  %3146 = vmatprep.subr.mxu0 0.0
  %3147 = vmatpush1.msra.mxu0 0.0
  %3148 = vmatprep.subr.mxu0 0.0
  %3149 = vmatpush1.msra.mxu0 0.0
  %3150 = vmatprep.subr.mxu0 0.0
  %3151 = vmatpush1.msra.mxu0 0.0
  %3152 = vmatprep.mubr.f32.mxu0 0.0
  %3153 = vmatmul.mubr.f32.gmra.mrb[0].mxu0 %v3041
  %v3154 = vpop.f32.mrb[0].mxu0
  %v3155 = vadd.f32 0.0, %v3154
  %v3156 = vpop.f32.mrb[0].mxu0
  %3157 = vmatprep.mubr.f32.mxu0 0.0
  %3158 = vmatmul.mubr.f32.gmra.mrb[0].mxu0 %v3044
  %v3159 = vpop.f32.mrb[0].mxu0
  %v3160 = vadd.f32 0.0, %v3159
  %v3161 = vpop.f32.mrb[0].mxu0
  %3162 = vmatprep.mubr.f32.mxu0 0.0
  %3163 = vmatmul.mubr.f32.gmra.mrb[0].mxu0 %v3047
  %v3164 = vpop.f32.mrb[0].mxu0
  %v3165 = vadd.f32 0.0, %v3164
  %v3166 = vpop.f32.mrb[0].mxu0
  %3167 = vmatprep.mubr.f32.mxu0 0.0
  %3168 = vmatmul.mubr.f32.gmra.mrb[0].mxu0 %v3050
  %v3169 = vpop.f32.mrb[0].mxu0
  %v3170 = vadd.f32 0.0, %v3169
  %v3171 = vpop.f32.mrb[0].mxu0
  %3172 = vmatprep.mubr.f32.mxu0 0.0
  %3173 = vmatmul.mubr.f32.gmra.mrb[0].mxu0 %v3053
  %v3174 = vpop.f32.mrb[0].mxu0
  %v3175 = vadd.f32 0.0, %v3174
  %v3176 = vpop.f32.mrb[0].mxu0
  %3177 = vmatprep.mubr.f32.mxu0 0.0
  %3178 = vmatmul.mubr.f32.gmra.mrb[0].mxu0 %v3056
  %v3179 = vpop.f32.mrb[0].mxu0
  %v3180 = vadd.f32 0.0, %v3179
  %v3181 = vpop.f32.mrb[0].mxu0
  %3182 = vmatprep.mubr.f32.mxu0 0.0
  %3183 = vmatmul.mubr.f32.gmra.mrb[0].mxu0 %v3059
  %v3184 = vpop.f32.mrb[0].mxu0
  %v3185 = vadd.f32 0.0, %v3184
  %v3186 = vpop.f32.mrb[0].mxu0
  %3187 = vmatprep.mubr.f32.mxu0 0.0
  %3188 = vmatmul.mubr.f32.gmra.mrb[0].mxu0 %v3062
  %v3189 = vpop.f32.mrb[0].mxu0
  %v3190 = vadd.f32 0.0, %v3189
  %v3191 = vpop.f32.mrb[0].mxu0
  %3192 = vmatprep.mubr.f32.mxu0 0.0
  %3193 = vmatmul.mubr.f32.gmra.mrb[0].mxu0 %v3065
  %v3194 = vpop.f32.mrb[0].mxu0
  %v3195 = vadd.f32 0.0, %v3194
  %v3196 = vpop.f32.mrb[0].mxu0
  %3197 = vmatprep.mubr.f32.mxu0 0.0
  %3198 = vmatmul.mubr.f32.gmra.mrb[0].mxu0 %v3068
  %v3199 = vpop.f32.mrb[0].mxu0
  %v3200 = vadd.f32 0.0, %v3199
  %v3201 = vpop.f32.mrb[0].mxu0
  %3202 = vmatprep.mubr.f32.mxu0 0.0
  %3203 = vmatmul.mubr.f32.gmra.mrb[0].mxu0 %v3071
  %v3204 = vpop.f32.mrb[0].mxu0
  %v3205 = vadd.f32 0.0, %v3204
  %v3206 = vpop.f32.mrb[0].mxu0
  %3207 = vmatprep.mubr.f32.mxu0 0.0
  %3208 = vmatmul.mubr.f32.gmra.mrb[0].mxu0 %v3074
  %v3209 = vpop.f32.mrb[0].mxu0
  %v3210 = vadd.f32 0.0, %v3209
  %v3211 = vpop.f32.mrb[0].mxu0
  %3212 = vmatprep.mubr.f32.mxu0 0.0
  %3213 = vmatmul.mubr.f32.gmra.mrb[0].mxu0 %v3077
  %v3214 = vpop.f32.mrb[0].mxu0
  %v3215 = vadd.f32 0.0, %v3214
  %v3216 = vpop.f32.mrb[0].mxu0
  %3217 = vmatprep.mubr.f32.mxu0 0.0
  %3218 = vmatmul.mubr.f32.gmra.mrb[0].mxu0 %v3080
  %v3219 = vpop.f32.mrb[0].mxu0
  %v3220 = vadd.f32 0.0, %v3219
  %v3221 = vpop.f32.mrb[0].mxu0
  %3222 = vmatprep.mubr.f32.mxu0 0.0
  %3223 = vmatmul.mubr.f32.gmra.mrb[0].mxu0 %v3083
  %v3224 = vpop.f32.mrb[0].mxu0
  %v3225 = vadd.f32 0.0, %v3224
  %v3226 = vpop.f32.mrb[0].mxu0
  %3227 = vmatprep.mubr.f32.mxu0 0.0
  %3228 = vmatmul.mubr.f32.gmra.mrb[0].mxu0 %v3086
  %v3229 = vpop.f32.mrb[0].mxu0
  %v3230 = vadd.f32 0.0, %v3229
  %v3231 = vpop.f32.mrb[0].mxu0
  %3232 = vdwg.mxu0
  %v3233 = vadd.f32 %v171, %v3155
  %v3234 = vadd.f32 %v176, %v3160
  %v3235 = vadd.f32 %v181, %v3165
  %v3236 = vadd.f32 %v186, %v3170
  %v3237 = vadd.f32 %v191, %v3175
  %v3238 = vadd.f32 %v196, %v3180
  %v3239 = vadd.f32 %v201, %v3185
  %v3240 = vadd.f32 %v206, %v3190
  %v3241 = vadd.f32 %v211, %v3195
  %v3242 = vadd.f32 %v216, %v3200
  %v3243 = vadd.f32 %v221, %v3205
  %v3244 = vadd.f32 %v226, %v3210
  %v3245 = vadd.f32 %v231, %v3215
  %v3246 = vadd.f32 %v236, %v3220
  %v3247 = vadd.f32 %v241, %v3225
  %v3248 = vadd.f32 %v246, %v3230
  %v3249 = vsel %vm439, %v3233, 0.0
  %3250 = vadd.xlane.f32.xlu0 %v3249
  %v3251 = vpop.xlane.xlu0 %3250
  %v3252 = vsel %vm439, %v3234, 0.0
  %3253 = vadd.xlane.f32.xlu0 %v3252
  %v3254 = vpop.xlane.xlu0 %3253
  %v3255 = vsel %vm439, %v3235, 0.0
  %3256 = vadd.xlane.f32.xlu0 %v3255
  %v3257 = vpop.xlane.xlu0 %3256
  %v3258 = vsel %vm439, %v3236, 0.0
  %3259 = vadd.xlane.f32.xlu0 %v3258
  %v3260 = vpop.xlane.xlu0 %3259
  %v3261 = vsel %vm439, %v3237, 0.0
  %3262 = vadd.xlane.f32.xlu0 %v3261
  %v3263 = vpop.xlane.xlu0 %3262
  %v3264 = vsel %vm439, %v3238, 0.0
  %3265 = vadd.xlane.f32.xlu0 %v3264
  %v3266 = vpop.xlane.xlu0 %3265
  %v3267 = vsel %vm439, %v3239, 0.0
  %3268 = vadd.xlane.f32.xlu0 %v3267
  %v3269 = vpop.xlane.xlu0 %3268
  %v3270 = vsel %vm439, %v3240, 0.0
  %3271 = vadd.xlane.f32.xlu0 %v3270
  %v3272 = vpop.xlane.xlu0 %3271
  %v3273 = vsel %vm439, %v3241, 0.0
  %3274 = vadd.xlane.f32.xlu0 %v3273
  %v3275 = vpop.xlane.xlu0 %3274
  %v3276 = vsel %vm439, %v3242, 0.0
  %3277 = vadd.xlane.f32.xlu0 %v3276
  %v3278 = vpop.xlane.xlu0 %3277
  %v3279 = vsel %vm439, %v3243, 0.0
  %3280 = vadd.xlane.f32.xlu0 %v3279
  %v3281 = vpop.xlane.xlu0 %3280
  %v3282 = vsel %vm439, %v3244, 0.0
  %3283 = vadd.xlane.f32.xlu0 %v3282
  %v3284 = vpop.xlane.xlu0 %3283
  %v3285 = vsel %vm439, %v3245, 0.0
  %3286 = vadd.xlane.f32.xlu0 %v3285
  %v3287 = vpop.xlane.xlu0 %3286
  %v3288 = vsel %vm439, %v3246, 0.0
  %3289 = vadd.xlane.f32.xlu0 %v3288
  %v3290 = vpop.xlane.xlu0 %3289
  %v3291 = vsel %vm439, %v3247, 0.0
  %3292 = vadd.xlane.f32.xlu0 %v3291
  %v3293 = vpop.xlane.xlu0 %3292
  %v3294 = vsel %vm439, %v3248, 0.0
  %3295 = vadd.xlane.f32.xlu0 %v3294
  %v3296 = vpop.xlane.xlu0 %3295
  %v3297 = vmul.f32 %v3251, %v488
  %v3298 = vmul.f32 %v3254, %v488
  %v3299 = vmul.f32 %v3257, %v488
  %v3300 = vmul.f32 %v3260, %v488
  %v3301 = vmul.f32 %v3263, %v488
  %v3302 = vmul.f32 %v3266, %v488
  %v3303 = vmul.f32 %v3269, %v488
  %v3304 = vmul.f32 %v3272, %v488
  %v3305 = vmul.f32 %v3275, %v488
  %v3306 = vmul.f32 %v3278, %v488
  %v3307 = vmul.f32 %v3281, %v488
  %v3308 = vmul.f32 %v3284, %v488
  %v3309 = vmul.f32 %v3287, %v488
  %v3310 = vmul.f32 %v3290, %v488
  %v3311 = vmul.f32 %v3293, %v488
  %v3312 = vmul.f32 %v3296, %v488
  %v3313 = vsub.f32 %v3233, %v3297
  %v3314 = vsub.f32 %v3234, %v3298
  %v3315 = vsub.f32 %v3235, %v3299
  %v3316 = vsub.f32 %v3236, %v3300
  %v3317 = vsub.f32 %v3237, %v3301
  %v3318 = vsub.f32 %v3238, %v3302
  %v3319 = vsub.f32 %v3239, %v3303
  %v3320 = vsub.f32 %v3240, %v3304
  %v3321 = vsub.f32 %v3241, %v3305
  %v3322 = vsub.f32 %v3242, %v3306
  %v3323 = vsub.f32 %v3243, %v3307
  %v3324 = vsub.f32 %v3244, %v3308
  %v3325 = vsub.f32 %v3245, %v3309
  %v3326 = vsub.f32 %v3246, %v3310
  %v3327 = vsub.f32 %v3247, %v3311
  %v3328 = vsub.f32 %v3248, %v3312
  %v3329 = vmul.f32 %v3313, %v3313
  %v3330 = vmul.f32 %v3314, %v3314
  %v3331 = vmul.f32 %v3315, %v3315
  %v3332 = vmul.f32 %v3316, %v3316
  %v3333 = vmul.f32 %v3317, %v3317
  %v3334 = vmul.f32 %v3318, %v3318
  %v3335 = vmul.f32 %v3319, %v3319
  %v3336 = vmul.f32 %v3320, %v3320
  %v3337 = vmul.f32 %v3321, %v3321
  %v3338 = vmul.f32 %v3322, %v3322
  %v3339 = vmul.f32 %v3323, %v3323
  %v3340 = vmul.f32 %v3324, %v3324
  %v3341 = vmul.f32 %v3325, %v3325
  %v3342 = vmul.f32 %v3326, %v3326
  %v3343 = vmul.f32 %v3327, %v3327
  %v3344 = vmul.f32 %v3328, %v3328
  %v3345 = vsel %vm439, %v3329, 0.0
  %3346 = vadd.xlane.f32.xlu0 %v3345
  %v3347 = vpop.xlane.xlu0 %3346
  %v3348 = vsel %vm439, %v3330, 0.0
  %3349 = vadd.xlane.f32.xlu0 %v3348
  %v3350 = vpop.xlane.xlu0 %3349
  %v3351 = vsel %vm439, %v3331, 0.0
  %3352 = vadd.xlane.f32.xlu0 %v3351
  %v3353 = vpop.xlane.xlu0 %3352
  %v3354 = vsel %vm439, %v3332, 0.0
  %3355 = vadd.xlane.f32.xlu0 %v3354
  %v3356 = vpop.xlane.xlu0 %3355
  %v3357 = vsel %vm439, %v3333, 0.0
  %3358 = vadd.xlane.f32.xlu0 %v3357
  %v3359 = vpop.xlane.xlu0 %3358
  %v3360 = vsel %vm439, %v3334, 0.0
  %3361 = vadd.xlane.f32.xlu0 %v3360
  %v3362 = vpop.xlane.xlu0 %3361
  %v3363 = vsel %vm439, %v3335, 0.0
  %3364 = vadd.xlane.f32.xlu0 %v3363
  %v3365 = vpop.xlane.xlu0 %3364
  %v3366 = vsel %vm439, %v3336, 0.0
  %3367 = vadd.xlane.f32.xlu0 %v3366
  %v3368 = vpop.xlane.xlu0 %3367
  %v3369 = vsel %vm439, %v3337, 0.0
  %3370 = vadd.xlane.f32.xlu0 %v3369
  %v3371 = vpop.xlane.xlu0 %3370
  %v3372 = vsel %vm439, %v3338, 0.0
  %3373 = vadd.xlane.f32.xlu0 %v3372
  %v3374 = vpop.xlane.xlu0 %3373
  %v3375 = vsel %vm439, %v3339, 0.0
  %3376 = vadd.xlane.f32.xlu0 %v3375
  %v3377 = vpop.xlane.xlu0 %3376
  %v3378 = vsel %vm439, %v3340, 0.0
  %3379 = vadd.xlane.f32.xlu0 %v3378
  %v3380 = vpop.xlane.xlu0 %3379
  %v3381 = vsel %vm439, %v3341, 0.0
  %3382 = vadd.xlane.f32.xlu0 %v3381
  %v3383 = vpop.xlane.xlu0 %3382
  %v3384 = vsel %vm439, %v3342, 0.0
  %3385 = vadd.xlane.f32.xlu0 %v3384
  %v3386 = vpop.xlane.xlu0 %3385
  %v3387 = vsel %vm439, %v3343, 0.0
  %3388 = vadd.xlane.f32.xlu0 %v3387
  %v3389 = vpop.xlane.xlu0 %3388
  %v3390 = vsel %vm439, %v3344, 0.0
  %3391 = vadd.xlane.f32.xlu0 %v3390
  %v3392 = vpop.xlane.xlu0 %3391
  %v3393 = vmul.f32 %v3347, %v488
  %v3394 = vmul.f32 %v3350, %v488
  %v3395 = vmul.f32 %v3353, %v488
  %v3396 = vmul.f32 %v3356, %v488
  %v3397 = vmul.f32 %v3359, %v488
  %v3398 = vmul.f32 %v3362, %v488
  %v3399 = vmul.f32 %v3365, %v488
  %v3400 = vmul.f32 %v3368, %v488
  %v3401 = vmul.f32 %v3371, %v488
  %v3402 = vmul.f32 %v3374, %v488
  %v3403 = vmul.f32 %v3377, %v488
  %v3404 = vmul.f32 %v3380, %v488
  %v3405 = vmul.f32 %v3383, %v488
  %v3406 = vmul.f32 %v3386, %v488
  %v3407 = vmul.f32 %v3389, %v488
  %v3408 = vmul.f32 %v3392, %v488
  %v3409 = vadd.f32 %v3393, 1e-05
  %v3410 = vadd.f32 %v3394, 1e-05
  %v3411 = vadd.f32 %v3395, 1e-05
  %v3412 = vadd.f32 %v3396, 1e-05
  %v3413 = vadd.f32 %v3397, 1e-05
  %v3414 = vadd.f32 %v3398, 1e-05
  %v3415 = vadd.f32 %v3399, 1e-05
  %v3416 = vadd.f32 %v3400, 1e-05
  %v3417 = vadd.f32 %v3401, 1e-05
  %v3418 = vadd.f32 %v3402, 1e-05
  %v3419 = vadd.f32 %v3403, 1e-05
  %v3420 = vadd.f32 %v3404, 1e-05
  %v3421 = vadd.f32 %v3405, 1e-05
  %v3422 = vadd.f32 %v3406, 1e-05
  %v3423 = vadd.f32 %v3407, 1e-05
  %v3424 = vadd.f32 %v3408, 1e-05
  %v3425 = vrsqrt.pop %v3409
  %v3426 = vrsqrt.pop %v3410
  %v3427 = vrsqrt.pop %v3411
  %v3428 = vrsqrt.pop %v3412
  %v3429 = vrsqrt.pop %v3413
  %v3430 = vrsqrt.pop %v3414
  %v3431 = vrsqrt.pop %v3415
  %v3432 = vrsqrt.pop %v3416
  %v3433 = vrsqrt.pop %v3417
  %v3434 = vrsqrt.pop %v3418
  %v3435 = vrsqrt.pop %v3419
  %v3436 = vrsqrt.pop %v3420
  %v3437 = vrsqrt.pop %v3421
  %v3438 = vrsqrt.pop %v3422
  %v3439 = vrsqrt.pop %v3423
  %v3440 = vrsqrt.pop %v3424
  %v3441 = vmul.f32 %v3313, %v3425
  %v3442 = vmul.f32 %v3314, %v3426
  %v3443 = vmul.f32 %v3315, %v3427
  %v3444 = vmul.f32 %v3316, %v3428
  %v3445 = vmul.f32 %v3317, %v3429
  %v3446 = vmul.f32 %v3318, %v3430
  %v3447 = vmul.f32 %v3319, %v3431
  %v3448 = vmul.f32 %v3320, %v3432
  %v3449 = vmul.f32 %v3321, %v3433
  %v3450 = vmul.f32 %v3322, %v3434
  %v3451 = vmul.f32 %v3323, %v3435
  %v3452 = vmul.f32 %v3324, %v3436
  %v3453 = vmul.f32 %v3325, %v3437
  %v3454 = vmul.f32 %v3326, %v3438
  %v3455 = vmul.f32 %v3327, %v3439
  %v3456 = vmul.f32 %v3328, %v3440
  %v3457 = vlaneseq
  %v3458 = vshrl.u32 %v3457, 7
  %v3459 = vsub.s32 0, %v3458
  %v3460 = vrot.slane %v426, %v3459
  %v3461 = vmul.f32 %v3441, %v3460
  %v3462 = vmul.f32 %v3442, %v3460
  %v3463 = vmul.f32 %v3443, %v3460
  %v3464 = vmul.f32 %v3444, %v3460
  %v3465 = vmul.f32 %v3445, %v3460
  %v3466 = vmul.f32 %v3446, %v3460
  %v3467 = vmul.f32 %v3447, %v3460
  %v3468 = vmul.f32 %v3448, %v3460
  %v3469 = vmul.f32 %v3449, %v3460
  %v3470 = vmul.f32 %v3450, %v3460
  %v3471 = vmul.f32 %v3451, %v3460
  %v3472 = vmul.f32 %v3452, %v3460
  %v3473 = vmul.f32 %v3453, %v3460
  %v3474 = vmul.f32 %v3454, %v3460
  %v3475 = vmul.f32 %v3455, %v3460
  %v3476 = vmul.f32 %v3456, %v3460
  %3481 = vrot.lane.b32.xlu0 %v431, 96
  %v3482 = vpop.permute.xlu0 %3481
  %3483 = vrot.lane.b32.xlu0 %v432, 96
  %v3484 = vpop.permute.xlu0 %3483
  %3485 = vrot.lane.b32.xlu0 %v433, 96
  %v3486 = vpop.permute.xlu0 %3485
  %3487 = vrot.lane.b32.xlu0 %v434, 96
  %v3488 = vpop.permute.xlu0 %3487
  %v3494 = vsel %vm439, %v3461, 0
  %v3497 = vsel %vm439, %v3462, 0
  %v3500 = vsel %vm439, %v3463, 0
  %v3503 = vsel %vm439, %v3464, 0
  %v3506 = vsel %vm439, %v3465, 0
  %v3509 = vsel %vm439, %v3466, 0
  %v3512 = vsel %vm439, %v3467, 0
  %v3515 = vsel %vm439, %v3468, 0
  %v3518 = vsel %vm439, %v3469, 0
  %v3521 = vsel %vm439, %v3470, 0
  %v3524 = vsel %vm439, %v3471, 0
  %v3527 = vsel %vm439, %v3472, 0
  %v3530 = vsel %vm439, %v3473, 0
  %v3533 = vsel %vm439, %v3474, 0
  %v3536 = vsel %vm439, %v3475, 0
  %v3539 = vsel %vm439, %v3476, 0
  %3541 = vmatprep.subr.mxu0 0.0
  %3542 = vmatpush1.msra.mxu0 %v3482
  %3543 = vmatprep.subr.mxu0 0.0
  %3544 = vmatpush1.msra.mxu0 %v3484
  %3545 = vmatprep.subr.mxu0 0.0
  %3546 = vmatpush1.msra.mxu0 %v3486
  %3547 = vmatprep.subr.mxu0 0.0
  %3548 = vmatpush1.msra.mxu0 %v3488
  %3549 = vmatprep.subr.mxu0 0.0
  %3550 = vmatpush1.msra.mxu0 0.0
  %3551 = vmatprep.subr.mxu0 0.0
  %3552 = vmatpush1.msra.mxu0 0.0
  %3553 = vmatprep.subr.mxu0 0.0
  %3554 = vmatpush1.msra.mxu0 0.0
  %3555 = vmatprep.subr.mxu0 0.0
  %3556 = vmatpush1.msra.mxu0 0.0
  %3557 = vmatprep.subr.mxu0 0.0
  %3558 = vmatpush1.msra.mxu0 0.0
  %3559 = vmatprep.subr.mxu0 0.0
  %3560 = vmatpush1.msra.mxu0 0.0
  %3561 = vmatprep.subr.mxu0 0.0
  %3562 = vmatpush1.msra.mxu0 0.0
  %3563 = vmatprep.subr.mxu0 0.0
  %3564 = vmatpush1.msra.mxu0 0.0
  %3565 = vmatprep.subr.mxu0 0.0
  %3566 = vmatpush1.msra.mxu0 0.0
  %3567 = vmatprep.subr.mxu0 0.0
  %3568 = vmatpush1.msra.mxu0 0.0
  %3569 = vmatprep.subr.mxu0 0.0
  %3570 = vmatpush1.msra.mxu0 0.0
  %3571 = vmatprep.subr.mxu0 0.0
  %3572 = vmatpush1.msra.mxu0 0.0
  %3573 = vmatprep.subr.mxu0 0.0
  %3574 = vmatpush1.msra.mxu0 0.0
  %3575 = vmatprep.subr.mxu0 0.0
  %3576 = vmatpush1.msra.mxu0 0.0
  %3577 = vmatprep.subr.mxu0 0.0
  %3578 = vmatpush1.msra.mxu0 0.0
  %3579 = vmatprep.subr.mxu0 0.0
  %3580 = vmatpush1.msra.mxu0 0.0
  %3581 = vmatprep.subr.mxu0 0.0
  %3582 = vmatpush1.msra.mxu0 0.0
  %3583 = vmatprep.subr.mxu0 0.0
  %3584 = vmatpush1.msra.mxu0 0.0
  %3585 = vmatprep.subr.mxu0 0.0
  %3586 = vmatpush1.msra.mxu0 0.0
  %3587 = vmatprep.subr.mxu0 0.0
  %3588 = vmatpush1.msra.mxu0 0.0
  %3589 = vmatprep.subr.mxu0 0.0
  %3590 = vmatpush1.msra.mxu0 0.0
  %3591 = vmatprep.subr.mxu0 0.0
  %3592 = vmatpush1.msra.mxu0 0.0
  %3593 = vmatprep.subr.mxu0 0.0
  %3594 = vmatpush1.msra.mxu0 0.0
  %3595 = vmatprep.subr.mxu0 0.0
  %3596 = vmatpush1.msra.mxu0 0.0
  %3597 = vmatprep.subr.mxu0 0.0
  %3598 = vmatpush1.msra.mxu0 0.0
  %3599 = vmatprep.subr.mxu0 0.0
  %3600 = vmatpush1.msra.mxu0 0.0
  %3601 = vmatprep.subr.mxu0 0.0
  %3602 = vmatpush1.msra.mxu0 0.0
  %3603 = vmatprep.subr.mxu0 0.0
  %3604 = vmatpush1.msra.mxu0 0.0
  %3605 = vmatprep.mubr.f32.mxu0 0.0
  %3606 = vmatmul.mubr.f32.gmra.mrb[0].mxu0 %v3494
  %v3607 = vpop.f32.mrb[0].mxu0
  %v3608 = vadd.f32 0.0, %v3607
  %v3609 = vpop.f32.mrb[0].mxu0
  %3610 = vmatprep.mubr.f32.mxu0 0.0
  %3611 = vmatmul.mubr.f32.gmra.mrb[0].mxu0 %v3497
  %v3612 = vpop.f32.mrb[0].mxu0
  %v3613 = vadd.f32 0.0, %v3612
  %v3614 = vpop.f32.mrb[0].mxu0
  %3615 = vmatprep.mubr.f32.mxu0 0.0
  %3616 = vmatmul.mubr.f32.gmra.mrb[0].mxu0 %v3500
  %v3617 = vpop.f32.mrb[0].mxu0
  %v3618 = vadd.f32 0.0, %v3617
  %v3619 = vpop.f32.mrb[0].mxu0
  %3620 = vmatprep.mubr.f32.mxu0 0.0
  %3621 = vmatmul.mubr.f32.gmra.mrb[0].mxu0 %v3503
  %v3622 = vpop.f32.mrb[0].mxu0
  %v3623 = vadd.f32 0.0, %v3622
  %v3624 = vpop.f32.mrb[0].mxu0
  %3625 = vmatprep.mubr.f32.mxu0 0.0
  %3626 = vmatmul.mubr.f32.gmra.mrb[0].mxu0 %v3506
  %v3627 = vpop.f32.mrb[0].mxu0
  %v3628 = vadd.f32 0.0, %v3627
  %v3629 = vpop.f32.mrb[0].mxu0
  %3630 = vmatprep.mubr.f32.mxu0 0.0
  %3631 = vmatmul.mubr.f32.gmra.mrb[0].mxu0 %v3509
  %v3632 = vpop.f32.mrb[0].mxu0
  %v3633 = vadd.f32 0.0, %v3632
  %v3634 = vpop.f32.mrb[0].mxu0
  %3635 = vmatprep.mubr.f32.mxu0 0.0
  %3636 = vmatmul.mubr.f32.gmra.mrb[0].mxu0 %v3512
  %v3637 = vpop.f32.mrb[0].mxu0
  %v3638 = vadd.f32 0.0, %v3637
  %v3639 = vpop.f32.mrb[0].mxu0
  %3640 = vmatprep.mubr.f32.mxu0 0.0
  %3641 = vmatmul.mubr.f32.gmra.mrb[0].mxu0 %v3515
  %v3642 = vpop.f32.mrb[0].mxu0
  %v3643 = vadd.f32 0.0, %v3642
  %v3644 = vpop.f32.mrb[0].mxu0
  %3645 = vmatprep.mubr.f32.mxu0 0.0
  %3646 = vmatmul.mubr.f32.gmra.mrb[0].mxu0 %v3518
  %v3647 = vpop.f32.mrb[0].mxu0
  %v3648 = vadd.f32 0.0, %v3647
  %v3649 = vpop.f32.mrb[0].mxu0
  %3650 = vmatprep.mubr.f32.mxu0 0.0
  %3651 = vmatmul.mubr.f32.gmra.mrb[0].mxu0 %v3521
  %v3652 = vpop.f32.mrb[0].mxu0
  %v3653 = vadd.f32 0.0, %v3652
  %v3654 = vpop.f32.mrb[0].mxu0
  %3655 = vmatprep.mubr.f32.mxu0 0.0
  %3656 = vmatmul.mubr.f32.gmra.mrb[0].mxu0 %v3524
  %v3657 = vpop.f32.mrb[0].mxu0
  %v3658 = vadd.f32 0.0, %v3657
  %v3659 = vpop.f32.mrb[0].mxu0
  %3660 = vmatprep.mubr.f32.mxu0 0.0
  %3661 = vmatmul.mubr.f32.gmra.mrb[0].mxu0 %v3527
  %v3662 = vpop.f32.mrb[0].mxu0
  %v3663 = vadd.f32 0.0, %v3662
  %v3664 = vpop.f32.mrb[0].mxu0
  %3665 = vmatprep.mubr.f32.mxu0 0.0
  %3666 = vmatmul.mubr.f32.gmra.mrb[0].mxu0 %v3530
  %v3667 = vpop.f32.mrb[0].mxu0
  %v3668 = vadd.f32 0.0, %v3667
  %v3669 = vpop.f32.mrb[0].mxu0
  %3670 = vmatprep.mubr.f32.mxu0 0.0
  %3671 = vmatmul.mubr.f32.gmra.mrb[0].mxu0 %v3533
  %v3672 = vpop.f32.mrb[0].mxu0
  %v3673 = vadd.f32 0.0, %v3672
  %v3674 = vpop.f32.mrb[0].mxu0
  %3675 = vmatprep.mubr.f32.mxu0 0.0
  %3676 = vmatmul.mubr.f32.gmra.mrb[0].mxu0 %v3536
  %v3677 = vpop.f32.mrb[0].mxu0
  %v3678 = vadd.f32 0.0, %v3677
  %v3679 = vpop.f32.mrb[0].mxu0
  %3680 = vmatprep.mubr.f32.mxu0 0.0
  %3681 = vmatmul.mubr.f32.gmra.mrb[0].mxu0 %v3539
  %v3682 = vpop.f32.mrb[0].mxu0
  %v3683 = vadd.f32 0.0, %v3682
  %v3684 = vpop.f32.mrb[0].mxu0
  %3685 = vdwg.mxu0
  %v3686 = vmul.f32 %v3608, 0.5
  %v3687 = vmul.f32 %v3613, 0.5
  %v3688 = vmul.f32 %v3618, 0.5
  %v3689 = vmul.f32 %v3623, 0.5
  %v3690 = vmul.f32 %v3628, 0.5
  %v3691 = vmul.f32 %v3633, 0.5
  %v3692 = vmul.f32 %v3638, 0.5
  %v3693 = vmul.f32 %v3643, 0.5
  %v3694 = vmul.f32 %v3648, 0.5
  %v3695 = vmul.f32 %v3653, 0.5
  %v3696 = vmul.f32 %v3658, 0.5
  %v3697 = vmul.f32 %v3663, 0.5
  %v3698 = vmul.f32 %v3668, 0.5
  %v3699 = vmul.f32 %v3673, 0.5
  %v3700 = vmul.f32 %v3678, 0.5
  %v3701 = vmul.f32 %v3683, 0.5
  %v3702 = vmul.f32 %v3608, 0.70710677
  %v3703 = vmul.f32 %v3613, 0.70710677
  %v3704 = vmul.f32 %v3618, 0.70710677
  %v3705 = vmul.f32 %v3623, 0.70710677
  %v3706 = vmul.f32 %v3628, 0.70710677
  %v3707 = vmul.f32 %v3633, 0.70710677
  %v3708 = vmul.f32 %v3638, 0.70710677
  %v3709 = vmul.f32 %v3643, 0.70710677
  %v3710 = vmul.f32 %v3648, 0.70710677
  %v3711 = vmul.f32 %v3653, 0.70710677
  %v3712 = vmul.f32 %v3658, 0.70710677
  %v3713 = vmul.f32 %v3663, 0.70710677
  %v3714 = vmul.f32 %v3668, 0.70710677
  %v3715 = vmul.f32 %v3673, 0.70710677
  %v3716 = vmul.f32 %v3678, 0.70710677
  %v3717 = vmul.f32 %v3683, 0.70710677
  %vm3718 = vcmp.ge.f32.partialorder %v3702, 0.0
  %vm3719 = vcmp.ge.f32.partialorder %v3703, 0.0
  %vm3720 = vcmp.ge.f32.partialorder %v3704, 0.0
  %vm3721 = vcmp.ge.f32.partialorder %v3705, 0.0
  %vm3722 = vcmp.ge.f32.partialorder %v3706, 0.0
  %vm3723 = vcmp.ge.f32.partialorder %v3707, 0.0
  %vm3724 = vcmp.ge.f32.partialorder %v3708, 0.0
  %vm3725 = vcmp.ge.f32.partialorder %v3709, 0.0
  %vm3726 = vcmp.ge.f32.partialorder %v3710, 0.0
  %vm3727 = vcmp.ge.f32.partialorder %v3711, 0.0
  %vm3728 = vcmp.ge.f32.partialorder %v3712, 0.0
  %vm3729 = vcmp.ge.f32.partialorder %v3713, 0.0
  %vm3730 = vcmp.ge.f32.partialorder %v3714, 0.0
  %vm3731 = vcmp.ge.f32.partialorder %v3715, 0.0
  %vm3732 = vcmp.ge.f32.partialorder %v3716, 0.0
  %vm3733 = vcmp.ge.f32.partialorder %v3717, 0.0
  %v3734 = vsel %vm3718, 1.0, -1.0
  %v3735 = vsel %vm3719, 1.0, -1.0
  %v3736 = vsel %vm3720, 1.0, -1.0
  %v3737 = vsel %vm3721, 1.0, -1.0
  %v3738 = vsel %vm3722, 1.0, -1.0
  %v3739 = vsel %vm3723, 1.0, -1.0
  %v3740 = vsel %vm3724, 1.0, -1.0
  %v3741 = vsel %vm3725, 1.0, -1.0
  %v3742 = vsel %vm3726, 1.0, -1.0
  %v3743 = vsel %vm3727, 1.0, -1.0
  %v3744 = vsel %vm3728, 1.0, -1.0
  %v3745 = vsel %vm3729, 1.0, -1.0
  %v3746 = vsel %vm3730, 1.0, -1.0
  %v3747 = vsel %vm3731, 1.0, -1.0
  %v3748 = vsel %vm3732, 1.0, -1.0
  %v3749 = vsel %vm3733, 1.0, -1.0
  %v3750 = vand.u32 2147483647, %v3702
  %v3751 = vand.u32 2147483647, %v3703
  %v3752 = vand.u32 2147483647, %v3704
  %v3753 = vand.u32 2147483647, %v3705
  %v3754 = vand.u32 2147483647, %v3706
  %v3755 = vand.u32 2147483647, %v3707
  %v3756 = vand.u32 2147483647, %v3708
  %v3757 = vand.u32 2147483647, %v3709
  %v3758 = vand.u32 2147483647, %v3710
  %v3759 = vand.u32 2147483647, %v3711
  %v3760 = vand.u32 2147483647, %v3712
  %v3761 = vand.u32 2147483647, %v3713
  %v3762 = vand.u32 2147483647, %v3714
  %v3763 = vand.u32 2147483647, %v3715
  %v3764 = vand.u32 2147483647, %v3716
  %v3765 = vand.u32 2147483647, %v3717
  %v3766 = vmul.f32 %v3750, 0.3275911
  %v3767 = vmul.f32 %v3751, 0.3275911
  %v3768 = vmul.f32 %v3752, 0.3275911
  %v3769 = vmul.f32 %v3753, 0.3275911
  %v3770 = vmul.f32 %v3754, 0.3275911
  %v3771 = vmul.f32 %v3755, 0.3275911
  %v3772 = vmul.f32 %v3756, 0.3275911
  %v3773 = vmul.f32 %v3757, 0.3275911
  %v3774 = vmul.f32 %v3758, 0.3275911
  %v3775 = vmul.f32 %v3759, 0.3275911
  %v3776 = vmul.f32 %v3760, 0.3275911
  %v3777 = vmul.f32 %v3761, 0.3275911
  %v3778 = vmul.f32 %v3762, 0.3275911
  %v3779 = vmul.f32 %v3763, 0.3275911
  %v3780 = vmul.f32 %v3764, 0.3275911
  %v3781 = vmul.f32 %v3765, 0.3275911
  %v3782 = vadd.f32 %v3766, 1.0
  %v3783 = vadd.f32 %v3767, 1.0
  %v3784 = vadd.f32 %v3768, 1.0
  %v3785 = vadd.f32 %v3769, 1.0
  %v3786 = vadd.f32 %v3770, 1.0
  %v3787 = vadd.f32 %v3771, 1.0
  %v3788 = vadd.f32 %v3772, 1.0
  %v3789 = vadd.f32 %v3773, 1.0
  %v3790 = vadd.f32 %v3774, 1.0
  %v3791 = vadd.f32 %v3775, 1.0
  %v3792 = vadd.f32 %v3776, 1.0
  %v3793 = vadd.f32 %v3777, 1.0
  %v3794 = vadd.f32 %v3778, 1.0
  %v3795 = vadd.f32 %v3779, 1.0
  %v3796 = vadd.f32 %v3780, 1.0
  %v3797 = vadd.f32 %v3781, 1.0
  %v3798 = vrcp.pop %v3782
  %v3799 = vrcp.pop %v3783
  %v3800 = vrcp.pop %v3784
  %v3801 = vrcp.pop %v3785
  %v3802 = vrcp.pop %v3786
  %v3803 = vrcp.pop %v3787
  %v3804 = vrcp.pop %v3788
  %v3805 = vrcp.pop %v3789
  %v3806 = vrcp.pop %v3790
  %v3807 = vrcp.pop %v3791
  %v3808 = vrcp.pop %v3792
  %v3809 = vrcp.pop %v3793
  %v3810 = vrcp.pop %v3794
  %v3811 = vrcp.pop %v3795
  %v3812 = vrcp.pop %v3796
  %v3813 = vrcp.pop %v3797
  %v3814 = vmul.f32 %v3782, %v3798
  %v3815 = vmul.f32 %v3783, %v3799
  %v3816 = vmul.f32 %v3784, %v3800
  %v3817 = vmul.f32 %v3785, %v3801
  %v3818 = vmul.f32 %v3786, %v3802
  %v3819 = vmul.f32 %v3787, %v3803
  %v3820 = vmul.f32 %v3788, %v3804
  %v3821 = vmul.f32 %v3789, %v3805
  %v3822 = vmul.f32 %v3790, %v3806
  %v3823 = vmul.f32 %v3791, %v3807
  %v3824 = vmul.f32 %v3792, %v3808
  %v3825 = vmul.f32 %v3793, %v3809
  %v3826 = vmul.f32 %v3794, %v3810
  %v3827 = vmul.f32 %v3795, %v3811
  %v3828 = vmul.f32 %v3796, %v3812
  %v3829 = vmul.f32 %v3797, %v3813
  %v3830 = vsub.f32 2.0, %v3814
  %v3831 = vsub.f32 2.0, %v3815
  %v3832 = vsub.f32 2.0, %v3816
  %v3833 = vsub.f32 2.0, %v3817
  %v3834 = vsub.f32 2.0, %v3818
  %v3835 = vsub.f32 2.0, %v3819
  %v3836 = vsub.f32 2.0, %v3820
  %v3837 = vsub.f32 2.0, %v3821
  %v3838 = vsub.f32 2.0, %v3822
  %v3839 = vsub.f32 2.0, %v3823
  %v3840 = vsub.f32 2.0, %v3824
  %v3841 = vsub.f32 2.0, %v3825
  %v3842 = vsub.f32 2.0, %v3826
  %v3843 = vsub.f32 2.0, %v3827
  %v3844 = vsub.f32 2.0, %v3828
  %v3845 = vsub.f32 2.0, %v3829
  %v3846 = vmul.f32 %v3798, %v3830
  %v3847 = vmul.f32 %v3799, %v3831
  %v3848 = vmul.f32 %v3800, %v3832
  %v3849 = vmul.f32 %v3801, %v3833
  %v3850 = vmul.f32 %v3802, %v3834
  %v3851 = vmul.f32 %v3803, %v3835
  %v3852 = vmul.f32 %v3804, %v3836
  %v3853 = vmul.f32 %v3805, %v3837
  %v3854 = vmul.f32 %v3806, %v3838
  %v3855 = vmul.f32 %v3807, %v3839
  %v3856 = vmul.f32 %v3808, %v3840
  %v3857 = vmul.f32 %v3809, %v3841
  %v3858 = vmul.f32 %v3810, %v3842
  %v3859 = vmul.f32 %v3811, %v3843
  %v3860 = vmul.f32 %v3812, %v3844
  %v3861 = vmul.f32 %v3813, %v3845
  %v3862 = vmul.f32 %v3846, 1.0614054
  %v3863 = vmul.f32 %v3847, 1.0614054
  %v3864 = vmul.f32 %v3848, 1.0614054
  %v3865 = vmul.f32 %v3849, 1.0614054
  %v3866 = vmul.f32 %v3850, 1.0614054
  %v3867 = vmul.f32 %v3851, 1.0614054
  %v3868 = vmul.f32 %v3852, 1.0614054
  %v3869 = vmul.f32 %v3853, 1.0614054
  %v3870 = vmul.f32 %v3854, 1.0614054
  %v3871 = vmul.f32 %v3855, 1.0614054
  %v3872 = vmul.f32 %v3856, 1.0614054
  %v3873 = vmul.f32 %v3857, 1.0614054
  %v3874 = vmul.f32 %v3858, 1.0614054
  %v3875 = vmul.f32 %v3859, 1.0614054
  %v3876 = vmul.f32 %v3860, 1.0614054
  %v3877 = vmul.f32 %v3861, 1.0614054
  %v3878 = vadd.f32 %v3862, -1.4531521
  %v3879 = vadd.f32 %v3863, -1.4531521
  %v3880 = vadd.f32 %v3864, -1.4531521
  %v3881 = vadd.f32 %v3865, -1.4531521
  %v3882 = vadd.f32 %v3866, -1.4531521
  %v3883 = vadd.f32 %v3867, -1.4531521
  %v3884 = vadd.f32 %v3868, -1.4531521
  %v3885 = vadd.f32 %v3869, -1.4531521
  %v3886 = vadd.f32 %v3870, -1.4531521
  %v3887 = vadd.f32 %v3871, -1.4531521
  %v3888 = vadd.f32 %v3872, -1.4531521
  %v3889 = vadd.f32 %v3873, -1.4531521
  %v3890 = vadd.f32 %v3874, -1.4531521
  %v3891 = vadd.f32 %v3875, -1.4531521
  %v3892 = vadd.f32 %v3876, -1.4531521
  %v3893 = vadd.f32 %v3877, -1.4531521
  %v3894 = vmul.f32 %v3878, %v3846
  %v3895 = vmul.f32 %v3879, %v3847
  %v3896 = vmul.f32 %v3880, %v3848
  %v3897 = vmul.f32 %v3881, %v3849
  %v3898 = vmul.f32 %v3882, %v3850
  %v3899 = vmul.f32 %v3883, %v3851
  %v3900 = vmul.f32 %v3884, %v3852
  %v3901 = vmul.f32 %v3885, %v3853
  %v3902 = vmul.f32 %v3886, %v3854
  %v3903 = vmul.f32 %v3887, %v3855
  %v3904 = vmul.f32 %v3888, %v3856
  %v3905 = vmul.f32 %v3889, %v3857
  %v3906 = vmul.f32 %v3890, %v3858
  %v3907 = vmul.f32 %v3891, %v3859
  %v3908 = vmul.f32 %v3892, %v3860
  %v3909 = vmul.f32 %v3893, %v3861
  %v3910 = vadd.f32 %v3894, 1.4214138
  %v3911 = vadd.f32 %v3895, 1.4214138
  %v3912 = vadd.f32 %v3896, 1.4214138
  %v3913 = vadd.f32 %v3897, 1.4214138
  %v3914 = vadd.f32 %v3898, 1.4214138
  %v3915 = vadd.f32 %v3899, 1.4214138
  %v3916 = vadd.f32 %v3900, 1.4214138
  %v3917 = vadd.f32 %v3901, 1.4214138
  %v3918 = vadd.f32 %v3902, 1.4214138
  %v3919 = vadd.f32 %v3903, 1.4214138
  %v3920 = vadd.f32 %v3904, 1.4214138
  %v3921 = vadd.f32 %v3905, 1.4214138
  %v3922 = vadd.f32 %v3906, 1.4214138
  %v3923 = vadd.f32 %v3907, 1.4214138
  %v3924 = vadd.f32 %v3908, 1.4214138
  %v3925 = vadd.f32 %v3909, 1.4214138
  %v3926 = vmul.f32 %v3910, %v3846
  %v3927 = vmul.f32 %v3911, %v3847
  %v3928 = vmul.f32 %v3912, %v3848
  %v3929 = vmul.f32 %v3913, %v3849
  %v3930 = vmul.f32 %v3914, %v3850
  %v3931 = vmul.f32 %v3915, %v3851
  %v3932 = vmul.f32 %v3916, %v3852
  %v3933 = vmul.f32 %v3917, %v3853
  %v3934 = vmul.f32 %v3918, %v3854
  %v3935 = vmul.f32 %v3919, %v3855
  %v3936 = vmul.f32 %v3920, %v3856
  %v3937 = vmul.f32 %v3921, %v3857
  %v3938 = vmul.f32 %v3922, %v3858
  %v3939 = vmul.f32 %v3923, %v3859
  %v3940 = vmul.f32 %v3924, %v3860
  %v3941 = vmul.f32 %v3925, %v3861
  %v3942 = vadd.f32 %v3926, -0.28449672
  %v3943 = vadd.f32 %v3927, -0.28449672
  %v3944 = vadd.f32 %v3928, -0.28449672
  %v3945 = vadd.f32 %v3929, -0.28449672
  %v3946 = vadd.f32 %v3930, -0.28449672
  %v3947 = vadd.f32 %v3931, -0.28449672
  %v3948 = vadd.f32 %v3932, -0.28449672
  %v3949 = vadd.f32 %v3933, -0.28449672
  %v3950 = vadd.f32 %v3934, -0.28449672
  %v3951 = vadd.f32 %v3935, -0.28449672
  %v3952 = vadd.f32 %v3936, -0.28449672
  %v3953 = vadd.f32 %v3937, -0.28449672
  %v3954 = vadd.f32 %v3938, -0.28449672
  %v3955 = vadd.f32 %v3939, -0.28449672
  %v3956 = vadd.f32 %v3940, -0.28449672
  %v3957 = vadd.f32 %v3941, -0.28449672
  %v3958 = vmul.f32 %v3942, %v3846
  %v3959 = vmul.f32 %v3943, %v3847
  %v3960 = vmul.f32 %v3944, %v3848
  %v3961 = vmul.f32 %v3945, %v3849
  %v3962 = vmul.f32 %v3946, %v3850
  %v3963 = vmul.f32 %v3947, %v3851
  %v3964 = vmul.f32 %v3948, %v3852
  %v3965 = vmul.f32 %v3949, %v3853
  %v3966 = vmul.f32 %v3950, %v3854
  %v3967 = vmul.f32 %v3951, %v3855
  %v3968 = vmul.f32 %v3952, %v3856
  %v3969 = vmul.f32 %v3953, %v3857
  %v3970 = vmul.f32 %v3954, %v3858
  %v3971 = vmul.f32 %v3955, %v3859
  %v3972 = vmul.f32 %v3956, %v3860
  %v3973 = vmul.f32 %v3957, %v3861
  %v3974 = vadd.f32 %v3958, 0.2548296
  %v3975 = vadd.f32 %v3959, 0.2548296
  %v3976 = vadd.f32 %v3960, 0.2548296
  %v3977 = vadd.f32 %v3961, 0.2548296
  %v3978 = vadd.f32 %v3962, 0.2548296
  %v3979 = vadd.f32 %v3963, 0.2548296
  %v3980 = vadd.f32 %v3964, 0.2548296
  %v3981 = vadd.f32 %v3965, 0.2548296
  %v3982 = vadd.f32 %v3966, 0.2548296
  %v3983 = vadd.f32 %v3967, 0.2548296
  %v3984 = vadd.f32 %v3968, 0.2548296
  %v3985 = vadd.f32 %v3969, 0.2548296
  %v3986 = vadd.f32 %v3970, 0.2548296
  %v3987 = vadd.f32 %v3971, 0.2548296
  %v3988 = vadd.f32 %v3972, 0.2548296
  %v3989 = vadd.f32 %v3973, 0.2548296
  %v3990 = vmul.f32 %v3974, %v3846
  %v3991 = vmul.f32 %v3975, %v3847
  %v3992 = vmul.f32 %v3976, %v3848
  %v3993 = vmul.f32 %v3977, %v3849
  %v3994 = vmul.f32 %v3978, %v3850
  %v3995 = vmul.f32 %v3979, %v3851
  %v3996 = vmul.f32 %v3980, %v3852
  %v3997 = vmul.f32 %v3981, %v3853
  %v3998 = vmul.f32 %v3982, %v3854
  %v3999 = vmul.f32 %v3983, %v3855
  %v4000 = vmul.f32 %v3984, %v3856
  %v4001 = vmul.f32 %v3985, %v3857
  %v4002 = vmul.f32 %v3986, %v3858
  %v4003 = vmul.f32 %v3987, %v3859
  %v4004 = vmul.f32 %v3988, %v3860
  %v4005 = vmul.f32 %v3989, %v3861
  %v4006 = vsub.f32 0.0, %v3750
  %v4007 = vsub.f32 0.0, %v3751
  %v4008 = vsub.f32 0.0, %v3752
  %v4009 = vsub.f32 0.0, %v3753
  %v4010 = vsub.f32 0.0, %v3754
  %v4011 = vsub.f32 0.0, %v3755
  %v4012 = vsub.f32 0.0, %v3756
  %v4013 = vsub.f32 0.0, %v3757
  %v4014 = vsub.f32 0.0, %v3758
  %v4015 = vsub.f32 0.0, %v3759
  %v4016 = vsub.f32 0.0, %v3760
  %v4017 = vsub.f32 0.0, %v3761
  %v4018 = vsub.f32 0.0, %v3762
  %v4019 = vsub.f32 0.0, %v3763
  %v4020 = vsub.f32 0.0, %v3764
  %v4021 = vsub.f32 0.0, %v3765
  %v4022 = vmul.f32 %v4006, %v3750
  %v4023 = vmul.f32 %v4007, %v3751
  %v4024 = vmul.f32 %v4008, %v3752
  %v4025 = vmul.f32 %v4009, %v3753
  %v4026 = vmul.f32 %v4010, %v3754
  %v4027 = vmul.f32 %v4011, %v3755
  %v4028 = vmul.f32 %v4012, %v3756
  %v4029 = vmul.f32 %v4013, %v3757
  %v4030 = vmul.f32 %v4014, %v3758
  %v4031 = vmul.f32 %v4015, %v3759
  %v4032 = vmul.f32 %v4016, %v3760
  %v4033 = vmul.f32 %v4017, %v3761
  %v4034 = vmul.f32 %v4018, %v3762
  %v4035 = vmul.f32 %v4019, %v3763
  %v4036 = vmul.f32 %v4020, %v3764
  %v4037 = vmul.f32 %v4021, %v3765
  %v4038 = vmul.f32 %v4022, 1.442695
  %v4039 = vpow.pop %v4038
  %v4040 = vmul.f32 %v4023, 1.442695
  %v4041 = vpow.pop %v4040
  %v4042 = vmul.f32 %v4024, 1.442695
  %v4043 = vpow.pop %v4042
  %v4044 = vmul.f32 %v4025, 1.442695
  %v4045 = vpow.pop %v4044
  %v4046 = vmul.f32 %v4026, 1.442695
  %v4047 = vpow.pop %v4046
  %v4048 = vmul.f32 %v4027, 1.442695
  %v4049 = vpow.pop %v4048
  %v4050 = vmul.f32 %v4028, 1.442695
  %v4051 = vpow.pop %v4050
  %v4052 = vmul.f32 %v4029, 1.442695
  %v4053 = vpow.pop %v4052
  %v4054 = vmul.f32 %v4030, 1.442695
  %v4055 = vpow.pop %v4054
  %v4056 = vmul.f32 %v4031, 1.442695
  %v4057 = vpow.pop %v4056
  %v4058 = vmul.f32 %v4032, 1.442695
  %v4059 = vpow.pop %v4058
  %v4060 = vmul.f32 %v4033, 1.442695
  %v4061 = vpow.pop %v4060
  %v4062 = vmul.f32 %v4034, 1.442695
  %v4063 = vpow.pop %v4062
  %v4064 = vmul.f32 %v4035, 1.442695
  %v4065 = vpow.pop %v4064
  %v4066 = vmul.f32 %v4036, 1.442695
  %v4067 = vpow.pop %v4066
  %v4068 = vmul.f32 %v4037, 1.442695
  %v4069 = vpow.pop %v4068
  %v4070 = vmul.f32 %v3990, %v4039
  %v4071 = vmul.f32 %v3991, %v4041
  %v4072 = vmul.f32 %v3992, %v4043
  %v4073 = vmul.f32 %v3993, %v4045
  %v4074 = vmul.f32 %v3994, %v4047
  %v4075 = vmul.f32 %v3995, %v4049
  %v4076 = vmul.f32 %v3996, %v4051
  %v4077 = vmul.f32 %v3997, %v4053
  %v4078 = vmul.f32 %v3998, %v4055
  %v4079 = vmul.f32 %v3999, %v4057
  %v4080 = vmul.f32 %v4000, %v4059
  %v4081 = vmul.f32 %v4001, %v4061
  %v4082 = vmul.f32 %v4002, %v4063
  %v4083 = vmul.f32 %v4003, %v4065
  %v4084 = vmul.f32 %v4004, %v4067
  %v4085 = vmul.f32 %v4005, %v4069
  %v4086 = vsub.f32 1.0, %v4070
  %v4087 = vsub.f32 1.0, %v4071
  %v4088 = vsub.f32 1.0, %v4072
  %v4089 = vsub.f32 1.0, %v4073
  %v4090 = vsub.f32 1.0, %v4074
  %v4091 = vsub.f32 1.0, %v4075
  %v4092 = vsub.f32 1.0, %v4076
  %v4093 = vsub.f32 1.0, %v4077
  %v4094 = vsub.f32 1.0, %v4078
  %v4095 = vsub.f32 1.0, %v4079
  %v4096 = vsub.f32 1.0, %v4080
  %v4097 = vsub.f32 1.0, %v4081
  %v4098 = vsub.f32 1.0, %v4082
  %v4099 = vsub.f32 1.0, %v4083
  %v4100 = vsub.f32 1.0, %v4084
  %v4101 = vsub.f32 1.0, %v4085
  %v4102 = vmul.f32 %v3734, %v4086
  %v4103 = vmul.f32 %v3735, %v4087
  %v4104 = vmul.f32 %v3736, %v4088
  %v4105 = vmul.f32 %v3737, %v4089
  %v4106 = vmul.f32 %v3738, %v4090
  %v4107 = vmul.f32 %v3739, %v4091
  %v4108 = vmul.f32 %v3740, %v4092
  %v4109 = vmul.f32 %v3741, %v4093
  %v4110 = vmul.f32 %v3742, %v4094
  %v4111 = vmul.f32 %v3743, %v4095
  %v4112 = vmul.f32 %v3744, %v4096
  %v4113 = vmul.f32 %v3745, %v4097
  %v4114 = vmul.f32 %v3746, %v4098
  %v4115 = vmul.f32 %v3747, %v4099
  %v4116 = vmul.f32 %v3748, %v4100
  %v4117 = vmul.f32 %v3749, %v4101
  %v4118 = vadd.f32 %v4102, 1.0
  %v4119 = vadd.f32 %v4103, 1.0
  %v4120 = vadd.f32 %v4104, 1.0
  %v4121 = vadd.f32 %v4105, 1.0
  %v4122 = vadd.f32 %v4106, 1.0
  %v4123 = vadd.f32 %v4107, 1.0
  %v4124 = vadd.f32 %v4108, 1.0
  %v4125 = vadd.f32 %v4109, 1.0
  %v4126 = vadd.f32 %v4110, 1.0
  %v4127 = vadd.f32 %v4111, 1.0
  %v4128 = vadd.f32 %v4112, 1.0
  %v4129 = vadd.f32 %v4113, 1.0
  %v4130 = vadd.f32 %v4114, 1.0
  %v4131 = vadd.f32 %v4115, 1.0
  %v4132 = vadd.f32 %v4116, 1.0
  %v4133 = vadd.f32 %v4117, 1.0
  %v4134 = vmul.f32 %v3686, %v4118
  %v4135 = vmul.f32 %v3687, %v4119
  %v4136 = vmul.f32 %v3688, %v4120
  %v4137 = vmul.f32 %v3689, %v4121
  %v4138 = vmul.f32 %v3690, %v4122
  %v4139 = vmul.f32 %v3691, %v4123
  %v4140 = vmul.f32 %v3692, %v4124
  %v4141 = vmul.f32 %v3693, %v4125
  %v4142 = vmul.f32 %v3694, %v4126
  %v4143 = vmul.f32 %v3695, %v4127
  %v4144 = vmul.f32 %v3696, %v4128
  %v4145 = vmul.f32 %v3697, %v4129
  %v4146 = vmul.f32 %v3698, %v4130
  %v4147 = vmul.f32 %v3699, %v4131
  %v4148 = vmul.f32 %v3700, %v4132
  %v4149 = vmul.f32 %v3701, %v4133
  %4154 = vrot.lane.b32.xlu0 %v431, 32
  %v4155 = vpop.permute.xlu0 %4154
  %4156 = vrot.lane.b32.xlu0 %v432, 32
  %v4157 = vpop.permute.xlu0 %4156
  %4158 = vrot.lane.b32.xlu0 %v433, 32
  %v4159 = vpop.permute.xlu0 %4158
  %4160 = vrot.lane.b32.xlu0 %v434, 32
  %v4161 = vpop.permute.xlu0 %4160
  %4162 = vrot.lane.b32.xlu0 %v435, 32
  %v4163 = vpop.permute.xlu0 %4162
  %4164 = vrot.lane.b32.xlu0 %v436, 32
  %v4165 = vpop.permute.xlu0 %4164
  %4166 = vrot.lane.b32.xlu0 %v437, 32
  %v4167 = vpop.permute.xlu0 %4166
  %4168 = vrot.lane.b32.xlu0 %v438, 32
  %v4169 = vpop.permute.xlu0 %4168
  %v4179 = vsel %vm55, %v4134, 0
  %v4182 = vsel %vm55, %v4135, 0
  %v4185 = vsel %vm55, %v4136, 0
  %v4188 = vsel %vm55, %v4137, 0
  %v4191 = vsel %vm55, %v4138, 0
  %v4194 = vsel %vm55, %v4139, 0
  %v4197 = vsel %vm55, %v4140, 0
  %v4200 = vsel %vm55, %v4141, 0
  %v4203 = vsel %vm55, %v4142, 0
  %v4206 = vsel %vm55, %v4143, 0
  %v4209 = vsel %vm55, %v4144, 0
  %v4212 = vsel %vm55, %v4145, 0
  %v4215 = vsel %vm55, %v4146, 0
  %v4218 = vsel %vm55, %v4147, 0
  %v4221 = vsel %vm55, %v4148, 0
  %v4224 = vsel %vm55, %v4149, 0
  %4226 = vmatprep.subr.mxu0 0.0
  %4227 = vmatpush1.msra.mxu0 %v4155
  %4228 = vmatprep.subr.mxu0 0.0
  %4229 = vmatpush1.msra.mxu0 %v4157
  %4230 = vmatprep.subr.mxu0 0.0
  %4231 = vmatpush1.msra.mxu0 %v4159
  %4232 = vmatprep.subr.mxu0 0.0
  %4233 = vmatpush1.msra.mxu0 %v4161
  %4234 = vmatprep.subr.mxu0 0.0
  %4235 = vmatpush1.msra.mxu0 %v4163
  %4236 = vmatprep.subr.mxu0 0.0
  %4237 = vmatpush1.msra.mxu0 %v4165
  %4238 = vmatprep.subr.mxu0 0.0
  %4239 = vmatpush1.msra.mxu0 %v4167
  %4240 = vmatprep.subr.mxu0 0.0
  %4241 = vmatpush1.msra.mxu0 %v4169
  %4242 = vmatprep.subr.mxu0 0.0
  %4243 = vmatpush1.msra.mxu0 0.0
  %4244 = vmatprep.subr.mxu0 0.0
  %4245 = vmatpush1.msra.mxu0 0.0
  %4246 = vmatprep.subr.mxu0 0.0
  %4247 = vmatpush1.msra.mxu0 0.0
  %4248 = vmatprep.subr.mxu0 0.0
  %4249 = vmatpush1.msra.mxu0 0.0
  %4250 = vmatprep.subr.mxu0 0.0
  %4251 = vmatpush1.msra.mxu0 0.0
  %4252 = vmatprep.subr.mxu0 0.0
  %4253 = vmatpush1.msra.mxu0 0.0
  %4254 = vmatprep.subr.mxu0 0.0
  %4255 = vmatpush1.msra.mxu0 0.0
  %4256 = vmatprep.subr.mxu0 0.0
  %4257 = vmatpush1.msra.mxu0 0.0
  %4258 = vmatprep.subr.mxu0 0.0
  %4259 = vmatpush1.msra.mxu0 0.0
  %4260 = vmatprep.subr.mxu0 0.0
  %4261 = vmatpush1.msra.mxu0 0.0
  %4262 = vmatprep.subr.mxu0 0.0
  %4263 = vmatpush1.msra.mxu0 0.0
  %4264 = vmatprep.subr.mxu0 0.0
  %4265 = vmatpush1.msra.mxu0 0.0
  %4266 = vmatprep.subr.mxu0 0.0
  %4267 = vmatpush1.msra.mxu0 0.0
  %4268 = vmatprep.subr.mxu0 0.0
  %4269 = vmatpush1.msra.mxu0 0.0
  %4270 = vmatprep.subr.mxu0 0.0
  %4271 = vmatpush1.msra.mxu0 0.0
  %4272 = vmatprep.subr.mxu0 0.0
  %4273 = vmatpush1.msra.mxu0 0.0
  %4274 = vmatprep.subr.mxu0 0.0
  %4275 = vmatpush1.msra.mxu0 0.0
  %4276 = vmatprep.subr.mxu0 0.0
  %4277 = vmatpush1.msra.mxu0 0.0
  %4278 = vmatprep.subr.mxu0 0.0
  %4279 = vmatpush1.msra.mxu0 0.0
  %4280 = vmatprep.subr.mxu0 0.0
  %4281 = vmatpush1.msra.mxu0 0.0
  %4282 = vmatprep.subr.mxu0 0.0
  %4283 = vmatpush1.msra.mxu0 0.0
  %4284 = vmatprep.subr.mxu0 0.0
  %4285 = vmatpush1.msra.mxu0 0.0
  %4286 = vmatprep.subr.mxu0 0.0
  %4287 = vmatpush1.msra.mxu0 0.0
  %4288 = vmatprep.subr.mxu0 0.0
  %4289 = vmatpush1.msra.mxu0 0.0
  %4290 = vmatprep.mubr.f32.mxu0 0.0
  %4291 = vmatmul.mubr.f32.gmra.mrb[0].mxu0 %v4179
  %v4292 = vpop.f32.mrb[0].mxu0
  %v4293 = vadd.f32 0.0, %v4292
  %v4294 = vpop.f32.mrb[0].mxu0
  %4295 = vmatprep.mubr.f32.mxu0 0.0
  %4296 = vmatmul.mubr.f32.gmra.mrb[0].mxu0 %v4182
  %v4297 = vpop.f32.mrb[0].mxu0
  %v4298 = vadd.f32 0.0, %v4297
  %v4299 = vpop.f32.mrb[0].mxu0
  %4300 = vmatprep.mubr.f32.mxu0 0.0
  %4301 = vmatmul.mubr.f32.gmra.mrb[0].mxu0 %v4185
  %v4302 = vpop.f32.mrb[0].mxu0
  %v4303 = vadd.f32 0.0, %v4302
  %v4304 = vpop.f32.mrb[0].mxu0
  %4305 = vmatprep.mubr.f32.mxu0 0.0
  %4306 = vmatmul.mubr.f32.gmra.mrb[0].mxu0 %v4188
  %v4307 = vpop.f32.mrb[0].mxu0
  %v4308 = vadd.f32 0.0, %v4307
  %v4309 = vpop.f32.mrb[0].mxu0
  %4310 = vmatprep.mubr.f32.mxu0 0.0
  %4311 = vmatmul.mubr.f32.gmra.mrb[0].mxu0 %v4191
  %v4312 = vpop.f32.mrb[0].mxu0
  %v4313 = vadd.f32 0.0, %v4312
  %v4314 = vpop.f32.mrb[0].mxu0
  %4315 = vmatprep.mubr.f32.mxu0 0.0
  %4316 = vmatmul.mubr.f32.gmra.mrb[0].mxu0 %v4194
  %v4317 = vpop.f32.mrb[0].mxu0
  %v4318 = vadd.f32 0.0, %v4317
  %v4319 = vpop.f32.mrb[0].mxu0
  %4320 = vmatprep.mubr.f32.mxu0 0.0
  %4321 = vmatmul.mubr.f32.gmra.mrb[0].mxu0 %v4197
  %v4322 = vpop.f32.mrb[0].mxu0
  %v4323 = vadd.f32 0.0, %v4322
  %v4324 = vpop.f32.mrb[0].mxu0
  %4325 = vmatprep.mubr.f32.mxu0 0.0
  %4326 = vmatmul.mubr.f32.gmra.mrb[0].mxu0 %v4200
  %v4327 = vpop.f32.mrb[0].mxu0
  %v4328 = vadd.f32 0.0, %v4327
  %v4329 = vpop.f32.mrb[0].mxu0
  %4330 = vmatprep.mubr.f32.mxu0 0.0
  %4331 = vmatmul.mubr.f32.gmra.mrb[0].mxu0 %v4203
  %v4332 = vpop.f32.mrb[0].mxu0
  %v4333 = vadd.f32 0.0, %v4332
  %v4334 = vpop.f32.mrb[0].mxu0
  %4335 = vmatprep.mubr.f32.mxu0 0.0
  %4336 = vmatmul.mubr.f32.gmra.mrb[0].mxu0 %v4206
  %v4337 = vpop.f32.mrb[0].mxu0
  %v4338 = vadd.f32 0.0, %v4337
  %v4339 = vpop.f32.mrb[0].mxu0
  %4340 = vmatprep.mubr.f32.mxu0 0.0
  %4341 = vmatmul.mubr.f32.gmra.mrb[0].mxu0 %v4209
  %v4342 = vpop.f32.mrb[0].mxu0
  %v4343 = vadd.f32 0.0, %v4342
  %v4344 = vpop.f32.mrb[0].mxu0
  %4345 = vmatprep.mubr.f32.mxu0 0.0
  %4346 = vmatmul.mubr.f32.gmra.mrb[0].mxu0 %v4212
  %v4347 = vpop.f32.mrb[0].mxu0
  %v4348 = vadd.f32 0.0, %v4347
  %v4349 = vpop.f32.mrb[0].mxu0
  %4350 = vmatprep.mubr.f32.mxu0 0.0
  %4351 = vmatmul.mubr.f32.gmra.mrb[0].mxu0 %v4215
  %v4352 = vpop.f32.mrb[0].mxu0
  %v4353 = vadd.f32 0.0, %v4352
  %v4354 = vpop.f32.mrb[0].mxu0
  %4355 = vmatprep.mubr.f32.mxu0 0.0
  %4356 = vmatmul.mubr.f32.gmra.mrb[0].mxu0 %v4218
  %v4357 = vpop.f32.mrb[0].mxu0
  %v4358 = vadd.f32 0.0, %v4357
  %v4359 = vpop.f32.mrb[0].mxu0
  %4360 = vmatprep.mubr.f32.mxu0 0.0
  %4361 = vmatmul.mubr.f32.gmra.mrb[0].mxu0 %v4221
  %v4362 = vpop.f32.mrb[0].mxu0
  %v4363 = vadd.f32 0.0, %v4362
  %v4364 = vpop.f32.mrb[0].mxu0
  %4365 = vmatprep.mubr.f32.mxu0 0.0
  %4366 = vmatmul.mubr.f32.gmra.mrb[0].mxu0 %v4224
  %v4367 = vpop.f32.mrb[0].mxu0
  %v4368 = vadd.f32 0.0, %v4367
  %v4369 = vpop.f32.mrb[0].mxu0
  %4370 = vdwg.mxu0
  %v4371 = vadd.f32 %v3233, %v4293
  %v4372 = vadd.f32 %v3234, %v4298
  %v4373 = vadd.f32 %v3235, %v4303
  %v4374 = vadd.f32 %v3236, %v4308
  %v4375 = vadd.f32 %v3237, %v4313
  %v4376 = vadd.f32 %v3238, %v4318
  %v4377 = vadd.f32 %v3239, %v4323
  %v4378 = vadd.f32 %v3240, %v4328
  %v4379 = vadd.f32 %v3241, %v4333
  %v4380 = vadd.f32 %v3242, %v4338
  %v4381 = vadd.f32 %v3243, %v4343
  %v4382 = vadd.f32 %v3244, %v4348
  %v4383 = vadd.f32 %v3245, %v4353
  %v4384 = vadd.f32 %v3246, %v4358
  %v4385 = vadd.f32 %v3247, %v4363
  %v4386 = vadd.f32 %v3248, %v4368
  %v4387 = vld [vmem:[%s2 + $0x2] sm:$0x1]
  %v4388 = vld [vmem:[%s2 + $0x3] sm:$0x1]
  %v4389 = vld [vmem:[%s3 + $0x80] sm:$0xff]
  %v4390 = vld [vmem:[%s3 + $0x90] sm:$0xff]
  %v4391 = vld [vmem:[%s3 + $0xa0] sm:$0xff]
  %v4392 = vld [vmem:[%s3 + $0xb0] sm:$0xff]
  %v4393 = vld [vmem:[%s3 + $0x88] sm:$0xff]
  %v4394 = vld [vmem:[%s3 + $0x98] sm:$0xff]
  %v4395 = vld [vmem:[%s3 + $0xa8] sm:$0xff]
  %v4396 = vld [vmem:[%s3 + $0xb8] sm:$0xff]
  %v4397 = vld [vmem:[%s3 + $0x88] sm:$0xff]
  %v4398 = vld [vmem:[%s3 + $0x98] sm:$0xff]
  %v4399 = vld [vmem:[%s3 + $0xa8] sm:$0xff]
  %v4400 = vld [vmem:[%s3 + $0xb8] sm:$0xff]
  %v4401 = vld [vmem:[%s3 + $0xc8] sm:$0xff]
  %v4402 = vld [vmem:[%s3 + $0xd8] sm:$0xff]
  %v4403 = vld [vmem:[%s3 + $0xe8] sm:$0xff]
  %v4404 = vld [vmem:[%s3 + $0xf8] sm:$0xff]
  %v4405 = vsel %vm439, %v4371, 0.0
  %4406 = vadd.xlane.f32.xlu0 %v4405
  %v4407 = vpop.xlane.xlu0 %4406
  %v4408 = vsel %vm439, %v4372, 0.0
  %4409 = vadd.xlane.f32.xlu0 %v4408
  %v4410 = vpop.xlane.xlu0 %4409
  %v4411 = vsel %vm439, %v4373, 0.0
  %4412 = vadd.xlane.f32.xlu0 %v4411
  %v4413 = vpop.xlane.xlu0 %4412
  %v4414 = vsel %vm439, %v4374, 0.0
  %4415 = vadd.xlane.f32.xlu0 %v4414
  %v4416 = vpop.xlane.xlu0 %4415
  %v4417 = vsel %vm439, %v4375, 0.0
  %4418 = vadd.xlane.f32.xlu0 %v4417
  %v4419 = vpop.xlane.xlu0 %4418
  %v4420 = vsel %vm439, %v4376, 0.0
  %4421 = vadd.xlane.f32.xlu0 %v4420
  %v4422 = vpop.xlane.xlu0 %4421
  %v4423 = vsel %vm439, %v4377, 0.0
  %4424 = vadd.xlane.f32.xlu0 %v4423
  %v4425 = vpop.xlane.xlu0 %4424
  %v4426 = vsel %vm439, %v4378, 0.0
  %4427 = vadd.xlane.f32.xlu0 %v4426
  %v4428 = vpop.xlane.xlu0 %4427
  %v4429 = vsel %vm439, %v4379, 0.0
  %4430 = vadd.xlane.f32.xlu0 %v4429
  %v4431 = vpop.xlane.xlu0 %4430
  %v4432 = vsel %vm439, %v4380, 0.0
  %4433 = vadd.xlane.f32.xlu0 %v4432
  %v4434 = vpop.xlane.xlu0 %4433
  %v4435 = vsel %vm439, %v4381, 0.0
  %4436 = vadd.xlane.f32.xlu0 %v4435
  %v4437 = vpop.xlane.xlu0 %4436
  %v4438 = vsel %vm439, %v4382, 0.0
  %4439 = vadd.xlane.f32.xlu0 %v4438
  %v4440 = vpop.xlane.xlu0 %4439
  %v4441 = vsel %vm439, %v4383, 0.0
  %4442 = vadd.xlane.f32.xlu0 %v4441
  %v4443 = vpop.xlane.xlu0 %4442
  %v4444 = vsel %vm439, %v4384, 0.0
  %4445 = vadd.xlane.f32.xlu0 %v4444
  %v4446 = vpop.xlane.xlu0 %4445
  %v4447 = vsel %vm439, %v4385, 0.0
  %4448 = vadd.xlane.f32.xlu0 %v4447
  %v4449 = vpop.xlane.xlu0 %4448
  %v4450 = vsel %vm439, %v4386, 0.0
  %4451 = vadd.xlane.f32.xlu0 %v4450
  %v4452 = vpop.xlane.xlu0 %4451
  %v4453 = vmul.f32 %v4407, %v488
  %v4454 = vmul.f32 %v4410, %v488
  %v4455 = vmul.f32 %v4413, %v488
  %v4456 = vmul.f32 %v4416, %v488
  %v4457 = vmul.f32 %v4419, %v488
  %v4458 = vmul.f32 %v4422, %v488
  %v4459 = vmul.f32 %v4425, %v488
  %v4460 = vmul.f32 %v4428, %v488
  %v4461 = vmul.f32 %v4431, %v488
  %v4462 = vmul.f32 %v4434, %v488
  %v4463 = vmul.f32 %v4437, %v488
  %v4464 = vmul.f32 %v4440, %v488
  %v4465 = vmul.f32 %v4443, %v488
  %v4466 = vmul.f32 %v4446, %v488
  %v4467 = vmul.f32 %v4449, %v488
  %v4468 = vmul.f32 %v4452, %v488
  %v4469 = vsub.f32 %v4371, %v4453
  %v4470 = vsub.f32 %v4372, %v4454
  %v4471 = vsub.f32 %v4373, %v4455
  %v4472 = vsub.f32 %v4374, %v4456
  %v4473 = vsub.f32 %v4375, %v4457
  %v4474 = vsub.f32 %v4376, %v4458
  %v4475 = vsub.f32 %v4377, %v4459
  %v4476 = vsub.f32 %v4378, %v4460
  %v4477 = vsub.f32 %v4379, %v4461
  %v4478 = vsub.f32 %v4380, %v4462
  %v4479 = vsub.f32 %v4381, %v4463
  %v4480 = vsub.f32 %v4382, %v4464
  %v4481 = vsub.f32 %v4383, %v4465
  %v4482 = vsub.f32 %v4384, %v4466
  %v4483 = vsub.f32 %v4385, %v4467
  %v4484 = vsub.f32 %v4386, %v4468
  %v4485 = vmul.f32 %v4469, %v4469
  %v4486 = vmul.f32 %v4470, %v4470
  %v4487 = vmul.f32 %v4471, %v4471
  %v4488 = vmul.f32 %v4472, %v4472
  %v4489 = vmul.f32 %v4473, %v4473
  %v4490 = vmul.f32 %v4474, %v4474
  %v4491 = vmul.f32 %v4475, %v4475
  %v4492 = vmul.f32 %v4476, %v4476
  %v4493 = vmul.f32 %v4477, %v4477
  %v4494 = vmul.f32 %v4478, %v4478
  %v4495 = vmul.f32 %v4479, %v4479
  %v4496 = vmul.f32 %v4480, %v4480
  %v4497 = vmul.f32 %v4481, %v4481
  %v4498 = vmul.f32 %v4482, %v4482
  %v4499 = vmul.f32 %v4483, %v4483
  %v4500 = vmul.f32 %v4484, %v4484
  %v4501 = vsel %vm439, %v4485, 0.0
  %4502 = vadd.xlane.f32.xlu0 %v4501
  %v4503 = vpop.xlane.xlu0 %4502
  %v4504 = vsel %vm439, %v4486, 0.0
  %4505 = vadd.xlane.f32.xlu0 %v4504
  %v4506 = vpop.xlane.xlu0 %4505
  %v4507 = vsel %vm439, %v4487, 0.0
  %4508 = vadd.xlane.f32.xlu0 %v4507
  %v4509 = vpop.xlane.xlu0 %4508
  %v4510 = vsel %vm439, %v4488, 0.0
  %4511 = vadd.xlane.f32.xlu0 %v4510
  %v4512 = vpop.xlane.xlu0 %4511
  %v4513 = vsel %vm439, %v4489, 0.0
  %4514 = vadd.xlane.f32.xlu0 %v4513
  %v4515 = vpop.xlane.xlu0 %4514
  %v4516 = vsel %vm439, %v4490, 0.0
  %4517 = vadd.xlane.f32.xlu0 %v4516
  %v4518 = vpop.xlane.xlu0 %4517
  %v4519 = vsel %vm439, %v4491, 0.0
  %4520 = vadd.xlane.f32.xlu0 %v4519
  %v4521 = vpop.xlane.xlu0 %4520
  %v4522 = vsel %vm439, %v4492, 0.0
  %4523 = vadd.xlane.f32.xlu0 %v4522
  %v4524 = vpop.xlane.xlu0 %4523
  %v4525 = vsel %vm439, %v4493, 0.0
  %4526 = vadd.xlane.f32.xlu0 %v4525
  %v4527 = vpop.xlane.xlu0 %4526
  %v4528 = vsel %vm439, %v4494, 0.0
  %4529 = vadd.xlane.f32.xlu0 %v4528
  %v4530 = vpop.xlane.xlu0 %4529
  %v4531 = vsel %vm439, %v4495, 0.0
  %4532 = vadd.xlane.f32.xlu0 %v4531
  %v4533 = vpop.xlane.xlu0 %4532
  %v4534 = vsel %vm439, %v4496, 0.0
  %4535 = vadd.xlane.f32.xlu0 %v4534
  %v4536 = vpop.xlane.xlu0 %4535
  %v4537 = vsel %vm439, %v4497, 0.0
  %4538 = vadd.xlane.f32.xlu0 %v4537
  %v4539 = vpop.xlane.xlu0 %4538
  %v4540 = vsel %vm439, %v4498, 0.0
  %4541 = vadd.xlane.f32.xlu0 %v4540
  %v4542 = vpop.xlane.xlu0 %4541
  %v4543 = vsel %vm439, %v4499, 0.0
  %4544 = vadd.xlane.f32.xlu0 %v4543
  %v4545 = vpop.xlane.xlu0 %4544
  %v4546 = vsel %vm439, %v4500, 0.0
  %4547 = vadd.xlane.f32.xlu0 %v4546
  %v4548 = vpop.xlane.xlu0 %4547
  %v4549 = vmul.f32 %v4503, %v488
  %v4550 = vmul.f32 %v4506, %v488
  %v4551 = vmul.f32 %v4509, %v488
  %v4552 = vmul.f32 %v4512, %v488
  %v4553 = vmul.f32 %v4515, %v488
  %v4554 = vmul.f32 %v4518, %v488
  %v4555 = vmul.f32 %v4521, %v488
  %v4556 = vmul.f32 %v4524, %v488
  %v4557 = vmul.f32 %v4527, %v488
  %v4558 = vmul.f32 %v4530, %v488
  %v4559 = vmul.f32 %v4533, %v488
  %v4560 = vmul.f32 %v4536, %v488
  %v4561 = vmul.f32 %v4539, %v488
  %v4562 = vmul.f32 %v4542, %v488
  %v4563 = vmul.f32 %v4545, %v488
  %v4564 = vmul.f32 %v4548, %v488
  %v4565 = vadd.f32 %v4549, 1e-05
  %v4566 = vadd.f32 %v4550, 1e-05
  %v4567 = vadd.f32 %v4551, 1e-05
  %v4568 = vadd.f32 %v4552, 1e-05
  %v4569 = vadd.f32 %v4553, 1e-05
  %v4570 = vadd.f32 %v4554, 1e-05
  %v4571 = vadd.f32 %v4555, 1e-05
  %v4572 = vadd.f32 %v4556, 1e-05
  %v4573 = vadd.f32 %v4557, 1e-05
  %v4574 = vadd.f32 %v4558, 1e-05
  %v4575 = vadd.f32 %v4559, 1e-05
  %v4576 = vadd.f32 %v4560, 1e-05
  %v4577 = vadd.f32 %v4561, 1e-05
  %v4578 = vadd.f32 %v4562, 1e-05
  %v4579 = vadd.f32 %v4563, 1e-05
  %v4580 = vadd.f32 %v4564, 1e-05
  %v4581 = vrsqrt.pop %v4565
  %v4582 = vrsqrt.pop %v4566
  %v4583 = vrsqrt.pop %v4567
  %v4584 = vrsqrt.pop %v4568
  %v4585 = vrsqrt.pop %v4569
  %v4586 = vrsqrt.pop %v4570
  %v4587 = vrsqrt.pop %v4571
  %v4588 = vrsqrt.pop %v4572
  %v4589 = vrsqrt.pop %v4573
  %v4590 = vrsqrt.pop %v4574
  %v4591 = vrsqrt.pop %v4575
  %v4592 = vrsqrt.pop %v4576
  %v4593 = vrsqrt.pop %v4577
  %v4594 = vrsqrt.pop %v4578
  %v4595 = vrsqrt.pop %v4579
  %v4596 = vrsqrt.pop %v4580
  %v4597 = vmul.f32 %v4469, %v4581
  %v4598 = vmul.f32 %v4470, %v4582
  %v4599 = vmul.f32 %v4471, %v4583
  %v4600 = vmul.f32 %v4472, %v4584
  %v4601 = vmul.f32 %v4473, %v4585
  %v4602 = vmul.f32 %v4474, %v4586
  %v4603 = vmul.f32 %v4475, %v4587
  %v4604 = vmul.f32 %v4476, %v4588
  %v4605 = vmul.f32 %v4477, %v4589
  %v4606 = vmul.f32 %v4478, %v4590
  %v4607 = vmul.f32 %v4479, %v4591
  %v4608 = vmul.f32 %v4480, %v4592
  %v4609 = vmul.f32 %v4481, %v4593
  %v4610 = vmul.f32 %v4482, %v4594
  %v4611 = vmul.f32 %v4483, %v4595
  %v4612 = vmul.f32 %v4484, %v4596
  %v4613 = vlaneseq
  %v4614 = vshrl.u32 %v4613, 7
  %v4615 = vsub.s32 0, %v4614
  %v4616 = vrot.slane %v4387, %v4615
  %v4617 = vmul.f32 %v4597, %v4616
  %v4618 = vmul.f32 %v4598, %v4616
  %v4619 = vmul.f32 %v4599, %v4616
  %v4620 = vmul.f32 %v4600, %v4616
  %v4621 = vmul.f32 %v4601, %v4616
  %v4622 = vmul.f32 %v4602, %v4616
  %v4623 = vmul.f32 %v4603, %v4616
  %v4624 = vmul.f32 %v4604, %v4616
  %v4625 = vmul.f32 %v4605, %v4616
  %v4626 = vmul.f32 %v4606, %v4616
  %v4627 = vmul.f32 %v4607, %v4616
  %v4628 = vmul.f32 %v4608, %v4616
  %v4629 = vmul.f32 %v4609, %v4616
  %v4630 = vmul.f32 %v4610, %v4616
  %v4631 = vmul.f32 %v4611, %v4616
  %v4632 = vmul.f32 %v4612, %v4616
  %v4634 = vsel %vm439, %v4617, 0
  %v4637 = vsel %vm439, %v4618, 0
  %v4640 = vsel %vm439, %v4619, 0
  %v4643 = vsel %vm439, %v4620, 0
  %v4646 = vsel %vm439, %v4621, 0
  %v4649 = vsel %vm439, %v4622, 0
  %v4652 = vsel %vm439, %v4623, 0
  %v4655 = vsel %vm439, %v4624, 0
  %v4658 = vsel %vm439, %v4625, 0
  %v4661 = vsel %vm439, %v4626, 0
  %v4664 = vsel %vm439, %v4627, 0
  %v4667 = vsel %vm439, %v4628, 0
  %v4670 = vsel %vm439, %v4629, 0
  %v4673 = vsel %vm439, %v4630, 0
  %v4676 = vsel %vm439, %v4631, 0
  %v4679 = vsel %vm439, %v4632, 0
  %4681 = vmatprep.subr.mxu0 0.0
  %4682 = vmatpush1.msra.mxu0 %v4389
  %4683 = vmatprep.subr.mxu0 0.0
  %4684 = vmatpush1.msra.mxu0 %v4390
  %4685 = vmatprep.subr.mxu0 0.0
  %4686 = vmatpush1.msra.mxu0 %v4391
  %4687 = vmatprep.subr.mxu0 0.0
  %4688 = vmatpush1.msra.mxu0 %v4392
  %4689 = vmatprep.subr.mxu0 0.0
  %4690 = vmatpush1.msra.mxu0 0.0
  %4691 = vmatprep.subr.mxu0 0.0
  %4692 = vmatpush1.msra.mxu0 0.0
  %4693 = vmatprep.subr.mxu0 0.0
  %4694 = vmatpush1.msra.mxu0 0.0
  %4695 = vmatprep.subr.mxu0 0.0
  %4696 = vmatpush1.msra.mxu0 0.0
  %4697 = vmatprep.subr.mxu0 0.0
  %4698 = vmatpush1.msra.mxu0 0.0
  %4699 = vmatprep.subr.mxu0 0.0
  %4700 = vmatpush1.msra.mxu0 0.0
  %4701 = vmatprep.subr.mxu0 0.0
  %4702 = vmatpush1.msra.mxu0 0.0
  %4703 = vmatprep.subr.mxu0 0.0
  %4704 = vmatpush1.msra.mxu0 0.0
  %4705 = vmatprep.subr.mxu0 0.0
  %4706 = vmatpush1.msra.mxu0 0.0
  %4707 = vmatprep.subr.mxu0 0.0
  %4708 = vmatpush1.msra.mxu0 0.0
  %4709 = vmatprep.subr.mxu0 0.0
  %4710 = vmatpush1.msra.mxu0 0.0
  %4711 = vmatprep.subr.mxu0 0.0
  %4712 = vmatpush1.msra.mxu0 0.0
  %4713 = vmatprep.subr.mxu0 0.0
  %4714 = vmatpush1.msra.mxu0 0.0
  %4715 = vmatprep.subr.mxu0 0.0
  %4716 = vmatpush1.msra.mxu0 0.0
  %4717 = vmatprep.subr.mxu0 0.0
  %4718 = vmatpush1.msra.mxu0 0.0
  %4719 = vmatprep.subr.mxu0 0.0
  %4720 = vmatpush1.msra.mxu0 0.0
  %4721 = vmatprep.subr.mxu0 0.0
  %4722 = vmatpush1.msra.mxu0 0.0
  %4723 = vmatprep.subr.mxu0 0.0
  %4724 = vmatpush1.msra.mxu0 0.0
  %4725 = vmatprep.subr.mxu0 0.0
  %4726 = vmatpush1.msra.mxu0 0.0
  %4727 = vmatprep.subr.mxu0 0.0
  %4728 = vmatpush1.msra.mxu0 0.0
  %4729 = vmatprep.subr.mxu0 0.0
  %4730 = vmatpush1.msra.mxu0 0.0
  %4731 = vmatprep.subr.mxu0 0.0
  %4732 = vmatpush1.msra.mxu0 0.0
  %4733 = vmatprep.subr.mxu0 0.0
  %4734 = vmatpush1.msra.mxu0 0.0
  %4735 = vmatprep.subr.mxu0 0.0
  %4736 = vmatpush1.msra.mxu0 0.0
  %4737 = vmatprep.subr.mxu0 0.0
  %4738 = vmatpush1.msra.mxu0 0.0
  %4739 = vmatprep.subr.mxu0 0.0
  %4740 = vmatpush1.msra.mxu0 0.0
  %4741 = vmatprep.subr.mxu0 0.0
  %4742 = vmatpush1.msra.mxu0 0.0
  %4743 = vmatprep.subr.mxu0 0.0
  %4744 = vmatpush1.msra.mxu0 0.0
  %4745 = vmatprep.mubr.f32.mxu0 0.0
  %4746 = vmatmul.mubr.f32.gmra.mrb[0].mxu0 %v4634
  %v4747 = vpop.f32.mrb[0].mxu0
  %v4748 = vadd.f32 0.0, %v4747
  %v4749 = vpop.f32.mrb[0].mxu0
  %4750 = vmatprep.mubr.f32.mxu0 0.0
  %4751 = vmatmul.mubr.f32.gmra.mrb[0].mxu0 %v4637
  %v4752 = vpop.f32.mrb[0].mxu0
  %v4753 = vadd.f32 0.0, %v4752
  %v4754 = vpop.f32.mrb[0].mxu0
  %4755 = vmatprep.mubr.f32.mxu0 0.0
  %4756 = vmatmul.mubr.f32.gmra.mrb[0].mxu0 %v4640
  %v4757 = vpop.f32.mrb[0].mxu0
  %v4758 = vadd.f32 0.0, %v4757
  %v4759 = vpop.f32.mrb[0].mxu0
  %4760 = vmatprep.mubr.f32.mxu0 0.0
  %4761 = vmatmul.mubr.f32.gmra.mrb[0].mxu0 %v4643
  %v4762 = vpop.f32.mrb[0].mxu0
  %v4763 = vadd.f32 0.0, %v4762
  %v4764 = vpop.f32.mrb[0].mxu0
  %4765 = vmatprep.mubr.f32.mxu0 0.0
  %4766 = vmatmul.mubr.f32.gmra.mrb[0].mxu0 %v4646
  %v4767 = vpop.f32.mrb[0].mxu0
  %v4768 = vadd.f32 0.0, %v4767
  %v4769 = vpop.f32.mrb[0].mxu0
  %4770 = vmatprep.mubr.f32.mxu0 0.0
  %4771 = vmatmul.mubr.f32.gmra.mrb[0].mxu0 %v4649
  %v4772 = vpop.f32.mrb[0].mxu0
  %v4773 = vadd.f32 0.0, %v4772
  %v4774 = vpop.f32.mrb[0].mxu0
  %4775 = vmatprep.mubr.f32.mxu0 0.0
  %4776 = vmatmul.mubr.f32.gmra.mrb[0].mxu0 %v4652
  %v4777 = vpop.f32.mrb[0].mxu0
  %v4778 = vadd.f32 0.0, %v4777
  %v4779 = vpop.f32.mrb[0].mxu0
  %4780 = vmatprep.mubr.f32.mxu0 0.0
  %4781 = vmatmul.mubr.f32.gmra.mrb[0].mxu0 %v4655
  %v4782 = vpop.f32.mrb[0].mxu0
  %v4783 = vadd.f32 0.0, %v4782
  %v4784 = vpop.f32.mrb[0].mxu0
  %4785 = vmatprep.mubr.f32.mxu0 0.0
  %4786 = vmatmul.mubr.f32.gmra.mrb[0].mxu0 %v4658
  %v4787 = vpop.f32.mrb[0].mxu0
  %v4788 = vadd.f32 0.0, %v4787
  %v4789 = vpop.f32.mrb[0].mxu0
  %4790 = vmatprep.mubr.f32.mxu0 0.0
  %4791 = vmatmul.mubr.f32.gmra.mrb[0].mxu0 %v4661
  %v4792 = vpop.f32.mrb[0].mxu0
  %v4793 = vadd.f32 0.0, %v4792
  %v4794 = vpop.f32.mrb[0].mxu0
  %4795 = vmatprep.mubr.f32.mxu0 0.0
  %4796 = vmatmul.mubr.f32.gmra.mrb[0].mxu0 %v4664
  %v4797 = vpop.f32.mrb[0].mxu0
  %v4798 = vadd.f32 0.0, %v4797
  %v4799 = vpop.f32.mrb[0].mxu0
  %4800 = vmatprep.mubr.f32.mxu0 0.0
  %4801 = vmatmul.mubr.f32.gmra.mrb[0].mxu0 %v4667
  %v4802 = vpop.f32.mrb[0].mxu0
  %v4803 = vadd.f32 0.0, %v4802
  %v4804 = vpop.f32.mrb[0].mxu0
  %4805 = vmatprep.mubr.f32.mxu0 0.0
  %4806 = vmatmul.mubr.f32.gmra.mrb[0].mxu0 %v4670
  %v4807 = vpop.f32.mrb[0].mxu0
  %v4808 = vadd.f32 0.0, %v4807
  %v4809 = vpop.f32.mrb[0].mxu0
  %4810 = vmatprep.mubr.f32.mxu0 0.0
  %4811 = vmatmul.mubr.f32.gmra.mrb[0].mxu0 %v4673
  %v4812 = vpop.f32.mrb[0].mxu0
  %v4813 = vadd.f32 0.0, %v4812
  %v4814 = vpop.f32.mrb[0].mxu0
  %4815 = vmatprep.mubr.f32.mxu0 0.0
  %4816 = vmatmul.mubr.f32.gmra.mrb[0].mxu0 %v4676
  %v4817 = vpop.f32.mrb[0].mxu0
  %v4818 = vadd.f32 0.0, %v4817
  %v4819 = vpop.f32.mrb[0].mxu0
  %4820 = vmatprep.mubr.f32.mxu0 0.0
  %4821 = vmatmul.mubr.f32.gmra.mrb[0].mxu0 %v4679
  %v4822 = vpop.f32.mrb[0].mxu0
  %v4823 = vadd.f32 0.0, %v4822
  %v4824 = vpop.f32.mrb[0].mxu0
  %4825 = vdwg.mxu0
  %v4826 = vmul.f32 %v4748, %v249
  %v4827 = vmul.f32 %v4753, %v250
  %v4828 = vmul.f32 %v4758, %v251
  %v4829 = vmul.f32 %v4763, %v252
  %v4830 = vmul.f32 %v4768, %v253
  %v4831 = vmul.f32 %v4773, %v254
  %v4832 = vmul.f32 %v4778, %v255
  %v4833 = vmul.f32 %v4783, %v256
  %v4834 = vmul.f32 %v4788, %v257
  %v4835 = vmul.f32 %v4793, %v258
  %v4836 = vmul.f32 %v4798, %v259
  %v4837 = vmul.f32 %v4803, %v260
  %v4838 = vmul.f32 %v4808, %v261
  %v4839 = vmul.f32 %v4813, %v262
  %v4840 = vmul.f32 %v4818, %v263
  %v4841 = vmul.f32 %v4823, %v264
  %4842 = vrot.lane.b32.xlu0 %v4748, 127
  %v4843 = vpop.permute.xlu0 %4842
  %4844 = vrot.lane.b32.xlu0 %v4753, 127
  %v4845 = vpop.permute.xlu0 %4844
  %4846 = vrot.lane.b32.xlu0 %v4758, 127
  %v4847 = vpop.permute.xlu0 %4846
  %4848 = vrot.lane.b32.xlu0 %v4763, 127
  %v4849 = vpop.permute.xlu0 %4848
  %4850 = vrot.lane.b32.xlu0 %v4768, 127
  %v4851 = vpop.permute.xlu0 %4850
  %4852 = vrot.lane.b32.xlu0 %v4773, 127
  %v4853 = vpop.permute.xlu0 %4852
  %4854 = vrot.lane.b32.xlu0 %v4778, 127
  %v4855 = vpop.permute.xlu0 %4854
  %4856 = vrot.lane.b32.xlu0 %v4783, 127
  %v4857 = vpop.permute.xlu0 %4856
  %4858 = vrot.lane.b32.xlu0 %v4788, 127
  %v4859 = vpop.permute.xlu0 %4858
  %4860 = vrot.lane.b32.xlu0 %v4793, 127
  %v4861 = vpop.permute.xlu0 %4860
  %4862 = vrot.lane.b32.xlu0 %v4798, 127
  %v4863 = vpop.permute.xlu0 %4862
  %4864 = vrot.lane.b32.xlu0 %v4803, 127
  %v4865 = vpop.permute.xlu0 %4864
  %4866 = vrot.lane.b32.xlu0 %v4808, 127
  %v4867 = vpop.permute.xlu0 %4866
  %4868 = vrot.lane.b32.xlu0 %v4813, 127
  %v4869 = vpop.permute.xlu0 %4868
  %4870 = vrot.lane.b32.xlu0 %v4818, 127
  %v4871 = vpop.permute.xlu0 %4870
  %4872 = vrot.lane.b32.xlu0 %v4823, 127
  %v4873 = vpop.permute.xlu0 %4872
  %v4874 = vmul.f32 %v4843, %v265
  %v4875 = vmul.f32 %v4845, %v266
  %v4876 = vmul.f32 %v4847, %v267
  %v4877 = vmul.f32 %v4849, %v268
  %v4878 = vmul.f32 %v4851, %v269
  %v4879 = vmul.f32 %v4853, %v270
  %v4880 = vmul.f32 %v4855, %v271
  %v4881 = vmul.f32 %v4857, %v272
  %v4882 = vmul.f32 %v4859, %v273
  %v4883 = vmul.f32 %v4861, %v274
  %v4884 = vmul.f32 %v4863, %v275
  %v4885 = vmul.f32 %v4865, %v276
  %v4886 = vmul.f32 %v4867, %v277
  %v4887 = vmul.f32 %v4869, %v278
  %v4888 = vmul.f32 %v4871, %v279
  %v4889 = vmul.f32 %v4873, %v280
  %v4890 = vadd.f32 %v4826, %v4874
  %v4891 = vadd.f32 %v4827, %v4875
  %v4892 = vadd.f32 %v4828, %v4876
  %v4893 = vadd.f32 %v4829, %v4877
  %v4894 = vadd.f32 %v4830, %v4878
  %v4895 = vadd.f32 %v4831, %v4879
  %v4896 = vadd.f32 %v4832, %v4880
  %v4897 = vadd.f32 %v4833, %v4881
  %v4898 = vadd.f32 %v4834, %v4882
  %v4899 = vadd.f32 %v4835, %v4883
  %v4900 = vadd.f32 %v4836, %v4884
  %v4901 = vadd.f32 %v4837, %v4885
  %v4902 = vadd.f32 %v4838, %v4886
  %v4903 = vadd.f32 %v4839, %v4887
  %v4904 = vadd.f32 %v4840, %v4888
  %v4905 = vadd.f32 %v4841, %v4889
  %4906 = vrot.lane.b32.xlu0 %v4748, 1
  %v4907 = vpop.permute.xlu0 %4906
  %4908 = vrot.lane.b32.xlu0 %v4753, 1
  %v4909 = vpop.permute.xlu0 %4908
  %4910 = vrot.lane.b32.xlu0 %v4758, 1
  %v4911 = vpop.permute.xlu0 %4910
  %4912 = vrot.lane.b32.xlu0 %v4763, 1
  %v4913 = vpop.permute.xlu0 %4912
  %4914 = vrot.lane.b32.xlu0 %v4768, 1
  %v4915 = vpop.permute.xlu0 %4914
  %4916 = vrot.lane.b32.xlu0 %v4773, 1
  %v4917 = vpop.permute.xlu0 %4916
  %4918 = vrot.lane.b32.xlu0 %v4778, 1
  %v4919 = vpop.permute.xlu0 %4918
  %4920 = vrot.lane.b32.xlu0 %v4783, 1
  %v4921 = vpop.permute.xlu0 %4920
  %4922 = vrot.lane.b32.xlu0 %v4788, 1
  %v4923 = vpop.permute.xlu0 %4922
  %4924 = vrot.lane.b32.xlu0 %v4793, 1
  %v4925 = vpop.permute.xlu0 %4924
  %4926 = vrot.lane.b32.xlu0 %v4798, 1
  %v4927 = vpop.permute.xlu0 %4926
  %4928 = vrot.lane.b32.xlu0 %v4803, 1
  %v4929 = vpop.permute.xlu0 %4928
  %4930 = vrot.lane.b32.xlu0 %v4808, 1
  %v4931 = vpop.permute.xlu0 %4930
  %4932 = vrot.lane.b32.xlu0 %v4813, 1
  %v4933 = vpop.permute.xlu0 %4932
  %4934 = vrot.lane.b32.xlu0 %v4818, 1
  %v4935 = vpop.permute.xlu0 %4934
  %4936 = vrot.lane.b32.xlu0 %v4823, 1
  %v4937 = vpop.permute.xlu0 %4936
  %v4938 = vmul.f32 %v4907, %v281
  %v4939 = vmul.f32 %v4909, %v282
  %v4940 = vmul.f32 %v4911, %v283
  %v4941 = vmul.f32 %v4913, %v284
  %v4942 = vmul.f32 %v4915, %v285
  %v4943 = vmul.f32 %v4917, %v286
  %v4944 = vmul.f32 %v4919, %v287
  %v4945 = vmul.f32 %v4921, %v288
  %v4946 = vmul.f32 %v4923, %v289
  %v4947 = vmul.f32 %v4925, %v290
  %v4948 = vmul.f32 %v4927, %v291
  %v4949 = vmul.f32 %v4929, %v292
  %v4950 = vmul.f32 %v4931, %v293
  %v4951 = vmul.f32 %v4933, %v294
  %v4952 = vmul.f32 %v4935, %v295
  %v4953 = vmul.f32 %v4937, %v296
  %v4954 = vadd.f32 %v4890, %v4938
  %v4955 = vadd.f32 %v4891, %v4939
  %v4956 = vadd.f32 %v4892, %v4940
  %v4957 = vadd.f32 %v4893, %v4941
  %v4958 = vadd.f32 %v4894, %v4942
  %v4959 = vadd.f32 %v4895, %v4943
  %v4960 = vadd.f32 %v4896, %v4944
  %v4961 = vadd.f32 %v4897, %v4945
  %v4962 = vadd.f32 %v4898, %v4946
  %v4963 = vadd.f32 %v4899, %v4947
  %v4964 = vadd.f32 %v4900, %v4948
  %v4965 = vadd.f32 %v4901, %v4949
  %v4966 = vadd.f32 %v4902, %v4950
  %v4967 = vadd.f32 %v4903, %v4951
  %v4968 = vadd.f32 %v4904, %v4952
  %v4969 = vadd.f32 %v4905, %v4953
  %v4970 = vmul.f32 %v4954, %v361
  %v4971 = vmul.f32 %v4955, %v362
  %v4972 = vmul.f32 %v4956, %v363
  %v4973 = vmul.f32 %v4957, %v364
  %v4974 = vmul.f32 %v4958, %v365
  %v4975 = vmul.f32 %v4959, %v366
  %v4976 = vmul.f32 %v4960, %v367
  %v4977 = vmul.f32 %v4961, %v368
  %v4978 = vmul.f32 %v4962, %v369
  %v4979 = vmul.f32 %v4963, %v370
  %v4980 = vmul.f32 %v4964, %v371
  %v4981 = vmul.f32 %v4965, %v372
  %v4982 = vmul.f32 %v4966, %v373
  %v4983 = vmul.f32 %v4967, %v374
  %v4984 = vmul.f32 %v4968, %v375
  %v4985 = vmul.f32 %v4969, %v376
  %v4986 = vmul.f32 %v4954, %v377
  %v4987 = vmul.f32 %v4955, %v378
  %v4988 = vmul.f32 %v4956, %v379
  %v4989 = vmul.f32 %v4957, %v380
  %v4990 = vmul.f32 %v4958, %v381
  %v4991 = vmul.f32 %v4959, %v382
  %v4992 = vmul.f32 %v4960, %v383
  %v4993 = vmul.f32 %v4961, %v384
  %v4994 = vmul.f32 %v4962, %v385
  %v4995 = vmul.f32 %v4963, %v386
  %v4996 = vmul.f32 %v4964, %v387
  %v4997 = vmul.f32 %v4965, %v388
  %v4998 = vmul.f32 %v4966, %v389
  %v4999 = vmul.f32 %v4967, %v390
  %v5000 = vmul.f32 %v4968, %v391
  %v5001 = vmul.f32 %v4969, %v392
  %v5002 = vmul.f32 %v4954, %v393
  %v5003 = vmul.f32 %v4955, %v394
  %v5004 = vmul.f32 %v4956, %v395
  %v5005 = vmul.f32 %v4957, %v396
  %v5006 = vmul.f32 %v4958, %v397
  %v5007 = vmul.f32 %v4959, %v398
  %v5008 = vmul.f32 %v4960, %v399
  %v5009 = vmul.f32 %v4961, %v400
  %v5010 = vmul.f32 %v4962, %v401
  %v5011 = vmul.f32 %v4963, %v402
  %v5012 = vmul.f32 %v4964, %v403
  %v5013 = vmul.f32 %v4965, %v404
  %v5014 = vmul.f32 %v4966, %v405
  %v5015 = vmul.f32 %v4967, %v406
  %v5016 = vmul.f32 %v4968, %v407
  %v5017 = vmul.f32 %v4969, %v408
  %v5018 = vmul.f32 %v4954, %v409
  %v5019 = vmul.f32 %v4955, %v410
  %v5020 = vmul.f32 %v4956, %v411
  %v5021 = vmul.f32 %v4957, %v412
  %v5022 = vmul.f32 %v4958, %v413
  %v5023 = vmul.f32 %v4959, %v414
  %v5024 = vmul.f32 %v4960, %v415
  %v5025 = vmul.f32 %v4961, %v416
  %v5026 = vmul.f32 %v4962, %v417
  %v5027 = vmul.f32 %v4963, %v418
  %v5028 = vmul.f32 %v4964, %v419
  %v5029 = vmul.f32 %v4965, %v420
  %v5030 = vmul.f32 %v4966, %v421
  %v5031 = vmul.f32 %v4967, %v422
  %v5032 = vmul.f32 %v4968, %v423
  %v5033 = vmul.f32 %v4969, %v424
  %5050 = vrot.lane.b32.xlu0 %v4954, 96
  %v5051 = vpop.permute.xlu0 %5050
  %5052 = vrot.lane.b32.xlu0 %v4955, 96
  %v5053 = vpop.permute.xlu0 %5052
  %5054 = vrot.lane.b32.xlu0 %v4956, 96
  %v5055 = vpop.permute.xlu0 %5054
  %5056 = vrot.lane.b32.xlu0 %v4957, 96
  %v5057 = vpop.permute.xlu0 %5056
  %5058 = vrot.lane.b32.xlu0 %v4958, 96
  %v5059 = vpop.permute.xlu0 %5058
  %5060 = vrot.lane.b32.xlu0 %v4959, 96
  %v5061 = vpop.permute.xlu0 %5060
  %5062 = vrot.lane.b32.xlu0 %v4960, 96
  %v5063 = vpop.permute.xlu0 %5062
  %5064 = vrot.lane.b32.xlu0 %v4961, 96
  %v5065 = vpop.permute.xlu0 %5064
  %5066 = vrot.lane.b32.xlu0 %v4962, 96
  %v5067 = vpop.permute.xlu0 %5066
  %5068 = vrot.lane.b32.xlu0 %v4963, 96
  %v5069 = vpop.permute.xlu0 %5068
  %5070 = vrot.lane.b32.xlu0 %v4964, 96
  %v5071 = vpop.permute.xlu0 %5070
  %5072 = vrot.lane.b32.xlu0 %v4965, 96
  %v5073 = vpop.permute.xlu0 %5072
  %5074 = vrot.lane.b32.xlu0 %v4966, 96
  %v5075 = vpop.permute.xlu0 %5074
  %5076 = vrot.lane.b32.xlu0 %v4967, 96
  %v5077 = vpop.permute.xlu0 %5076
  %5078 = vrot.lane.b32.xlu0 %v4968, 96
  %v5079 = vpop.permute.xlu0 %5078
  %5080 = vrot.lane.b32.xlu0 %v4969, 96
  %v5081 = vpop.permute.xlu0 %5080
  %v5083 = vsel %vm439, %v4970, 0
  %v5086 = vsel %vm439, %v4971, 0
  %v5089 = vsel %vm439, %v4972, 0
  %v5092 = vsel %vm439, %v4973, 0
  %v5095 = vsel %vm439, %v4974, 0
  %v5098 = vsel %vm439, %v4975, 0
  %v5101 = vsel %vm439, %v4976, 0
  %v5104 = vsel %vm439, %v4977, 0
  %v5107 = vsel %vm439, %v4978, 0
  %v5110 = vsel %vm439, %v4979, 0
  %v5113 = vsel %vm439, %v4980, 0
  %v5116 = vsel %vm439, %v4981, 0
  %v5119 = vsel %vm439, %v4982, 0
  %v5122 = vsel %vm439, %v4983, 0
  %v5125 = vsel %vm439, %v4984, 0
  %v5128 = vsel %vm439, %v4985, 0
  %v5131 = vsel %vm439, %v4986, 0
  %v5134 = vsel %vm439, %v4987, 0
  %v5137 = vsel %vm439, %v4988, 0
  %v5140 = vsel %vm439, %v4989, 0
  %v5143 = vsel %vm439, %v4990, 0
  %v5146 = vsel %vm439, %v4991, 0
  %v5149 = vsel %vm439, %v4992, 0
  %v5152 = vsel %vm439, %v4993, 0
  %v5155 = vsel %vm439, %v4994, 0
  %v5158 = vsel %vm439, %v4995, 0
  %v5161 = vsel %vm439, %v4996, 0
  %v5164 = vsel %vm439, %v4997, 0
  %v5167 = vsel %vm439, %v4998, 0
  %v5170 = vsel %vm439, %v4999, 0
  %v5173 = vsel %vm439, %v5000, 0
  %v5176 = vsel %vm439, %v5001, 0
  %v5179 = vsel %vm439, %v5002, 0
  %v5182 = vsel %vm439, %v5003, 0
  %v5185 = vsel %vm439, %v5004, 0
  %v5188 = vsel %vm439, %v5005, 0
  %v5191 = vsel %vm439, %v5006, 0
  %v5194 = vsel %vm439, %v5007, 0
  %v5197 = vsel %vm439, %v5008, 0
  %v5200 = vsel %vm439, %v5009, 0
  %v5203 = vsel %vm439, %v5010, 0
  %v5206 = vsel %vm439, %v5011, 0
  %v5209 = vsel %vm439, %v5012, 0
  %v5212 = vsel %vm439, %v5013, 0
  %v5215 = vsel %vm439, %v5014, 0
  %v5218 = vsel %vm439, %v5015, 0
  %v5221 = vsel %vm439, %v5016, 0
  %v5224 = vsel %vm439, %v5017, 0
  %v5227 = vsel %vm439, %v5018, 0
  %v5230 = vsel %vm439, %v5019, 0
  %v5233 = vsel %vm439, %v5020, 0
  %v5236 = vsel %vm439, %v5021, 0
  %v5239 = vsel %vm439, %v5022, 0
  %v5242 = vsel %vm439, %v5023, 0
  %v5245 = vsel %vm439, %v5024, 0
  %v5248 = vsel %vm439, %v5025, 0
  %v5251 = vsel %vm439, %v5026, 0
  %v5254 = vsel %vm439, %v5027, 0
  %v5257 = vsel %vm439, %v5028, 0
  %v5260 = vsel %vm439, %v5029, 0
  %v5263 = vsel %vm439, %v5030, 0
  %v5266 = vsel %vm439, %v5031, 0
  %v5269 = vsel %vm439, %v5032, 0
  %v5272 = vsel %vm439, %v5033, 0
  %v5274 = vsel %vm439, %v5051, 0
  %v5276 = vsel %vm439, %v5053, 0
  %v5278 = vsel %vm439, %v5055, 0
  %v5280 = vsel %vm439, %v5057, 0
  %v5282 = vsel %vm439, %v5059, 0
  %v5284 = vsel %vm439, %v5061, 0
  %v5286 = vsel %vm439, %v5063, 0
  %v5288 = vsel %vm439, %v5065, 0
  %v5290 = vsel %vm439, %v5067, 0
  %v5292 = vsel %vm439, %v5069, 0
  %v5294 = vsel %vm439, %v5071, 0
  %v5296 = vsel %vm439, %v5073, 0
  %v5298 = vsel %vm439, %v5075, 0
  %v5300 = vsel %vm439, %v5077, 0
  %v5302 = vsel %vm439, %v5079, 0
  %v5304 = vsel %vm439, %v5081, 0
  %5306 = vmatprep.subr.mxu0 0.0
  %5307 = vmatpush1.xpose.msra.mxu0 %v5274
  %5308 = vmatprep.subr.mxu0 0.0
  %5309 = vmatpush1.xpose.msra.mxu0 %v5276
  %5310 = vmatprep.subr.mxu0 0.0
  %5311 = vmatpush1.xpose.msra.mxu0 %v5278
  %5312 = vmatprep.subr.mxu0 0.0
  %5313 = vmatpush1.xpose.msra.mxu0 %v5280
  %5314 = vmatprep.subr.mxu0 0.0
  %5315 = vmatpush1.xpose.msra.mxu0 %v5282
  %5316 = vmatprep.subr.mxu0 0.0
  %5317 = vmatpush1.xpose.msra.mxu0 %v5284
  %5318 = vmatprep.subr.mxu0 0.0
  %5319 = vmatpush1.xpose.msra.mxu0 %v5286
  %5320 = vmatprep.subr.mxu0 0.0
  %5321 = vmatpush1.xpose.msra.mxu0 %v5288
  %5322 = vmatprep.subr.mxu0 0.0
  %5323 = vmatpush1.xpose.msra.mxu0 %v5290
  %5324 = vmatprep.subr.mxu0 0.0
  %5325 = vmatpush1.xpose.msra.mxu0 %v5292
  %5326 = vmatprep.subr.mxu0 0.0
  %5327 = vmatpush1.xpose.msra.mxu0 %v5294
  %5328 = vmatprep.subr.mxu0 0.0
  %5329 = vmatpush1.xpose.msra.mxu0 %v5296
  %5330 = vmatprep.subr.mxu0 0.0
  %5331 = vmatpush1.xpose.msra.mxu0 %v5298
  %5332 = vmatprep.subr.mxu0 0.0
  %5333 = vmatpush1.xpose.msra.mxu0 %v5300
  %5334 = vmatprep.subr.mxu0 0.0
  %5335 = vmatpush1.xpose.msra.mxu0 %v5302
  %5336 = vmatprep.subr.mxu0 0.0
  %5337 = vmatpush1.xpose.msra.mxu0 %v5304
  %5338 = vmatprep.subr.mxu0 0.0
  %5339 = vmatpush1.xpose.msra.mxu0 0.0
  %5340 = vmatprep.subr.mxu0 0.0
  %5341 = vmatpush1.xpose.msra.mxu0 0.0
  %5342 = vmatprep.subr.mxu0 0.0
  %5343 = vmatpush1.xpose.msra.mxu0 0.0
  %5344 = vmatprep.subr.mxu0 0.0
  %5345 = vmatpush1.xpose.msra.mxu0 0.0
  %5346 = vmatprep.subr.mxu0 0.0
  %5347 = vmatpush1.xpose.msra.mxu0 0.0
  %5348 = vmatprep.subr.mxu0 0.0
  %5349 = vmatpush1.xpose.msra.mxu0 0.0
  %5350 = vmatprep.subr.mxu0 0.0
  %5351 = vmatpush1.xpose.msra.mxu0 0.0
  %5352 = vmatprep.subr.mxu0 0.0
  %5353 = vmatpush1.xpose.msra.mxu0 0.0
  %5354 = vmatprep.subr.mxu0 0.0
  %5355 = vmatpush1.xpose.msra.mxu0 0.0
  %5356 = vmatprep.subr.mxu0 0.0
  %5357 = vmatpush1.xpose.msra.mxu0 0.0
  %5358 = vmatprep.subr.mxu0 0.0
  %5359 = vmatpush1.xpose.msra.mxu0 0.0
  %5360 = vmatprep.subr.mxu0 0.0
  %5361 = vmatpush1.xpose.msra.mxu0 0.0
  %5362 = vmatprep.subr.mxu0 0.0
  %5363 = vmatpush1.xpose.msra.mxu0 0.0
  %5364 = vmatprep.subr.mxu0 0.0
  %5365 = vmatpush1.xpose.msra.mxu0 0.0
  %5366 = vmatprep.subr.mxu0 0.0
  %5367 = vmatpush1.xpose.msra.mxu0 0.0
  %5368 = vmatprep.subr.mxu0 0.0
  %5369 = vmatpush1.xpose.msra.mxu0 0.0
  %5370 = vmatprep.mubr.f32.mxu0 0.0
  %5371 = vmatmul.mubr.f32.gmra.mrb[0].mxu0 %v5083
  %v5372 = vpop.f32.mrb[0].mxu0
  %v5373 = vadd.f32 %v297, %v5372
  %v5374 = vpop.f32.mrb[0].mxu0
  %5375 = vmatprep.mubr.f32.mxu0 0.0
  %5376 = vmatmul.mubr.f32.gmra.mrb[0].mxu0 %v5086
  %v5377 = vpop.f32.mrb[0].mxu0
  %v5378 = vadd.f32 %v298, %v5377
  %v5379 = vpop.f32.mrb[0].mxu0
  %5380 = vmatprep.mubr.f32.mxu0 0.0
  %5381 = vmatmul.mubr.f32.gmra.mrb[0].mxu0 %v5089
  %v5382 = vpop.f32.mrb[0].mxu0
  %v5383 = vadd.f32 %v299, %v5382
  %v5384 = vpop.f32.mrb[0].mxu0
  %5385 = vmatprep.mubr.f32.mxu0 0.0
  %5386 = vmatmul.mubr.f32.gmra.mrb[0].mxu0 %v5092
  %v5387 = vpop.f32.mrb[0].mxu0
  %v5388 = vadd.f32 %v300, %v5387
  %v5389 = vpop.f32.mrb[0].mxu0
  %5390 = vmatprep.mubr.f32.mxu0 0.0
  %5391 = vmatmul.mubr.f32.gmra.mrb[0].mxu0 %v5095
  %v5392 = vpop.f32.mrb[0].mxu0
  %v5393 = vadd.f32 %v301, %v5392
  %v5394 = vpop.f32.mrb[0].mxu0
  %5395 = vmatprep.mubr.f32.mxu0 0.0
  %5396 = vmatmul.mubr.f32.gmra.mrb[0].mxu0 %v5098
  %v5397 = vpop.f32.mrb[0].mxu0
  %v5398 = vadd.f32 %v302, %v5397
  %v5399 = vpop.f32.mrb[0].mxu0
  %5400 = vmatprep.mubr.f32.mxu0 0.0
  %5401 = vmatmul.mubr.f32.gmra.mrb[0].mxu0 %v5101
  %v5402 = vpop.f32.mrb[0].mxu0
  %v5403 = vadd.f32 %v303, %v5402
  %v5404 = vpop.f32.mrb[0].mxu0
  %5405 = vmatprep.mubr.f32.mxu0 0.0
  %5406 = vmatmul.mubr.f32.gmra.mrb[0].mxu0 %v5104
  %v5407 = vpop.f32.mrb[0].mxu0
  %v5408 = vadd.f32 %v304, %v5407
  %v5409 = vpop.f32.mrb[0].mxu0
  %5410 = vmatprep.mubr.f32.mxu0 0.0
  %5411 = vmatmul.mubr.f32.gmra.mrb[0].mxu0 %v5107
  %v5412 = vpop.f32.mrb[0].mxu0
  %v5413 = vadd.f32 %v305, %v5412
  %v5414 = vpop.f32.mrb[0].mxu0
  %5415 = vmatprep.mubr.f32.mxu0 0.0
  %5416 = vmatmul.mubr.f32.gmra.mrb[0].mxu0 %v5110
  %v5417 = vpop.f32.mrb[0].mxu0
  %v5418 = vadd.f32 %v306, %v5417
  %v5419 = vpop.f32.mrb[0].mxu0
  %5420 = vmatprep.mubr.f32.mxu0 0.0
  %5421 = vmatmul.mubr.f32.gmra.mrb[0].mxu0 %v5113
  %v5422 = vpop.f32.mrb[0].mxu0
  %v5423 = vadd.f32 %v307, %v5422
  %v5424 = vpop.f32.mrb[0].mxu0
  %5425 = vmatprep.mubr.f32.mxu0 0.0
  %5426 = vmatmul.mubr.f32.gmra.mrb[0].mxu0 %v5116
  %v5427 = vpop.f32.mrb[0].mxu0
  %v5428 = vadd.f32 %v308, %v5427
  %v5429 = vpop.f32.mrb[0].mxu0
  %5430 = vmatprep.mubr.f32.mxu0 0.0
  %5431 = vmatmul.mubr.f32.gmra.mrb[0].mxu0 %v5119
  %v5432 = vpop.f32.mrb[0].mxu0
  %v5433 = vadd.f32 %v309, %v5432
  %v5434 = vpop.f32.mrb[0].mxu0
  %5435 = vmatprep.mubr.f32.mxu0 0.0
  %5436 = vmatmul.mubr.f32.gmra.mrb[0].mxu0 %v5122
  %v5437 = vpop.f32.mrb[0].mxu0
  %v5438 = vadd.f32 %v310, %v5437
  %v5439 = vpop.f32.mrb[0].mxu0
  %5440 = vmatprep.mubr.f32.mxu0 0.0
  %5441 = vmatmul.mubr.f32.gmra.mrb[0].mxu0 %v5125
  %v5442 = vpop.f32.mrb[0].mxu0
  %v5443 = vadd.f32 %v311, %v5442
  %v5444 = vpop.f32.mrb[0].mxu0
  %5445 = vmatprep.mubr.f32.mxu0 0.0
  %5446 = vmatmul.mubr.f32.gmra.mrb[0].mxu0 %v5128
  %v5447 = vpop.f32.mrb[0].mxu0
  %v5448 = vadd.f32 %v312, %v5447
  %v5449 = vpop.f32.mrb[0].mxu0
  %5450 = vmatprep.mubr.f32.mxu0 0.0
  %5451 = vmatmul.mubr.f32.gmra.mrb[0].mxu0 %v5131
  %v5452 = vpop.f32.mrb[0].mxu0
  %v5453 = vadd.f32 %v313, %v5452
  %v5454 = vpop.f32.mrb[0].mxu0
  %5455 = vmatprep.mubr.f32.mxu0 0.0
  %5456 = vmatmul.mubr.f32.gmra.mrb[0].mxu0 %v5134
  %v5457 = vpop.f32.mrb[0].mxu0
  %v5458 = vadd.f32 %v314, %v5457
  %v5459 = vpop.f32.mrb[0].mxu0
  %5460 = vmatprep.mubr.f32.mxu0 0.0
  %5461 = vmatmul.mubr.f32.gmra.mrb[0].mxu0 %v5137
  %v5462 = vpop.f32.mrb[0].mxu0
  %v5463 = vadd.f32 %v315, %v5462
  %v5464 = vpop.f32.mrb[0].mxu0
  %5465 = vmatprep.mubr.f32.mxu0 0.0
  %5466 = vmatmul.mubr.f32.gmra.mrb[0].mxu0 %v5140
  %v5467 = vpop.f32.mrb[0].mxu0
  %v5468 = vadd.f32 %v316, %v5467
  %v5469 = vpop.f32.mrb[0].mxu0
  %5470 = vmatprep.mubr.f32.mxu0 0.0
  %5471 = vmatmul.mubr.f32.gmra.mrb[0].mxu0 %v5143
  %v5472 = vpop.f32.mrb[0].mxu0
  %v5473 = vadd.f32 %v317, %v5472
  %v5474 = vpop.f32.mrb[0].mxu0
  %5475 = vmatprep.mubr.f32.mxu0 0.0
  %5476 = vmatmul.mubr.f32.gmra.mrb[0].mxu0 %v5146
  %v5477 = vpop.f32.mrb[0].mxu0
  %v5478 = vadd.f32 %v318, %v5477
  %v5479 = vpop.f32.mrb[0].mxu0
  %5480 = vmatprep.mubr.f32.mxu0 0.0
  %5481 = vmatmul.mubr.f32.gmra.mrb[0].mxu0 %v5149
  %v5482 = vpop.f32.mrb[0].mxu0
  %v5483 = vadd.f32 %v319, %v5482
  %v5484 = vpop.f32.mrb[0].mxu0
  %5485 = vmatprep.mubr.f32.mxu0 0.0
  %5486 = vmatmul.mubr.f32.gmra.mrb[0].mxu0 %v5152
  %v5487 = vpop.f32.mrb[0].mxu0
  %v5488 = vadd.f32 %v320, %v5487
  %v5489 = vpop.f32.mrb[0].mxu0
  %5490 = vmatprep.mubr.f32.mxu0 0.0
  %5491 = vmatmul.mubr.f32.gmra.mrb[0].mxu0 %v5155
  %v5492 = vpop.f32.mrb[0].mxu0
  %v5493 = vadd.f32 %v321, %v5492
  %v5494 = vpop.f32.mrb[0].mxu0
  %5495 = vmatprep.mubr.f32.mxu0 0.0
  %5496 = vmatmul.mubr.f32.gmra.mrb[0].mxu0 %v5158
  %v5497 = vpop.f32.mrb[0].mxu0
  %v5498 = vadd.f32 %v322, %v5497
  %v5499 = vpop.f32.mrb[0].mxu0
  %5500 = vmatprep.mubr.f32.mxu0 0.0
  %5501 = vmatmul.mubr.f32.gmra.mrb[0].mxu0 %v5161
  %v5502 = vpop.f32.mrb[0].mxu0
  %v5503 = vadd.f32 %v323, %v5502
  %v5504 = vpop.f32.mrb[0].mxu0
  %5505 = vmatprep.mubr.f32.mxu0 0.0
  %5506 = vmatmul.mubr.f32.gmra.mrb[0].mxu0 %v5164
  %v5507 = vpop.f32.mrb[0].mxu0
  %v5508 = vadd.f32 %v324, %v5507
  %v5509 = vpop.f32.mrb[0].mxu0
  %5510 = vmatprep.mubr.f32.mxu0 0.0
  %5511 = vmatmul.mubr.f32.gmra.mrb[0].mxu0 %v5167
  %v5512 = vpop.f32.mrb[0].mxu0
  %v5513 = vadd.f32 %v325, %v5512
  %v5514 = vpop.f32.mrb[0].mxu0
  %5515 = vmatprep.mubr.f32.mxu0 0.0
  %5516 = vmatmul.mubr.f32.gmra.mrb[0].mxu0 %v5170
  %v5517 = vpop.f32.mrb[0].mxu0
  %v5518 = vadd.f32 %v326, %v5517
  %v5519 = vpop.f32.mrb[0].mxu0
  %5520 = vmatprep.mubr.f32.mxu0 0.0
  %5521 = vmatmul.mubr.f32.gmra.mrb[0].mxu0 %v5173
  %v5522 = vpop.f32.mrb[0].mxu0
  %v5523 = vadd.f32 %v327, %v5522
  %v5524 = vpop.f32.mrb[0].mxu0
  %5525 = vmatprep.mubr.f32.mxu0 0.0
  %5526 = vmatmul.mubr.f32.gmra.mrb[0].mxu0 %v5176
  %v5527 = vpop.f32.mrb[0].mxu0
  %v5528 = vadd.f32 %v328, %v5527
  %v5529 = vpop.f32.mrb[0].mxu0
  %5530 = vmatprep.mubr.f32.mxu0 0.0
  %5531 = vmatmul.mubr.f32.gmra.mrb[0].mxu0 %v5179
  %v5532 = vpop.f32.mrb[0].mxu0
  %v5533 = vadd.f32 %v329, %v5532
  %v5534 = vpop.f32.mrb[0].mxu0
  %5535 = vmatprep.mubr.f32.mxu0 0.0
  %5536 = vmatmul.mubr.f32.gmra.mrb[0].mxu0 %v5182
  %v5537 = vpop.f32.mrb[0].mxu0
  %v5538 = vadd.f32 %v330, %v5537
  %v5539 = vpop.f32.mrb[0].mxu0
  %5540 = vmatprep.mubr.f32.mxu0 0.0
  %5541 = vmatmul.mubr.f32.gmra.mrb[0].mxu0 %v5185
  %v5542 = vpop.f32.mrb[0].mxu0
  %v5543 = vadd.f32 %v331, %v5542
  %v5544 = vpop.f32.mrb[0].mxu0
  %5545 = vmatprep.mubr.f32.mxu0 0.0
  %5546 = vmatmul.mubr.f32.gmra.mrb[0].mxu0 %v5188
  %v5547 = vpop.f32.mrb[0].mxu0
  %v5548 = vadd.f32 %v332, %v5547
  %v5549 = vpop.f32.mrb[0].mxu0
  %5550 = vmatprep.mubr.f32.mxu0 0.0
  %5551 = vmatmul.mubr.f32.gmra.mrb[0].mxu0 %v5191
  %v5552 = vpop.f32.mrb[0].mxu0
  %v5553 = vadd.f32 %v333, %v5552
  %v5554 = vpop.f32.mrb[0].mxu0
  %5555 = vmatprep.mubr.f32.mxu0 0.0
  %5556 = vmatmul.mubr.f32.gmra.mrb[0].mxu0 %v5194
  %v5557 = vpop.f32.mrb[0].mxu0
  %v5558 = vadd.f32 %v334, %v5557
  %v5559 = vpop.f32.mrb[0].mxu0
  %5560 = vmatprep.mubr.f32.mxu0 0.0
  %5561 = vmatmul.mubr.f32.gmra.mrb[0].mxu0 %v5197
  %v5562 = vpop.f32.mrb[0].mxu0
  %v5563 = vadd.f32 %v335, %v5562
  %v5564 = vpop.f32.mrb[0].mxu0
  %5565 = vmatprep.mubr.f32.mxu0 0.0
  %5566 = vmatmul.mubr.f32.gmra.mrb[0].mxu0 %v5200
  %v5567 = vpop.f32.mrb[0].mxu0
  %v5568 = vadd.f32 %v336, %v5567
  %v5569 = vpop.f32.mrb[0].mxu0
  %5570 = vmatprep.mubr.f32.mxu0 0.0
  %5571 = vmatmul.mubr.f32.gmra.mrb[0].mxu0 %v5203
  %v5572 = vpop.f32.mrb[0].mxu0
  %v5573 = vadd.f32 %v337, %v5572
  %v5574 = vpop.f32.mrb[0].mxu0
  %5575 = vmatprep.mubr.f32.mxu0 0.0
  %5576 = vmatmul.mubr.f32.gmra.mrb[0].mxu0 %v5206
  %v5577 = vpop.f32.mrb[0].mxu0
  %v5578 = vadd.f32 %v338, %v5577
  %v5579 = vpop.f32.mrb[0].mxu0
  %5580 = vmatprep.mubr.f32.mxu0 0.0
  %5581 = vmatmul.mubr.f32.gmra.mrb[0].mxu0 %v5209
  %v5582 = vpop.f32.mrb[0].mxu0
  %v5583 = vadd.f32 %v339, %v5582
  %v5584 = vpop.f32.mrb[0].mxu0
  %5585 = vmatprep.mubr.f32.mxu0 0.0
  %5586 = vmatmul.mubr.f32.gmra.mrb[0].mxu0 %v5212
  %v5587 = vpop.f32.mrb[0].mxu0
  %v5588 = vadd.f32 %v340, %v5587
  %v5589 = vpop.f32.mrb[0].mxu0
  %5590 = vmatprep.mubr.f32.mxu0 0.0
  %5591 = vmatmul.mubr.f32.gmra.mrb[0].mxu0 %v5215
  %v5592 = vpop.f32.mrb[0].mxu0
  %v5593 = vadd.f32 %v341, %v5592
  %v5594 = vpop.f32.mrb[0].mxu0
  %5595 = vmatprep.mubr.f32.mxu0 0.0
  %5596 = vmatmul.mubr.f32.gmra.mrb[0].mxu0 %v5218
  %v5597 = vpop.f32.mrb[0].mxu0
  %v5598 = vadd.f32 %v342, %v5597
  %v5599 = vpop.f32.mrb[0].mxu0
  %5600 = vmatprep.mubr.f32.mxu0 0.0
  %5601 = vmatmul.mubr.f32.gmra.mrb[0].mxu0 %v5221
  %v5602 = vpop.f32.mrb[0].mxu0
  %v5603 = vadd.f32 %v343, %v5602
  %v5604 = vpop.f32.mrb[0].mxu0
  %5605 = vmatprep.mubr.f32.mxu0 0.0
  %5606 = vmatmul.mubr.f32.gmra.mrb[0].mxu0 %v5224
  %v5607 = vpop.f32.mrb[0].mxu0
  %v5608 = vadd.f32 %v344, %v5607
  %v5609 = vpop.f32.mrb[0].mxu0
  %5610 = vmatprep.mubr.f32.mxu0 0.0
  %5611 = vmatmul.mubr.f32.gmra.mrb[0].mxu0 %v5227
  %v5612 = vpop.f32.mrb[0].mxu0
  %v5613 = vadd.f32 %v345, %v5612
  %v5614 = vpop.f32.mrb[0].mxu0
  %5615 = vmatprep.mubr.f32.mxu0 0.0
  %5616 = vmatmul.mubr.f32.gmra.mrb[0].mxu0 %v5230
  %v5617 = vpop.f32.mrb[0].mxu0
  %v5618 = vadd.f32 %v346, %v5617
  %v5619 = vpop.f32.mrb[0].mxu0
  %5620 = vmatprep.mubr.f32.mxu0 0.0
  %5621 = vmatmul.mubr.f32.gmra.mrb[0].mxu0 %v5233
  %v5622 = vpop.f32.mrb[0].mxu0
  %v5623 = vadd.f32 %v347, %v5622
  %v5624 = vpop.f32.mrb[0].mxu0
  %5625 = vmatprep.mubr.f32.mxu0 0.0
  %5626 = vmatmul.mubr.f32.gmra.mrb[0].mxu0 %v5236
  %v5627 = vpop.f32.mrb[0].mxu0
  %v5628 = vadd.f32 %v348, %v5627
  %v5629 = vpop.f32.mrb[0].mxu0
  %5630 = vmatprep.mubr.f32.mxu0 0.0
  %5631 = vmatmul.mubr.f32.gmra.mrb[0].mxu0 %v5239
  %v5632 = vpop.f32.mrb[0].mxu0
  %v5633 = vadd.f32 %v349, %v5632
  %v5634 = vpop.f32.mrb[0].mxu0
  %5635 = vmatprep.mubr.f32.mxu0 0.0
  %5636 = vmatmul.mubr.f32.gmra.mrb[0].mxu0 %v5242
  %v5637 = vpop.f32.mrb[0].mxu0
  %v5638 = vadd.f32 %v350, %v5637
  %v5639 = vpop.f32.mrb[0].mxu0
  %5640 = vmatprep.mubr.f32.mxu0 0.0
  %5641 = vmatmul.mubr.f32.gmra.mrb[0].mxu0 %v5245
  %v5642 = vpop.f32.mrb[0].mxu0
  %v5643 = vadd.f32 %v351, %v5642
  %v5644 = vpop.f32.mrb[0].mxu0
  %5645 = vmatprep.mubr.f32.mxu0 0.0
  %5646 = vmatmul.mubr.f32.gmra.mrb[0].mxu0 %v5248
  %v5647 = vpop.f32.mrb[0].mxu0
  %v5648 = vadd.f32 %v352, %v5647
  %v5649 = vpop.f32.mrb[0].mxu0
  %5650 = vmatprep.mubr.f32.mxu0 0.0
  %5651 = vmatmul.mubr.f32.gmra.mrb[0].mxu0 %v5251
  %v5652 = vpop.f32.mrb[0].mxu0
  %v5653 = vadd.f32 %v353, %v5652
  %v5654 = vpop.f32.mrb[0].mxu0
  %5655 = vmatprep.mubr.f32.mxu0 0.0
  %5656 = vmatmul.mubr.f32.gmra.mrb[0].mxu0 %v5254
  %v5657 = vpop.f32.mrb[0].mxu0
  %v5658 = vadd.f32 %v354, %v5657
  %v5659 = vpop.f32.mrb[0].mxu0
  %5660 = vmatprep.mubr.f32.mxu0 0.0
  %5661 = vmatmul.mubr.f32.gmra.mrb[0].mxu0 %v5257
  %v5662 = vpop.f32.mrb[0].mxu0
  %v5663 = vadd.f32 %v355, %v5662
  %v5664 = vpop.f32.mrb[0].mxu0
  %5665 = vmatprep.mubr.f32.mxu0 0.0
  %5666 = vmatmul.mubr.f32.gmra.mrb[0].mxu0 %v5260
  %v5667 = vpop.f32.mrb[0].mxu0
  %v5668 = vadd.f32 %v356, %v5667
  %v5669 = vpop.f32.mrb[0].mxu0
  %5670 = vmatprep.mubr.f32.mxu0 0.0
  %5671 = vmatmul.mubr.f32.gmra.mrb[0].mxu0 %v5263
  %v5672 = vpop.f32.mrb[0].mxu0
  %v5673 = vadd.f32 %v357, %v5672
  %v5674 = vpop.f32.mrb[0].mxu0
  %5675 = vmatprep.mubr.f32.mxu0 0.0
  %5676 = vmatmul.mubr.f32.gmra.mrb[0].mxu0 %v5266
  %v5677 = vpop.f32.mrb[0].mxu0
  %v5678 = vadd.f32 %v358, %v5677
  %v5679 = vpop.f32.mrb[0].mxu0
  %5680 = vmatprep.mubr.f32.mxu0 0.0
  %5681 = vmatmul.mubr.f32.gmra.mrb[0].mxu0 %v5269
  %v5682 = vpop.f32.mrb[0].mxu0
  %v5683 = vadd.f32 %v359, %v5682
  %v5684 = vpop.f32.mrb[0].mxu0
  %5685 = vmatprep.mubr.f32.mxu0 0.0
  %5686 = vmatmul.mubr.f32.gmra.mrb[0].mxu0 %v5272
  %v5687 = vpop.f32.mrb[0].mxu0
  %v5688 = vadd.f32 %v360, %v5687
  %v5689 = vpop.f32.mrb[0].mxu0
  %5690 = vdwg.mxu0
  %5691 = vmax.xlane.f32.xlu0 %v5373
  %v5692 = vpop.xlane.xlu0 %5691
  %5693 = vmax.xlane.f32.xlu0 %v5378
  %v5694 = vpop.xlane.xlu0 %5693
  %5695 = vmax.xlane.f32.xlu0 %v5383
  %v5696 = vpop.xlane.xlu0 %5695
  %5697 = vmax.xlane.f32.xlu0 %v5388
  %v5698 = vpop.xlane.xlu0 %5697
  %5699 = vmax.xlane.f32.xlu0 %v5393
  %v5700 = vpop.xlane.xlu0 %5699
  %5701 = vmax.xlane.f32.xlu0 %v5398
  %v5702 = vpop.xlane.xlu0 %5701
  %5703 = vmax.xlane.f32.xlu0 %v5403
  %v5704 = vpop.xlane.xlu0 %5703
  %5705 = vmax.xlane.f32.xlu0 %v5408
  %v5706 = vpop.xlane.xlu0 %5705
  %5707 = vmax.xlane.f32.xlu0 %v5413
  %v5708 = vpop.xlane.xlu0 %5707
  %5709 = vmax.xlane.f32.xlu0 %v5418
  %v5710 = vpop.xlane.xlu0 %5709
  %5711 = vmax.xlane.f32.xlu0 %v5423
  %v5712 = vpop.xlane.xlu0 %5711
  %5713 = vmax.xlane.f32.xlu0 %v5428
  %v5714 = vpop.xlane.xlu0 %5713
  %5715 = vmax.xlane.f32.xlu0 %v5433
  %v5716 = vpop.xlane.xlu0 %5715
  %5717 = vmax.xlane.f32.xlu0 %v5438
  %v5718 = vpop.xlane.xlu0 %5717
  %5719 = vmax.xlane.f32.xlu0 %v5443
  %v5720 = vpop.xlane.xlu0 %5719
  %5721 = vmax.xlane.f32.xlu0 %v5448
  %v5722 = vpop.xlane.xlu0 %5721
  %5723 = vmax.xlane.f32.xlu0 %v5453
  %v5724 = vpop.xlane.xlu0 %5723
  %5725 = vmax.xlane.f32.xlu0 %v5458
  %v5726 = vpop.xlane.xlu0 %5725
  %5727 = vmax.xlane.f32.xlu0 %v5463
  %v5728 = vpop.xlane.xlu0 %5727
  %5729 = vmax.xlane.f32.xlu0 %v5468
  %v5730 = vpop.xlane.xlu0 %5729
  %5731 = vmax.xlane.f32.xlu0 %v5473
  %v5732 = vpop.xlane.xlu0 %5731
  %5733 = vmax.xlane.f32.xlu0 %v5478
  %v5734 = vpop.xlane.xlu0 %5733
  %5735 = vmax.xlane.f32.xlu0 %v5483
  %v5736 = vpop.xlane.xlu0 %5735
  %5737 = vmax.xlane.f32.xlu0 %v5488
  %v5738 = vpop.xlane.xlu0 %5737
  %5739 = vmax.xlane.f32.xlu0 %v5493
  %v5740 = vpop.xlane.xlu0 %5739
  %5741 = vmax.xlane.f32.xlu0 %v5498
  %v5742 = vpop.xlane.xlu0 %5741
  %5743 = vmax.xlane.f32.xlu0 %v5503
  %v5744 = vpop.xlane.xlu0 %5743
  %5745 = vmax.xlane.f32.xlu0 %v5508
  %v5746 = vpop.xlane.xlu0 %5745
  %5747 = vmax.xlane.f32.xlu0 %v5513
  %v5748 = vpop.xlane.xlu0 %5747
  %5749 = vmax.xlane.f32.xlu0 %v5518
  %v5750 = vpop.xlane.xlu0 %5749
  %5751 = vmax.xlane.f32.xlu0 %v5523
  %v5752 = vpop.xlane.xlu0 %5751
  %5753 = vmax.xlane.f32.xlu0 %v5528
  %v5754 = vpop.xlane.xlu0 %5753
  %5755 = vmax.xlane.f32.xlu0 %v5533
  %v5756 = vpop.xlane.xlu0 %5755
  %5757 = vmax.xlane.f32.xlu0 %v5538
  %v5758 = vpop.xlane.xlu0 %5757
  %5759 = vmax.xlane.f32.xlu0 %v5543
  %v5760 = vpop.xlane.xlu0 %5759
  %5761 = vmax.xlane.f32.xlu0 %v5548
  %v5762 = vpop.xlane.xlu0 %5761
  %5763 = vmax.xlane.f32.xlu0 %v5553
  %v5764 = vpop.xlane.xlu0 %5763
  %5765 = vmax.xlane.f32.xlu0 %v5558
  %v5766 = vpop.xlane.xlu0 %5765
  %5767 = vmax.xlane.f32.xlu0 %v5563
  %v5768 = vpop.xlane.xlu0 %5767
  %5769 = vmax.xlane.f32.xlu0 %v5568
  %v5770 = vpop.xlane.xlu0 %5769
  %5771 = vmax.xlane.f32.xlu0 %v5573
  %v5772 = vpop.xlane.xlu0 %5771
  %5773 = vmax.xlane.f32.xlu0 %v5578
  %v5774 = vpop.xlane.xlu0 %5773
  %5775 = vmax.xlane.f32.xlu0 %v5583
  %v5776 = vpop.xlane.xlu0 %5775
  %5777 = vmax.xlane.f32.xlu0 %v5588
  %v5778 = vpop.xlane.xlu0 %5777
  %5779 = vmax.xlane.f32.xlu0 %v5593
  %v5780 = vpop.xlane.xlu0 %5779
  %5781 = vmax.xlane.f32.xlu0 %v5598
  %v5782 = vpop.xlane.xlu0 %5781
  %5783 = vmax.xlane.f32.xlu0 %v5603
  %v5784 = vpop.xlane.xlu0 %5783
  %5785 = vmax.xlane.f32.xlu0 %v5608
  %v5786 = vpop.xlane.xlu0 %5785
  %5787 = vmax.xlane.f32.xlu0 %v5613
  %v5788 = vpop.xlane.xlu0 %5787
  %5789 = vmax.xlane.f32.xlu0 %v5618
  %v5790 = vpop.xlane.xlu0 %5789
  %5791 = vmax.xlane.f32.xlu0 %v5623
  %v5792 = vpop.xlane.xlu0 %5791
  %5793 = vmax.xlane.f32.xlu0 %v5628
  %v5794 = vpop.xlane.xlu0 %5793
  %5795 = vmax.xlane.f32.xlu0 %v5633
  %v5796 = vpop.xlane.xlu0 %5795
  %5797 = vmax.xlane.f32.xlu0 %v5638
  %v5798 = vpop.xlane.xlu0 %5797
  %5799 = vmax.xlane.f32.xlu0 %v5643
  %v5800 = vpop.xlane.xlu0 %5799
  %5801 = vmax.xlane.f32.xlu0 %v5648
  %v5802 = vpop.xlane.xlu0 %5801
  %5803 = vmax.xlane.f32.xlu0 %v5653
  %v5804 = vpop.xlane.xlu0 %5803
  %5805 = vmax.xlane.f32.xlu0 %v5658
  %v5806 = vpop.xlane.xlu0 %5805
  %5807 = vmax.xlane.f32.xlu0 %v5663
  %v5808 = vpop.xlane.xlu0 %5807
  %5809 = vmax.xlane.f32.xlu0 %v5668
  %v5810 = vpop.xlane.xlu0 %5809
  %5811 = vmax.xlane.f32.xlu0 %v5673
  %v5812 = vpop.xlane.xlu0 %5811
  %5813 = vmax.xlane.f32.xlu0 %v5678
  %v5814 = vpop.xlane.xlu0 %5813
  %5815 = vmax.xlane.f32.xlu0 %v5683
  %v5816 = vpop.xlane.xlu0 %5815
  %5817 = vmax.xlane.f32.xlu0 %v5688
  %v5818 = vpop.xlane.xlu0 %5817
  %v5819 = vsub.f32 %v5373, %v5692
  %v5820 = vsub.f32 %v5378, %v5694
  %v5821 = vsub.f32 %v5383, %v5696
  %v5822 = vsub.f32 %v5388, %v5698
  %v5823 = vsub.f32 %v5393, %v5700
  %v5824 = vsub.f32 %v5398, %v5702
  %v5825 = vsub.f32 %v5403, %v5704
  %v5826 = vsub.f32 %v5408, %v5706
  %v5827 = vsub.f32 %v5413, %v5708
  %v5828 = vsub.f32 %v5418, %v5710
  %v5829 = vsub.f32 %v5423, %v5712
  %v5830 = vsub.f32 %v5428, %v5714
  %v5831 = vsub.f32 %v5433, %v5716
  %v5832 = vsub.f32 %v5438, %v5718
  %v5833 = vsub.f32 %v5443, %v5720
  %v5834 = vsub.f32 %v5448, %v5722
  %v5835 = vsub.f32 %v5453, %v5724
  %v5836 = vsub.f32 %v5458, %v5726
  %v5837 = vsub.f32 %v5463, %v5728
  %v5838 = vsub.f32 %v5468, %v5730
  %v5839 = vsub.f32 %v5473, %v5732
  %v5840 = vsub.f32 %v5478, %v5734
  %v5841 = vsub.f32 %v5483, %v5736
  %v5842 = vsub.f32 %v5488, %v5738
  %v5843 = vsub.f32 %v5493, %v5740
  %v5844 = vsub.f32 %v5498, %v5742
  %v5845 = vsub.f32 %v5503, %v5744
  %v5846 = vsub.f32 %v5508, %v5746
  %v5847 = vsub.f32 %v5513, %v5748
  %v5848 = vsub.f32 %v5518, %v5750
  %v5849 = vsub.f32 %v5523, %v5752
  %v5850 = vsub.f32 %v5528, %v5754
  %v5851 = vsub.f32 %v5533, %v5756
  %v5852 = vsub.f32 %v5538, %v5758
  %v5853 = vsub.f32 %v5543, %v5760
  %v5854 = vsub.f32 %v5548, %v5762
  %v5855 = vsub.f32 %v5553, %v5764
  %v5856 = vsub.f32 %v5558, %v5766
  %v5857 = vsub.f32 %v5563, %v5768
  %v5858 = vsub.f32 %v5568, %v5770
  %v5859 = vsub.f32 %v5573, %v5772
  %v5860 = vsub.f32 %v5578, %v5774
  %v5861 = vsub.f32 %v5583, %v5776
  %v5862 = vsub.f32 %v5588, %v5778
  %v5863 = vsub.f32 %v5593, %v5780
  %v5864 = vsub.f32 %v5598, %v5782
  %v5865 = vsub.f32 %v5603, %v5784
  %v5866 = vsub.f32 %v5608, %v5786
  %v5867 = vsub.f32 %v5613, %v5788
  %v5868 = vsub.f32 %v5618, %v5790
  %v5869 = vsub.f32 %v5623, %v5792
  %v5870 = vsub.f32 %v5628, %v5794
  %v5871 = vsub.f32 %v5633, %v5796
  %v5872 = vsub.f32 %v5638, %v5798
  %v5873 = vsub.f32 %v5643, %v5800
  %v5874 = vsub.f32 %v5648, %v5802
  %v5875 = vsub.f32 %v5653, %v5804
  %v5876 = vsub.f32 %v5658, %v5806
  %v5877 = vsub.f32 %v5663, %v5808
  %v5878 = vsub.f32 %v5668, %v5810
  %v5879 = vsub.f32 %v5673, %v5812
  %v5880 = vsub.f32 %v5678, %v5814
  %v5881 = vsub.f32 %v5683, %v5816
  %v5882 = vsub.f32 %v5688, %v5818
  %v5883 = vmul.f32 %v5819, 1.442695
  %v5884 = vpow.pop %v5883
  %v5885 = vmul.f32 %v5820, 1.442695
  %v5886 = vpow.pop %v5885
  %v5887 = vmul.f32 %v5821, 1.442695
  %v5888 = vpow.pop %v5887
  %v5889 = vmul.f32 %v5822, 1.442695
  %v5890 = vpow.pop %v5889
  %v5891 = vmul.f32 %v5823, 1.442695
  %v5892 = vpow.pop %v5891
  %v5893 = vmul.f32 %v5824, 1.442695
  %v5894 = vpow.pop %v5893
  %v5895 = vmul.f32 %v5825, 1.442695
  %v5896 = vpow.pop %v5895
  %v5897 = vmul.f32 %v5826, 1.442695
  %v5898 = vpow.pop %v5897
  %v5899 = vmul.f32 %v5827, 1.442695
  %v5900 = vpow.pop %v5899
  %v5901 = vmul.f32 %v5828, 1.442695
  %v5902 = vpow.pop %v5901
  %v5903 = vmul.f32 %v5829, 1.442695
  %v5904 = vpow.pop %v5903
  %v5905 = vmul.f32 %v5830, 1.442695
  %v5906 = vpow.pop %v5905
  %v5907 = vmul.f32 %v5831, 1.442695
  %v5908 = vpow.pop %v5907
  %v5909 = vmul.f32 %v5832, 1.442695
  %v5910 = vpow.pop %v5909
  %v5911 = vmul.f32 %v5833, 1.442695
  %v5912 = vpow.pop %v5911
  %v5913 = vmul.f32 %v5834, 1.442695
  %v5914 = vpow.pop %v5913
  %v5915 = vmul.f32 %v5835, 1.442695
  %v5916 = vpow.pop %v5915
  %v5917 = vmul.f32 %v5836, 1.442695
  %v5918 = vpow.pop %v5917
  %v5919 = vmul.f32 %v5837, 1.442695
  %v5920 = vpow.pop %v5919
  %v5921 = vmul.f32 %v5838, 1.442695
  %v5922 = vpow.pop %v5921
  %v5923 = vmul.f32 %v5839, 1.442695
  %v5924 = vpow.pop %v5923
  %v5925 = vmul.f32 %v5840, 1.442695
  %v5926 = vpow.pop %v5925
  %v5927 = vmul.f32 %v5841, 1.442695
  %v5928 = vpow.pop %v5927
  %v5929 = vmul.f32 %v5842, 1.442695
  %v5930 = vpow.pop %v5929
  %v5931 = vmul.f32 %v5843, 1.442695
  %v5932 = vpow.pop %v5931
  %v5933 = vmul.f32 %v5844, 1.442695
  %v5934 = vpow.pop %v5933
  %v5935 = vmul.f32 %v5845, 1.442695
  %v5936 = vpow.pop %v5935
  %v5937 = vmul.f32 %v5846, 1.442695
  %v5938 = vpow.pop %v5937
  %v5939 = vmul.f32 %v5847, 1.442695
  %v5940 = vpow.pop %v5939
  %v5941 = vmul.f32 %v5848, 1.442695
  %v5942 = vpow.pop %v5941
  %v5943 = vmul.f32 %v5849, 1.442695
  %v5944 = vpow.pop %v5943
  %v5945 = vmul.f32 %v5850, 1.442695
  %v5946 = vpow.pop %v5945
  %v5947 = vmul.f32 %v5851, 1.442695
  %v5948 = vpow.pop %v5947
  %v5949 = vmul.f32 %v5852, 1.442695
  %v5950 = vpow.pop %v5949
  %v5951 = vmul.f32 %v5853, 1.442695
  %v5952 = vpow.pop %v5951
  %v5953 = vmul.f32 %v5854, 1.442695
  %v5954 = vpow.pop %v5953
  %v5955 = vmul.f32 %v5855, 1.442695
  %v5956 = vpow.pop %v5955
  %v5957 = vmul.f32 %v5856, 1.442695
  %v5958 = vpow.pop %v5957
  %v5959 = vmul.f32 %v5857, 1.442695
  %v5960 = vpow.pop %v5959
  %v5961 = vmul.f32 %v5858, 1.442695
  %v5962 = vpow.pop %v5961
  %v5963 = vmul.f32 %v5859, 1.442695
  %v5964 = vpow.pop %v5963
  %v5965 = vmul.f32 %v5860, 1.442695
  %v5966 = vpow.pop %v5965
  %v5967 = vmul.f32 %v5861, 1.442695
  %v5968 = vpow.pop %v5967
  %v5969 = vmul.f32 %v5862, 1.442695
  %v5970 = vpow.pop %v5969
  %v5971 = vmul.f32 %v5863, 1.442695
  %v5972 = vpow.pop %v5971
  %v5973 = vmul.f32 %v5864, 1.442695
  %v5974 = vpow.pop %v5973
  %v5975 = vmul.f32 %v5865, 1.442695
  %v5976 = vpow.pop %v5975
  %v5977 = vmul.f32 %v5866, 1.442695
  %v5978 = vpow.pop %v5977
  %v5979 = vmul.f32 %v5867, 1.442695
  %v5980 = vpow.pop %v5979
  %v5981 = vmul.f32 %v5868, 1.442695
  %v5982 = vpow.pop %v5981
  %v5983 = vmul.f32 %v5869, 1.442695
  %v5984 = vpow.pop %v5983
  %v5985 = vmul.f32 %v5870, 1.442695
  %v5986 = vpow.pop %v5985
  %v5987 = vmul.f32 %v5871, 1.442695
  %v5988 = vpow.pop %v5987
  %v5989 = vmul.f32 %v5872, 1.442695
  %v5990 = vpow.pop %v5989
  %v5991 = vmul.f32 %v5873, 1.442695
  %v5992 = vpow.pop %v5991
  %v5993 = vmul.f32 %v5874, 1.442695
  %v5994 = vpow.pop %v5993
  %v5995 = vmul.f32 %v5875, 1.442695
  %v5996 = vpow.pop %v5995
  %v5997 = vmul.f32 %v5876, 1.442695
  %v5998 = vpow.pop %v5997
  %v5999 = vmul.f32 %v5877, 1.442695
  %v6000 = vpow.pop %v5999
  %v6001 = vmul.f32 %v5878, 1.442695
  %v6002 = vpow.pop %v6001
  %v6003 = vmul.f32 %v5879, 1.442695
  %v6004 = vpow.pop %v6003
  %v6005 = vmul.f32 %v5880, 1.442695
  %v6006 = vpow.pop %v6005
  %v6007 = vmul.f32 %v5881, 1.442695
  %v6008 = vpow.pop %v6007
  %v6009 = vmul.f32 %v5882, 1.442695
  %v6010 = vpow.pop %v6009
  %6011 = vadd.xlane.f32.xlu0 %v5884
  %v6012 = vpop.xlane.xlu0 %6011
  %6013 = vadd.xlane.f32.xlu0 %v5886
  %v6014 = vpop.xlane.xlu0 %6013
  %6015 = vadd.xlane.f32.xlu0 %v5888
  %v6016 = vpop.xlane.xlu0 %6015
  %6017 = vadd.xlane.f32.xlu0 %v5890
  %v6018 = vpop.xlane.xlu0 %6017
  %6019 = vadd.xlane.f32.xlu0 %v5892
  %v6020 = vpop.xlane.xlu0 %6019
  %6021 = vadd.xlane.f32.xlu0 %v5894
  %v6022 = vpop.xlane.xlu0 %6021
  %6023 = vadd.xlane.f32.xlu0 %v5896
  %v6024 = vpop.xlane.xlu0 %6023
  %6025 = vadd.xlane.f32.xlu0 %v5898
  %v6026 = vpop.xlane.xlu0 %6025
  %6027 = vadd.xlane.f32.xlu0 %v5900
  %v6028 = vpop.xlane.xlu0 %6027
  %6029 = vadd.xlane.f32.xlu0 %v5902
  %v6030 = vpop.xlane.xlu0 %6029
  %6031 = vadd.xlane.f32.xlu0 %v5904
  %v6032 = vpop.xlane.xlu0 %6031
  %6033 = vadd.xlane.f32.xlu0 %v5906
  %v6034 = vpop.xlane.xlu0 %6033
  %6035 = vadd.xlane.f32.xlu0 %v5908
  %v6036 = vpop.xlane.xlu0 %6035
  %6037 = vadd.xlane.f32.xlu0 %v5910
  %v6038 = vpop.xlane.xlu0 %6037
  %6039 = vadd.xlane.f32.xlu0 %v5912
  %v6040 = vpop.xlane.xlu0 %6039
  %6041 = vadd.xlane.f32.xlu0 %v5914
  %v6042 = vpop.xlane.xlu0 %6041
  %6043 = vadd.xlane.f32.xlu0 %v5916
  %v6044 = vpop.xlane.xlu0 %6043
  %6045 = vadd.xlane.f32.xlu0 %v5918
  %v6046 = vpop.xlane.xlu0 %6045
  %6047 = vadd.xlane.f32.xlu0 %v5920
  %v6048 = vpop.xlane.xlu0 %6047
  %6049 = vadd.xlane.f32.xlu0 %v5922
  %v6050 = vpop.xlane.xlu0 %6049
  %6051 = vadd.xlane.f32.xlu0 %v5924
  %v6052 = vpop.xlane.xlu0 %6051
  %6053 = vadd.xlane.f32.xlu0 %v5926
  %v6054 = vpop.xlane.xlu0 %6053
  %6055 = vadd.xlane.f32.xlu0 %v5928
  %v6056 = vpop.xlane.xlu0 %6055
  %6057 = vadd.xlane.f32.xlu0 %v5930
  %v6058 = vpop.xlane.xlu0 %6057
  %6059 = vadd.xlane.f32.xlu0 %v5932
  %v6060 = vpop.xlane.xlu0 %6059
  %6061 = vadd.xlane.f32.xlu0 %v5934
  %v6062 = vpop.xlane.xlu0 %6061
  %6063 = vadd.xlane.f32.xlu0 %v5936
  %v6064 = vpop.xlane.xlu0 %6063
  %6065 = vadd.xlane.f32.xlu0 %v5938
  %v6066 = vpop.xlane.xlu0 %6065
  %6067 = vadd.xlane.f32.xlu0 %v5940
  %v6068 = vpop.xlane.xlu0 %6067
  %6069 = vadd.xlane.f32.xlu0 %v5942
  %v6070 = vpop.xlane.xlu0 %6069
  %6071 = vadd.xlane.f32.xlu0 %v5944
  %v6072 = vpop.xlane.xlu0 %6071
  %6073 = vadd.xlane.f32.xlu0 %v5946
  %v6074 = vpop.xlane.xlu0 %6073
  %6075 = vadd.xlane.f32.xlu0 %v5948
  %v6076 = vpop.xlane.xlu0 %6075
  %6077 = vadd.xlane.f32.xlu0 %v5950
  %v6078 = vpop.xlane.xlu0 %6077
  %6079 = vadd.xlane.f32.xlu0 %v5952
  %v6080 = vpop.xlane.xlu0 %6079
  %6081 = vadd.xlane.f32.xlu0 %v5954
  %v6082 = vpop.xlane.xlu0 %6081
  %6083 = vadd.xlane.f32.xlu0 %v5956
  %v6084 = vpop.xlane.xlu0 %6083
  %6085 = vadd.xlane.f32.xlu0 %v5958
  %v6086 = vpop.xlane.xlu0 %6085
  %6087 = vadd.xlane.f32.xlu0 %v5960
  %v6088 = vpop.xlane.xlu0 %6087
  %6089 = vadd.xlane.f32.xlu0 %v5962
  %v6090 = vpop.xlane.xlu0 %6089
  %6091 = vadd.xlane.f32.xlu0 %v5964
  %v6092 = vpop.xlane.xlu0 %6091
  %6093 = vadd.xlane.f32.xlu0 %v5966
  %v6094 = vpop.xlane.xlu0 %6093
  %6095 = vadd.xlane.f32.xlu0 %v5968
  %v6096 = vpop.xlane.xlu0 %6095
  %6097 = vadd.xlane.f32.xlu0 %v5970
  %v6098 = vpop.xlane.xlu0 %6097
  %6099 = vadd.xlane.f32.xlu0 %v5972
  %v6100 = vpop.xlane.xlu0 %6099
  %6101 = vadd.xlane.f32.xlu0 %v5974
  %v6102 = vpop.xlane.xlu0 %6101
  %6103 = vadd.xlane.f32.xlu0 %v5976
  %v6104 = vpop.xlane.xlu0 %6103
  %6105 = vadd.xlane.f32.xlu0 %v5978
  %v6106 = vpop.xlane.xlu0 %6105
  %6107 = vadd.xlane.f32.xlu0 %v5980
  %v6108 = vpop.xlane.xlu0 %6107
  %6109 = vadd.xlane.f32.xlu0 %v5982
  %v6110 = vpop.xlane.xlu0 %6109
  %6111 = vadd.xlane.f32.xlu0 %v5984
  %v6112 = vpop.xlane.xlu0 %6111
  %6113 = vadd.xlane.f32.xlu0 %v5986
  %v6114 = vpop.xlane.xlu0 %6113
  %6115 = vadd.xlane.f32.xlu0 %v5988
  %v6116 = vpop.xlane.xlu0 %6115
  %6117 = vadd.xlane.f32.xlu0 %v5990
  %v6118 = vpop.xlane.xlu0 %6117
  %6119 = vadd.xlane.f32.xlu0 %v5992
  %v6120 = vpop.xlane.xlu0 %6119
  %6121 = vadd.xlane.f32.xlu0 %v5994
  %v6122 = vpop.xlane.xlu0 %6121
  %6123 = vadd.xlane.f32.xlu0 %v5996
  %v6124 = vpop.xlane.xlu0 %6123
  %6125 = vadd.xlane.f32.xlu0 %v5998
  %v6126 = vpop.xlane.xlu0 %6125
  %6127 = vadd.xlane.f32.xlu0 %v6000
  %v6128 = vpop.xlane.xlu0 %6127
  %6129 = vadd.xlane.f32.xlu0 %v6002
  %v6130 = vpop.xlane.xlu0 %6129
  %6131 = vadd.xlane.f32.xlu0 %v6004
  %v6132 = vpop.xlane.xlu0 %6131
  %6133 = vadd.xlane.f32.xlu0 %v6006
  %v6134 = vpop.xlane.xlu0 %6133
  %6135 = vadd.xlane.f32.xlu0 %v6008
  %v6136 = vpop.xlane.xlu0 %6135
  %6137 = vadd.xlane.f32.xlu0 %v6010
  %v6138 = vpop.xlane.xlu0 %6137
  %v6139 = vrcp.pop %v6012
  %v6140 = vrcp.pop %v6014
  %v6141 = vrcp.pop %v6016
  %v6142 = vrcp.pop %v6018
  %v6143 = vrcp.pop %v6020
  %v6144 = vrcp.pop %v6022
  %v6145 = vrcp.pop %v6024
  %v6146 = vrcp.pop %v6026
  %v6147 = vrcp.pop %v6028
  %v6148 = vrcp.pop %v6030
  %v6149 = vrcp.pop %v6032
  %v6150 = vrcp.pop %v6034
  %v6151 = vrcp.pop %v6036
  %v6152 = vrcp.pop %v6038
  %v6153 = vrcp.pop %v6040
  %v6154 = vrcp.pop %v6042
  %v6155 = vrcp.pop %v6044
  %v6156 = vrcp.pop %v6046
  %v6157 = vrcp.pop %v6048
  %v6158 = vrcp.pop %v6050
  %v6159 = vrcp.pop %v6052
  %v6160 = vrcp.pop %v6054
  %v6161 = vrcp.pop %v6056
  %v6162 = vrcp.pop %v6058
  %v6163 = vrcp.pop %v6060
  %v6164 = vrcp.pop %v6062
  %v6165 = vrcp.pop %v6064
  %v6166 = vrcp.pop %v6066
  %v6167 = vrcp.pop %v6068
  %v6168 = vrcp.pop %v6070
  %v6169 = vrcp.pop %v6072
  %v6170 = vrcp.pop %v6074
  %v6171 = vrcp.pop %v6076
  %v6172 = vrcp.pop %v6078
  %v6173 = vrcp.pop %v6080
  %v6174 = vrcp.pop %v6082
  %v6175 = vrcp.pop %v6084
  %v6176 = vrcp.pop %v6086
  %v6177 = vrcp.pop %v6088
  %v6178 = vrcp.pop %v6090
  %v6179 = vrcp.pop %v6092
  %v6180 = vrcp.pop %v6094
  %v6181 = vrcp.pop %v6096
  %v6182 = vrcp.pop %v6098
  %v6183 = vrcp.pop %v6100
  %v6184 = vrcp.pop %v6102
  %v6185 = vrcp.pop %v6104
  %v6186 = vrcp.pop %v6106
  %v6187 = vrcp.pop %v6108
  %v6188 = vrcp.pop %v6110
  %v6189 = vrcp.pop %v6112
  %v6190 = vrcp.pop %v6114
  %v6191 = vrcp.pop %v6116
  %v6192 = vrcp.pop %v6118
  %v6193 = vrcp.pop %v6120
  %v6194 = vrcp.pop %v6122
  %v6195 = vrcp.pop %v6124
  %v6196 = vrcp.pop %v6126
  %v6197 = vrcp.pop %v6128
  %v6198 = vrcp.pop %v6130
  %v6199 = vrcp.pop %v6132
  %v6200 = vrcp.pop %v6134
  %v6201 = vrcp.pop %v6136
  %v6202 = vrcp.pop %v6138
  %v6203 = vmul.f32 %v6012, %v6139
  %v6204 = vmul.f32 %v6014, %v6140
  %v6205 = vmul.f32 %v6016, %v6141
  %v6206 = vmul.f32 %v6018, %v6142
  %v6207 = vmul.f32 %v6020, %v6143
  %v6208 = vmul.f32 %v6022, %v6144
  %v6209 = vmul.f32 %v6024, %v6145
  %v6210 = vmul.f32 %v6026, %v6146
  %v6211 = vmul.f32 %v6028, %v6147
  %v6212 = vmul.f32 %v6030, %v6148
  %v6213 = vmul.f32 %v6032, %v6149
  %v6214 = vmul.f32 %v6034, %v6150
  %v6215 = vmul.f32 %v6036, %v6151
  %v6216 = vmul.f32 %v6038, %v6152
  %v6217 = vmul.f32 %v6040, %v6153
  %v6218 = vmul.f32 %v6042, %v6154
  %v6219 = vmul.f32 %v6044, %v6155
  %v6220 = vmul.f32 %v6046, %v6156
  %v6221 = vmul.f32 %v6048, %v6157
  %v6222 = vmul.f32 %v6050, %v6158
  %v6223 = vmul.f32 %v6052, %v6159
  %v6224 = vmul.f32 %v6054, %v6160
  %v6225 = vmul.f32 %v6056, %v6161
  %v6226 = vmul.f32 %v6058, %v6162
  %v6227 = vmul.f32 %v6060, %v6163
  %v6228 = vmul.f32 %v6062, %v6164
  %v6229 = vmul.f32 %v6064, %v6165
  %v6230 = vmul.f32 %v6066, %v6166
  %v6231 = vmul.f32 %v6068, %v6167
  %v6232 = vmul.f32 %v6070, %v6168
  %v6233 = vmul.f32 %v6072, %v6169
  %v6234 = vmul.f32 %v6074, %v6170
  %v6235 = vmul.f32 %v6076, %v6171
  %v6236 = vmul.f32 %v6078, %v6172
  %v6237 = vmul.f32 %v6080, %v6173
  %v6238 = vmul.f32 %v6082, %v6174
  %v6239 = vmul.f32 %v6084, %v6175
  %v6240 = vmul.f32 %v6086, %v6176
  %v6241 = vmul.f32 %v6088, %v6177
  %v6242 = vmul.f32 %v6090, %v6178
  %v6243 = vmul.f32 %v6092, %v6179
  %v6244 = vmul.f32 %v6094, %v6180
  %v6245 = vmul.f32 %v6096, %v6181
  %v6246 = vmul.f32 %v6098, %v6182
  %v6247 = vmul.f32 %v6100, %v6183
  %v6248 = vmul.f32 %v6102, %v6184
  %v6249 = vmul.f32 %v6104, %v6185
  %v6250 = vmul.f32 %v6106, %v6186
  %v6251 = vmul.f32 %v6108, %v6187
  %v6252 = vmul.f32 %v6110, %v6188
  %v6253 = vmul.f32 %v6112, %v6189
  %v6254 = vmul.f32 %v6114, %v6190
  %v6255 = vmul.f32 %v6116, %v6191
  %v6256 = vmul.f32 %v6118, %v6192
  %v6257 = vmul.f32 %v6120, %v6193
  %v6258 = vmul.f32 %v6122, %v6194
  %v6259 = vmul.f32 %v6124, %v6195
  %v6260 = vmul.f32 %v6126, %v6196
  %v6261 = vmul.f32 %v6128, %v6197
  %v6262 = vmul.f32 %v6130, %v6198
  %v6263 = vmul.f32 %v6132, %v6199
  %v6264 = vmul.f32 %v6134, %v6200
  %v6265 = vmul.f32 %v6136, %v6201
  %v6266 = vmul.f32 %v6138, %v6202
  %v6267 = vsub.f32 2.0, %v6203
  %v6268 = vsub.f32 2.0, %v6204
  %v6269 = vsub.f32 2.0, %v6205
  %v6270 = vsub.f32 2.0, %v6206
  %v6271 = vsub.f32 2.0, %v6207
  %v6272 = vsub.f32 2.0, %v6208
  %v6273 = vsub.f32 2.0, %v6209
  %v6274 = vsub.f32 2.0, %v6210
  %v6275 = vsub.f32 2.0, %v6211
  %v6276 = vsub.f32 2.0, %v6212
  %v6277 = vsub.f32 2.0, %v6213
  %v6278 = vsub.f32 2.0, %v6214
  %v6279 = vsub.f32 2.0, %v6215
  %v6280 = vsub.f32 2.0, %v6216
  %v6281 = vsub.f32 2.0, %v6217
  %v6282 = vsub.f32 2.0, %v6218
  %v6283 = vsub.f32 2.0, %v6219
  %v6284 = vsub.f32 2.0, %v6220
  %v6285 = vsub.f32 2.0, %v6221
  %v6286 = vsub.f32 2.0, %v6222
  %v6287 = vsub.f32 2.0, %v6223
  %v6288 = vsub.f32 2.0, %v6224
  %v6289 = vsub.f32 2.0, %v6225
  %v6290 = vsub.f32 2.0, %v6226
  %v6291 = vsub.f32 2.0, %v6227
  %v6292 = vsub.f32 2.0, %v6228
  %v6293 = vsub.f32 2.0, %v6229
  %v6294 = vsub.f32 2.0, %v6230
  %v6295 = vsub.f32 2.0, %v6231
  %v6296 = vsub.f32 2.0, %v6232
  %v6297 = vsub.f32 2.0, %v6233
  %v6298 = vsub.f32 2.0, %v6234
  %v6299 = vsub.f32 2.0, %v6235
  %v6300 = vsub.f32 2.0, %v6236
  %v6301 = vsub.f32 2.0, %v6237
  %v6302 = vsub.f32 2.0, %v6238
  %v6303 = vsub.f32 2.0, %v6239
  %v6304 = vsub.f32 2.0, %v6240
  %v6305 = vsub.f32 2.0, %v6241
  %v6306 = vsub.f32 2.0, %v6242
  %v6307 = vsub.f32 2.0, %v6243
  %v6308 = vsub.f32 2.0, %v6244
  %v6309 = vsub.f32 2.0, %v6245
  %v6310 = vsub.f32 2.0, %v6246
  %v6311 = vsub.f32 2.0, %v6247
  %v6312 = vsub.f32 2.0, %v6248
  %v6313 = vsub.f32 2.0, %v6249
  %v6314 = vsub.f32 2.0, %v6250
  %v6315 = vsub.f32 2.0, %v6251
  %v6316 = vsub.f32 2.0, %v6252
  %v6317 = vsub.f32 2.0, %v6253
  %v6318 = vsub.f32 2.0, %v6254
  %v6319 = vsub.f32 2.0, %v6255
  %v6320 = vsub.f32 2.0, %v6256
  %v6321 = vsub.f32 2.0, %v6257
  %v6322 = vsub.f32 2.0, %v6258
  %v6323 = vsub.f32 2.0, %v6259
  %v6324 = vsub.f32 2.0, %v6260
  %v6325 = vsub.f32 2.0, %v6261
  %v6326 = vsub.f32 2.0, %v6262
  %v6327 = vsub.f32 2.0, %v6263
  %v6328 = vsub.f32 2.0, %v6264
  %v6329 = vsub.f32 2.0, %v6265
  %v6330 = vsub.f32 2.0, %v6266
  %v6331 = vmul.f32 %v6139, %v6267
  %v6332 = vmul.f32 %v6140, %v6268
  %v6333 = vmul.f32 %v6141, %v6269
  %v6334 = vmul.f32 %v6142, %v6270
  %v6335 = vmul.f32 %v6143, %v6271
  %v6336 = vmul.f32 %v6144, %v6272
  %v6337 = vmul.f32 %v6145, %v6273
  %v6338 = vmul.f32 %v6146, %v6274
  %v6339 = vmul.f32 %v6147, %v6275
  %v6340 = vmul.f32 %v6148, %v6276
  %v6341 = vmul.f32 %v6149, %v6277
  %v6342 = vmul.f32 %v6150, %v6278
  %v6343 = vmul.f32 %v6151, %v6279
  %v6344 = vmul.f32 %v6152, %v6280
  %v6345 = vmul.f32 %v6153, %v6281
  %v6346 = vmul.f32 %v6154, %v6282
  %v6347 = vmul.f32 %v6155, %v6283
  %v6348 = vmul.f32 %v6156, %v6284
  %v6349 = vmul.f32 %v6157, %v6285
  %v6350 = vmul.f32 %v6158, %v6286
  %v6351 = vmul.f32 %v6159, %v6287
  %v6352 = vmul.f32 %v6160, %v6288
  %v6353 = vmul.f32 %v6161, %v6289
  %v6354 = vmul.f32 %v6162, %v6290
  %v6355 = vmul.f32 %v6163, %v6291
  %v6356 = vmul.f32 %v6164, %v6292
  %v6357 = vmul.f32 %v6165, %v6293
  %v6358 = vmul.f32 %v6166, %v6294
  %v6359 = vmul.f32 %v6167, %v6295
  %v6360 = vmul.f32 %v6168, %v6296
  %v6361 = vmul.f32 %v6169, %v6297
  %v6362 = vmul.f32 %v6170, %v6298
  %v6363 = vmul.f32 %v6171, %v6299
  %v6364 = vmul.f32 %v6172, %v6300
  %v6365 = vmul.f32 %v6173, %v6301
  %v6366 = vmul.f32 %v6174, %v6302
  %v6367 = vmul.f32 %v6175, %v6303
  %v6368 = vmul.f32 %v6176, %v6304
  %v6369 = vmul.f32 %v6177, %v6305
  %v6370 = vmul.f32 %v6178, %v6306
  %v6371 = vmul.f32 %v6179, %v6307
  %v6372 = vmul.f32 %v6180, %v6308
  %v6373 = vmul.f32 %v6181, %v6309
  %v6374 = vmul.f32 %v6182, %v6310
  %v6375 = vmul.f32 %v6183, %v6311
  %v6376 = vmul.f32 %v6184, %v6312
  %v6377 = vmul.f32 %v6185, %v6313
  %v6378 = vmul.f32 %v6186, %v6314
  %v6379 = vmul.f32 %v6187, %v6315
  %v6380 = vmul.f32 %v6188, %v6316
  %v6381 = vmul.f32 %v6189, %v6317
  %v6382 = vmul.f32 %v6190, %v6318
  %v6383 = vmul.f32 %v6191, %v6319
  %v6384 = vmul.f32 %v6192, %v6320
  %v6385 = vmul.f32 %v6193, %v6321
  %v6386 = vmul.f32 %v6194, %v6322
  %v6387 = vmul.f32 %v6195, %v6323
  %v6388 = vmul.f32 %v6196, %v6324
  %v6389 = vmul.f32 %v6197, %v6325
  %v6390 = vmul.f32 %v6198, %v6326
  %v6391 = vmul.f32 %v6199, %v6327
  %v6392 = vmul.f32 %v6200, %v6328
  %v6393 = vmul.f32 %v6201, %v6329
  %v6394 = vmul.f32 %v6202, %v6330
  %v6395 = vmul.f32 %v5884, %v6331
  %v6396 = vmul.f32 %v5886, %v6332
  %v6397 = vmul.f32 %v5888, %v6333
  %v6398 = vmul.f32 %v5890, %v6334
  %v6399 = vmul.f32 %v5892, %v6335
  %v6400 = vmul.f32 %v5894, %v6336
  %v6401 = vmul.f32 %v5896, %v6337
  %v6402 = vmul.f32 %v5898, %v6338
  %v6403 = vmul.f32 %v5900, %v6339
  %v6404 = vmul.f32 %v5902, %v6340
  %v6405 = vmul.f32 %v5904, %v6341
  %v6406 = vmul.f32 %v5906, %v6342
  %v6407 = vmul.f32 %v5908, %v6343
  %v6408 = vmul.f32 %v5910, %v6344
  %v6409 = vmul.f32 %v5912, %v6345
  %v6410 = vmul.f32 %v5914, %v6346
  %v6411 = vmul.f32 %v5916, %v6347
  %v6412 = vmul.f32 %v5918, %v6348
  %v6413 = vmul.f32 %v5920, %v6349
  %v6414 = vmul.f32 %v5922, %v6350
  %v6415 = vmul.f32 %v5924, %v6351
  %v6416 = vmul.f32 %v5926, %v6352
  %v6417 = vmul.f32 %v5928, %v6353
  %v6418 = vmul.f32 %v5930, %v6354
  %v6419 = vmul.f32 %v5932, %v6355
  %v6420 = vmul.f32 %v5934, %v6356
  %v6421 = vmul.f32 %v5936, %v6357
  %v6422 = vmul.f32 %v5938, %v6358
  %v6423 = vmul.f32 %v5940, %v6359
  %v6424 = vmul.f32 %v5942, %v6360
  %v6425 = vmul.f32 %v5944, %v6361
  %v6426 = vmul.f32 %v5946, %v6362
  %v6427 = vmul.f32 %v5948, %v6363
  %v6428 = vmul.f32 %v5950, %v6364
  %v6429 = vmul.f32 %v5952, %v6365
  %v6430 = vmul.f32 %v5954, %v6366
  %v6431 = vmul.f32 %v5956, %v6367
  %v6432 = vmul.f32 %v5958, %v6368
  %v6433 = vmul.f32 %v5960, %v6369
  %v6434 = vmul.f32 %v5962, %v6370
  %v6435 = vmul.f32 %v5964, %v6371
  %v6436 = vmul.f32 %v5966, %v6372
  %v6437 = vmul.f32 %v5968, %v6373
  %v6438 = vmul.f32 %v5970, %v6374
  %v6439 = vmul.f32 %v5972, %v6375
  %v6440 = vmul.f32 %v5974, %v6376
  %v6441 = vmul.f32 %v5976, %v6377
  %v6442 = vmul.f32 %v5978, %v6378
  %v6443 = vmul.f32 %v5980, %v6379
  %v6444 = vmul.f32 %v5982, %v6380
  %v6445 = vmul.f32 %v5984, %v6381
  %v6446 = vmul.f32 %v5986, %v6382
  %v6447 = vmul.f32 %v5988, %v6383
  %v6448 = vmul.f32 %v5990, %v6384
  %v6449 = vmul.f32 %v5992, %v6385
  %v6450 = vmul.f32 %v5994, %v6386
  %v6451 = vmul.f32 %v5996, %v6387
  %v6452 = vmul.f32 %v5998, %v6388
  %v6453 = vmul.f32 %v6000, %v6389
  %v6454 = vmul.f32 %v6002, %v6390
  %v6455 = vmul.f32 %v6004, %v6391
  %v6456 = vmul.f32 %v6006, %v6392
  %v6457 = vmul.f32 %v6008, %v6393
  %v6458 = vmul.f32 %v6010, %v6394
  %6459 = vrot.lane.b32.xlu0 %v4954, 64
  %v6460 = vpop.permute.xlu0 %6459
  %6461 = vrot.lane.b32.xlu0 %v4955, 64
  %v6462 = vpop.permute.xlu0 %6461
  %6463 = vrot.lane.b32.xlu0 %v4956, 64
  %v6464 = vpop.permute.xlu0 %6463
  %6465 = vrot.lane.b32.xlu0 %v4957, 64
  %v6466 = vpop.permute.xlu0 %6465
  %6467 = vrot.lane.b32.xlu0 %v4958, 64
  %v6468 = vpop.permute.xlu0 %6467
  %6469 = vrot.lane.b32.xlu0 %v4959, 64
  %v6470 = vpop.permute.xlu0 %6469
  %6471 = vrot.lane.b32.xlu0 %v4960, 64
  %v6472 = vpop.permute.xlu0 %6471
  %6473 = vrot.lane.b32.xlu0 %v4961, 64
  %v6474 = vpop.permute.xlu0 %6473
  %6475 = vrot.lane.b32.xlu0 %v4962, 64
  %v6476 = vpop.permute.xlu0 %6475
  %6477 = vrot.lane.b32.xlu0 %v4963, 64
  %v6478 = vpop.permute.xlu0 %6477
  %6479 = vrot.lane.b32.xlu0 %v4964, 64
  %v6480 = vpop.permute.xlu0 %6479
  %6481 = vrot.lane.b32.xlu0 %v4965, 64
  %v6482 = vpop.permute.xlu0 %6481
  %6483 = vrot.lane.b32.xlu0 %v4966, 64
  %v6484 = vpop.permute.xlu0 %6483
  %6485 = vrot.lane.b32.xlu0 %v4967, 64
  %v6486 = vpop.permute.xlu0 %6485
  %6487 = vrot.lane.b32.xlu0 %v4968, 64
  %v6488 = vpop.permute.xlu0 %6487
  %6489 = vrot.lane.b32.xlu0 %v4969, 64
  %v6490 = vpop.permute.xlu0 %6489
  %6507 = vmatprep.subr.mxu0 0.0
  %6508 = vmatpush1.msra.mxu0 %v6460
  %6509 = vmatprep.subr.mxu0 0.0
  %6510 = vmatpush1.msra.mxu0 %v6462
  %6511 = vmatprep.subr.mxu0 0.0
  %6512 = vmatpush1.msra.mxu0 %v6464
  %6513 = vmatprep.subr.mxu0 0.0
  %6514 = vmatpush1.msra.mxu0 %v6466
  %6515 = vmatprep.subr.mxu0 0.0
  %6516 = vmatpush1.msra.mxu0 %v6468
  %6517 = vmatprep.subr.mxu0 0.0
  %6518 = vmatpush1.msra.mxu0 %v6470
  %6519 = vmatprep.subr.mxu0 0.0
  %6520 = vmatpush1.msra.mxu0 %v6472
  %6521 = vmatprep.subr.mxu0 0.0
  %6522 = vmatpush1.msra.mxu0 %v6474
  %6523 = vmatprep.subr.mxu0 0.0
  %6524 = vmatpush1.msra.mxu0 %v6476
  %6525 = vmatprep.subr.mxu0 0.0
  %6526 = vmatpush1.msra.mxu0 %v6478
  %6527 = vmatprep.subr.mxu0 0.0
  %6528 = vmatpush1.msra.mxu0 %v6480
  %6529 = vmatprep.subr.mxu0 0.0
  %6530 = vmatpush1.msra.mxu0 %v6482
  %6531 = vmatprep.subr.mxu0 0.0
  %6532 = vmatpush1.msra.mxu0 %v6484
  %6533 = vmatprep.subr.mxu0 0.0
  %6534 = vmatpush1.msra.mxu0 %v6486
  %6535 = vmatprep.subr.mxu0 0.0
  %6536 = vmatpush1.msra.mxu0 %v6488
  %6537 = vmatprep.subr.mxu0 0.0
  %6538 = vmatpush1.msra.mxu0 %v6490
  %6539 = vmatprep.subr.mxu0 0.0
  %6540 = vmatpush1.msra.mxu0 0.0
  %6541 = vmatprep.subr.mxu0 0.0
  %6542 = vmatpush1.msra.mxu0 0.0
  %6543 = vmatprep.subr.mxu0 0.0
  %6544 = vmatpush1.msra.mxu0 0.0
  %6545 = vmatprep.subr.mxu0 0.0
  %6546 = vmatpush1.msra.mxu0 0.0
  %6547 = vmatprep.subr.mxu0 0.0
  %6548 = vmatpush1.msra.mxu0 0.0
  %6549 = vmatprep.subr.mxu0 0.0
  %6550 = vmatpush1.msra.mxu0 0.0
  %6551 = vmatprep.subr.mxu0 0.0
  %6552 = vmatpush1.msra.mxu0 0.0
  %6553 = vmatprep.subr.mxu0 0.0
  %6554 = vmatpush1.msra.mxu0 0.0
  %6555 = vmatprep.subr.mxu0 0.0
  %6556 = vmatpush1.msra.mxu0 0.0
  %6557 = vmatprep.subr.mxu0 0.0
  %6558 = vmatpush1.msra.mxu0 0.0
  %6559 = vmatprep.subr.mxu0 0.0
  %6560 = vmatpush1.msra.mxu0 0.0
  %6561 = vmatprep.subr.mxu0 0.0
  %6562 = vmatpush1.msra.mxu0 0.0
  %6563 = vmatprep.subr.mxu0 0.0
  %6564 = vmatpush1.msra.mxu0 0.0
  %6565 = vmatprep.subr.mxu0 0.0
  %6566 = vmatpush1.msra.mxu0 0.0
  %6567 = vmatprep.subr.mxu0 0.0
  %6568 = vmatpush1.msra.mxu0 0.0
  %6569 = vmatprep.subr.mxu0 0.0
  %6570 = vmatpush1.msra.mxu0 0.0
  %6571 = vmatprep.mubr.f32.mxu0 0.0
  %6572 = vmatmul.mubr.f32.gmra.mrb[0].mxu0 %v6395
  %v6573 = vpop.f32.mrb[0].mxu0
  %v6574 = vadd.f32 0.0, %v6573
  %v6575 = vpop.f32.mrb[0].mxu0
  %6576 = vmatprep.mubr.f32.mxu0 0.0
  %6577 = vmatmul.mubr.f32.gmra.mrb[0].mxu0 %v6396
  %v6578 = vpop.f32.mrb[0].mxu0
  %v6579 = vadd.f32 0.0, %v6578
  %v6580 = vpop.f32.mrb[0].mxu0
  %6581 = vmatprep.mubr.f32.mxu0 0.0
  %6582 = vmatmul.mubr.f32.gmra.mrb[0].mxu0 %v6397
  %v6583 = vpop.f32.mrb[0].mxu0
  %v6584 = vadd.f32 0.0, %v6583
  %v6585 = vpop.f32.mrb[0].mxu0
  %6586 = vmatprep.mubr.f32.mxu0 0.0
  %6587 = vmatmul.mubr.f32.gmra.mrb[0].mxu0 %v6398
  %v6588 = vpop.f32.mrb[0].mxu0
  %v6589 = vadd.f32 0.0, %v6588
  %v6590 = vpop.f32.mrb[0].mxu0
  %6591 = vmatprep.mubr.f32.mxu0 0.0
  %6592 = vmatmul.mubr.f32.gmra.mrb[0].mxu0 %v6399
  %v6593 = vpop.f32.mrb[0].mxu0
  %v6594 = vadd.f32 0.0, %v6593
  %v6595 = vpop.f32.mrb[0].mxu0
  %6596 = vmatprep.mubr.f32.mxu0 0.0
  %6597 = vmatmul.mubr.f32.gmra.mrb[0].mxu0 %v6400
  %v6598 = vpop.f32.mrb[0].mxu0
  %v6599 = vadd.f32 0.0, %v6598
  %v6600 = vpop.f32.mrb[0].mxu0
  %6601 = vmatprep.mubr.f32.mxu0 0.0
  %6602 = vmatmul.mubr.f32.gmra.mrb[0].mxu0 %v6401
  %v6603 = vpop.f32.mrb[0].mxu0
  %v6604 = vadd.f32 0.0, %v6603
  %v6605 = vpop.f32.mrb[0].mxu0
  %6606 = vmatprep.mubr.f32.mxu0 0.0
  %6607 = vmatmul.mubr.f32.gmra.mrb[0].mxu0 %v6402
  %v6608 = vpop.f32.mrb[0].mxu0
  %v6609 = vadd.f32 0.0, %v6608
  %v6610 = vpop.f32.mrb[0].mxu0
  %6611 = vmatprep.mubr.f32.mxu0 0.0
  %6612 = vmatmul.mubr.f32.gmra.mrb[0].mxu0 %v6403
  %v6613 = vpop.f32.mrb[0].mxu0
  %v6614 = vadd.f32 0.0, %v6613
  %v6615 = vpop.f32.mrb[0].mxu0
  %6616 = vmatprep.mubr.f32.mxu0 0.0
  %6617 = vmatmul.mubr.f32.gmra.mrb[0].mxu0 %v6404
  %v6618 = vpop.f32.mrb[0].mxu0
  %v6619 = vadd.f32 0.0, %v6618
  %v6620 = vpop.f32.mrb[0].mxu0
  %6621 = vmatprep.mubr.f32.mxu0 0.0
  %6622 = vmatmul.mubr.f32.gmra.mrb[0].mxu0 %v6405
  %v6623 = vpop.f32.mrb[0].mxu0
  %v6624 = vadd.f32 0.0, %v6623
  %v6625 = vpop.f32.mrb[0].mxu0
  %6626 = vmatprep.mubr.f32.mxu0 0.0
  %6627 = vmatmul.mubr.f32.gmra.mrb[0].mxu0 %v6406
  %v6628 = vpop.f32.mrb[0].mxu0
  %v6629 = vadd.f32 0.0, %v6628
  %v6630 = vpop.f32.mrb[0].mxu0
  %6631 = vmatprep.mubr.f32.mxu0 0.0
  %6632 = vmatmul.mubr.f32.gmra.mrb[0].mxu0 %v6407
  %v6633 = vpop.f32.mrb[0].mxu0
  %v6634 = vadd.f32 0.0, %v6633
  %v6635 = vpop.f32.mrb[0].mxu0
  %6636 = vmatprep.mubr.f32.mxu0 0.0
  %6637 = vmatmul.mubr.f32.gmra.mrb[0].mxu0 %v6408
  %v6638 = vpop.f32.mrb[0].mxu0
  %v6639 = vadd.f32 0.0, %v6638
  %v6640 = vpop.f32.mrb[0].mxu0
  %6641 = vmatprep.mubr.f32.mxu0 0.0
  %6642 = vmatmul.mubr.f32.gmra.mrb[0].mxu0 %v6409
  %v6643 = vpop.f32.mrb[0].mxu0
  %v6644 = vadd.f32 0.0, %v6643
  %v6645 = vpop.f32.mrb[0].mxu0
  %6646 = vmatprep.mubr.f32.mxu0 0.0
  %6647 = vmatmul.mubr.f32.gmra.mrb[0].mxu0 %v6410
  %v6648 = vpop.f32.mrb[0].mxu0
  %v6649 = vadd.f32 0.0, %v6648
  %v6650 = vpop.f32.mrb[0].mxu0
  %6651 = vmatprep.mubr.f32.mxu0 0.0
  %6652 = vmatmul.mubr.f32.gmra.mrb[0].mxu0 %v6411
  %v6653 = vpop.f32.mrb[0].mxu0
  %v6654 = vadd.f32 0.0, %v6653
  %v6655 = vpop.f32.mrb[0].mxu0
  %6656 = vmatprep.mubr.f32.mxu0 0.0
  %6657 = vmatmul.mubr.f32.gmra.mrb[0].mxu0 %v6412
  %v6658 = vpop.f32.mrb[0].mxu0
  %v6659 = vadd.f32 0.0, %v6658
  %v6660 = vpop.f32.mrb[0].mxu0
  %6661 = vmatprep.mubr.f32.mxu0 0.0
  %6662 = vmatmul.mubr.f32.gmra.mrb[0].mxu0 %v6413
  %v6663 = vpop.f32.mrb[0].mxu0
  %v6664 = vadd.f32 0.0, %v6663
  %v6665 = vpop.f32.mrb[0].mxu0
  %6666 = vmatprep.mubr.f32.mxu0 0.0
  %6667 = vmatmul.mubr.f32.gmra.mrb[0].mxu0 %v6414
  %v6668 = vpop.f32.mrb[0].mxu0
  %v6669 = vadd.f32 0.0, %v6668
  %v6670 = vpop.f32.mrb[0].mxu0
  %6671 = vmatprep.mubr.f32.mxu0 0.0
  %6672 = vmatmul.mubr.f32.gmra.mrb[0].mxu0 %v6415
  %v6673 = vpop.f32.mrb[0].mxu0
  %v6674 = vadd.f32 0.0, %v6673
  %v6675 = vpop.f32.mrb[0].mxu0
  %6676 = vmatprep.mubr.f32.mxu0 0.0
  %6677 = vmatmul.mubr.f32.gmra.mrb[0].mxu0 %v6416
  %v6678 = vpop.f32.mrb[0].mxu0
  %v6679 = vadd.f32 0.0, %v6678
  %v6680 = vpop.f32.mrb[0].mxu0
  %6681 = vmatprep.mubr.f32.mxu0 0.0
  %6682 = vmatmul.mubr.f32.gmra.mrb[0].mxu0 %v6417
  %v6683 = vpop.f32.mrb[0].mxu0
  %v6684 = vadd.f32 0.0, %v6683
  %v6685 = vpop.f32.mrb[0].mxu0
  %6686 = vmatprep.mubr.f32.mxu0 0.0
  %6687 = vmatmul.mubr.f32.gmra.mrb[0].mxu0 %v6418
  %v6688 = vpop.f32.mrb[0].mxu0
  %v6689 = vadd.f32 0.0, %v6688
  %v6690 = vpop.f32.mrb[0].mxu0
  %6691 = vmatprep.mubr.f32.mxu0 0.0
  %6692 = vmatmul.mubr.f32.gmra.mrb[0].mxu0 %v6419
  %v6693 = vpop.f32.mrb[0].mxu0
  %v6694 = vadd.f32 0.0, %v6693
  %v6695 = vpop.f32.mrb[0].mxu0
  %6696 = vmatprep.mubr.f32.mxu0 0.0
  %6697 = vmatmul.mubr.f32.gmra.mrb[0].mxu0 %v6420
  %v6698 = vpop.f32.mrb[0].mxu0
  %v6699 = vadd.f32 0.0, %v6698
  %v6700 = vpop.f32.mrb[0].mxu0
  %6701 = vmatprep.mubr.f32.mxu0 0.0
  %6702 = vmatmul.mubr.f32.gmra.mrb[0].mxu0 %v6421
  %v6703 = vpop.f32.mrb[0].mxu0
  %v6704 = vadd.f32 0.0, %v6703
  %v6705 = vpop.f32.mrb[0].mxu0
  %6706 = vmatprep.mubr.f32.mxu0 0.0
  %6707 = vmatmul.mubr.f32.gmra.mrb[0].mxu0 %v6422
  %v6708 = vpop.f32.mrb[0].mxu0
  %v6709 = vadd.f32 0.0, %v6708
  %v6710 = vpop.f32.mrb[0].mxu0
  %6711 = vmatprep.mubr.f32.mxu0 0.0
  %6712 = vmatmul.mubr.f32.gmra.mrb[0].mxu0 %v6423
  %v6713 = vpop.f32.mrb[0].mxu0
  %v6714 = vadd.f32 0.0, %v6713
  %v6715 = vpop.f32.mrb[0].mxu0
  %6716 = vmatprep.mubr.f32.mxu0 0.0
  %6717 = vmatmul.mubr.f32.gmra.mrb[0].mxu0 %v6424
  %v6718 = vpop.f32.mrb[0].mxu0
  %v6719 = vadd.f32 0.0, %v6718
  %v6720 = vpop.f32.mrb[0].mxu0
  %6721 = vmatprep.mubr.f32.mxu0 0.0
  %6722 = vmatmul.mubr.f32.gmra.mrb[0].mxu0 %v6425
  %v6723 = vpop.f32.mrb[0].mxu0
  %v6724 = vadd.f32 0.0, %v6723
  %v6725 = vpop.f32.mrb[0].mxu0
  %6726 = vmatprep.mubr.f32.mxu0 0.0
  %6727 = vmatmul.mubr.f32.gmra.mrb[0].mxu0 %v6426
  %v6728 = vpop.f32.mrb[0].mxu0
  %v6729 = vadd.f32 0.0, %v6728
  %v6730 = vpop.f32.mrb[0].mxu0
  %6731 = vmatprep.mubr.f32.mxu0 0.0
  %6732 = vmatmul.mubr.f32.gmra.mrb[0].mxu0 %v6427
  %v6733 = vpop.f32.mrb[0].mxu0
  %v6734 = vadd.f32 0.0, %v6733
  %v6735 = vpop.f32.mrb[0].mxu0
  %6736 = vmatprep.mubr.f32.mxu0 0.0
  %6737 = vmatmul.mubr.f32.gmra.mrb[0].mxu0 %v6428
  %v6738 = vpop.f32.mrb[0].mxu0
  %v6739 = vadd.f32 0.0, %v6738
  %v6740 = vpop.f32.mrb[0].mxu0
  %6741 = vmatprep.mubr.f32.mxu0 0.0
  %6742 = vmatmul.mubr.f32.gmra.mrb[0].mxu0 %v6429
  %v6743 = vpop.f32.mrb[0].mxu0
  %v6744 = vadd.f32 0.0, %v6743
  %v6745 = vpop.f32.mrb[0].mxu0
  %6746 = vmatprep.mubr.f32.mxu0 0.0
  %6747 = vmatmul.mubr.f32.gmra.mrb[0].mxu0 %v6430
  %v6748 = vpop.f32.mrb[0].mxu0
  %v6749 = vadd.f32 0.0, %v6748
  %v6750 = vpop.f32.mrb[0].mxu0
  %6751 = vmatprep.mubr.f32.mxu0 0.0
  %6752 = vmatmul.mubr.f32.gmra.mrb[0].mxu0 %v6431
  %v6753 = vpop.f32.mrb[0].mxu0
  %v6754 = vadd.f32 0.0, %v6753
  %v6755 = vpop.f32.mrb[0].mxu0
  %6756 = vmatprep.mubr.f32.mxu0 0.0
  %6757 = vmatmul.mubr.f32.gmra.mrb[0].mxu0 %v6432
  %v6758 = vpop.f32.mrb[0].mxu0
  %v6759 = vadd.f32 0.0, %v6758
  %v6760 = vpop.f32.mrb[0].mxu0
  %6761 = vmatprep.mubr.f32.mxu0 0.0
  %6762 = vmatmul.mubr.f32.gmra.mrb[0].mxu0 %v6433
  %v6763 = vpop.f32.mrb[0].mxu0
  %v6764 = vadd.f32 0.0, %v6763
  %v6765 = vpop.f32.mrb[0].mxu0
  %6766 = vmatprep.mubr.f32.mxu0 0.0
  %6767 = vmatmul.mubr.f32.gmra.mrb[0].mxu0 %v6434
  %v6768 = vpop.f32.mrb[0].mxu0
  %v6769 = vadd.f32 0.0, %v6768
  %v6770 = vpop.f32.mrb[0].mxu0
  %6771 = vmatprep.mubr.f32.mxu0 0.0
  %6772 = vmatmul.mubr.f32.gmra.mrb[0].mxu0 %v6435
  %v6773 = vpop.f32.mrb[0].mxu0
  %v6774 = vadd.f32 0.0, %v6773
  %v6775 = vpop.f32.mrb[0].mxu0
  %6776 = vmatprep.mubr.f32.mxu0 0.0
  %6777 = vmatmul.mubr.f32.gmra.mrb[0].mxu0 %v6436
  %v6778 = vpop.f32.mrb[0].mxu0
  %v6779 = vadd.f32 0.0, %v6778
  %v6780 = vpop.f32.mrb[0].mxu0
  %6781 = vmatprep.mubr.f32.mxu0 0.0
  %6782 = vmatmul.mubr.f32.gmra.mrb[0].mxu0 %v6437
  %v6783 = vpop.f32.mrb[0].mxu0
  %v6784 = vadd.f32 0.0, %v6783
  %v6785 = vpop.f32.mrb[0].mxu0
  %6786 = vmatprep.mubr.f32.mxu0 0.0
  %6787 = vmatmul.mubr.f32.gmra.mrb[0].mxu0 %v6438
  %v6788 = vpop.f32.mrb[0].mxu0
  %v6789 = vadd.f32 0.0, %v6788
  %v6790 = vpop.f32.mrb[0].mxu0
  %6791 = vmatprep.mubr.f32.mxu0 0.0
  %6792 = vmatmul.mubr.f32.gmra.mrb[0].mxu0 %v6439
  %v6793 = vpop.f32.mrb[0].mxu0
  %v6794 = vadd.f32 0.0, %v6793
  %v6795 = vpop.f32.mrb[0].mxu0
  %6796 = vmatprep.mubr.f32.mxu0 0.0
  %6797 = vmatmul.mubr.f32.gmra.mrb[0].mxu0 %v6440
  %v6798 = vpop.f32.mrb[0].mxu0
  %v6799 = vadd.f32 0.0, %v6798
  %v6800 = vpop.f32.mrb[0].mxu0
  %6801 = vmatprep.mubr.f32.mxu0 0.0
  %6802 = vmatmul.mubr.f32.gmra.mrb[0].mxu0 %v6441
  %v6803 = vpop.f32.mrb[0].mxu0
  %v6804 = vadd.f32 0.0, %v6803
  %v6805 = vpop.f32.mrb[0].mxu0
  %6806 = vmatprep.mubr.f32.mxu0 0.0
  %6807 = vmatmul.mubr.f32.gmra.mrb[0].mxu0 %v6442
  %v6808 = vpop.f32.mrb[0].mxu0
  %v6809 = vadd.f32 0.0, %v6808
  %v6810 = vpop.f32.mrb[0].mxu0
  %6811 = vmatprep.mubr.f32.mxu0 0.0
  %6812 = vmatmul.mubr.f32.gmra.mrb[0].mxu0 %v6443
  %v6813 = vpop.f32.mrb[0].mxu0
  %v6814 = vadd.f32 0.0, %v6813
  %v6815 = vpop.f32.mrb[0].mxu0
  %6816 = vmatprep.mubr.f32.mxu0 0.0
  %6817 = vmatmul.mubr.f32.gmra.mrb[0].mxu0 %v6444
  %v6818 = vpop.f32.mrb[0].mxu0
  %v6819 = vadd.f32 0.0, %v6818
  %v6820 = vpop.f32.mrb[0].mxu0
  %6821 = vmatprep.mubr.f32.mxu0 0.0
  %6822 = vmatmul.mubr.f32.gmra.mrb[0].mxu0 %v6445
  %v6823 = vpop.f32.mrb[0].mxu0
  %v6824 = vadd.f32 0.0, %v6823
  %v6825 = vpop.f32.mrb[0].mxu0
  %6826 = vmatprep.mubr.f32.mxu0 0.0
  %6827 = vmatmul.mubr.f32.gmra.mrb[0].mxu0 %v6446
  %v6828 = vpop.f32.mrb[0].mxu0
  %v6829 = vadd.f32 0.0, %v6828
  %v6830 = vpop.f32.mrb[0].mxu0
  %6831 = vmatprep.mubr.f32.mxu0 0.0
  %6832 = vmatmul.mubr.f32.gmra.mrb[0].mxu0 %v6447
  %v6833 = vpop.f32.mrb[0].mxu0
  %v6834 = vadd.f32 0.0, %v6833
  %v6835 = vpop.f32.mrb[0].mxu0
  %6836 = vmatprep.mubr.f32.mxu0 0.0
  %6837 = vmatmul.mubr.f32.gmra.mrb[0].mxu0 %v6448
  %v6838 = vpop.f32.mrb[0].mxu0
  %v6839 = vadd.f32 0.0, %v6838
  %v6840 = vpop.f32.mrb[0].mxu0
  %6841 = vmatprep.mubr.f32.mxu0 0.0
  %6842 = vmatmul.mubr.f32.gmra.mrb[0].mxu0 %v6449
  %v6843 = vpop.f32.mrb[0].mxu0
  %v6844 = vadd.f32 0.0, %v6843
  %v6845 = vpop.f32.mrb[0].mxu0
  %6846 = vmatprep.mubr.f32.mxu0 0.0
  %6847 = vmatmul.mubr.f32.gmra.mrb[0].mxu0 %v6450
  %v6848 = vpop.f32.mrb[0].mxu0
  %v6849 = vadd.f32 0.0, %v6848
  %v6850 = vpop.f32.mrb[0].mxu0
  %6851 = vmatprep.mubr.f32.mxu0 0.0
  %6852 = vmatmul.mubr.f32.gmra.mrb[0].mxu0 %v6451
  %v6853 = vpop.f32.mrb[0].mxu0
  %v6854 = vadd.f32 0.0, %v6853
  %v6855 = vpop.f32.mrb[0].mxu0
  %6856 = vmatprep.mubr.f32.mxu0 0.0
  %6857 = vmatmul.mubr.f32.gmra.mrb[0].mxu0 %v6452
  %v6858 = vpop.f32.mrb[0].mxu0
  %v6859 = vadd.f32 0.0, %v6858
  %v6860 = vpop.f32.mrb[0].mxu0
  %6861 = vmatprep.mubr.f32.mxu0 0.0
  %6862 = vmatmul.mubr.f32.gmra.mrb[0].mxu0 %v6453
  %v6863 = vpop.f32.mrb[0].mxu0
  %v6864 = vadd.f32 0.0, %v6863
  %v6865 = vpop.f32.mrb[0].mxu0
  %6866 = vmatprep.mubr.f32.mxu0 0.0
  %6867 = vmatmul.mubr.f32.gmra.mrb[0].mxu0 %v6454
  %v6868 = vpop.f32.mrb[0].mxu0
  %v6869 = vadd.f32 0.0, %v6868
  %v6870 = vpop.f32.mrb[0].mxu0
  %6871 = vmatprep.mubr.f32.mxu0 0.0
  %6872 = vmatmul.mubr.f32.gmra.mrb[0].mxu0 %v6455
  %v6873 = vpop.f32.mrb[0].mxu0
  %v6874 = vadd.f32 0.0, %v6873
  %v6875 = vpop.f32.mrb[0].mxu0
  %6876 = vmatprep.mubr.f32.mxu0 0.0
  %6877 = vmatmul.mubr.f32.gmra.mrb[0].mxu0 %v6456
  %v6878 = vpop.f32.mrb[0].mxu0
  %v6879 = vadd.f32 0.0, %v6878
  %v6880 = vpop.f32.mrb[0].mxu0
  %6881 = vmatprep.mubr.f32.mxu0 0.0
  %6882 = vmatmul.mubr.f32.gmra.mrb[0].mxu0 %v6457
  %v6883 = vpop.f32.mrb[0].mxu0
  %v6884 = vadd.f32 0.0, %v6883
  %v6885 = vpop.f32.mrb[0].mxu0
  %6886 = vmatprep.mubr.f32.mxu0 0.0
  %6887 = vmatmul.mubr.f32.gmra.mrb[0].mxu0 %v6458
  %v6888 = vpop.f32.mrb[0].mxu0
  %v6889 = vadd.f32 0.0, %v6888
  %v6890 = vpop.f32.mrb[0].mxu0
  %6891 = vdwg.mxu0
  %v6892 = vmul.f32 %v6574, %v361
  %v6893 = vmul.f32 %v6579, %v362
  %v6894 = vmul.f32 %v6584, %v363
  %v6895 = vmul.f32 %v6589, %v364
  %v6896 = vmul.f32 %v6594, %v365
  %v6897 = vmul.f32 %v6599, %v366
  %v6898 = vmul.f32 %v6604, %v367
  %v6899 = vmul.f32 %v6609, %v368
  %v6900 = vmul.f32 %v6614, %v369
  %v6901 = vmul.f32 %v6619, %v370
  %v6902 = vmul.f32 %v6624, %v371
  %v6903 = vmul.f32 %v6629, %v372
  %v6904 = vmul.f32 %v6634, %v373
  %v6905 = vmul.f32 %v6639, %v374
  %v6906 = vmul.f32 %v6644, %v375
  %v6907 = vmul.f32 %v6649, %v376
  %v6908 = vmul.f32 %v6654, %v377
  %v6909 = vmul.f32 %v6659, %v378
  %v6910 = vmul.f32 %v6664, %v379
  %v6911 = vmul.f32 %v6669, %v380
  %v6912 = vmul.f32 %v6674, %v381
  %v6913 = vmul.f32 %v6679, %v382
  %v6914 = vmul.f32 %v6684, %v383
  %v6915 = vmul.f32 %v6689, %v384
  %v6916 = vmul.f32 %v6694, %v385
  %v6917 = vmul.f32 %v6699, %v386
  %v6918 = vmul.f32 %v6704, %v387
  %v6919 = vmul.f32 %v6709, %v388
  %v6920 = vmul.f32 %v6714, %v389
  %v6921 = vmul.f32 %v6719, %v390
  %v6922 = vmul.f32 %v6724, %v391
  %v6923 = vmul.f32 %v6729, %v392
  %v6924 = vmul.f32 %v6734, %v393
  %v6925 = vmul.f32 %v6739, %v394
  %v6926 = vmul.f32 %v6744, %v395
  %v6927 = vmul.f32 %v6749, %v396
  %v6928 = vmul.f32 %v6754, %v397
  %v6929 = vmul.f32 %v6759, %v398
  %v6930 = vmul.f32 %v6764, %v399
  %v6931 = vmul.f32 %v6769, %v400
  %v6932 = vmul.f32 %v6774, %v401
  %v6933 = vmul.f32 %v6779, %v402
  %v6934 = vmul.f32 %v6784, %v403
  %v6935 = vmul.f32 %v6789, %v404
  %v6936 = vmul.f32 %v6794, %v405
  %v6937 = vmul.f32 %v6799, %v406
  %v6938 = vmul.f32 %v6804, %v407
  %v6939 = vmul.f32 %v6809, %v408
  %v6940 = vmul.f32 %v6814, %v409
  %v6941 = vmul.f32 %v6819, %v410
  %v6942 = vmul.f32 %v6824, %v411
  %v6943 = vmul.f32 %v6829, %v412
  %v6944 = vmul.f32 %v6834, %v413
  %v6945 = vmul.f32 %v6839, %v414
  %v6946 = vmul.f32 %v6844, %v415
  %v6947 = vmul.f32 %v6849, %v416
  %v6948 = vmul.f32 %v6854, %v417
  %v6949 = vmul.f32 %v6859, %v418
  %v6950 = vmul.f32 %v6864, %v419
  %v6951 = vmul.f32 %v6869, %v420
  %v6952 = vmul.f32 %v6874, %v421
  %v6953 = vmul.f32 %v6879, %v422
  %v6954 = vmul.f32 %v6884, %v423
  %v6955 = vmul.f32 %v6889, %v424
  %v6956 = vadd.f32 %v6892, %v6908
  %v6957 = vadd.f32 %v6893, %v6909
  %v6958 = vadd.f32 %v6894, %v6910
  %v6959 = vadd.f32 %v6895, %v6911
  %v6960 = vadd.f32 %v6896, %v6912
  %v6961 = vadd.f32 %v6897, %v6913
  %v6962 = vadd.f32 %v6898, %v6914
  %v6963 = vadd.f32 %v6899, %v6915
  %v6964 = vadd.f32 %v6900, %v6916
  %v6965 = vadd.f32 %v6901, %v6917
  %v6966 = vadd.f32 %v6902, %v6918
  %v6967 = vadd.f32 %v6903, %v6919
  %v6968 = vadd.f32 %v6904, %v6920
  %v6969 = vadd.f32 %v6905, %v6921
  %v6970 = vadd.f32 %v6906, %v6922
  %v6971 = vadd.f32 %v6907, %v6923
  %v6972 = vadd.f32 %v6956, %v6924
  %v6973 = vadd.f32 %v6957, %v6925
  %v6974 = vadd.f32 %v6958, %v6926
  %v6975 = vadd.f32 %v6959, %v6927
  %v6976 = vadd.f32 %v6960, %v6928
  %v6977 = vadd.f32 %v6961, %v6929
  %v6978 = vadd.f32 %v6962, %v6930
  %v6979 = vadd.f32 %v6963, %v6931
  %v6980 = vadd.f32 %v6964, %v6932
  %v6981 = vadd.f32 %v6965, %v6933
  %v6982 = vadd.f32 %v6966, %v6934
  %v6983 = vadd.f32 %v6967, %v6935
  %v6984 = vadd.f32 %v6968, %v6936
  %v6985 = vadd.f32 %v6969, %v6937
  %v6986 = vadd.f32 %v6970, %v6938
  %v6987 = vadd.f32 %v6971, %v6939
  %v6988 = vadd.f32 %v6972, %v6940
  %v6989 = vadd.f32 %v6973, %v6941
  %v6990 = vadd.f32 %v6974, %v6942
  %v6991 = vadd.f32 %v6975, %v6943
  %v6992 = vadd.f32 %v6976, %v6944
  %v6993 = vadd.f32 %v6977, %v6945
  %v6994 = vadd.f32 %v6978, %v6946
  %v6995 = vadd.f32 %v6979, %v6947
  %v6996 = vadd.f32 %v6980, %v6948
  %v6997 = vadd.f32 %v6981, %v6949
  %v6998 = vadd.f32 %v6982, %v6950
  %v6999 = vadd.f32 %v6983, %v6951
  %v7000 = vadd.f32 %v6984, %v6952
  %v7001 = vadd.f32 %v6985, %v6953
  %v7002 = vadd.f32 %v6986, %v6954
  %v7003 = vadd.f32 %v6987, %v6955
  %v7005 = vsel %vm439, %v6988, 0
  %v7008 = vsel %vm439, %v6989, 0
  %v7011 = vsel %vm439, %v6990, 0
  %v7014 = vsel %vm439, %v6991, 0
  %v7017 = vsel %vm439, %v6992, 0
  %v7020 = vsel %vm439, %v6993, 0
  %v7023 = vsel %vm439, %v6994, 0
  %v7026 = vsel %vm439, %v6995, 0
  %v7029 = vsel %vm439, %v6996, 0
  %v7032 = vsel %vm439, %v6997, 0
  %v7035 = vsel %vm439, %v6998, 0
  %v7038 = vsel %vm439, %v6999, 0
  %v7041 = vsel %vm439, %v7000, 0
  %v7044 = vsel %vm439, %v7001, 0
  %v7047 = vsel %vm439, %v7002, 0
  %v7050 = vsel %vm439, %v7003, 0
  %7052 = vmatprep.subr.mxu0 0.0
  %7053 = vmatpush1.msra.mxu0 %v4393
  %7054 = vmatprep.subr.mxu0 0.0
  %7055 = vmatpush1.msra.mxu0 %v4394
  %7056 = vmatprep.subr.mxu0 0.0
  %7057 = vmatpush1.msra.mxu0 %v4395
  %7058 = vmatprep.subr.mxu0 0.0
  %7059 = vmatpush1.msra.mxu0 %v4396
  %7060 = vmatprep.subr.mxu0 0.0
  %7061 = vmatpush1.msra.mxu0 0.0
  %7062 = vmatprep.subr.mxu0 0.0
  %7063 = vmatpush1.msra.mxu0 0.0
  %7064 = vmatprep.subr.mxu0 0.0
  %7065 = vmatpush1.msra.mxu0 0.0
  %7066 = vmatprep.subr.mxu0 0.0
  %7067 = vmatpush1.msra.mxu0 0.0
  %7068 = vmatprep.subr.mxu0 0.0
  %7069 = vmatpush1.msra.mxu0 0.0
  %7070 = vmatprep.subr.mxu0 0.0
  %7071 = vmatpush1.msra.mxu0 0.0
  %7072 = vmatprep.subr.mxu0 0.0
  %7073 = vmatpush1.msra.mxu0 0.0
  %7074 = vmatprep.subr.mxu0 0.0
  %7075 = vmatpush1.msra.mxu0 0.0
  %7076 = vmatprep.subr.mxu0 0.0
  %7077 = vmatpush1.msra.mxu0 0.0
  %7078 = vmatprep.subr.mxu0 0.0
  %7079 = vmatpush1.msra.mxu0 0.0
  %7080 = vmatprep.subr.mxu0 0.0
  %7081 = vmatpush1.msra.mxu0 0.0
  %7082 = vmatprep.subr.mxu0 0.0
  %7083 = vmatpush1.msra.mxu0 0.0
  %7084 = vmatprep.subr.mxu0 0.0
  %7085 = vmatpush1.msra.mxu0 0.0
  %7086 = vmatprep.subr.mxu0 0.0
  %7087 = vmatpush1.msra.mxu0 0.0
  %7088 = vmatprep.subr.mxu0 0.0
  %7089 = vmatpush1.msra.mxu0 0.0
  %7090 = vmatprep.subr.mxu0 0.0
  %7091 = vmatpush1.msra.mxu0 0.0
  %7092 = vmatprep.subr.mxu0 0.0
  %7093 = vmatpush1.msra.mxu0 0.0
  %7094 = vmatprep.subr.mxu0 0.0
  %7095 = vmatpush1.msra.mxu0 0.0
  %7096 = vmatprep.subr.mxu0 0.0
  %7097 = vmatpush1.msra.mxu0 0.0
  %7098 = vmatprep.subr.mxu0 0.0
  %7099 = vmatpush1.msra.mxu0 0.0
  %7100 = vmatprep.subr.mxu0 0.0
  %7101 = vmatpush1.msra.mxu0 0.0
  %7102 = vmatprep.subr.mxu0 0.0
  %7103 = vmatpush1.msra.mxu0 0.0
  %7104 = vmatprep.subr.mxu0 0.0
  %7105 = vmatpush1.msra.mxu0 0.0
  %7106 = vmatprep.subr.mxu0 0.0
  %7107 = vmatpush1.msra.mxu0 0.0
  %7108 = vmatprep.subr.mxu0 0.0
  %7109 = vmatpush1.msra.mxu0 0.0
  %7110 = vmatprep.subr.mxu0 0.0
  %7111 = vmatpush1.msra.mxu0 0.0
  %7112 = vmatprep.subr.mxu0 0.0
  %7113 = vmatpush1.msra.mxu0 0.0
  %7114 = vmatprep.subr.mxu0 0.0
  %7115 = vmatpush1.msra.mxu0 0.0
  %7116 = vmatprep.mubr.f32.mxu0 0.0
  %7117 = vmatmul.mubr.f32.gmra.mrb[0].mxu0 %v7005
  %v7118 = vpop.f32.mrb[0].mxu0
  %v7119 = vadd.f32 0.0, %v7118
  %v7120 = vpop.f32.mrb[0].mxu0
  %7121 = vmatprep.mubr.f32.mxu0 0.0
  %7122 = vmatmul.mubr.f32.gmra.mrb[0].mxu0 %v7008
  %v7123 = vpop.f32.mrb[0].mxu0
  %v7124 = vadd.f32 0.0, %v7123
  %v7125 = vpop.f32.mrb[0].mxu0
  %7126 = vmatprep.mubr.f32.mxu0 0.0
  %7127 = vmatmul.mubr.f32.gmra.mrb[0].mxu0 %v7011
  %v7128 = vpop.f32.mrb[0].mxu0
  %v7129 = vadd.f32 0.0, %v7128
  %v7130 = vpop.f32.mrb[0].mxu0
  %7131 = vmatprep.mubr.f32.mxu0 0.0
  %7132 = vmatmul.mubr.f32.gmra.mrb[0].mxu0 %v7014
  %v7133 = vpop.f32.mrb[0].mxu0
  %v7134 = vadd.f32 0.0, %v7133
  %v7135 = vpop.f32.mrb[0].mxu0
  %7136 = vmatprep.mubr.f32.mxu0 0.0
  %7137 = vmatmul.mubr.f32.gmra.mrb[0].mxu0 %v7017
  %v7138 = vpop.f32.mrb[0].mxu0
  %v7139 = vadd.f32 0.0, %v7138
  %v7140 = vpop.f32.mrb[0].mxu0
  %7141 = vmatprep.mubr.f32.mxu0 0.0
  %7142 = vmatmul.mubr.f32.gmra.mrb[0].mxu0 %v7020
  %v7143 = vpop.f32.mrb[0].mxu0
  %v7144 = vadd.f32 0.0, %v7143
  %v7145 = vpop.f32.mrb[0].mxu0
  %7146 = vmatprep.mubr.f32.mxu0 0.0
  %7147 = vmatmul.mubr.f32.gmra.mrb[0].mxu0 %v7023
  %v7148 = vpop.f32.mrb[0].mxu0
  %v7149 = vadd.f32 0.0, %v7148
  %v7150 = vpop.f32.mrb[0].mxu0
  %7151 = vmatprep.mubr.f32.mxu0 0.0
  %7152 = vmatmul.mubr.f32.gmra.mrb[0].mxu0 %v7026
  %v7153 = vpop.f32.mrb[0].mxu0
  %v7154 = vadd.f32 0.0, %v7153
  %v7155 = vpop.f32.mrb[0].mxu0
  %7156 = vmatprep.mubr.f32.mxu0 0.0
  %7157 = vmatmul.mubr.f32.gmra.mrb[0].mxu0 %v7029
  %v7158 = vpop.f32.mrb[0].mxu0
  %v7159 = vadd.f32 0.0, %v7158
  %v7160 = vpop.f32.mrb[0].mxu0
  %7161 = vmatprep.mubr.f32.mxu0 0.0
  %7162 = vmatmul.mubr.f32.gmra.mrb[0].mxu0 %v7032
  %v7163 = vpop.f32.mrb[0].mxu0
  %v7164 = vadd.f32 0.0, %v7163
  %v7165 = vpop.f32.mrb[0].mxu0
  %7166 = vmatprep.mubr.f32.mxu0 0.0
  %7167 = vmatmul.mubr.f32.gmra.mrb[0].mxu0 %v7035
  %v7168 = vpop.f32.mrb[0].mxu0
  %v7169 = vadd.f32 0.0, %v7168
  %v7170 = vpop.f32.mrb[0].mxu0
  %7171 = vmatprep.mubr.f32.mxu0 0.0
  %7172 = vmatmul.mubr.f32.gmra.mrb[0].mxu0 %v7038
  %v7173 = vpop.f32.mrb[0].mxu0
  %v7174 = vadd.f32 0.0, %v7173
  %v7175 = vpop.f32.mrb[0].mxu0
  %7176 = vmatprep.mubr.f32.mxu0 0.0
  %7177 = vmatmul.mubr.f32.gmra.mrb[0].mxu0 %v7041
  %v7178 = vpop.f32.mrb[0].mxu0
  %v7179 = vadd.f32 0.0, %v7178
  %v7180 = vpop.f32.mrb[0].mxu0
  %7181 = vmatprep.mubr.f32.mxu0 0.0
  %7182 = vmatmul.mubr.f32.gmra.mrb[0].mxu0 %v7044
  %v7183 = vpop.f32.mrb[0].mxu0
  %v7184 = vadd.f32 0.0, %v7183
  %v7185 = vpop.f32.mrb[0].mxu0
  %7186 = vmatprep.mubr.f32.mxu0 0.0
  %7187 = vmatmul.mubr.f32.gmra.mrb[0].mxu0 %v7047
  %v7188 = vpop.f32.mrb[0].mxu0
  %v7189 = vadd.f32 0.0, %v7188
  %v7190 = vpop.f32.mrb[0].mxu0
  %7191 = vmatprep.mubr.f32.mxu0 0.0
  %7192 = vmatmul.mubr.f32.gmra.mrb[0].mxu0 %v7050
  %v7193 = vpop.f32.mrb[0].mxu0
  %v7194 = vadd.f32 0.0, %v7193
  %v7195 = vpop.f32.mrb[0].mxu0
  %7196 = vdwg.mxu0
  %v7197 = vadd.f32 %v4371, %v7119
  %v7198 = vadd.f32 %v4372, %v7124
  %v7199 = vadd.f32 %v4373, %v7129
  %v7200 = vadd.f32 %v4374, %v7134
  %v7201 = vadd.f32 %v4375, %v7139
  %v7202 = vadd.f32 %v4376, %v7144
  %v7203 = vadd.f32 %v4377, %v7149
  %v7204 = vadd.f32 %v4378, %v7154
  %v7205 = vadd.f32 %v4379, %v7159
  %v7206 = vadd.f32 %v4380, %v7164
  %v7207 = vadd.f32 %v4381, %v7169
  %v7208 = vadd.f32 %v4382, %v7174
  %v7209 = vadd.f32 %v4383, %v7179
  %v7210 = vadd.f32 %v4384, %v7184
  %v7211 = vadd.f32 %v4385, %v7189
  %v7212 = vadd.f32 %v4386, %v7194
  %v7213 = vsel %vm439, %v7197, 0.0
  %7214 = vadd.xlane.f32.xlu0 %v7213
  %v7215 = vpop.xlane.xlu0 %7214
  %v7216 = vsel %vm439, %v7198, 0.0
  %7217 = vadd.xlane.f32.xlu0 %v7216
  %v7218 = vpop.xlane.xlu0 %7217
  %v7219 = vsel %vm439, %v7199, 0.0
  %7220 = vadd.xlane.f32.xlu0 %v7219
  %v7221 = vpop.xlane.xlu0 %7220
  %v7222 = vsel %vm439, %v7200, 0.0
  %7223 = vadd.xlane.f32.xlu0 %v7222
  %v7224 = vpop.xlane.xlu0 %7223
  %v7225 = vsel %vm439, %v7201, 0.0
  %7226 = vadd.xlane.f32.xlu0 %v7225
  %v7227 = vpop.xlane.xlu0 %7226
  %v7228 = vsel %vm439, %v7202, 0.0
  %7229 = vadd.xlane.f32.xlu0 %v7228
  %v7230 = vpop.xlane.xlu0 %7229
  %v7231 = vsel %vm439, %v7203, 0.0
  %7232 = vadd.xlane.f32.xlu0 %v7231
  %v7233 = vpop.xlane.xlu0 %7232
  %v7234 = vsel %vm439, %v7204, 0.0
  %7235 = vadd.xlane.f32.xlu0 %v7234
  %v7236 = vpop.xlane.xlu0 %7235
  %v7237 = vsel %vm439, %v7205, 0.0
  %7238 = vadd.xlane.f32.xlu0 %v7237
  %v7239 = vpop.xlane.xlu0 %7238
  %v7240 = vsel %vm439, %v7206, 0.0
  %7241 = vadd.xlane.f32.xlu0 %v7240
  %v7242 = vpop.xlane.xlu0 %7241
  %v7243 = vsel %vm439, %v7207, 0.0
  %7244 = vadd.xlane.f32.xlu0 %v7243
  %v7245 = vpop.xlane.xlu0 %7244
  %v7246 = vsel %vm439, %v7208, 0.0
  %7247 = vadd.xlane.f32.xlu0 %v7246
  %v7248 = vpop.xlane.xlu0 %7247
  %v7249 = vsel %vm439, %v7209, 0.0
  %7250 = vadd.xlane.f32.xlu0 %v7249
  %v7251 = vpop.xlane.xlu0 %7250
  %v7252 = vsel %vm439, %v7210, 0.0
  %7253 = vadd.xlane.f32.xlu0 %v7252
  %v7254 = vpop.xlane.xlu0 %7253
  %v7255 = vsel %vm439, %v7211, 0.0
  %7256 = vadd.xlane.f32.xlu0 %v7255
  %v7257 = vpop.xlane.xlu0 %7256
  %v7258 = vsel %vm439, %v7212, 0.0
  %7259 = vadd.xlane.f32.xlu0 %v7258
  %v7260 = vpop.xlane.xlu0 %7259
  %v7261 = vmul.f32 %v7215, %v488
  %v7262 = vmul.f32 %v7218, %v488
  %v7263 = vmul.f32 %v7221, %v488
  %v7264 = vmul.f32 %v7224, %v488
  %v7265 = vmul.f32 %v7227, %v488
  %v7266 = vmul.f32 %v7230, %v488
  %v7267 = vmul.f32 %v7233, %v488
  %v7268 = vmul.f32 %v7236, %v488
  %v7269 = vmul.f32 %v7239, %v488
  %v7270 = vmul.f32 %v7242, %v488
  %v7271 = vmul.f32 %v7245, %v488
  %v7272 = vmul.f32 %v7248, %v488
  %v7273 = vmul.f32 %v7251, %v488
  %v7274 = vmul.f32 %v7254, %v488
  %v7275 = vmul.f32 %v7257, %v488
  %v7276 = vmul.f32 %v7260, %v488
  %v7277 = vsub.f32 %v7197, %v7261
  %v7278 = vsub.f32 %v7198, %v7262
  %v7279 = vsub.f32 %v7199, %v7263
  %v7280 = vsub.f32 %v7200, %v7264
  %v7281 = vsub.f32 %v7201, %v7265
  %v7282 = vsub.f32 %v7202, %v7266
  %v7283 = vsub.f32 %v7203, %v7267
  %v7284 = vsub.f32 %v7204, %v7268
  %v7285 = vsub.f32 %v7205, %v7269
  %v7286 = vsub.f32 %v7206, %v7270
  %v7287 = vsub.f32 %v7207, %v7271
  %v7288 = vsub.f32 %v7208, %v7272
  %v7289 = vsub.f32 %v7209, %v7273
  %v7290 = vsub.f32 %v7210, %v7274
  %v7291 = vsub.f32 %v7211, %v7275
  %v7292 = vsub.f32 %v7212, %v7276
  %v7293 = vmul.f32 %v7277, %v7277
  %v7294 = vmul.f32 %v7278, %v7278
  %v7295 = vmul.f32 %v7279, %v7279
  %v7296 = vmul.f32 %v7280, %v7280
  %v7297 = vmul.f32 %v7281, %v7281
  %v7298 = vmul.f32 %v7282, %v7282
  %v7299 = vmul.f32 %v7283, %v7283
  %v7300 = vmul.f32 %v7284, %v7284
  %v7301 = vmul.f32 %v7285, %v7285
  %v7302 = vmul.f32 %v7286, %v7286
  %v7303 = vmul.f32 %v7287, %v7287
  %v7304 = vmul.f32 %v7288, %v7288
  %v7305 = vmul.f32 %v7289, %v7289
  %v7306 = vmul.f32 %v7290, %v7290
  %v7307 = vmul.f32 %v7291, %v7291
  %v7308 = vmul.f32 %v7292, %v7292
  %v7309 = vsel %vm439, %v7293, 0.0
  %7310 = vadd.xlane.f32.xlu0 %v7309
  %v7311 = vpop.xlane.xlu0 %7310
  %v7312 = vsel %vm439, %v7294, 0.0
  %7313 = vadd.xlane.f32.xlu0 %v7312
  %v7314 = vpop.xlane.xlu0 %7313
  %v7315 = vsel %vm439, %v7295, 0.0
  %7316 = vadd.xlane.f32.xlu0 %v7315
  %v7317 = vpop.xlane.xlu0 %7316
  %v7318 = vsel %vm439, %v7296, 0.0
  %7319 = vadd.xlane.f32.xlu0 %v7318
  %v7320 = vpop.xlane.xlu0 %7319
  %v7321 = vsel %vm439, %v7297, 0.0
  %7322 = vadd.xlane.f32.xlu0 %v7321
  %v7323 = vpop.xlane.xlu0 %7322
  %v7324 = vsel %vm439, %v7298, 0.0
  %7325 = vadd.xlane.f32.xlu0 %v7324
  %v7326 = vpop.xlane.xlu0 %7325
  %v7327 = vsel %vm439, %v7299, 0.0
  %7328 = vadd.xlane.f32.xlu0 %v7327
  %v7329 = vpop.xlane.xlu0 %7328
  %v7330 = vsel %vm439, %v7300, 0.0
  %7331 = vadd.xlane.f32.xlu0 %v7330
  %v7332 = vpop.xlane.xlu0 %7331
  %v7333 = vsel %vm439, %v7301, 0.0
  %7334 = vadd.xlane.f32.xlu0 %v7333
  %v7335 = vpop.xlane.xlu0 %7334
  %v7336 = vsel %vm439, %v7302, 0.0
  %7337 = vadd.xlane.f32.xlu0 %v7336
  %v7338 = vpop.xlane.xlu0 %7337
  %v7339 = vsel %vm439, %v7303, 0.0
  %7340 = vadd.xlane.f32.xlu0 %v7339
  %v7341 = vpop.xlane.xlu0 %7340
  %v7342 = vsel %vm439, %v7304, 0.0
  %7343 = vadd.xlane.f32.xlu0 %v7342
  %v7344 = vpop.xlane.xlu0 %7343
  %v7345 = vsel %vm439, %v7305, 0.0
  %7346 = vadd.xlane.f32.xlu0 %v7345
  %v7347 = vpop.xlane.xlu0 %7346
  %v7348 = vsel %vm439, %v7306, 0.0
  %7349 = vadd.xlane.f32.xlu0 %v7348
  %v7350 = vpop.xlane.xlu0 %7349
  %v7351 = vsel %vm439, %v7307, 0.0
  %7352 = vadd.xlane.f32.xlu0 %v7351
  %v7353 = vpop.xlane.xlu0 %7352
  %v7354 = vsel %vm439, %v7308, 0.0
  %7355 = vadd.xlane.f32.xlu0 %v7354
  %v7356 = vpop.xlane.xlu0 %7355
  %v7357 = vmul.f32 %v7311, %v488
  %v7358 = vmul.f32 %v7314, %v488
  %v7359 = vmul.f32 %v7317, %v488
  %v7360 = vmul.f32 %v7320, %v488
  %v7361 = vmul.f32 %v7323, %v488
  %v7362 = vmul.f32 %v7326, %v488
  %v7363 = vmul.f32 %v7329, %v488
  %v7364 = vmul.f32 %v7332, %v488
  %v7365 = vmul.f32 %v7335, %v488
  %v7366 = vmul.f32 %v7338, %v488
  %v7367 = vmul.f32 %v7341, %v488
  %v7368 = vmul.f32 %v7344, %v488
  %v7369 = vmul.f32 %v7347, %v488
  %v7370 = vmul.f32 %v7350, %v488
  %v7371 = vmul.f32 %v7353, %v488
  %v7372 = vmul.f32 %v7356, %v488
  %v7373 = vadd.f32 %v7357, 1e-05
  %v7374 = vadd.f32 %v7358, 1e-05
  %v7375 = vadd.f32 %v7359, 1e-05
  %v7376 = vadd.f32 %v7360, 1e-05
  %v7377 = vadd.f32 %v7361, 1e-05
  %v7378 = vadd.f32 %v7362, 1e-05
  %v7379 = vadd.f32 %v7363, 1e-05
  %v7380 = vadd.f32 %v7364, 1e-05
  %v7381 = vadd.f32 %v7365, 1e-05
  %v7382 = vadd.f32 %v7366, 1e-05
  %v7383 = vadd.f32 %v7367, 1e-05
  %v7384 = vadd.f32 %v7368, 1e-05
  %v7385 = vadd.f32 %v7369, 1e-05
  %v7386 = vadd.f32 %v7370, 1e-05
  %v7387 = vadd.f32 %v7371, 1e-05
  %v7388 = vadd.f32 %v7372, 1e-05
  %v7389 = vrsqrt.pop %v7373
  %v7390 = vrsqrt.pop %v7374
  %v7391 = vrsqrt.pop %v7375
  %v7392 = vrsqrt.pop %v7376
  %v7393 = vrsqrt.pop %v7377
  %v7394 = vrsqrt.pop %v7378
  %v7395 = vrsqrt.pop %v7379
  %v7396 = vrsqrt.pop %v7380
  %v7397 = vrsqrt.pop %v7381
  %v7398 = vrsqrt.pop %v7382
  %v7399 = vrsqrt.pop %v7383
  %v7400 = vrsqrt.pop %v7384
  %v7401 = vrsqrt.pop %v7385
  %v7402 = vrsqrt.pop %v7386
  %v7403 = vrsqrt.pop %v7387
  %v7404 = vrsqrt.pop %v7388
  %v7405 = vmul.f32 %v7277, %v7389
  %v7406 = vmul.f32 %v7278, %v7390
  %v7407 = vmul.f32 %v7279, %v7391
  %v7408 = vmul.f32 %v7280, %v7392
  %v7409 = vmul.f32 %v7281, %v7393
  %v7410 = vmul.f32 %v7282, %v7394
  %v7411 = vmul.f32 %v7283, %v7395
  %v7412 = vmul.f32 %v7284, %v7396
  %v7413 = vmul.f32 %v7285, %v7397
  %v7414 = vmul.f32 %v7286, %v7398
  %v7415 = vmul.f32 %v7287, %v7399
  %v7416 = vmul.f32 %v7288, %v7400
  %v7417 = vmul.f32 %v7289, %v7401
  %v7418 = vmul.f32 %v7290, %v7402
  %v7419 = vmul.f32 %v7291, %v7403
  %v7420 = vmul.f32 %v7292, %v7404
  %v7421 = vlaneseq
  %v7422 = vshrl.u32 %v7421, 7
  %v7423 = vsub.s32 0, %v7422
  %v7424 = vrot.slane %v4388, %v7423
  %v7425 = vmul.f32 %v7405, %v7424
  %v7426 = vmul.f32 %v7406, %v7424
  %v7427 = vmul.f32 %v7407, %v7424
  %v7428 = vmul.f32 %v7408, %v7424
  %v7429 = vmul.f32 %v7409, %v7424
  %v7430 = vmul.f32 %v7410, %v7424
  %v7431 = vmul.f32 %v7411, %v7424
  %v7432 = vmul.f32 %v7412, %v7424
  %v7433 = vmul.f32 %v7413, %v7424
  %v7434 = vmul.f32 %v7414, %v7424
  %v7435 = vmul.f32 %v7415, %v7424
  %v7436 = vmul.f32 %v7416, %v7424
  %v7437 = vmul.f32 %v7417, %v7424
  %v7438 = vmul.f32 %v7418, %v7424
  %v7439 = vmul.f32 %v7419, %v7424
  %v7440 = vmul.f32 %v7420, %v7424
  %7445 = vrot.lane.b32.xlu0 %v4393, 96
  %v7446 = vpop.permute.xlu0 %7445
  %7447 = vrot.lane.b32.xlu0 %v4394, 96
  %v7448 = vpop.permute.xlu0 %7447
  %7449 = vrot.lane.b32.xlu0 %v4395, 96
  %v7450 = vpop.permute.xlu0 %7449
  %7451 = vrot.lane.b32.xlu0 %v4396, 96
  %v7452 = vpop.permute.xlu0 %7451
  %v7458 = vsel %vm439, %v7425, 0
  %v7461 = vsel %vm439, %v7426, 0
  %v7464 = vsel %vm439, %v7427, 0
  %v7467 = vsel %vm439, %v7428, 0
  %v7470 = vsel %vm439, %v7429, 0
  %v7473 = vsel %vm439, %v7430, 0
  %v7476 = vsel %vm439, %v7431, 0
  %v7479 = vsel %vm439, %v7432, 0
  %v7482 = vsel %vm439, %v7433, 0
  %v7485 = vsel %vm439, %v7434, 0
  %v7488 = vsel %vm439, %v7435, 0
  %v7491 = vsel %vm439, %v7436, 0
  %v7494 = vsel %vm439, %v7437, 0
  %v7497 = vsel %vm439, %v7438, 0
  %v7500 = vsel %vm439, %v7439, 0
  %v7503 = vsel %vm439, %v7440, 0
  %7505 = vmatprep.subr.mxu0 0.0
  %7506 = vmatpush1.msra.mxu0 %v7446
  %7507 = vmatprep.subr.mxu0 0.0
  %7508 = vmatpush1.msra.mxu0 %v7448
  %7509 = vmatprep.subr.mxu0 0.0
  %7510 = vmatpush1.msra.mxu0 %v7450
  %7511 = vmatprep.subr.mxu0 0.0
  %7512 = vmatpush1.msra.mxu0 %v7452
  %7513 = vmatprep.subr.mxu0 0.0
  %7514 = vmatpush1.msra.mxu0 0.0
  %7515 = vmatprep.subr.mxu0 0.0
  %7516 = vmatpush1.msra.mxu0 0.0
  %7517 = vmatprep.subr.mxu0 0.0
  %7518 = vmatpush1.msra.mxu0 0.0
  %7519 = vmatprep.subr.mxu0 0.0
  %7520 = vmatpush1.msra.mxu0 0.0
  %7521 = vmatprep.subr.mxu0 0.0
  %7522 = vmatpush1.msra.mxu0 0.0
  %7523 = vmatprep.subr.mxu0 0.0
  %7524 = vmatpush1.msra.mxu0 0.0
  %7525 = vmatprep.subr.mxu0 0.0
  %7526 = vmatpush1.msra.mxu0 0.0
  %7527 = vmatprep.subr.mxu0 0.0
  %7528 = vmatpush1.msra.mxu0 0.0
  %7529 = vmatprep.subr.mxu0 0.0
  %7530 = vmatpush1.msra.mxu0 0.0
  %7531 = vmatprep.subr.mxu0 0.0
  %7532 = vmatpush1.msra.mxu0 0.0
  %7533 = vmatprep.subr.mxu0 0.0
  %7534 = vmatpush1.msra.mxu0 0.0
  %7535 = vmatprep.subr.mxu0 0.0
  %7536 = vmatpush1.msra.mxu0 0.0
  %7537 = vmatprep.subr.mxu0 0.0
  %7538 = vmatpush1.msra.mxu0 0.0
  %7539 = vmatprep.subr.mxu0 0.0
  %7540 = vmatpush1.msra.mxu0 0.0
  %7541 = vmatprep.subr.mxu0 0.0
  %7542 = vmatpush1.msra.mxu0 0.0
  %7543 = vmatprep.subr.mxu0 0.0
  %7544 = vmatpush1.msra.mxu0 0.0
  %7545 = vmatprep.subr.mxu0 0.0
  %7546 = vmatpush1.msra.mxu0 0.0
  %7547 = vmatprep.subr.mxu0 0.0
  %7548 = vmatpush1.msra.mxu0 0.0
  %7549 = vmatprep.subr.mxu0 0.0
  %7550 = vmatpush1.msra.mxu0 0.0
  %7551 = vmatprep.subr.mxu0 0.0
  %7552 = vmatpush1.msra.mxu0 0.0
  %7553 = vmatprep.subr.mxu0 0.0
  %7554 = vmatpush1.msra.mxu0 0.0
  %7555 = vmatprep.subr.mxu0 0.0
  %7556 = vmatpush1.msra.mxu0 0.0
  %7557 = vmatprep.subr.mxu0 0.0
  %7558 = vmatpush1.msra.mxu0 0.0
  %7559 = vmatprep.subr.mxu0 0.0
  %7560 = vmatpush1.msra.mxu0 0.0
  %7561 = vmatprep.subr.mxu0 0.0
  %7562 = vmatpush1.msra.mxu0 0.0
  %7563 = vmatprep.subr.mxu0 0.0
  %7564 = vmatpush1.msra.mxu0 0.0
  %7565 = vmatprep.subr.mxu0 0.0
  %7566 = vmatpush1.msra.mxu0 0.0
  %7567 = vmatprep.subr.mxu0 0.0
  %7568 = vmatpush1.msra.mxu0 0.0
  %7569 = vmatprep.mubr.f32.mxu0 0.0
  %7570 = vmatmul.mubr.f32.gmra.mrb[0].mxu0 %v7458
  %v7571 = vpop.f32.mrb[0].mxu0
  %v7572 = vadd.f32 0.0, %v7571
  %v7573 = vpop.f32.mrb[0].mxu0
  %7574 = vmatprep.mubr.f32.mxu0 0.0
  %7575 = vmatmul.mubr.f32.gmra.mrb[0].mxu0 %v7461
  %v7576 = vpop.f32.mrb[0].mxu0
  %v7577 = vadd.f32 0.0, %v7576
  %v7578 = vpop.f32.mrb[0].mxu0
  %7579 = vmatprep.mubr.f32.mxu0 0.0
  %7580 = vmatmul.mubr.f32.gmra.mrb[0].mxu0 %v7464
  %v7581 = vpop.f32.mrb[0].mxu0
  %v7582 = vadd.f32 0.0, %v7581
  %v7583 = vpop.f32.mrb[0].mxu0
  %7584 = vmatprep.mubr.f32.mxu0 0.0
  %7585 = vmatmul.mubr.f32.gmra.mrb[0].mxu0 %v7467
  %v7586 = vpop.f32.mrb[0].mxu0
  %v7587 = vadd.f32 0.0, %v7586
  %v7588 = vpop.f32.mrb[0].mxu0
  %7589 = vmatprep.mubr.f32.mxu0 0.0
  %7590 = vmatmul.mubr.f32.gmra.mrb[0].mxu0 %v7470
  %v7591 = vpop.f32.mrb[0].mxu0
  %v7592 = vadd.f32 0.0, %v7591
  %v7593 = vpop.f32.mrb[0].mxu0
  %7594 = vmatprep.mubr.f32.mxu0 0.0
  %7595 = vmatmul.mubr.f32.gmra.mrb[0].mxu0 %v7473
  %v7596 = vpop.f32.mrb[0].mxu0
  %v7597 = vadd.f32 0.0, %v7596
  %v7598 = vpop.f32.mrb[0].mxu0
  %7599 = vmatprep.mubr.f32.mxu0 0.0
  %7600 = vmatmul.mubr.f32.gmra.mrb[0].mxu0 %v7476
  %v7601 = vpop.f32.mrb[0].mxu0
  %v7602 = vadd.f32 0.0, %v7601
  %v7603 = vpop.f32.mrb[0].mxu0
  %7604 = vmatprep.mubr.f32.mxu0 0.0
  %7605 = vmatmul.mubr.f32.gmra.mrb[0].mxu0 %v7479
  %v7606 = vpop.f32.mrb[0].mxu0
  %v7607 = vadd.f32 0.0, %v7606
  %v7608 = vpop.f32.mrb[0].mxu0
  %7609 = vmatprep.mubr.f32.mxu0 0.0
  %7610 = vmatmul.mubr.f32.gmra.mrb[0].mxu0 %v7482
  %v7611 = vpop.f32.mrb[0].mxu0
  %v7612 = vadd.f32 0.0, %v7611
  %v7613 = vpop.f32.mrb[0].mxu0
  %7614 = vmatprep.mubr.f32.mxu0 0.0
  %7615 = vmatmul.mubr.f32.gmra.mrb[0].mxu0 %v7485
  %v7616 = vpop.f32.mrb[0].mxu0
  %v7617 = vadd.f32 0.0, %v7616
  %v7618 = vpop.f32.mrb[0].mxu0
  %7619 = vmatprep.mubr.f32.mxu0 0.0
  %7620 = vmatmul.mubr.f32.gmra.mrb[0].mxu0 %v7488
  %v7621 = vpop.f32.mrb[0].mxu0
  %v7622 = vadd.f32 0.0, %v7621
  %v7623 = vpop.f32.mrb[0].mxu0
  %7624 = vmatprep.mubr.f32.mxu0 0.0
  %7625 = vmatmul.mubr.f32.gmra.mrb[0].mxu0 %v7491
  %v7626 = vpop.f32.mrb[0].mxu0
  %v7627 = vadd.f32 0.0, %v7626
  %v7628 = vpop.f32.mrb[0].mxu0
  %7629 = vmatprep.mubr.f32.mxu0 0.0
  %7630 = vmatmul.mubr.f32.gmra.mrb[0].mxu0 %v7494
  %v7631 = vpop.f32.mrb[0].mxu0
  %v7632 = vadd.f32 0.0, %v7631
  %v7633 = vpop.f32.mrb[0].mxu0
  %7634 = vmatprep.mubr.f32.mxu0 0.0
  %7635 = vmatmul.mubr.f32.gmra.mrb[0].mxu0 %v7497
  %v7636 = vpop.f32.mrb[0].mxu0
  %v7637 = vadd.f32 0.0, %v7636
  %v7638 = vpop.f32.mrb[0].mxu0
  %7639 = vmatprep.mubr.f32.mxu0 0.0
  %7640 = vmatmul.mubr.f32.gmra.mrb[0].mxu0 %v7500
  %v7641 = vpop.f32.mrb[0].mxu0
  %v7642 = vadd.f32 0.0, %v7641
  %v7643 = vpop.f32.mrb[0].mxu0
  %7644 = vmatprep.mubr.f32.mxu0 0.0
  %7645 = vmatmul.mubr.f32.gmra.mrb[0].mxu0 %v7503
  %v7646 = vpop.f32.mrb[0].mxu0
  %v7647 = vadd.f32 0.0, %v7646
  %v7648 = vpop.f32.mrb[0].mxu0
  %7649 = vdwg.mxu0
  %v7650 = vmul.f32 %v7572, 0.5
  %v7651 = vmul.f32 %v7577, 0.5
  %v7652 = vmul.f32 %v7582, 0.5
  %v7653 = vmul.f32 %v7587, 0.5
  %v7654 = vmul.f32 %v7592, 0.5
  %v7655 = vmul.f32 %v7597, 0.5
  %v7656 = vmul.f32 %v7602, 0.5
  %v7657 = vmul.f32 %v7607, 0.5
  %v7658 = vmul.f32 %v7612, 0.5
  %v7659 = vmul.f32 %v7617, 0.5
  %v7660 = vmul.f32 %v7622, 0.5
  %v7661 = vmul.f32 %v7627, 0.5
  %v7662 = vmul.f32 %v7632, 0.5
  %v7663 = vmul.f32 %v7637, 0.5
  %v7664 = vmul.f32 %v7642, 0.5
  %v7665 = vmul.f32 %v7647, 0.5
  %v7666 = vmul.f32 %v7572, 0.70710677
  %v7667 = vmul.f32 %v7577, 0.70710677
  %v7668 = vmul.f32 %v7582, 0.70710677
  %v7669 = vmul.f32 %v7587, 0.70710677
  %v7670 = vmul.f32 %v7592, 0.70710677
  %v7671 = vmul.f32 %v7597, 0.70710677
  %v7672 = vmul.f32 %v7602, 0.70710677
  %v7673 = vmul.f32 %v7607, 0.70710677
  %v7674 = vmul.f32 %v7612, 0.70710677
  %v7675 = vmul.f32 %v7617, 0.70710677
  %v7676 = vmul.f32 %v7622, 0.70710677
  %v7677 = vmul.f32 %v7627, 0.70710677
  %v7678 = vmul.f32 %v7632, 0.70710677
  %v7679 = vmul.f32 %v7637, 0.70710677
  %v7680 = vmul.f32 %v7642, 0.70710677
  %v7681 = vmul.f32 %v7647, 0.70710677
  %vm7682 = vcmp.ge.f32.partialorder %v7666, 0.0
  %vm7683 = vcmp.ge.f32.partialorder %v7667, 0.0
  %vm7684 = vcmp.ge.f32.partialorder %v7668, 0.0
  %vm7685 = vcmp.ge.f32.partialorder %v7669, 0.0
  %vm7686 = vcmp.ge.f32.partialorder %v7670, 0.0
  %vm7687 = vcmp.ge.f32.partialorder %v7671, 0.0
  %vm7688 = vcmp.ge.f32.partialorder %v7672, 0.0
  %vm7689 = vcmp.ge.f32.partialorder %v7673, 0.0
  %vm7690 = vcmp.ge.f32.partialorder %v7674, 0.0
  %vm7691 = vcmp.ge.f32.partialorder %v7675, 0.0
  %vm7692 = vcmp.ge.f32.partialorder %v7676, 0.0
  %vm7693 = vcmp.ge.f32.partialorder %v7677, 0.0
  %vm7694 = vcmp.ge.f32.partialorder %v7678, 0.0
  %vm7695 = vcmp.ge.f32.partialorder %v7679, 0.0
  %vm7696 = vcmp.ge.f32.partialorder %v7680, 0.0
  %vm7697 = vcmp.ge.f32.partialorder %v7681, 0.0
  %v7698 = vsel %vm7682, 1.0, -1.0
  %v7699 = vsel %vm7683, 1.0, -1.0
  %v7700 = vsel %vm7684, 1.0, -1.0
  %v7701 = vsel %vm7685, 1.0, -1.0
  %v7702 = vsel %vm7686, 1.0, -1.0
  %v7703 = vsel %vm7687, 1.0, -1.0
  %v7704 = vsel %vm7688, 1.0, -1.0
  %v7705 = vsel %vm7689, 1.0, -1.0
  %v7706 = vsel %vm7690, 1.0, -1.0
  %v7707 = vsel %vm7691, 1.0, -1.0
  %v7708 = vsel %vm7692, 1.0, -1.0
  %v7709 = vsel %vm7693, 1.0, -1.0
  %v7710 = vsel %vm7694, 1.0, -1.0
  %v7711 = vsel %vm7695, 1.0, -1.0
  %v7712 = vsel %vm7696, 1.0, -1.0
  %v7713 = vsel %vm7697, 1.0, -1.0
  %v7714 = vand.u32 2147483647, %v7666
  %v7715 = vand.u32 2147483647, %v7667
  %v7716 = vand.u32 2147483647, %v7668
  %v7717 = vand.u32 2147483647, %v7669
  %v7718 = vand.u32 2147483647, %v7670
  %v7719 = vand.u32 2147483647, %v7671
  %v7720 = vand.u32 2147483647, %v7672
  %v7721 = vand.u32 2147483647, %v7673
  %v7722 = vand.u32 2147483647, %v7674
  %v7723 = vand.u32 2147483647, %v7675
  %v7724 = vand.u32 2147483647, %v7676
  %v7725 = vand.u32 2147483647, %v7677
  %v7726 = vand.u32 2147483647, %v7678
  %v7727 = vand.u32 2147483647, %v7679
  %v7728 = vand.u32 2147483647, %v7680
  %v7729 = vand.u32 2147483647, %v7681
  %v7730 = vmul.f32 %v7714, 0.3275911
  %v7731 = vmul.f32 %v7715, 0.3275911
  %v7732 = vmul.f32 %v7716, 0.3275911
  %v7733 = vmul.f32 %v7717, 0.3275911
  %v7734 = vmul.f32 %v7718, 0.3275911
  %v7735 = vmul.f32 %v7719, 0.3275911
  %v7736 = vmul.f32 %v7720, 0.3275911
  %v7737 = vmul.f32 %v7721, 0.3275911
  %v7738 = vmul.f32 %v7722, 0.3275911
  %v7739 = vmul.f32 %v7723, 0.3275911
  %v7740 = vmul.f32 %v7724, 0.3275911
  %v7741 = vmul.f32 %v7725, 0.3275911
  %v7742 = vmul.f32 %v7726, 0.3275911
  %v7743 = vmul.f32 %v7727, 0.3275911
  %v7744 = vmul.f32 %v7728, 0.3275911
  %v7745 = vmul.f32 %v7729, 0.3275911
  %v7746 = vadd.f32 %v7730, 1.0
  %v7747 = vadd.f32 %v7731, 1.0
  %v7748 = vadd.f32 %v7732, 1.0
  %v7749 = vadd.f32 %v7733, 1.0
  %v7750 = vadd.f32 %v7734, 1.0
  %v7751 = vadd.f32 %v7735, 1.0
  %v7752 = vadd.f32 %v7736, 1.0
  %v7753 = vadd.f32 %v7737, 1.0
  %v7754 = vadd.f32 %v7738, 1.0
  %v7755 = vadd.f32 %v7739, 1.0
  %v7756 = vadd.f32 %v7740, 1.0
  %v7757 = vadd.f32 %v7741, 1.0
  %v7758 = vadd.f32 %v7742, 1.0
  %v7759 = vadd.f32 %v7743, 1.0
  %v7760 = vadd.f32 %v7744, 1.0
  %v7761 = vadd.f32 %v7745, 1.0
  %v7762 = vrcp.pop %v7746
  %v7763 = vrcp.pop %v7747
  %v7764 = vrcp.pop %v7748
  %v7765 = vrcp.pop %v7749
  %v7766 = vrcp.pop %v7750
  %v7767 = vrcp.pop %v7751
  %v7768 = vrcp.pop %v7752
  %v7769 = vrcp.pop %v7753
  %v7770 = vrcp.pop %v7754
  %v7771 = vrcp.pop %v7755
  %v7772 = vrcp.pop %v7756
  %v7773 = vrcp.pop %v7757
  %v7774 = vrcp.pop %v7758
  %v7775 = vrcp.pop %v7759
  %v7776 = vrcp.pop %v7760
  %v7777 = vrcp.pop %v7761
  %v7778 = vmul.f32 %v7746, %v7762
  %v7779 = vmul.f32 %v7747, %v7763
  %v7780 = vmul.f32 %v7748, %v7764
  %v7781 = vmul.f32 %v7749, %v7765
  %v7782 = vmul.f32 %v7750, %v7766
  %v7783 = vmul.f32 %v7751, %v7767
  %v7784 = vmul.f32 %v7752, %v7768
  %v7785 = vmul.f32 %v7753, %v7769
  %v7786 = vmul.f32 %v7754, %v7770
  %v7787 = vmul.f32 %v7755, %v7771
  %v7788 = vmul.f32 %v7756, %v7772
  %v7789 = vmul.f32 %v7757, %v7773
  %v7790 = vmul.f32 %v7758, %v7774
  %v7791 = vmul.f32 %v7759, %v7775
  %v7792 = vmul.f32 %v7760, %v7776
  %v7793 = vmul.f32 %v7761, %v7777
  %v7794 = vsub.f32 2.0, %v7778
  %v7795 = vsub.f32 2.0, %v7779
  %v7796 = vsub.f32 2.0, %v7780
  %v7797 = vsub.f32 2.0, %v7781
  %v7798 = vsub.f32 2.0, %v7782
  %v7799 = vsub.f32 2.0, %v7783
  %v7800 = vsub.f32 2.0, %v7784
  %v7801 = vsub.f32 2.0, %v7785
  %v7802 = vsub.f32 2.0, %v7786
  %v7803 = vsub.f32 2.0, %v7787
  %v7804 = vsub.f32 2.0, %v7788
  %v7805 = vsub.f32 2.0, %v7789
  %v7806 = vsub.f32 2.0, %v7790
  %v7807 = vsub.f32 2.0, %v7791
  %v7808 = vsub.f32 2.0, %v7792
  %v7809 = vsub.f32 2.0, %v7793
  %v7810 = vmul.f32 %v7762, %v7794
  %v7811 = vmul.f32 %v7763, %v7795
  %v7812 = vmul.f32 %v7764, %v7796
  %v7813 = vmul.f32 %v7765, %v7797
  %v7814 = vmul.f32 %v7766, %v7798
  %v7815 = vmul.f32 %v7767, %v7799
  %v7816 = vmul.f32 %v7768, %v7800
  %v7817 = vmul.f32 %v7769, %v7801
  %v7818 = vmul.f32 %v7770, %v7802
  %v7819 = vmul.f32 %v7771, %v7803
  %v7820 = vmul.f32 %v7772, %v7804
  %v7821 = vmul.f32 %v7773, %v7805
  %v7822 = vmul.f32 %v7774, %v7806
  %v7823 = vmul.f32 %v7775, %v7807
  %v7824 = vmul.f32 %v7776, %v7808
  %v7825 = vmul.f32 %v7777, %v7809
  %v7826 = vmul.f32 %v7810, 1.0614054
  %v7827 = vmul.f32 %v7811, 1.0614054
  %v7828 = vmul.f32 %v7812, 1.0614054
  %v7829 = vmul.f32 %v7813, 1.0614054
  %v7830 = vmul.f32 %v7814, 1.0614054
  %v7831 = vmul.f32 %v7815, 1.0614054
  %v7832 = vmul.f32 %v7816, 1.0614054
  %v7833 = vmul.f32 %v7817, 1.0614054
  %v7834 = vmul.f32 %v7818, 1.0614054
  %v7835 = vmul.f32 %v7819, 1.0614054
  %v7836 = vmul.f32 %v7820, 1.0614054
  %v7837 = vmul.f32 %v7821, 1.0614054
  %v7838 = vmul.f32 %v7822, 1.0614054
  %v7839 = vmul.f32 %v7823, 1.0614054
  %v7840 = vmul.f32 %v7824, 1.0614054
  %v7841 = vmul.f32 %v7825, 1.0614054
  %v7842 = vadd.f32 %v7826, -1.4531521
  %v7843 = vadd.f32 %v7827, -1.4531521
  %v7844 = vadd.f32 %v7828, -1.4531521
  %v7845 = vadd.f32 %v7829, -1.4531521
  %v7846 = vadd.f32 %v7830, -1.4531521
  %v7847 = vadd.f32 %v7831, -1.4531521
  %v7848 = vadd.f32 %v7832, -1.4531521
  %v7849 = vadd.f32 %v7833, -1.4531521
  %v7850 = vadd.f32 %v7834, -1.4531521
  %v7851 = vadd.f32 %v7835, -1.4531521
  %v7852 = vadd.f32 %v7836, -1.4531521
  %v7853 = vadd.f32 %v7837, -1.4531521
  %v7854 = vadd.f32 %v7838, -1.4531521
  %v7855 = vadd.f32 %v7839, -1.4531521
  %v7856 = vadd.f32 %v7840, -1.4531521
  %v7857 = vadd.f32 %v7841, -1.4531521
  %v7858 = vmul.f32 %v7842, %v7810
  %v7859 = vmul.f32 %v7843, %v7811
  %v7860 = vmul.f32 %v7844, %v7812
  %v7861 = vmul.f32 %v7845, %v7813
  %v7862 = vmul.f32 %v7846, %v7814
  %v7863 = vmul.f32 %v7847, %v7815
  %v7864 = vmul.f32 %v7848, %v7816
  %v7865 = vmul.f32 %v7849, %v7817
  %v7866 = vmul.f32 %v7850, %v7818
  %v7867 = vmul.f32 %v7851, %v7819
  %v7868 = vmul.f32 %v7852, %v7820
  %v7869 = vmul.f32 %v7853, %v7821
  %v7870 = vmul.f32 %v7854, %v7822
  %v7871 = vmul.f32 %v7855, %v7823
  %v7872 = vmul.f32 %v7856, %v7824
  %v7873 = vmul.f32 %v7857, %v7825
  %v7874 = vadd.f32 %v7858, 1.4214138
  %v7875 = vadd.f32 %v7859, 1.4214138
  %v7876 = vadd.f32 %v7860, 1.4214138
  %v7877 = vadd.f32 %v7861, 1.4214138
  %v7878 = vadd.f32 %v7862, 1.4214138
  %v7879 = vadd.f32 %v7863, 1.4214138
  %v7880 = vadd.f32 %v7864, 1.4214138
  %v7881 = vadd.f32 %v7865, 1.4214138
  %v7882 = vadd.f32 %v7866, 1.4214138
  %v7883 = vadd.f32 %v7867, 1.4214138
  %v7884 = vadd.f32 %v7868, 1.4214138
  %v7885 = vadd.f32 %v7869, 1.4214138
  %v7886 = vadd.f32 %v7870, 1.4214138
  %v7887 = vadd.f32 %v7871, 1.4214138
  %v7888 = vadd.f32 %v7872, 1.4214138
  %v7889 = vadd.f32 %v7873, 1.4214138
  %v7890 = vmul.f32 %v7874, %v7810
  %v7891 = vmul.f32 %v7875, %v7811
  %v7892 = vmul.f32 %v7876, %v7812
  %v7893 = vmul.f32 %v7877, %v7813
  %v7894 = vmul.f32 %v7878, %v7814
  %v7895 = vmul.f32 %v7879, %v7815
  %v7896 = vmul.f32 %v7880, %v7816
  %v7897 = vmul.f32 %v7881, %v7817
  %v7898 = vmul.f32 %v7882, %v7818
  %v7899 = vmul.f32 %v7883, %v7819
  %v7900 = vmul.f32 %v7884, %v7820
  %v7901 = vmul.f32 %v7885, %v7821
  %v7902 = vmul.f32 %v7886, %v7822
  %v7903 = vmul.f32 %v7887, %v7823
  %v7904 = vmul.f32 %v7888, %v7824
  %v7905 = vmul.f32 %v7889, %v7825
  %v7906 = vadd.f32 %v7890, -0.28449672
  %v7907 = vadd.f32 %v7891, -0.28449672
  %v7908 = vadd.f32 %v7892, -0.28449672
  %v7909 = vadd.f32 %v7893, -0.28449672
  %v7910 = vadd.f32 %v7894, -0.28449672
  %v7911 = vadd.f32 %v7895, -0.28449672
  %v7912 = vadd.f32 %v7896, -0.28449672
  %v7913 = vadd.f32 %v7897, -0.28449672
  %v7914 = vadd.f32 %v7898, -0.28449672
  %v7915 = vadd.f32 %v7899, -0.28449672
  %v7916 = vadd.f32 %v7900, -0.28449672
  %v7917 = vadd.f32 %v7901, -0.28449672
  %v7918 = vadd.f32 %v7902, -0.28449672
  %v7919 = vadd.f32 %v7903, -0.28449672
  %v7920 = vadd.f32 %v7904, -0.28449672
  %v7921 = vadd.f32 %v7905, -0.28449672
  %v7922 = vmul.f32 %v7906, %v7810
  %v7923 = vmul.f32 %v7907, %v7811
  %v7924 = vmul.f32 %v7908, %v7812
  %v7925 = vmul.f32 %v7909, %v7813
  %v7926 = vmul.f32 %v7910, %v7814
  %v7927 = vmul.f32 %v7911, %v7815
  %v7928 = vmul.f32 %v7912, %v7816
  %v7929 = vmul.f32 %v7913, %v7817
  %v7930 = vmul.f32 %v7914, %v7818
  %v7931 = vmul.f32 %v7915, %v7819
  %v7932 = vmul.f32 %v7916, %v7820
  %v7933 = vmul.f32 %v7917, %v7821
  %v7934 = vmul.f32 %v7918, %v7822
  %v7935 = vmul.f32 %v7919, %v7823
  %v7936 = vmul.f32 %v7920, %v7824
  %v7937 = vmul.f32 %v7921, %v7825
  %v7938 = vadd.f32 %v7922, 0.2548296
  %v7939 = vadd.f32 %v7923, 0.2548296
  %v7940 = vadd.f32 %v7924, 0.2548296
  %v7941 = vadd.f32 %v7925, 0.2548296
  %v7942 = vadd.f32 %v7926, 0.2548296
  %v7943 = vadd.f32 %v7927, 0.2548296
  %v7944 = vadd.f32 %v7928, 0.2548296
  %v7945 = vadd.f32 %v7929, 0.2548296
  %v7946 = vadd.f32 %v7930, 0.2548296
  %v7947 = vadd.f32 %v7931, 0.2548296
  %v7948 = vadd.f32 %v7932, 0.2548296
  %v7949 = vadd.f32 %v7933, 0.2548296
  %v7950 = vadd.f32 %v7934, 0.2548296
  %v7951 = vadd.f32 %v7935, 0.2548296
  %v7952 = vadd.f32 %v7936, 0.2548296
  %v7953 = vadd.f32 %v7937, 0.2548296
  %v7954 = vmul.f32 %v7938, %v7810
  %v7955 = vmul.f32 %v7939, %v7811
  %v7956 = vmul.f32 %v7940, %v7812
  %v7957 = vmul.f32 %v7941, %v7813
  %v7958 = vmul.f32 %v7942, %v7814
  %v7959 = vmul.f32 %v7943, %v7815
  %v7960 = vmul.f32 %v7944, %v7816
  %v7961 = vmul.f32 %v7945, %v7817
  %v7962 = vmul.f32 %v7946, %v7818
  %v7963 = vmul.f32 %v7947, %v7819
  %v7964 = vmul.f32 %v7948, %v7820
  %v7965 = vmul.f32 %v7949, %v7821
  %v7966 = vmul.f32 %v7950, %v7822
  %v7967 = vmul.f32 %v7951, %v7823
  %v7968 = vmul.f32 %v7952, %v7824
  %v7969 = vmul.f32 %v7953, %v7825
  %v7970 = vsub.f32 0.0, %v7714
  %v7971 = vsub.f32 0.0, %v7715
  %v7972 = vsub.f32 0.0, %v7716
  %v7973 = vsub.f32 0.0, %v7717
  %v7974 = vsub.f32 0.0, %v7718
  %v7975 = vsub.f32 0.0, %v7719
  %v7976 = vsub.f32 0.0, %v7720
  %v7977 = vsub.f32 0.0, %v7721
  %v7978 = vsub.f32 0.0, %v7722
  %v7979 = vsub.f32 0.0, %v7723
  %v7980 = vsub.f32 0.0, %v7724
  %v7981 = vsub.f32 0.0, %v7725
  %v7982 = vsub.f32 0.0, %v7726
  %v7983 = vsub.f32 0.0, %v7727
  %v7984 = vsub.f32 0.0, %v7728
  %v7985 = vsub.f32 0.0, %v7729
  %v7986 = vmul.f32 %v7970, %v7714
  %v7987 = vmul.f32 %v7971, %v7715
  %v7988 = vmul.f32 %v7972, %v7716
  %v7989 = vmul.f32 %v7973, %v7717
  %v7990 = vmul.f32 %v7974, %v7718
  %v7991 = vmul.f32 %v7975, %v7719
  %v7992 = vmul.f32 %v7976, %v7720
  %v7993 = vmul.f32 %v7977, %v7721
  %v7994 = vmul.f32 %v7978, %v7722
  %v7995 = vmul.f32 %v7979, %v7723
  %v7996 = vmul.f32 %v7980, %v7724
  %v7997 = vmul.f32 %v7981, %v7725
  %v7998 = vmul.f32 %v7982, %v7726
  %v7999 = vmul.f32 %v7983, %v7727
  %v8000 = vmul.f32 %v7984, %v7728
  %v8001 = vmul.f32 %v7985, %v7729
  %v8002 = vmul.f32 %v7986, 1.442695
  %v8003 = vpow.pop %v8002
  %v8004 = vmul.f32 %v7987, 1.442695
  %v8005 = vpow.pop %v8004
  %v8006 = vmul.f32 %v7988, 1.442695
  %v8007 = vpow.pop %v8006
  %v8008 = vmul.f32 %v7989, 1.442695
  %v8009 = vpow.pop %v8008
  %v8010 = vmul.f32 %v7990, 1.442695
  %v8011 = vpow.pop %v8010
  %v8012 = vmul.f32 %v7991, 1.442695
  %v8013 = vpow.pop %v8012
  %v8014 = vmul.f32 %v7992, 1.442695
  %v8015 = vpow.pop %v8014
  %v8016 = vmul.f32 %v7993, 1.442695
  %v8017 = vpow.pop %v8016
  %v8018 = vmul.f32 %v7994, 1.442695
  %v8019 = vpow.pop %v8018
  %v8020 = vmul.f32 %v7995, 1.442695
  %v8021 = vpow.pop %v8020
  %v8022 = vmul.f32 %v7996, 1.442695
  %v8023 = vpow.pop %v8022
  %v8024 = vmul.f32 %v7997, 1.442695
  %v8025 = vpow.pop %v8024
  %v8026 = vmul.f32 %v7998, 1.442695
  %v8027 = vpow.pop %v8026
  %v8028 = vmul.f32 %v7999, 1.442695
  %v8029 = vpow.pop %v8028
  %v8030 = vmul.f32 %v8000, 1.442695
  %v8031 = vpow.pop %v8030
  %v8032 = vmul.f32 %v8001, 1.442695
  %v8033 = vpow.pop %v8032
  %v8034 = vmul.f32 %v7954, %v8003
  %v8035 = vmul.f32 %v7955, %v8005
  %v8036 = vmul.f32 %v7956, %v8007
  %v8037 = vmul.f32 %v7957, %v8009
  %v8038 = vmul.f32 %v7958, %v8011
  %v8039 = vmul.f32 %v7959, %v8013
  %v8040 = vmul.f32 %v7960, %v8015
  %v8041 = vmul.f32 %v7961, %v8017
  %v8042 = vmul.f32 %v7962, %v8019
  %v8043 = vmul.f32 %v7963, %v8021
  %v8044 = vmul.f32 %v7964, %v8023
  %v8045 = vmul.f32 %v7965, %v8025
  %v8046 = vmul.f32 %v7966, %v8027
  %v8047 = vmul.f32 %v7967, %v8029
  %v8048 = vmul.f32 %v7968, %v8031
  %v8049 = vmul.f32 %v7969, %v8033
  %v8050 = vsub.f32 1.0, %v8034
  %v8051 = vsub.f32 1.0, %v8035
  %v8052 = vsub.f32 1.0, %v8036
  %v8053 = vsub.f32 1.0, %v8037
  %v8054 = vsub.f32 1.0, %v8038
  %v8055 = vsub.f32 1.0, %v8039
  %v8056 = vsub.f32 1.0, %v8040
  %v8057 = vsub.f32 1.0, %v8041
  %v8058 = vsub.f32 1.0, %v8042
  %v8059 = vsub.f32 1.0, %v8043
  %v8060 = vsub.f32 1.0, %v8044
  %v8061 = vsub.f32 1.0, %v8045
  %v8062 = vsub.f32 1.0, %v8046
  %v8063 = vsub.f32 1.0, %v8047
  %v8064 = vsub.f32 1.0, %v8048
  %v8065 = vsub.f32 1.0, %v8049
  %v8066 = vmul.f32 %v7698, %v8050
  %v8067 = vmul.f32 %v7699, %v8051
  %v8068 = vmul.f32 %v7700, %v8052
  %v8069 = vmul.f32 %v7701, %v8053
  %v8070 = vmul.f32 %v7702, %v8054
  %v8071 = vmul.f32 %v7703, %v8055
  %v8072 = vmul.f32 %v7704, %v8056
  %v8073 = vmul.f32 %v7705, %v8057
  %v8074 = vmul.f32 %v7706, %v8058
  %v8075 = vmul.f32 %v7707, %v8059
  %v8076 = vmul.f32 %v7708, %v8060
  %v8077 = vmul.f32 %v7709, %v8061
  %v8078 = vmul.f32 %v7710, %v8062
  %v8079 = vmul.f32 %v7711, %v8063
  %v8080 = vmul.f32 %v7712, %v8064
  %v8081 = vmul.f32 %v7713, %v8065
  %v8082 = vadd.f32 %v8066, 1.0
  %v8083 = vadd.f32 %v8067, 1.0
  %v8084 = vadd.f32 %v8068, 1.0
  %v8085 = vadd.f32 %v8069, 1.0
  %v8086 = vadd.f32 %v8070, 1.0
  %v8087 = vadd.f32 %v8071, 1.0
  %v8088 = vadd.f32 %v8072, 1.0
  %v8089 = vadd.f32 %v8073, 1.0
  %v8090 = vadd.f32 %v8074, 1.0
  %v8091 = vadd.f32 %v8075, 1.0
  %v8092 = vadd.f32 %v8076, 1.0
  %v8093 = vadd.f32 %v8077, 1.0
  %v8094 = vadd.f32 %v8078, 1.0
  %v8095 = vadd.f32 %v8079, 1.0
  %v8096 = vadd.f32 %v8080, 1.0
  %v8097 = vadd.f32 %v8081, 1.0
  %v8098 = vmul.f32 %v7650, %v8082
  %v8099 = vmul.f32 %v7651, %v8083
  %v8100 = vmul.f32 %v7652, %v8084
  %v8101 = vmul.f32 %v7653, %v8085
  %v8102 = vmul.f32 %v7654, %v8086
  %v8103 = vmul.f32 %v7655, %v8087
  %v8104 = vmul.f32 %v7656, %v8088
  %v8105 = vmul.f32 %v7657, %v8089
  %v8106 = vmul.f32 %v7658, %v8090
  %v8107 = vmul.f32 %v7659, %v8091
  %v8108 = vmul.f32 %v7660, %v8092
  %v8109 = vmul.f32 %v7661, %v8093
  %v8110 = vmul.f32 %v7662, %v8094
  %v8111 = vmul.f32 %v7663, %v8095
  %v8112 = vmul.f32 %v7664, %v8096
  %v8113 = vmul.f32 %v7665, %v8097
  %8122 = vrot.lane.b32.xlu0 %v4397, 32
  %v8123 = vpop.permute.xlu0 %8122
  %8124 = vrot.lane.b32.xlu0 %v4398, 32
  %v8125 = vpop.permute.xlu0 %8124
  %8126 = vrot.lane.b32.xlu0 %v4399, 32
  %v8127 = vpop.permute.xlu0 %8126
  %8128 = vrot.lane.b32.xlu0 %v4400, 32
  %v8129 = vpop.permute.xlu0 %8128
  %8130 = vrot.lane.b32.xlu0 %v4401, 32
  %v8131 = vpop.permute.xlu0 %8130
  %8132 = vrot.lane.b32.xlu0 %v4402, 32
  %v8133 = vpop.permute.xlu0 %8132
  %8134 = vrot.lane.b32.xlu0 %v4403, 32
  %v8135 = vpop.permute.xlu0 %8134
  %8136 = vrot.lane.b32.xlu0 %v4404, 32
  %v8137 = vpop.permute.xlu0 %8136
  %v8147 = vsel %vm55, %v8098, 0
  %v8150 = vsel %vm55, %v8099, 0
  %v8153 = vsel %vm55, %v8100, 0
  %v8156 = vsel %vm55, %v8101, 0
  %v8159 = vsel %vm55, %v8102, 0
  %v8162 = vsel %vm55, %v8103, 0
  %v8165 = vsel %vm55, %v8104, 0
  %v8168 = vsel %vm55, %v8105, 0
  %v8171 = vsel %vm55, %v8106, 0
  %v8174 = vsel %vm55, %v8107, 0
  %v8177 = vsel %vm55, %v8108, 0
  %v8180 = vsel %vm55, %v8109, 0
  %v8183 = vsel %vm55, %v8110, 0
  %v8186 = vsel %vm55, %v8111, 0
  %v8189 = vsel %vm55, %v8112, 0
  %v8192 = vsel %vm55, %v8113, 0
  %8194 = vmatprep.subr.mxu0 0.0
  %8195 = vmatpush1.msra.mxu0 %v8123
  %8196 = vmatprep.subr.mxu0 0.0
  %8197 = vmatpush1.msra.mxu0 %v8125
  %8198 = vmatprep.subr.mxu0 0.0
  %8199 = vmatpush1.msra.mxu0 %v8127
  %8200 = vmatprep.subr.mxu0 0.0
  %8201 = vmatpush1.msra.mxu0 %v8129
  %8202 = vmatprep.subr.mxu0 0.0
  %8203 = vmatpush1.msra.mxu0 %v8131
  %8204 = vmatprep.subr.mxu0 0.0
  %8205 = vmatpush1.msra.mxu0 %v8133
  %8206 = vmatprep.subr.mxu0 0.0
  %8207 = vmatpush1.msra.mxu0 %v8135
  %8208 = vmatprep.subr.mxu0 0.0
  %8209 = vmatpush1.msra.mxu0 %v8137
  %8210 = vmatprep.subr.mxu0 0.0
  %8211 = vmatpush1.msra.mxu0 0.0
  %8212 = vmatprep.subr.mxu0 0.0
  %8213 = vmatpush1.msra.mxu0 0.0
  %8214 = vmatprep.subr.mxu0 0.0
  %8215 = vmatpush1.msra.mxu0 0.0
  %8216 = vmatprep.subr.mxu0 0.0
  %8217 = vmatpush1.msra.mxu0 0.0
  %8218 = vmatprep.subr.mxu0 0.0
  %8219 = vmatpush1.msra.mxu0 0.0
  %8220 = vmatprep.subr.mxu0 0.0
  %8221 = vmatpush1.msra.mxu0 0.0
  %8222 = vmatprep.subr.mxu0 0.0
  %8223 = vmatpush1.msra.mxu0 0.0
  %8224 = vmatprep.subr.mxu0 0.0
  %8225 = vmatpush1.msra.mxu0 0.0
  %8226 = vmatprep.subr.mxu0 0.0
  %8227 = vmatpush1.msra.mxu0 0.0
  %8228 = vmatprep.subr.mxu0 0.0
  %8229 = vmatpush1.msra.mxu0 0.0
  %8230 = vmatprep.subr.mxu0 0.0
  %8231 = vmatpush1.msra.mxu0 0.0
  %8232 = vmatprep.subr.mxu0 0.0
  %8233 = vmatpush1.msra.mxu0 0.0
  %8234 = vmatprep.subr.mxu0 0.0
  %8235 = vmatpush1.msra.mxu0 0.0
  %8236 = vmatprep.subr.mxu0 0.0
  %8237 = vmatpush1.msra.mxu0 0.0
  %8238 = vmatprep.subr.mxu0 0.0
  %8239 = vmatpush1.msra.mxu0 0.0
  %8240 = vmatprep.subr.mxu0 0.0
  %8241 = vmatpush1.msra.mxu0 0.0
  %8242 = vmatprep.subr.mxu0 0.0
  %8243 = vmatpush1.msra.mxu0 0.0
  %8244 = vmatprep.subr.mxu0 0.0
  %8245 = vmatpush1.msra.mxu0 0.0
  %8246 = vmatprep.subr.mxu0 0.0
  %8247 = vmatpush1.msra.mxu0 0.0
  %8248 = vmatprep.subr.mxu0 0.0
  %8249 = vmatpush1.msra.mxu0 0.0
  %8250 = vmatprep.subr.mxu0 0.0
  %8251 = vmatpush1.msra.mxu0 0.0
  %8252 = vmatprep.subr.mxu0 0.0
  %8253 = vmatpush1.msra.mxu0 0.0
  %8254 = vmatprep.subr.mxu0 0.0
  %8255 = vmatpush1.msra.mxu0 0.0
  %8256 = vmatprep.subr.mxu0 0.0
  %8257 = vmatpush1.msra.mxu0 0.0
  %8258 = vmatprep.mubr.f32.mxu0 0.0
  %8259 = vmatmul.mubr.f32.gmra.mrb[0].mxu0 %v8147
  %v8260 = vpop.f32.mrb[0].mxu0
  %v8261 = vadd.f32 0.0, %v8260
  %v8262 = vpop.f32.mrb[0].mxu0
  %8263 = vmatprep.mubr.f32.mxu0 0.0
  %8264 = vmatmul.mubr.f32.gmra.mrb[0].mxu0 %v8150
  %v8265 = vpop.f32.mrb[0].mxu0
  %v8266 = vadd.f32 0.0, %v8265
  %v8267 = vpop.f32.mrb[0].mxu0
  %8268 = vmatprep.mubr.f32.mxu0 0.0
  %8269 = vmatmul.mubr.f32.gmra.mrb[0].mxu0 %v8153
  %v8270 = vpop.f32.mrb[0].mxu0
  %v8271 = vadd.f32 0.0, %v8270
  %v8272 = vpop.f32.mrb[0].mxu0
  %8273 = vmatprep.mubr.f32.mxu0 0.0
  %8274 = vmatmul.mubr.f32.gmra.mrb[0].mxu0 %v8156
  %v8275 = vpop.f32.mrb[0].mxu0
  %v8276 = vadd.f32 0.0, %v8275
  %v8277 = vpop.f32.mrb[0].mxu0
  %8278 = vmatprep.mubr.f32.mxu0 0.0
  %8279 = vmatmul.mubr.f32.gmra.mrb[0].mxu0 %v8159
  %v8280 = vpop.f32.mrb[0].mxu0
  %v8281 = vadd.f32 0.0, %v8280
  %v8282 = vpop.f32.mrb[0].mxu0
  %8283 = vmatprep.mubr.f32.mxu0 0.0
  %8284 = vmatmul.mubr.f32.gmra.mrb[0].mxu0 %v8162
  %v8285 = vpop.f32.mrb[0].mxu0
  %v8286 = vadd.f32 0.0, %v8285
  %v8287 = vpop.f32.mrb[0].mxu0
  %8288 = vmatprep.mubr.f32.mxu0 0.0
  %8289 = vmatmul.mubr.f32.gmra.mrb[0].mxu0 %v8165
  %v8290 = vpop.f32.mrb[0].mxu0
  %v8291 = vadd.f32 0.0, %v8290
  %v8292 = vpop.f32.mrb[0].mxu0
  %8293 = vmatprep.mubr.f32.mxu0 0.0
  %8294 = vmatmul.mubr.f32.gmra.mrb[0].mxu0 %v8168
  %v8295 = vpop.f32.mrb[0].mxu0
  %v8296 = vadd.f32 0.0, %v8295
  %v8297 = vpop.f32.mrb[0].mxu0
  %8298 = vmatprep.mubr.f32.mxu0 0.0
  %8299 = vmatmul.mubr.f32.gmra.mrb[0].mxu0 %v8171
  %v8300 = vpop.f32.mrb[0].mxu0
  %v8301 = vadd.f32 0.0, %v8300
  %v8302 = vpop.f32.mrb[0].mxu0
  %8303 = vmatprep.mubr.f32.mxu0 0.0
  %8304 = vmatmul.mubr.f32.gmra.mrb[0].mxu0 %v8174
  %v8305 = vpop.f32.mrb[0].mxu0
  %v8306 = vadd.f32 0.0, %v8305
  %v8307 = vpop.f32.mrb[0].mxu0
  %8308 = vmatprep.mubr.f32.mxu0 0.0
  %8309 = vmatmul.mubr.f32.gmra.mrb[0].mxu0 %v8177
  %v8310 = vpop.f32.mrb[0].mxu0
  %v8311 = vadd.f32 0.0, %v8310
  %v8312 = vpop.f32.mrb[0].mxu0
  %8313 = vmatprep.mubr.f32.mxu0 0.0
  %8314 = vmatmul.mubr.f32.gmra.mrb[0].mxu0 %v8180
  %v8315 = vpop.f32.mrb[0].mxu0
  %v8316 = vadd.f32 0.0, %v8315
  %v8317 = vpop.f32.mrb[0].mxu0
  %8318 = vmatprep.mubr.f32.mxu0 0.0
  %8319 = vmatmul.mubr.f32.gmra.mrb[0].mxu0 %v8183
  %v8320 = vpop.f32.mrb[0].mxu0
  %v8321 = vadd.f32 0.0, %v8320
  %v8322 = vpop.f32.mrb[0].mxu0
  %8323 = vmatprep.mubr.f32.mxu0 0.0
  %8324 = vmatmul.mubr.f32.gmra.mrb[0].mxu0 %v8186
  %v8325 = vpop.f32.mrb[0].mxu0
  %v8326 = vadd.f32 0.0, %v8325
  %v8327 = vpop.f32.mrb[0].mxu0
  %8328 = vmatprep.mubr.f32.mxu0 0.0
  %8329 = vmatmul.mubr.f32.gmra.mrb[0].mxu0 %v8189
  %v8330 = vpop.f32.mrb[0].mxu0
  %v8331 = vadd.f32 0.0, %v8330
  %v8332 = vpop.f32.mrb[0].mxu0
  %8333 = vmatprep.mubr.f32.mxu0 0.0
  %8334 = vmatmul.mubr.f32.gmra.mrb[0].mxu0 %v8192
  %v8335 = vpop.f32.mrb[0].mxu0
  %v8336 = vadd.f32 0.0, %v8335
  %v8337 = vpop.f32.mrb[0].mxu0
  %8338 = vdwg.mxu0
  %v8339 = vadd.f32 %v7197, %v8261
  %v8340 = vadd.f32 %v7198, %v8266
  %v8341 = vadd.f32 %v7199, %v8271
  %v8342 = vadd.f32 %v7200, %v8276
  %v8343 = vadd.f32 %v7201, %v8281
  %v8344 = vadd.f32 %v7202, %v8286
  %v8345 = vadd.f32 %v7203, %v8291
  %v8346 = vadd.f32 %v7204, %v8296
  %v8347 = vadd.f32 %v7205, %v8301
  %v8348 = vadd.f32 %v7206, %v8306
  %v8349 = vadd.f32 %v7207, %v8311
  %v8350 = vadd.f32 %v7208, %v8316
  %v8351 = vadd.f32 %v7209, %v8321
  %v8352 = vadd.f32 %v7210, %v8326
  %v8353 = vadd.f32 %v7211, %v8331
  %v8354 = vadd.f32 %v7212, %v8336
  %v8355 = vld [vmem:[%s6] sm:$0xff]
  %v8356 = vld [vmem:[%s6 + $0x8] sm:$0xff]
  %v8357 = vld [vmem:[%s6 + $0x10] sm:$0xff]
  %v8358 = vld [vmem:[%s6 + $0x18] sm:$0xff]
  %v8359 = vld [vmem:[%s6 + $0x20] sm:$0x1]
  %v8360 = vld [vmem:[%s6 + $0x21] sm:$0x1]
  %v8361 = vld [vmem:[%s6 + $0x22] sm:$0x1]
  %v8362 = vlaneseq
  %v8363 = vshrl.u32 %v8362, 7
  %v8364 = vsub.s32 0, %v8363
  %v8365 = vrot.slane %v8359, %v8364
  %v8367 = vsel %vm439, %v8339, 0
  %v8370 = vsel %vm439, %v8340, 0
  %v8373 = vsel %vm439, %v8341, 0
  %v8376 = vsel %vm439, %v8342, 0
  %v8379 = vsel %vm439, %v8343, 0
  %v8382 = vsel %vm439, %v8344, 0
  %v8385 = vsel %vm439, %v8345, 0
  %v8388 = vsel %vm439, %v8346, 0
  %v8391 = vsel %vm439, %v8347, 0
  %v8394 = vsel %vm439, %v8348, 0
  %v8397 = vsel %vm439, %v8349, 0
  %v8400 = vsel %vm439, %v8350, 0
  %v8403 = vsel %vm439, %v8351, 0
  %v8406 = vsel %vm439, %v8352, 0
  %v8409 = vsel %vm439, %v8353, 0
  %v8412 = vsel %vm439, %v8354, 0
  %8414 = vmatprep.subr.mxu0 0.0
  %8415 = vmatpush1.msra.mxu0 %v8355
  %8416 = vmatprep.subr.mxu0 0.0
  %8417 = vmatpush1.msra.mxu0 %v8356
  %8418 = vmatprep.subr.mxu0 0.0
  %8419 = vmatpush1.msra.mxu0 %v8357
  %8420 = vmatprep.subr.mxu0 0.0
  %8421 = vmatpush1.msra.mxu0 %v8358
  %8422 = vmatprep.subr.mxu0 0.0
  %8423 = vmatpush1.msra.mxu0 0.0
  %8424 = vmatprep.subr.mxu0 0.0
  %8425 = vmatpush1.msra.mxu0 0.0
  %8426 = vmatprep.subr.mxu0 0.0
  %8427 = vmatpush1.msra.mxu0 0.0
  %8428 = vmatprep.subr.mxu0 0.0
  %8429 = vmatpush1.msra.mxu0 0.0
  %8430 = vmatprep.subr.mxu0 0.0
  %8431 = vmatpush1.msra.mxu0 0.0
  %8432 = vmatprep.subr.mxu0 0.0
  %8433 = vmatpush1.msra.mxu0 0.0
  %8434 = vmatprep.subr.mxu0 0.0
  %8435 = vmatpush1.msra.mxu0 0.0
  %8436 = vmatprep.subr.mxu0 0.0
  %8437 = vmatpush1.msra.mxu0 0.0
  %8438 = vmatprep.subr.mxu0 0.0
  %8439 = vmatpush1.msra.mxu0 0.0
  %8440 = vmatprep.subr.mxu0 0.0
  %8441 = vmatpush1.msra.mxu0 0.0
  %8442 = vmatprep.subr.mxu0 0.0
  %8443 = vmatpush1.msra.mxu0 0.0
  %8444 = vmatprep.subr.mxu0 0.0
  %8445 = vmatpush1.msra.mxu0 0.0
  %8446 = vmatprep.subr.mxu0 0.0
  %8447 = vmatpush1.msra.mxu0 0.0
  %8448 = vmatprep.subr.mxu0 0.0
  %8449 = vmatpush1.msra.mxu0 0.0
  %8450 = vmatprep.subr.mxu0 0.0
  %8451 = vmatpush1.msra.mxu0 0.0
  %8452 = vmatprep.subr.mxu0 0.0
  %8453 = vmatpush1.msra.mxu0 0.0
  %8454 = vmatprep.subr.mxu0 0.0
  %8455 = vmatpush1.msra.mxu0 0.0
  %8456 = vmatprep.subr.mxu0 0.0
  %8457 = vmatpush1.msra.mxu0 0.0
  %8458 = vmatprep.subr.mxu0 0.0
  %8459 = vmatpush1.msra.mxu0 0.0
  %8460 = vmatprep.subr.mxu0 0.0
  %8461 = vmatpush1.msra.mxu0 0.0
  %8462 = vmatprep.subr.mxu0 0.0
  %8463 = vmatpush1.msra.mxu0 0.0
  %8464 = vmatprep.subr.mxu0 0.0
  %8465 = vmatpush1.msra.mxu0 0.0
  %8466 = vmatprep.subr.mxu0 0.0
  %8467 = vmatpush1.msra.mxu0 0.0
  %8468 = vmatprep.subr.mxu0 0.0
  %8469 = vmatpush1.msra.mxu0 0.0
  %8470 = vmatprep.subr.mxu0 0.0
  %8471 = vmatpush1.msra.mxu0 0.0
  %8472 = vmatprep.subr.mxu0 0.0
  %8473 = vmatpush1.msra.mxu0 0.0
  %8474 = vmatprep.subr.mxu0 0.0
  %8475 = vmatpush1.msra.mxu0 0.0
  %8476 = vmatprep.subr.mxu0 0.0
  %8477 = vmatpush1.msra.mxu0 0.0
  %8478 = vmatprep.mubr.f32.mxu0 0.0
  %8479 = vmatmul.mubr.f32.gmra.mrb[0].mxu0 %v8367
  %v8480 = vpop.f32.mrb[0].mxu0
  %v8481 = vadd.f32 %v8365, %v8480
  %v8482 = vpop.f32.mrb[0].mxu0
  %8483 = vmatprep.mubr.f32.mxu0 0.0
  %8484 = vmatmul.mubr.f32.gmra.mrb[0].mxu0 %v8370
  %v8485 = vpop.f32.mrb[0].mxu0
  %v8486 = vadd.f32 %v8365, %v8485
  %v8487 = vpop.f32.mrb[0].mxu0
  %8488 = vmatprep.mubr.f32.mxu0 0.0
  %8489 = vmatmul.mubr.f32.gmra.mrb[0].mxu0 %v8373
  %v8490 = vpop.f32.mrb[0].mxu0
  %v8491 = vadd.f32 %v8365, %v8490
  %v8492 = vpop.f32.mrb[0].mxu0
  %8493 = vmatprep.mubr.f32.mxu0 0.0
  %8494 = vmatmul.mubr.f32.gmra.mrb[0].mxu0 %v8376
  %v8495 = vpop.f32.mrb[0].mxu0
  %v8496 = vadd.f32 %v8365, %v8495
  %v8497 = vpop.f32.mrb[0].mxu0
  %8498 = vmatprep.mubr.f32.mxu0 0.0
  %8499 = vmatmul.mubr.f32.gmra.mrb[0].mxu0 %v8379
  %v8500 = vpop.f32.mrb[0].mxu0
  %v8501 = vadd.f32 %v8365, %v8500
  %v8502 = vpop.f32.mrb[0].mxu0
  %8503 = vmatprep.mubr.f32.mxu0 0.0
  %8504 = vmatmul.mubr.f32.gmra.mrb[0].mxu0 %v8382
  %v8505 = vpop.f32.mrb[0].mxu0
  %v8506 = vadd.f32 %v8365, %v8505
  %v8507 = vpop.f32.mrb[0].mxu0
  %8508 = vmatprep.mubr.f32.mxu0 0.0
  %8509 = vmatmul.mubr.f32.gmra.mrb[0].mxu0 %v8385
  %v8510 = vpop.f32.mrb[0].mxu0
  %v8511 = vadd.f32 %v8365, %v8510
  %v8512 = vpop.f32.mrb[0].mxu0
  %8513 = vmatprep.mubr.f32.mxu0 0.0
  %8514 = vmatmul.mubr.f32.gmra.mrb[0].mxu0 %v8388
  %v8515 = vpop.f32.mrb[0].mxu0
  %v8516 = vadd.f32 %v8365, %v8515
  %v8517 = vpop.f32.mrb[0].mxu0
  %8518 = vmatprep.mubr.f32.mxu0 0.0
  %8519 = vmatmul.mubr.f32.gmra.mrb[0].mxu0 %v8391
  %v8520 = vpop.f32.mrb[0].mxu0
  %v8521 = vadd.f32 %v8365, %v8520
  %v8522 = vpop.f32.mrb[0].mxu0
  %8523 = vmatprep.mubr.f32.mxu0 0.0
  %8524 = vmatmul.mubr.f32.gmra.mrb[0].mxu0 %v8394
  %v8525 = vpop.f32.mrb[0].mxu0
  %v8526 = vadd.f32 %v8365, %v8525
  %v8527 = vpop.f32.mrb[0].mxu0
  %8528 = vmatprep.mubr.f32.mxu0 0.0
  %8529 = vmatmul.mubr.f32.gmra.mrb[0].mxu0 %v8397
  %v8530 = vpop.f32.mrb[0].mxu0
  %v8531 = vadd.f32 %v8365, %v8530
  %v8532 = vpop.f32.mrb[0].mxu0
  %8533 = vmatprep.mubr.f32.mxu0 0.0
  %8534 = vmatmul.mubr.f32.gmra.mrb[0].mxu0 %v8400
  %v8535 = vpop.f32.mrb[0].mxu0
  %v8536 = vadd.f32 %v8365, %v8535
  %v8537 = vpop.f32.mrb[0].mxu0
  %8538 = vmatprep.mubr.f32.mxu0 0.0
  %8539 = vmatmul.mubr.f32.gmra.mrb[0].mxu0 %v8403
  %v8540 = vpop.f32.mrb[0].mxu0
  %v8541 = vadd.f32 %v8365, %v8540
  %v8542 = vpop.f32.mrb[0].mxu0
  %8543 = vmatprep.mubr.f32.mxu0 0.0
  %8544 = vmatmul.mubr.f32.gmra.mrb[0].mxu0 %v8406
  %v8545 = vpop.f32.mrb[0].mxu0
  %v8546 = vadd.f32 %v8365, %v8545
  %v8547 = vpop.f32.mrb[0].mxu0
  %8548 = vmatprep.mubr.f32.mxu0 0.0
  %8549 = vmatmul.mubr.f32.gmra.mrb[0].mxu0 %v8409
  %v8550 = vpop.f32.mrb[0].mxu0
  %v8551 = vadd.f32 %v8365, %v8550
  %v8552 = vpop.f32.mrb[0].mxu0
  %8553 = vmatprep.mubr.f32.mxu0 0.0
  %8554 = vmatmul.mubr.f32.gmra.mrb[0].mxu0 %v8412
  %v8555 = vpop.f32.mrb[0].mxu0
  %v8556 = vadd.f32 %v8365, %v8555
  %v8557 = vpop.f32.mrb[0].mxu0
  %8558 = vdwg.mxu0
  %v8559 = vadd.f32 %v8481, %v8486
  %v8560 = vadd.f32 %v8559, %v8491
  %v8561 = vadd.f32 %v8560, %v8496
  %v8562 = vadd.f32 %v8561, %v8501
  %v8563 = vadd.f32 %v8562, %v8506
  %v8564 = vadd.f32 %v8563, %v8511
  %v8565 = vadd.f32 %v8564, %v8516
  %v8566 = vadd.f32 %v8565, %v8521
  %v8567 = vadd.f32 %v8566, %v8526
  %v8568 = vadd.f32 %v8567, %v8531
  %v8569 = vadd.f32 %v8568, %v8536
  %v8570 = vadd.f32 %v8569, %v8541
  %v8571 = vadd.f32 %v8570, %v8546
  %v8572 = vadd.f32 %v8571, %v8551
  %v8573 = vadd.f32 %v8572, %v8556
  %v8574 = vrot.slane %v8573, 4
  %v8575 = vadd.f32 %v8573, %v8574
  %v8576 = vrot.slane %v8575, 2
  %v8577 = vadd.f32 %v8575, %v8576
  %v8578 = vrot.slane %v8577, 1
  %v8579 = vadd.f32 %v8577, %v8578
  %8581 = vrot.lane.b32.xlu0 %v8579, 96
  %v8582 = vpop.permute.xlu0 %8581
  %v8584 = vadd.f32 %v8579, %v8582
  %8585 = vrot.lane.b32.xlu0 %v8579, 64
  %v8586 = vpop.permute.xlu0 %8585
  %v8588 = vadd.f32 %v8584, %v8586
  %8589 = vrot.lane.b32.xlu0 %v8579, 32
  %v8590 = vpop.permute.xlu0 %8589
  %v8592 = vadd.f32 %v8588, %v8590
  %v8593 = vmul.f32 %v8592, 0.001953125
  %8595 = vrot.lane.b32.xlu0 %v8593, 32
  %v8596 = vpop.permute.xlu0 %8595
  %8598 = vrot.lane.b32.xlu0 %v8593, 64
  %v8599 = vpop.permute.xlu0 %8598
  %8601 = vrot.lane.b32.xlu0 %v8593, 96
  %v8602 = vpop.permute.xlu0 %8601
  %v8604 = vsel %vm439, %v8593, %v8596
  %v8605 = vsel %vm55, %v8604, %v8599
  %vm8606 = vcmask 785408
  %v8607 = vsel %vm8606, %v8605, %v8602
  %v8608 = vlaneseq
  %v8609 = vshrl.u32 %v8608, 7
  %v8610 = vsub.s32 0, %v8609
  %v8611 = vrot.slane %v8607, %v8610
  %v8612 = vsub.f32 %v8481, %v8611
  %v8613 = vsub.f32 %v8486, %v8611
  %v8614 = vsub.f32 %v8491, %v8611
  %v8615 = vsub.f32 %v8496, %v8611
  %v8616 = vsub.f32 %v8501, %v8611
  %v8617 = vsub.f32 %v8506, %v8611
  %v8618 = vsub.f32 %v8511, %v8611
  %v8619 = vsub.f32 %v8516, %v8611
  %v8620 = vsub.f32 %v8521, %v8611
  %v8621 = vsub.f32 %v8526, %v8611
  %v8622 = vsub.f32 %v8531, %v8611
  %v8623 = vsub.f32 %v8536, %v8611
  %v8624 = vsub.f32 %v8541, %v8611
  %v8625 = vsub.f32 %v8546, %v8611
  %v8626 = vsub.f32 %v8551, %v8611
  %v8627 = vsub.f32 %v8556, %v8611
  %v8628 = vmul.f32 %v8612, %v8612
  %v8629 = vmul.f32 %v8613, %v8613
  %v8630 = vmul.f32 %v8614, %v8614
  %v8631 = vmul.f32 %v8615, %v8615
  %v8632 = vmul.f32 %v8616, %v8616
  %v8633 = vmul.f32 %v8617, %v8617
  %v8634 = vmul.f32 %v8618, %v8618
  %v8635 = vmul.f32 %v8619, %v8619
  %v8636 = vmul.f32 %v8620, %v8620
  %v8637 = vmul.f32 %v8621, %v8621
  %v8638 = vmul.f32 %v8622, %v8622
  %v8639 = vmul.f32 %v8623, %v8623
  %v8640 = vmul.f32 %v8624, %v8624
  %v8641 = vmul.f32 %v8625, %v8625
  %v8642 = vmul.f32 %v8626, %v8626
  %v8643 = vmul.f32 %v8627, %v8627
  %v8644 = vadd.f32 %v8628, %v8629
  %v8645 = vadd.f32 %v8644, %v8630
  %v8646 = vadd.f32 %v8645, %v8631
  %v8647 = vadd.f32 %v8646, %v8632
  %v8648 = vadd.f32 %v8647, %v8633
  %v8649 = vadd.f32 %v8648, %v8634
  %v8650 = vadd.f32 %v8649, %v8635
  %v8651 = vadd.f32 %v8650, %v8636
  %v8652 = vadd.f32 %v8651, %v8637
  %v8653 = vadd.f32 %v8652, %v8638
  %v8654 = vadd.f32 %v8653, %v8639
  %v8655 = vadd.f32 %v8654, %v8640
  %v8656 = vadd.f32 %v8655, %v8641
  %v8657 = vadd.f32 %v8656, %v8642
  %v8658 = vadd.f32 %v8657, %v8643
  %v8659 = vrot.slane %v8658, 4
  %v8660 = vadd.f32 %v8658, %v8659
  %v8661 = vrot.slane %v8660, 2
  %v8662 = vadd.f32 %v8660, %v8661
  %v8663 = vrot.slane %v8662, 1
  %v8664 = vadd.f32 %v8662, %v8663
  %8666 = vrot.lane.b32.xlu0 %v8664, 96
  %v8667 = vpop.permute.xlu0 %8666
  %v8669 = vadd.f32 %v8664, %v8667
  %8670 = vrot.lane.b32.xlu0 %v8664, 64
  %v8671 = vpop.permute.xlu0 %8670
  %v8673 = vadd.f32 %v8669, %v8671
  %8674 = vrot.lane.b32.xlu0 %v8664, 32
  %v8675 = vpop.permute.xlu0 %8674
  %v8677 = vadd.f32 %v8673, %v8675
  %v8678 = vmul.f32 %v8677, 0.001953125
  %v8679 = vadd.f32 %v8678, 1e-05
  %v8680 = vrsqrt.pop %v8679
  %v8681 = vmul.f32 %v8360, %v8680
  %v8682 = vmul.f32 %v8593, %v8681
  %v8683 = vsub.f32 %v8361, %v8682
  %8685 = vrot.lane.b32.xlu0 %v8681, 32
  %v8686 = vpop.permute.xlu0 %8685
  %8688 = vrot.lane.b32.xlu0 %v8681, 64
  %v8689 = vpop.permute.xlu0 %8688
  %8691 = vrot.lane.b32.xlu0 %v8681, 96
  %v8692 = vpop.permute.xlu0 %8691
  %v8694 = vsel %vm439, %v8681, %v8686
  %v8695 = vsel %vm55, %v8694, %v8689
  %v8696 = vsel %vm8606, %v8695, %v8692
  %8698 = vrot.lane.b32.xlu0 %v8683, 32
  %v8699 = vpop.permute.xlu0 %8698
  %8701 = vrot.lane.b32.xlu0 %v8683, 64
  %v8702 = vpop.permute.xlu0 %8701
  %8704 = vrot.lane.b32.xlu0 %v8683, 96
  %v8705 = vpop.permute.xlu0 %8704
  %v8707 = vsel %vm439, %v8683, %v8699
  %v8708 = vsel %vm55, %v8707, %v8702
  %v8709 = vsel %vm8606, %v8708, %v8705
  %v8710 = vlaneseq
  %v8711 = vshrl.u32 %v8710, 7
  %v8712 = vsub.s32 0, %v8711
  %v8713 = vrot.slane %v8696, %v8712
  %v8714 = vmul.f32 %v8481, %v8713
  %v8715 = vmul.f32 %v8486, %v8713
  %v8716 = vmul.f32 %v8491, %v8713
  %v8717 = vmul.f32 %v8496, %v8713
  %v8718 = vmul.f32 %v8501, %v8713
  %v8719 = vmul.f32 %v8506, %v8713
  %v8720 = vmul.f32 %v8511, %v8713
  %v8721 = vmul.f32 %v8516, %v8713
  %v8722 = vmul.f32 %v8521, %v8713
  %v8723 = vmul.f32 %v8526, %v8713
  %v8724 = vmul.f32 %v8531, %v8713
  %v8725 = vmul.f32 %v8536, %v8713
  %v8726 = vmul.f32 %v8541, %v8713
  %v8727 = vmul.f32 %v8546, %v8713
  %v8728 = vmul.f32 %v8551, %v8713
  %v8729 = vmul.f32 %v8556, %v8713
  %v8730 = vlaneseq
  %v8731 = vshrl.u32 %v8730, 7
  %v8732 = vsub.s32 0, %v8731
  %v8733 = vrot.slane %v8709, %v8732
  %v8734 = vadd.f32 %v8714, %v8733
  %v8735 = vadd.f32 %v8715, %v8733
  %v8736 = vadd.f32 %v8716, %v8733
  %v8737 = vadd.f32 %v8717, %v8733
  %v8738 = vadd.f32 %v8718, %v8733
  %v8739 = vadd.f32 %v8719, %v8733
  %v8740 = vadd.f32 %v8720, %v8733
  %v8741 = vadd.f32 %v8721, %v8733
  %v8742 = vadd.f32 %v8722, %v8733
  %v8743 = vadd.f32 %v8723, %v8733
  %v8744 = vadd.f32 %v8724, %v8733
  %v8745 = vadd.f32 %v8725, %v8733
  %v8746 = vadd.f32 %v8726, %v8733
  %v8747 = vadd.f32 %v8727, %v8733
  %v8748 = vadd.f32 %v8728, %v8733
  %v8749 = vadd.f32 %v8729, %v8733
  %v8750 = vmul.f32 %v8734, 0.5
  %v8751 = vmul.f32 %v8735, 0.5
  %v8752 = vmul.f32 %v8736, 0.5
  %v8753 = vmul.f32 %v8737, 0.5
  %v8754 = vmul.f32 %v8738, 0.5
  %v8755 = vmul.f32 %v8739, 0.5
  %v8756 = vmul.f32 %v8740, 0.5
  %v8757 = vmul.f32 %v8741, 0.5
  %v8758 = vmul.f32 %v8742, 0.5
  %v8759 = vmul.f32 %v8743, 0.5
  %v8760 = vmul.f32 %v8744, 0.5
  %v8761 = vmul.f32 %v8745, 0.5
  %v8762 = vmul.f32 %v8746, 0.5
  %v8763 = vmul.f32 %v8747, 0.5
  %v8764 = vmul.f32 %v8748, 0.5
  %v8765 = vmul.f32 %v8749, 0.5
  %v8766 = vmul.f32 %v8734, 0.70710677
  %v8767 = vmul.f32 %v8735, 0.70710677
  %v8768 = vmul.f32 %v8736, 0.70710677
  %v8769 = vmul.f32 %v8737, 0.70710677
  %v8770 = vmul.f32 %v8738, 0.70710677
  %v8771 = vmul.f32 %v8739, 0.70710677
  %v8772 = vmul.f32 %v8740, 0.70710677
  %v8773 = vmul.f32 %v8741, 0.70710677
  %v8774 = vmul.f32 %v8742, 0.70710677
  %v8775 = vmul.f32 %v8743, 0.70710677
  %v8776 = vmul.f32 %v8744, 0.70710677
  %v8777 = vmul.f32 %v8745, 0.70710677
  %v8778 = vmul.f32 %v8746, 0.70710677
  %v8779 = vmul.f32 %v8747, 0.70710677
  %v8780 = vmul.f32 %v8748, 0.70710677
  %v8781 = vmul.f32 %v8749, 0.70710677
  %vm8782 = vcmp.ge.f32.partialorder %v8766, 0.0
  %vm8783 = vcmp.ge.f32.partialorder %v8767, 0.0
  %vm8784 = vcmp.ge.f32.partialorder %v8768, 0.0
  %vm8785 = vcmp.ge.f32.partialorder %v8769, 0.0
  %vm8786 = vcmp.ge.f32.partialorder %v8770, 0.0
  %vm8787 = vcmp.ge.f32.partialorder %v8771, 0.0
  %vm8788 = vcmp.ge.f32.partialorder %v8772, 0.0
  %vm8789 = vcmp.ge.f32.partialorder %v8773, 0.0
  %vm8790 = vcmp.ge.f32.partialorder %v8774, 0.0
  %vm8791 = vcmp.ge.f32.partialorder %v8775, 0.0
  %vm8792 = vcmp.ge.f32.partialorder %v8776, 0.0
  %vm8793 = vcmp.ge.f32.partialorder %v8777, 0.0
  %vm8794 = vcmp.ge.f32.partialorder %v8778, 0.0
  %vm8795 = vcmp.ge.f32.partialorder %v8779, 0.0
  %vm8796 = vcmp.ge.f32.partialorder %v8780, 0.0
  %vm8797 = vcmp.ge.f32.partialorder %v8781, 0.0
  %v8798 = vsel %vm8782, 1.0, -1.0
  %v8799 = vsel %vm8783, 1.0, -1.0
  %v8800 = vsel %vm8784, 1.0, -1.0
  %v8801 = vsel %vm8785, 1.0, -1.0
  %v8802 = vsel %vm8786, 1.0, -1.0
  %v8803 = vsel %vm8787, 1.0, -1.0
  %v8804 = vsel %vm8788, 1.0, -1.0
  %v8805 = vsel %vm8789, 1.0, -1.0
  %v8806 = vsel %vm8790, 1.0, -1.0
  %v8807 = vsel %vm8791, 1.0, -1.0
  %v8808 = vsel %vm8792, 1.0, -1.0
  %v8809 = vsel %vm8793, 1.0, -1.0
  %v8810 = vsel %vm8794, 1.0, -1.0
  %v8811 = vsel %vm8795, 1.0, -1.0
  %v8812 = vsel %vm8796, 1.0, -1.0
  %v8813 = vsel %vm8797, 1.0, -1.0
  %v8814 = vand.u32 2147483647, %v8766
  %v8815 = vand.u32 2147483647, %v8767
  %v8816 = vand.u32 2147483647, %v8768
  %v8817 = vand.u32 2147483647, %v8769
  %v8818 = vand.u32 2147483647, %v8770
  %v8819 = vand.u32 2147483647, %v8771
  %v8820 = vand.u32 2147483647, %v8772
  %v8821 = vand.u32 2147483647, %v8773
  %v8822 = vand.u32 2147483647, %v8774
  %v8823 = vand.u32 2147483647, %v8775
  %v8824 = vand.u32 2147483647, %v8776
  %v8825 = vand.u32 2147483647, %v8777
  %v8826 = vand.u32 2147483647, %v8778
  %v8827 = vand.u32 2147483647, %v8779
  %v8828 = vand.u32 2147483647, %v8780
  %v8829 = vand.u32 2147483647, %v8781
  %v8830 = vmul.f32 %v8814, 0.3275911
  %v8831 = vmul.f32 %v8815, 0.3275911
  %v8832 = vmul.f32 %v8816, 0.3275911
  %v8833 = vmul.f32 %v8817, 0.3275911
  %v8834 = vmul.f32 %v8818, 0.3275911
  %v8835 = vmul.f32 %v8819, 0.3275911
  %v8836 = vmul.f32 %v8820, 0.3275911
  %v8837 = vmul.f32 %v8821, 0.3275911
  %v8838 = vmul.f32 %v8822, 0.3275911
  %v8839 = vmul.f32 %v8823, 0.3275911
  %v8840 = vmul.f32 %v8824, 0.3275911
  %v8841 = vmul.f32 %v8825, 0.3275911
  %v8842 = vmul.f32 %v8826, 0.3275911
  %v8843 = vmul.f32 %v8827, 0.3275911
  %v8844 = vmul.f32 %v8828, 0.3275911
  %v8845 = vmul.f32 %v8829, 0.3275911
  %v8846 = vadd.f32 %v8830, 1.0
  %v8847 = vadd.f32 %v8831, 1.0
  %v8848 = vadd.f32 %v8832, 1.0
  %v8849 = vadd.f32 %v8833, 1.0
  %v8850 = vadd.f32 %v8834, 1.0
  %v8851 = vadd.f32 %v8835, 1.0
  %v8852 = vadd.f32 %v8836, 1.0
  %v8853 = vadd.f32 %v8837, 1.0
  %v8854 = vadd.f32 %v8838, 1.0
  %v8855 = vadd.f32 %v8839, 1.0
  %v8856 = vadd.f32 %v8840, 1.0
  %v8857 = vadd.f32 %v8841, 1.0
  %v8858 = vadd.f32 %v8842, 1.0
  %v8859 = vadd.f32 %v8843, 1.0
  %v8860 = vadd.f32 %v8844, 1.0
  %v8861 = vadd.f32 %v8845, 1.0
  %v8862 = vrcp.pop %v8846
  %v8863 = vrcp.pop %v8847
  %v8864 = vrcp.pop %v8848
  %v8865 = vrcp.pop %v8849
  %v8866 = vrcp.pop %v8850
  %v8867 = vrcp.pop %v8851
  %v8868 = vrcp.pop %v8852
  %v8869 = vrcp.pop %v8853
  %v8870 = vrcp.pop %v8854
  %v8871 = vrcp.pop %v8855
  %v8872 = vrcp.pop %v8856
  %v8873 = vrcp.pop %v8857
  %v8874 = vrcp.pop %v8858
  %v8875 = vrcp.pop %v8859
  %v8876 = vrcp.pop %v8860
  %v8877 = vrcp.pop %v8861
  %v8878 = vmul.f32 %v8846, %v8862
  %v8879 = vmul.f32 %v8847, %v8863
  %v8880 = vmul.f32 %v8848, %v8864
  %v8881 = vmul.f32 %v8849, %v8865
  %v8882 = vmul.f32 %v8850, %v8866
  %v8883 = vmul.f32 %v8851, %v8867
  %v8884 = vmul.f32 %v8852, %v8868
  %v8885 = vmul.f32 %v8853, %v8869
  %v8886 = vmul.f32 %v8854, %v8870
  %v8887 = vmul.f32 %v8855, %v8871
  %v8888 = vmul.f32 %v8856, %v8872
  %v8889 = vmul.f32 %v8857, %v8873
  %v8890 = vmul.f32 %v8858, %v8874
  %v8891 = vmul.f32 %v8859, %v8875
  %v8892 = vmul.f32 %v8860, %v8876
  %v8893 = vmul.f32 %v8861, %v8877
  %v8894 = vsub.f32 2.0, %v8878
  %v8895 = vsub.f32 2.0, %v8879
  %v8896 = vsub.f32 2.0, %v8880
  %v8897 = vsub.f32 2.0, %v8881
  %v8898 = vsub.f32 2.0, %v8882
  %v8899 = vsub.f32 2.0, %v8883
  %v8900 = vsub.f32 2.0, %v8884
  %v8901 = vsub.f32 2.0, %v8885
  %v8902 = vsub.f32 2.0, %v8886
  %v8903 = vsub.f32 2.0, %v8887
  %v8904 = vsub.f32 2.0, %v8888
  %v8905 = vsub.f32 2.0, %v8889
  %v8906 = vsub.f32 2.0, %v8890
  %v8907 = vsub.f32 2.0, %v8891
  %v8908 = vsub.f32 2.0, %v8892
  %v8909 = vsub.f32 2.0, %v8893
  %v8910 = vmul.f32 %v8862, %v8894
  %v8911 = vmul.f32 %v8863, %v8895
  %v8912 = vmul.f32 %v8864, %v8896
  %v8913 = vmul.f32 %v8865, %v8897
  %v8914 = vmul.f32 %v8866, %v8898
  %v8915 = vmul.f32 %v8867, %v8899
  %v8916 = vmul.f32 %v8868, %v8900
  %v8917 = vmul.f32 %v8869, %v8901
  %v8918 = vmul.f32 %v8870, %v8902
  %v8919 = vmul.f32 %v8871, %v8903
  %v8920 = vmul.f32 %v8872, %v8904
  %v8921 = vmul.f32 %v8873, %v8905
  %v8922 = vmul.f32 %v8874, %v8906
  %v8923 = vmul.f32 %v8875, %v8907
  %v8924 = vmul.f32 %v8876, %v8908
  %v8925 = vmul.f32 %v8877, %v8909
  %v8926 = vmul.f32 %v8910, 1.0614054
  %v8927 = vmul.f32 %v8911, 1.0614054
  %v8928 = vmul.f32 %v8912, 1.0614054
  %v8929 = vmul.f32 %v8913, 1.0614054
  %v8930 = vmul.f32 %v8914, 1.0614054
  %v8931 = vmul.f32 %v8915, 1.0614054
  %v8932 = vmul.f32 %v8916, 1.0614054
  %v8933 = vmul.f32 %v8917, 1.0614054
  %v8934 = vmul.f32 %v8918, 1.0614054
  %v8935 = vmul.f32 %v8919, 1.0614054
  %v8936 = vmul.f32 %v8920, 1.0614054
  %v8937 = vmul.f32 %v8921, 1.0614054
  %v8938 = vmul.f32 %v8922, 1.0614054
  %v8939 = vmul.f32 %v8923, 1.0614054
  %v8940 = vmul.f32 %v8924, 1.0614054
  %v8941 = vmul.f32 %v8925, 1.0614054
  %v8942 = vadd.f32 %v8926, -1.4531521
  %v8943 = vadd.f32 %v8927, -1.4531521
  %v8944 = vadd.f32 %v8928, -1.4531521
  %v8945 = vadd.f32 %v8929, -1.4531521
  %v8946 = vadd.f32 %v8930, -1.4531521
  %v8947 = vadd.f32 %v8931, -1.4531521
  %v8948 = vadd.f32 %v8932, -1.4531521
  %v8949 = vadd.f32 %v8933, -1.4531521
  %v8950 = vadd.f32 %v8934, -1.4531521
  %v8951 = vadd.f32 %v8935, -1.4531521
  %v8952 = vadd.f32 %v8936, -1.4531521
  %v8953 = vadd.f32 %v8937, -1.4531521
  %v8954 = vadd.f32 %v8938, -1.4531521
  %v8955 = vadd.f32 %v8939, -1.4531521
  %v8956 = vadd.f32 %v8940, -1.4531521
  %v8957 = vadd.f32 %v8941, -1.4531521
  %v8958 = vmul.f32 %v8942, %v8910
  %v8959 = vmul.f32 %v8943, %v8911
  %v8960 = vmul.f32 %v8944, %v8912
  %v8961 = vmul.f32 %v8945, %v8913
  %v8962 = vmul.f32 %v8946, %v8914
  %v8963 = vmul.f32 %v8947, %v8915
  %v8964 = vmul.f32 %v8948, %v8916
  %v8965 = vmul.f32 %v8949, %v8917
  %v8966 = vmul.f32 %v8950, %v8918
  %v8967 = vmul.f32 %v8951, %v8919
  %v8968 = vmul.f32 %v8952, %v8920
  %v8969 = vmul.f32 %v8953, %v8921
  %v8970 = vmul.f32 %v8954, %v8922
  %v8971 = vmul.f32 %v8955, %v8923
  %v8972 = vmul.f32 %v8956, %v8924
  %v8973 = vmul.f32 %v8957, %v8925
  %v8974 = vadd.f32 %v8958, 1.4214138
  %v8975 = vadd.f32 %v8959, 1.4214138
  %v8976 = vadd.f32 %v8960, 1.4214138
  %v8977 = vadd.f32 %v8961, 1.4214138
  %v8978 = vadd.f32 %v8962, 1.4214138
  %v8979 = vadd.f32 %v8963, 1.4214138
  %v8980 = vadd.f32 %v8964, 1.4214138
  %v8981 = vadd.f32 %v8965, 1.4214138
  %v8982 = vadd.f32 %v8966, 1.4214138
  %v8983 = vadd.f32 %v8967, 1.4214138
  %v8984 = vadd.f32 %v8968, 1.4214138
  %v8985 = vadd.f32 %v8969, 1.4214138
  %v8986 = vadd.f32 %v8970, 1.4214138
  %v8987 = vadd.f32 %v8971, 1.4214138
  %v8988 = vadd.f32 %v8972, 1.4214138
  %v8989 = vadd.f32 %v8973, 1.4214138
  %v8990 = vmul.f32 %v8974, %v8910
  %v8991 = vmul.f32 %v8975, %v8911
  %v8992 = vmul.f32 %v8976, %v8912
  %v8993 = vmul.f32 %v8977, %v8913
  %v8994 = vmul.f32 %v8978, %v8914
  %v8995 = vmul.f32 %v8979, %v8915
  %v8996 = vmul.f32 %v8980, %v8916
  %v8997 = vmul.f32 %v8981, %v8917
  %v8998 = vmul.f32 %v8982, %v8918
  %v8999 = vmul.f32 %v8983, %v8919
  %v9000 = vmul.f32 %v8984, %v8920
  %v9001 = vmul.f32 %v8985, %v8921
  %v9002 = vmul.f32 %v8986, %v8922
  %v9003 = vmul.f32 %v8987, %v8923
  %v9004 = vmul.f32 %v8988, %v8924
  %v9005 = vmul.f32 %v8989, %v8925
  %v9006 = vadd.f32 %v8990, -0.28449672
  %v9007 = vadd.f32 %v8991, -0.28449672
  %v9008 = vadd.f32 %v8992, -0.28449672
  %v9009 = vadd.f32 %v8993, -0.28449672
  %v9010 = vadd.f32 %v8994, -0.28449672
  %v9011 = vadd.f32 %v8995, -0.28449672
  %v9012 = vadd.f32 %v8996, -0.28449672
  %v9013 = vadd.f32 %v8997, -0.28449672
  %v9014 = vadd.f32 %v8998, -0.28449672
  %v9015 = vadd.f32 %v8999, -0.28449672
  %v9016 = vadd.f32 %v9000, -0.28449672
  %v9017 = vadd.f32 %v9001, -0.28449672
  %v9018 = vadd.f32 %v9002, -0.28449672
  %v9019 = vadd.f32 %v9003, -0.28449672
  %v9020 = vadd.f32 %v9004, -0.28449672
  %v9021 = vadd.f32 %v9005, -0.28449672
  %v9022 = vmul.f32 %v9006, %v8910
  %v9023 = vmul.f32 %v9007, %v8911
  %v9024 = vmul.f32 %v9008, %v8912
  %v9025 = vmul.f32 %v9009, %v8913
  %v9026 = vmul.f32 %v9010, %v8914
  %v9027 = vmul.f32 %v9011, %v8915
  %v9028 = vmul.f32 %v9012, %v8916
  %v9029 = vmul.f32 %v9013, %v8917
  %v9030 = vmul.f32 %v9014, %v8918
  %v9031 = vmul.f32 %v9015, %v8919
  %v9032 = vmul.f32 %v9016, %v8920
  %v9033 = vmul.f32 %v9017, %v8921
  %v9034 = vmul.f32 %v9018, %v8922
  %v9035 = vmul.f32 %v9019, %v8923
  %v9036 = vmul.f32 %v9020, %v8924
  %v9037 = vmul.f32 %v9021, %v8925
  %v9038 = vadd.f32 %v9022, 0.2548296
  %v9039 = vadd.f32 %v9023, 0.2548296
  %v9040 = vadd.f32 %v9024, 0.2548296
  %v9041 = vadd.f32 %v9025, 0.2548296
  %v9042 = vadd.f32 %v9026, 0.2548296
  %v9043 = vadd.f32 %v9027, 0.2548296
  %v9044 = vadd.f32 %v9028, 0.2548296
  %v9045 = vadd.f32 %v9029, 0.2548296
  %v9046 = vadd.f32 %v9030, 0.2548296
  %v9047 = vadd.f32 %v9031, 0.2548296
  %v9048 = vadd.f32 %v9032, 0.2548296
  %v9049 = vadd.f32 %v9033, 0.2548296
  %v9050 = vadd.f32 %v9034, 0.2548296
  %v9051 = vadd.f32 %v9035, 0.2548296
  %v9052 = vadd.f32 %v9036, 0.2548296
  %v9053 = vadd.f32 %v9037, 0.2548296
  %v9054 = vmul.f32 %v9038, %v8910
  %v9055 = vmul.f32 %v9039, %v8911
  %v9056 = vmul.f32 %v9040, %v8912
  %v9057 = vmul.f32 %v9041, %v8913
  %v9058 = vmul.f32 %v9042, %v8914
  %v9059 = vmul.f32 %v9043, %v8915
  %v9060 = vmul.f32 %v9044, %v8916
  %v9061 = vmul.f32 %v9045, %v8917
  %v9062 = vmul.f32 %v9046, %v8918
  %v9063 = vmul.f32 %v9047, %v8919
  %v9064 = vmul.f32 %v9048, %v8920
  %v9065 = vmul.f32 %v9049, %v8921
  %v9066 = vmul.f32 %v9050, %v8922
  %v9067 = vmul.f32 %v9051, %v8923
  %v9068 = vmul.f32 %v9052, %v8924
  %v9069 = vmul.f32 %v9053, %v8925
  %v9070 = vsub.f32 0.0, %v8814
  %v9071 = vsub.f32 0.0, %v8815
  %v9072 = vsub.f32 0.0, %v8816
  %v9073 = vsub.f32 0.0, %v8817
  %v9074 = vsub.f32 0.0, %v8818
  %v9075 = vsub.f32 0.0, %v8819
  %v9076 = vsub.f32 0.0, %v8820
  %v9077 = vsub.f32 0.0, %v8821
  %v9078 = vsub.f32 0.0, %v8822
  %v9079 = vsub.f32 0.0, %v8823
  %v9080 = vsub.f32 0.0, %v8824
  %v9081 = vsub.f32 0.0, %v8825
  %v9082 = vsub.f32 0.0, %v8826
  %v9083 = vsub.f32 0.0, %v8827
  %v9084 = vsub.f32 0.0, %v8828
  %v9085 = vsub.f32 0.0, %v8829
  %v9086 = vmul.f32 %v9070, %v8814
  %v9087 = vmul.f32 %v9071, %v8815
  %v9088 = vmul.f32 %v9072, %v8816
  %v9089 = vmul.f32 %v9073, %v8817
  %v9090 = vmul.f32 %v9074, %v8818
  %v9091 = vmul.f32 %v9075, %v8819
  %v9092 = vmul.f32 %v9076, %v8820
  %v9093 = vmul.f32 %v9077, %v8821
  %v9094 = vmul.f32 %v9078, %v8822
  %v9095 = vmul.f32 %v9079, %v8823
  %v9096 = vmul.f32 %v9080, %v8824
  %v9097 = vmul.f32 %v9081, %v8825
  %v9098 = vmul.f32 %v9082, %v8826
  %v9099 = vmul.f32 %v9083, %v8827
  %v9100 = vmul.f32 %v9084, %v8828
  %v9101 = vmul.f32 %v9085, %v8829
  %v9102 = vmul.f32 %v9086, 1.442695
  %v9103 = vpow.pop %v9102
  %v9104 = vmul.f32 %v9087, 1.442695
  %v9105 = vpow.pop %v9104
  %v9106 = vmul.f32 %v9088, 1.442695
  %v9107 = vpow.pop %v9106
  %v9108 = vmul.f32 %v9089, 1.442695
  %v9109 = vpow.pop %v9108
  %v9110 = vmul.f32 %v9090, 1.442695
  %v9111 = vpow.pop %v9110
  %v9112 = vmul.f32 %v9091, 1.442695
  %v9113 = vpow.pop %v9112
  %v9114 = vmul.f32 %v9092, 1.442695
  %v9115 = vpow.pop %v9114
  %v9116 = vmul.f32 %v9093, 1.442695
  %v9117 = vpow.pop %v9116
  %v9118 = vmul.f32 %v9094, 1.442695
  %v9119 = vpow.pop %v9118
  %v9120 = vmul.f32 %v9095, 1.442695
  %v9121 = vpow.pop %v9120
  %v9122 = vmul.f32 %v9096, 1.442695
  %v9123 = vpow.pop %v9122
  %v9124 = vmul.f32 %v9097, 1.442695
  %v9125 = vpow.pop %v9124
  %v9126 = vmul.f32 %v9098, 1.442695
  %v9127 = vpow.pop %v9126
  %v9128 = vmul.f32 %v9099, 1.442695
  %v9129 = vpow.pop %v9128
  %v9130 = vmul.f32 %v9100, 1.442695
  %v9131 = vpow.pop %v9130
  %v9132 = vmul.f32 %v9101, 1.442695
  %v9133 = vpow.pop %v9132
  %v9134 = vmul.f32 %v9054, %v9103
  %v9135 = vmul.f32 %v9055, %v9105
  %v9136 = vmul.f32 %v9056, %v9107
  %v9137 = vmul.f32 %v9057, %v9109
  %v9138 = vmul.f32 %v9058, %v9111
  %v9139 = vmul.f32 %v9059, %v9113
  %v9140 = vmul.f32 %v9060, %v9115
  %v9141 = vmul.f32 %v9061, %v9117
  %v9142 = vmul.f32 %v9062, %v9119
  %v9143 = vmul.f32 %v9063, %v9121
  %v9144 = vmul.f32 %v9064, %v9123
  %v9145 = vmul.f32 %v9065, %v9125
  %v9146 = vmul.f32 %v9066, %v9127
  %v9147 = vmul.f32 %v9067, %v9129
  %v9148 = vmul.f32 %v9068, %v9131
  %v9149 = vmul.f32 %v9069, %v9133
  %v9150 = vsub.f32 1.0, %v9134
  %v9151 = vsub.f32 1.0, %v9135
  %v9152 = vsub.f32 1.0, %v9136
  %v9153 = vsub.f32 1.0, %v9137
  %v9154 = vsub.f32 1.0, %v9138
  %v9155 = vsub.f32 1.0, %v9139
  %v9156 = vsub.f32 1.0, %v9140
  %v9157 = vsub.f32 1.0, %v9141
  %v9158 = vsub.f32 1.0, %v9142
  %v9159 = vsub.f32 1.0, %v9143
  %v9160 = vsub.f32 1.0, %v9144
  %v9161 = vsub.f32 1.0, %v9145
  %v9162 = vsub.f32 1.0, %v9146
  %v9163 = vsub.f32 1.0, %v9147
  %v9164 = vsub.f32 1.0, %v9148
  %v9165 = vsub.f32 1.0, %v9149
  %v9166 = vmul.f32 %v8798, %v9150
  %v9167 = vmul.f32 %v8799, %v9151
  %v9168 = vmul.f32 %v8800, %v9152
  %v9169 = vmul.f32 %v8801, %v9153
  %v9170 = vmul.f32 %v8802, %v9154
  %v9171 = vmul.f32 %v8803, %v9155
  %v9172 = vmul.f32 %v8804, %v9156
  %v9173 = vmul.f32 %v8805, %v9157
  %v9174 = vmul.f32 %v8806, %v9158
  %v9175 = vmul.f32 %v8807, %v9159
  %v9176 = vmul.f32 %v8808, %v9160
  %v9177 = vmul.f32 %v8809, %v9161
  %v9178 = vmul.f32 %v8810, %v9162
  %v9179 = vmul.f32 %v8811, %v9163
  %v9180 = vmul.f32 %v8812, %v9164
  %v9181 = vmul.f32 %v8813, %v9165
  %v9182 = vadd.f32 %v9166, 1.0
  %v9183 = vadd.f32 %v9167, 1.0
  %v9184 = vadd.f32 %v9168, 1.0
  %v9185 = vadd.f32 %v9169, 1.0
  %v9186 = vadd.f32 %v9170, 1.0
  %v9187 = vadd.f32 %v9171, 1.0
  %v9188 = vadd.f32 %v9172, 1.0
  %v9189 = vadd.f32 %v9173, 1.0
  %v9190 = vadd.f32 %v9174, 1.0
  %v9191 = vadd.f32 %v9175, 1.0
  %v9192 = vadd.f32 %v9176, 1.0
  %v9193 = vadd.f32 %v9177, 1.0
  %v9194 = vadd.f32 %v9178, 1.0
  %v9195 = vadd.f32 %v9179, 1.0
  %v9196 = vadd.f32 %v9180, 1.0
  %v9197 = vadd.f32 %v9181, 1.0
  %v9198 = vmul.f32 %v8750, %v9182
  %v9199 = vmul.f32 %v8751, %v9183
  %v9200 = vmul.f32 %v8752, %v9184
  %v9201 = vmul.f32 %v8753, %v9185
  %v9202 = vmul.f32 %v8754, %v9186
  %v9203 = vmul.f32 %v8755, %v9187
  %v9204 = vmul.f32 %v8756, %v9188
  %v9205 = vmul.f32 %v8757, %v9189
  %v9206 = vmul.f32 %v8758, %v9190
  %v9207 = vmul.f32 %v8759, %v9191
  %v9208 = vmul.f32 %v8760, %v9192
  %v9209 = vmul.f32 %v8761, %v9193
  %v9210 = vmul.f32 %v8762, %v9194
  %v9211 = vmul.f32 %v8763, %v9195
  %v9212 = vmul.f32 %v8764, %v9196
  %v9213 = vmul.f32 %v8765, %v9197
  %9214 = vst [vmem:[%s7] sm:$0xff] %v9198
  %9215 = vst [vmem:[%s7 + $0x8] sm:$0xff] %v9199
  %9216 = vst [vmem:[%s7 + $0x10] sm:$0xff] %v9200
  %9217 = vst [vmem:[%s7 + $0x18] sm:$0xff] %v9201
  %9218 = vst [vmem:[%s7 + $0x20] sm:$0xff] %v9202
  %9219 = vst [vmem:[%s7 + $0x28] sm:$0xff] %v9203
  %9220 = vst [vmem:[%s7 + $0x30] sm:$0xff] %v9204
  %9221 = vst [vmem:[%s7 + $0x38] sm:$0xff] %v9205
  %9222 = vst [vmem:[%s7 + $0x40] sm:$0xff] %v9206
  %9223 = vst [vmem:[%s7 + $0x48] sm:$0xff] %v9207
  %9224 = vst [vmem:[%s7 + $0x50] sm:$0xff] %v9208
  %9225 = vst [vmem:[%s7 + $0x58] sm:$0xff] %v9209
  %9226 = vst [vmem:[%s7 + $0x60] sm:$0xff] %v9210
  %9227 = vst [vmem:[%s7 + $0x68] sm:$0xff] %v9211
  %9228 = vst [vmem:[%s7 + $0x70] sm:$0xff] %v9212
  %9229 = vst [vmem:[%s7 + $0x78] sm:$0xff] %v9213
  // Predicated region
  $region30: #{_lambda_.1} parent=0 // pred_check
    _
  $region31: #{_lambda_.1} parent=0 // pred_check_branch
    %9231 = sbr.rel (0) target = $region33
  $region32: #{_lambda_.1} parent=0 // pred_region
    _
  $region33: #{_lambda_.1} parent=0 // pred_fallthru
    _
  // Predicated region
  $region34: #{_lambda_.1} parent=0 // pred_check
    _
  $region35: #{_lambda_.1} parent=0 // pred_check_branch
    %9233 = sbr.rel (0) target = $region37
  $region36: #{_lambda_.1} parent=0 // pred_region
    _
  $region37: #{_lambda_.1} parent=0 // pred_fallthru
    _

</llo_original>
